<compile_context>
chip_gen: v6e
topology: v6e:2x2x1
jax: 0.10.0
libtpu: 0.0.40
codegen_flags: <defaults>
</compile_context>

<pallas_src>
import functools

import numpy as np
import jax
import jax.numpy as jnp
from jax import lax
from jax.experimental import pallas as pl
from jax.experimental.pallas import tpu as pltpu

# ----------------------- hyper-parameters (parameters.*) -----------------------
FEATURE_SIZE = 80      # parameters.feature_size (forced in __init__)
KERNEL_SIZE = 16       # parameters.kernel_size  -> VGG3L channels 4,4,8,8,16,16
EMBEDDING_SIZE = 32    # parameters.embedding_size
NUM_ACCENTS = 8        # parameters.num_accents
SCALING_FACTOR = 30.0  # parameters.scalingFactor (AMSoftmax s)
MARGIN_FACTOR = 0.4    # parameters.marginFactor  (AMSoftmax m; training-only)
BN_EPS = 1e-5

# Storage dtype of the banded conv matmul matrices (matmul operands only; accumulation
# and every elementwise op stay fp32).  Set to jnp.float32 for bit-closer numerics.
CONV_MATMUL_DTYPE = jnp.bfloat16


# =============================== fused Pallas kernel ===========================

def _fused_kernel(x_ref,
                  m1a, b1a, m1be, m1bo, b1b,
                  m2a, b2a, m2be, m2bo, b2b,
                  m3a, b3a, m3be, m3bo, b3b,
                  att_ref, fc1w_ref, fc1b_ref, fc2w_ref, fc2b_ref,
                  g_ref, beta_ref, mu_ref, var_ref,
                  prew_ref, preb_ref, amw_ref,
                  pred_ref, cos_ref,
                  pad_ref, tmp_ref,
                  *, seq_len, scale):
    """Whole SpeakerClassifier forward for one batch element (grid step).

    pad_ref : (T+2, 320) VMEM scratch holding the current activation with one zero
              row of time padding above and below (channel-major row layout C*W).
    tmp_ref : (T, 320)   VMEM scratch for the frequency-pooled conv output.
    """
    f32 = jnp.float32

    def set_padded(act, h, kw):
        zrow = jnp.zeros((1, kw), f32)
        pad_ref[0:1, 0:kw] = zrow
        pad_ref[h + 1:h + 2, 0:kw] = zrow
        pad_ref[1:h + 1, 0:kw] = act

    def conv_relu(h, kw, m_ref, b_ref):
        """3x3 conv (+bias, +ReLU) as 3 time-shifted matmuls against banded weights."""
        mmdt = m_ref.dtype
        acc = jnp.dot(pad_ref[0:h, 0:kw].astype(mmdt), m_ref[0],
                      preferred_element_type=f32)
        acc = acc + jnp.dot(pad_ref[1:h + 1, 0:kw].astype(mmdt), m_ref[1],
                            preferred_element_type=f32)
        acc = acc + jnp.dot(pad_ref[2:h + 2, 0:kw].astype(mmdt), m_ref[2],
                            preferred_element_type=f32)
        return jnp.maximum(acc + b_ref[...], 0.0)

    blocks = ((m1a, b1a, m1be, m1bo, b1b),
              (m2a, b2a, m2be, m2bo, b2b),
              (m3a, b3a, m3be, m3bo, b3b))

    # ----------------------------- VGG3L front-end -----------------------------
    h = seq_len            # time rows
    w = FEATURE_SIZE       # frequency width
    cin = 1
    set_padded(x_ref[0], h, cin * w)
    for (ma, ba, mbe, mbo, bb) in blocks:
        kin = cin * w
        kmid = ma.shape[-1]
        # conv_a + ReLU (no pool)
        x_mid = conv_relu(h, kin, ma, ba)                     # (h, kmid)
        set_padded(x_mid, h, kmid)
        # conv_b + ReLU with the frequency half of the 2x2 ceil max-pool folded into
        # the weights (even / odd frequency column selections), then elementwise max.
        e = conv_relu(h, kmid, mbe, bb)
        o = conv_relu(h, kmid, mbo, bb)
        kout = mbe.shape[-1]
        tmp_ref[0:h, 0:kout] = jnp.maximum(e, o)              # freq-pooled rows
        # time half of the pool (ceil_mode): max of adjacent row pairs, written
        # directly as the next layer's zero-padded interior.
        ho = -(-h // 2)
        zrow = jnp.zeros((1, kout), f32)
        pad_ref[0:1, 0:kout] = zrow
        pad_ref[ho + 1:ho + 2, 0:kout] = zrow
        for i in range(h // 2):
            pad_ref[1 + i:2 + i, 0:kout] = jnp.maximum(
                tmp_ref[2 * i:2 * i + 1, 0:kout],
                tmp_ref[2 * i + 1:2 * i + 2, 0:kout])
        if h % 2:
            pad_ref[ho:ho + 1, 0:kout] = tmp_ref[h - 1:h, 0:kout]
        wp = -(-w // 2)
        h, w, cin = ho, wp, kout // wp

    vec = cin * w                                             # == vector_size (C*F')
    ht = pad_ref[1:1 + h, 0:vec]                              # (T''', vec), fp32
    # (channel-major row layout == PyTorch's (C, F') flatten -> weights used as-is)

    # ---------------- Attention pooling (softmax over time of ht @ att) --------
    scores = jnp.dot(ht, att_ref[...], preferred_element_type=f32)   # (T''', 1)
    mx = jnp.max(scores, axis=0, keepdims=True)
    ex = jnp.exp(scores - mx)
    wts = ex / jnp.sum(ex, axis=0, keepdims=True)
    e0 = jnp.sum(ht * wts, axis=0, keepdims=True)             # (1, vec)

    # ------------- FC block: fc1+ReLU -> fc2+ReLU -> BatchNorm1d(eval) ---------
    e1 = jnp.maximum(
        jnp.dot(e0, fc1w_ref[...], preferred_element_type=f32) + fc1b_ref[...], 0.0)
    e2 = jnp.maximum(
        jnp.dot(e1, fc2w_ref[...], preferred_element_type=f32) + fc2b_ref[...], 0.0)
    e2 = (e2 - mu_ref[...]) * lax.rsqrt(var_ref[...] + BN_EPS) * g_ref[...] + beta_ref[...]
    e3 = jnp.dot(e2, prew_ref[...], preferred_element_type=f32) + preb_ref[...]

    # ----------------- AMSoftmax head (inference path, label=None) -------------
    xn = e3 * lax.rsqrt(jnp.maximum(jnp.sum(e3 * e3, axis=-1, keepdims=True), 1e-24))
    amw = amw_ref[...]
    wn = amw * lax.rsqrt(jnp.maximum(jnp.sum(amw * amw, axis=0, keepdims=True), 1e-24))
    cos = jnp.dot(xn, wn, preferred_element_type=f32)          # (1, num_accents)
    cos_ref[0] = cos
    pred_ref[0] = scale * cos
    # TODO(synk): AMSoftmax margin/annealing branch (label is not None, uses
    # marginFactor) is training-only and not implemented here.


# ===================== offline parameter preparation (host) ====================

def _banded_conv_mats(w, width):
    """w: (3, 3, Cin, Cout) -> (3, Cin*width, Cout*width) fp32 banded matrices so
    that conv(x)[t] = sum_kh padded_x[t+kh] @ M[kh]   (channel-major rows)."""
    mats = []
    for kh in range(3):
        m = np.zeros((w.shape[2] * width, w.shape[3] * width), np.float32)
        for kw in range(3):
            m += np.kron(np.asarray(w[kh, kw], np.float32),
                         np.eye(width, k=1 - kw, dtype=np.float32))
        mats.append(m)
    return np.stack(mats, axis=0)


def _freq_pool_select(channels, width, parity):
    """0/1 selection matrix (C*width, C*ceil(width/2)) picking the even (parity=0) or
    odd (parity=1) frequency of every 2-wide pool window (ceil_mode for odd width)."""
    wp = -(-width // 2)
    e = np.zeros((width, wp), np.float32)
    for j in range(wp):
        e[min(2 * j + parity, width - 1), j] = 1.0
    return np.kron(np.eye(channels, dtype=np.float32), e)


def prepare_params(p, conv_dtype=CONV_MATMUL_DTYPE):
    """Done ONCE outside jit: fold conv weights into banded matmul matrices, fold the
    frequency max-pool into even/odd column selections of the preceding conv, and
    reshape the small head parameters for the fused kernel."""
    ks = KERNEL_SIZE
    chain = [(('c11', 'c12'), 1, ks // 4, ks // 4),
             (('c21', 'c22'), ks // 4, ks // 2, ks // 2),
             (('c31', 'c32'), ks // 2, ks, ks)]
    kp = {}
    width = FEATURE_SIZE
    for bi, ((na, nb), _cin, _cmid, cout) in enumerate(chain, start=1):
        ma = _banded_conv_mats(np.asarray(p[f'{na}_w'], np.float32), width)
        mb = _banded_conv_mats(np.asarray(p[f'{nb}_w'], np.float32), width)
        wp = -(-width // 2)
        se = _freq_pool_select(cout, width, 0)
        so = _freq_pool_select(cout, width, 1)
        kp[f'm{bi}a'] = jnp.asarray(ma, conv_dtype)
        kp[f'b{bi}a'] = jnp.asarray(
            np.repeat(np.asarray(p[f'{na}_b'], np.float32), width)[None, :])
        kp[f'm{bi}be'] = jnp.asarray(mb @ se, conv_dtype)
        kp[f'm{bi}bo'] = jnp.asarray(mb @ so, conv_dtype)
        kp[f'b{bi}b'] = jnp.asarray(
            np.repeat(np.asarray(p[f'{nb}_b'], np.float32), wp)[None, :])
        width = wp
    kp['att'] = jnp.asarray(p['att'], jnp.float32)
    kp['fc1_w'] = jnp.asarray(p['fc1_w'], jnp.float32)
    kp['fc1_b'] = jnp.asarray(p['fc1_b'], jnp.float32).reshape(1, -1)
    kp['fc2_w'] = jnp.asarray(p['fc2_w'], jnp.float32)
    kp['fc2_b'] = jnp.asarray(p['fc2_b'], jnp.float32).reshape(1, -1)
    kp['bn2_gamma'] = jnp.asarray(p['bn2_gamma'], jnp.float32).reshape(1, -1)
    kp['bn2_beta'] = jnp.asarray(p['bn2_beta'], jnp.float32).reshape(1, -1)
    kp['bn2_mean'] = jnp.asarray(p['bn2_mean'], jnp.float32).reshape(1, -1)
    kp['bn2_var'] = jnp.asarray(p['bn2_var'], jnp.float32).reshape(1, -1)
    kp['pre_w'] = jnp.asarray(p['pre_w'], jnp.float32)
    kp['pre_b'] = jnp.asarray(p['pre_b'], jnp.float32).reshape(1, -1)
    kp['am_w'] = jnp.asarray(p['am_w'], jnp.float32)
    return kp


_WEIGHT_KEYS = ('m1a', 'b1a', 'm1be', 'm1bo', 'b1b',
                'm2a', 'b2a', 'm2be', 'm2bo', 'b2b',
                'm3a', 'b3a', 'm3be', 'm3bo', 'b3b',
                'att', 'fc1_w', 'fc1_b', 'fc2_w', 'fc2_b',
                'bn2_gamma', 'bn2_beta', 'bn2_mean', 'bn2_var',
                'pre_w', 'pre_b', 'am_w')


# ============================ full forward (module) ============================

def speaker_classifier_forward(x, kp):
    """x: (B, T, 80) float32  ->  (prediction, outputTensor), both (B, num_accents)."""
    B, T, F = x.shape
    assert F == FEATURE_SIZE

    # widest channel-major conv row needed by any layer (320 for ks=16, feat=80)
    pad_w, w = 0, FEATURE_SIZE
    for cmid in (KERNEL_SIZE // 4, KERNEL_SIZE // 2, KERNEL_SIZE):
        pad_w = max(pad_w, cmid * w)
        w = -(-w // 2)

    def _const_spec(arr):
        return pl.BlockSpec(arr.shape, lambda b, _n=arr.ndim: (0,) * _n)

    in_specs = [pl.BlockSpec((1, T, FEATURE_SIZE), lambda b: (b, 0, 0))]
    in_specs += [_const_spec(kp[k]) for k in _WEIGHT_KEYS]
    out_spec = pl.BlockSpec((1, 1, NUM_ACCENTS), lambda b: (b, 0, 0))

    kern = functools.partial(_fused_kernel, seq_len=T, scale=SCALING_FACTOR)
    grid_spec = pltpu.PrefetchScalarGridSpec(
        num_scalar_prefetch=0,
        grid=(B,),
        in_specs=in_specs,
        out_specs=[out_spec, out_spec],
        scratch_shapes=[pltpu.VMEM((T + 2, pad_w), jnp.float32),
                        pltpu.VMEM((T, pad_w), jnp.float32)],
    )
    pred, cos = pl.pallas_call(
        kern,
        out_shape=(jax.ShapeDtypeStruct((B, 1, NUM_ACCENTS), jnp.float32),
                   jax.ShapeDtypeStruct((B, 1, NUM_ACCENTS), jnp.float32)),
        grid_spec=grid_spec,
        compiler_params=pltpu.CompilerParams(dimension_semantics=("parallel",)),
    )(x, *(kp[k] for k in _WEIGHT_KEYS))
    return pred[:, 0, :], cos[:, 0, :]


# ============================== parameter init =================================

def init_params(key):
    """Random parameters in (transposed-)PyTorch layout: conv weights (kh, kw, Cin, Cout)
    (= torch weight.permute(2,3,1,0)), linear weights (in, out) (= torch weight.T)."""
    ks = KERNEL_SIZE
    c = [1, ks // 4, ks // 4, ks // 2, ks // 2, ks, ks]     # conv channel chain
    names = ['c11', 'c12', 'c21', 'c22', 'c31', 'c32']
    p = {}
    keys = jax.random.split(key, 32)
    ki = 0
    for i, n in enumerate(names):
        p[f'{n}_w'] = 0.1 * jax.random.normal(keys[ki], (3, 3, c[i], c[i + 1]), jnp.float32); ki += 1
        p[f'{n}_b'] = 0.01 * jax.random.normal(keys[ki], (c[i + 1],), jnp.float32); ki += 1
    f_out = FEATURE_SIZE
    for _ in range(3):
        f_out = -(-f_out // 2)
    vector_size = ks * f_out                                # getVGG3LOutputDimension(80, ks) = 160
    p['att'] = 0.1 * jax.random.normal(keys[ki], (vector_size, 1), jnp.float32); ki += 1
    p['fc1_w'] = 0.1 * jax.random.normal(keys[ki], (vector_size, EMBEDDING_SIZE), jnp.float32); ki += 1
    p['fc1_b'] = 0.01 * jax.random.normal(keys[ki], (EMBEDDING_SIZE,), jnp.float32); ki += 1
    p['fc2_w'] = 0.1 * jax.random.normal(keys[ki], (EMBEDDING_SIZE, EMBEDDING_SIZE), jnp.float32); ki += 1
    p['fc2_b'] = 0.01 * jax.random.normal(keys[ki], (EMBEDDING_SIZE,), jnp.float32); ki += 1
    p['bn2_gamma'] = 1.0 + 0.1 * jax.random.normal(keys[ki], (EMBEDDING_SIZE,), jnp.float32); ki += 1
    p['bn2_beta'] = 0.1 * jax.random.normal(keys[ki], (EMBEDDING_SIZE,), jnp.float32); ki += 1
    p['bn2_mean'] = 0.1 * jax.random.normal(keys[ki], (EMBEDDING_SIZE,), jnp.float32); ki += 1
    p['bn2_var'] = 1.0 + 0.1 * jnp.abs(jax.random.normal(keys[ki], (EMBEDDING_SIZE,), jnp.float32)); ki += 1
    p['pre_w'] = 0.1 * jax.random.normal(keys[ki], (EMBEDDING_SIZE, EMBEDDING_SIZE), jnp.float32); ki += 1
    p['pre_b'] = 0.01 * jax.random.normal(keys[ki], (EMBEDDING_SIZE,), jnp.float32); ki += 1
    p['am_w'] = jax.random.normal(keys[ki], (EMBEDDING_SIZE, NUM_ACCENTS), jnp.float32); ki += 1
    return p


# ==================================== main =====================================

if __name__ == "__main__":
    key = jax.random.PRNGKey(0)
    pkey, xkey = jax.random.split(key)
    params = init_params(pkey)           # PyTorch-layout parameters
    kparams = prepare_params(params)     # one-time offline folding into kernel layout
    # Small input: batch=2, 16 frames, 80 mel features (feature_size fixed to 80).
    x = jax.random.normal(xkey, (2, 16, FEATURE_SIZE), jnp.float32)

    fwd = jax.jit(speaker_classifier_forward)
    prediction, output_tensor = fwd(x, kparams)
    jax.block_until_ready((prediction, output_tensor))

    assert prediction.shape == (2, NUM_ACCENTS)
    assert output_tensor.shape == (2, NUM_ACCENTS)
    assert bool(jnp.all(jnp.isfinite(prediction)))
    assert bool(jnp.all(jnp.isfinite(output_tensor)))
    print("KERNEL_OK")
</pallas_src>

<mosaic_0001>
module attributes {stable_mosaic.version = 11 : i64} {
  func.func @_fused_kernel(%arg0: i32, %arg1: memref<1x16x80xf32, #tpu.memory_space<vmem>>, %arg2: memref<3x80x320xbf16, #tpu.memory_space<vmem>>, %arg3: memref<1x320xf32, #tpu.memory_space<vmem>>, %arg4: memref<3x320x160xbf16, #tpu.memory_space<vmem>>, %arg5: memref<3x320x160xbf16, #tpu.memory_space<vmem>>, %arg6: memref<1x160xf32, #tpu.memory_space<vmem>>, %arg7: memref<3x160x320xbf16, #tpu.memory_space<vmem>>, %arg8: memref<1x320xf32, #tpu.memory_space<vmem>>, %arg9: memref<3x320x160xbf16, #tpu.memory_space<vmem>>, %arg10: memref<3x320x160xbf16, #tpu.memory_space<vmem>>, %arg11: memref<1x160xf32, #tpu.memory_space<vmem>>, %arg12: memref<3x160x320xbf16, #tpu.memory_space<vmem>>, %arg13: memref<1x320xf32, #tpu.memory_space<vmem>>, %arg14: memref<3x320x160xbf16, #tpu.memory_space<vmem>>, %arg15: memref<3x320x160xbf16, #tpu.memory_space<vmem>>, %arg16: memref<1x160xf32, #tpu.memory_space<vmem>>, %arg17: memref<160x1xf32, #tpu.memory_space<vmem>>, %arg18: memref<160x32xf32, #tpu.memory_space<vmem>>, %arg19: memref<1x32xf32, #tpu.memory_space<vmem>>, %arg20: memref<32x32xf32, #tpu.memory_space<vmem>>, %arg21: memref<1x32xf32, #tpu.memory_space<vmem>>, %arg22: memref<1x32xf32, #tpu.memory_space<vmem>>, %arg23: memref<1x32xf32, #tpu.memory_space<vmem>>, %arg24: memref<1x32xf32, #tpu.memory_space<vmem>>, %arg25: memref<1x32xf32, #tpu.memory_space<vmem>>, %arg26: memref<32x32xf32, #tpu.memory_space<vmem>>, %arg27: memref<1x32xf32, #tpu.memory_space<vmem>>, %arg28: memref<32x8xf32, #tpu.memory_space<vmem>>, %arg29: memref<1x1x8xf32, #tpu.memory_space<vmem>>, %arg30: memref<1x1x8xf32, #tpu.memory_space<vmem>>, %arg31: memref<18x320xf32, #tpu.memory_space<vmem>>, %arg32: memref<16x320xf32, #tpu.memory_space<vmem>>) attributes {dimension_semantics = [#tpu.dimension_semantics<parallel>], iteration_bounds = array<i64: 2>, scalar_prefetch = 0 : i64, scratch_operands = 2 : i64, tpu.core_type = #tpu.core_type<tc>, window_params = [{transform_indices = @transform_0, window_bounds = array<i64: 1, 16, 80>}, {pipeline_mode = #tpu.pipeline_mode<synchronous>, transform_indices = @transform_1, window_bounds = array<i64: 3, 80, 320>}, {pipeline_mode = #tpu.pipeline_mode<synchronous>, transform_indices = @transform_2, window_bounds = array<i64: 1, 320>}, {pipeline_mode = #tpu.pipeline_mode<synchronous>, transform_indices = @transform_3, window_bounds = array<i64: 3, 320, 160>}, {pipeline_mode = #tpu.pipeline_mode<synchronous>, transform_indices = @transform_4, window_bounds = array<i64: 3, 320, 160>}, {pipeline_mode = #tpu.pipeline_mode<synchronous>, transform_indices = @transform_5, window_bounds = array<i64: 1, 160>}, {pipeline_mode = #tpu.pipeline_mode<synchronous>, transform_indices = @transform_6, window_bounds = array<i64: 3, 160, 320>}, {pipeline_mode = #tpu.pipeline_mode<synchronous>, transform_indices = @transform_7, window_bounds = array<i64: 1, 320>}, {pipeline_mode = #tpu.pipeline_mode<synchronous>, transform_indices = @transform_8, window_bounds = array<i64: 3, 320, 160>}, {pipeline_mode = #tpu.pipeline_mode<synchronous>, transform_indices = @transform_9, window_bounds = array<i64: 3, 320, 160>}, {pipeline_mode = #tpu.pipeline_mode<synchronous>, transform_indices = @transform_10, window_bounds = array<i64: 1, 160>}, {pipeline_mode = #tpu.pipeline_mode<synchronous>, transform_indices = @transform_11, window_bounds = array<i64: 3, 160, 320>}, {pipeline_mode = #tpu.pipeline_mode<synchronous>, transform_indices = @transform_12, window_bounds = array<i64: 1, 320>}, {pipeline_mode = #tpu.pipeline_mode<synchronous>, transform_indices = @transform_13, window_bounds = array<i64: 3, 320, 160>}, {pipeline_mode = #tpu.pipeline_mode<synchronous>, transform_indices = @transform_14, window_bounds = array<i64: 3, 320, 160>}, {pipeline_mode = #tpu.pipeline_mode<synchronous>, transform_indices = @transform_15, window_bounds = array<i64: 1, 160>}, {pipeline_mode = #tpu.pipeline_mode<synchronous>, transform_indices = @transform_16, window_bounds = array<i64: 160, 1>}, {pipeline_mode = #tpu.pipeline_mode<synchronous>, transform_indices = @transform_17, window_bounds = array<i64: 160, 32>}, {pipeline_mode = #tpu.pipeline_mode<synchronous>, transform_indices = @transform_18, window_bounds = array<i64: 1, 32>}, {pipeline_mode = #tpu.pipeline_mode<synchronous>, transform_indices = @transform_19, window_bounds = array<i64: 32, 32>}, {pipeline_mode = #tpu.pipeline_mode<synchronous>, transform_indices = @transform_20, window_bounds = array<i64: 1, 32>}, {pipeline_mode = #tpu.pipeline_mode<synchronous>, transform_indices = @transform_21, window_bounds = array<i64: 1, 32>}, {pipeline_mode = #tpu.pipeline_mode<synchronous>, transform_indices = @transform_22, window_bounds = array<i64: 1, 32>}, {pipeline_mode = #tpu.pipeline_mode<synchronous>, transform_indices = @transform_23, window_bounds = array<i64: 1, 32>}, {pipeline_mode = #tpu.pipeline_mode<synchronous>, transform_indices = @transform_24, window_bounds = array<i64: 1, 32>}, {pipeline_mode = #tpu.pipeline_mode<synchronous>, transform_indices = @transform_25, window_bounds = array<i64: 32, 32>}, {pipeline_mode = #tpu.pipeline_mode<synchronous>, transform_indices = @transform_26, window_bounds = array<i64: 1, 32>}, {pipeline_mode = #tpu.pipeline_mode<synchronous>, transform_indices = @transform_27, window_bounds = array<i64: 32, 8>}, {transform_indices = @transform_28, window_bounds = array<i64: 1, 1, 8>}, {transform_indices = @transform_29, window_bounds = array<i64: 1, 1, 8>}]} {
    %c0 = arith.constant 0 : index
    %c0_0 = arith.constant 0 : index
    %c0_1 = arith.constant 0 : index
    %0 = vector.load %arg1[%c0, %c0_0, %c0_1] : memref<1x16x80xf32, #tpu.memory_space<vmem>>, vector<1x16x80xf32>
    %1 = vector.shape_cast %0 : vector<1x16x80xf32> to vector<16x80xf32>
    %cst = arith.constant 0.000000e+00 : f32
    %2 = vector.broadcast %cst : f32 to vector<1x80xf32>
    %c0_2 = arith.constant 0 : index
    %c0_3 = arith.constant 0 : index
    %3 = vector.load %arg31[%c0_2, %c0_3] : memref<18x320xf32, #tpu.memory_space<vmem>>, vector<1x80xf32>
    tpu.vector_store %arg31[%c0_2, %c0_3], %2 {strides = array<i32>} : memref<18x320xf32, #tpu.memory_space<vmem>>, vector<1x80xf32>,
    %c17 = arith.constant 17 : index
    %c0_4 = arith.constant 0 : index
    %4 = vector.load %arg31[%c17, %c0_4] : memref<18x320xf32, #tpu.memory_space<vmem>>, vector<1x80xf32>
    tpu.vector_store %arg31[%c17, %c0_4], %2 {strides = array<i32>} : memref<18x320xf32, #tpu.memory_space<vmem>>, vector<1x80xf32>,
    %c1 = arith.constant 1 : index
    %c0_5 = arith.constant 0 : index
    %5 = vector.load %arg31[%c1, %c0_5] : memref<18x320xf32, #tpu.memory_space<vmem>>, vector<16x80xf32>
    tpu.vector_store %arg31[%c1, %c0_5], %1 {strides = array<i32>} : memref<18x320xf32, #tpu.memory_space<vmem>>, vector<16x80xf32>,
    %c0_6 = arith.constant 0 : index
    %c0_7 = arith.constant 0 : index
    %6 = vector.load %arg31[%c0_6, %c0_7] : memref<18x320xf32, #tpu.memory_space<vmem>>, vector<16x80xf32>
    %7 = arith.truncf %6 : vector<16x80xf32> to vector<16x80xbf16>
    %c0_8 = arith.constant 0 : index
    %c0_9 = arith.constant 0 : index
    %c0_10 = arith.constant 0 : index
    %8 = vector.load %arg2[%c0_8, %c0_9, %c0_10] : memref<3x80x320xbf16, #tpu.memory_space<vmem>>, vector<1x80x320xbf16>
    %9 = vector.shape_cast %8 : vector<1x80x320xbf16> to vector<80x320xbf16>
    %cst_11 = arith.constant dense<0.000000e+00> : vector<16x320xf32>
    %10 = tpu.matmul %7, %9, %cst_11 {dimension_numbers = #tpu.dot_dimension_numbers<[1], [0], [0], [1], [0, 0, 1, 1], [], []>} : vector<16x80xbf16>, vector<80x320xbf16>, vector<16x320xf32> -> vector<16x320xf32>
    %c1_12 = arith.constant 1 : index
    %c0_13 = arith.constant 0 : index
    %11 = vector.load %arg31[%c1_12, %c0_13] : memref<18x320xf32, #tpu.memory_space<vmem>>, vector<16x80xf32>
    %12 = arith.truncf %11 : vector<16x80xf32> to vector<16x80xbf16>
    %c1_14 = arith.constant 1 : index
    %c0_15 = arith.constant 0 : index
    %c0_16 = arith.constant 0 : index
    %13 = vector.load %arg2[%c1_14, %c0_15, %c0_16] : memref<3x80x320xbf16, #tpu.memory_space<vmem>>, vector<1x80x320xbf16>
    %14 = vector.shape_cast %13 : vector<1x80x320xbf16> to vector<80x320xbf16>
    %cst_17 = arith.constant dense<0.000000e+00> : vector<16x320xf32>
    %15 = tpu.matmul %12, %14, %cst_17 {dimension_numbers = #tpu.dot_dimension_numbers<[1], [0], [0], [1], [0, 0, 1, 1], [], []>} : vector<16x80xbf16>, vector<80x320xbf16>, vector<16x320xf32> -> vector<16x320xf32>
    %16 = arith.addf %10, %15 : vector<16x320xf32>
    %c2 = arith.constant 2 : index
    %c0_18 = arith.constant 0 : index
    %17 = vector.load %arg31[%c2, %c0_18] : memref<18x320xf32, #tpu.memory_space<vmem>>, vector<16x80xf32>
    %18 = arith.truncf %17 : vector<16x80xf32> to vector<16x80xbf16>
    %c2_19 = arith.constant 2 : index
    %c0_20 = arith.constant 0 : index
    %c0_21 = arith.constant 0 : index
    %19 = vector.load %arg2[%c2_19, %c0_20, %c0_21] : memref<3x80x320xbf16, #tpu.memory_space<vmem>>, vector<1x80x320xbf16>
    %20 = vector.shape_cast %19 : vector<1x80x320xbf16> to vector<80x320xbf16>
    %cst_22 = arith.constant dense<0.000000e+00> : vector<16x320xf32>
    %21 = tpu.matmul %18, %20, %cst_22 {dimension_numbers = #tpu.dot_dimension_numbers<[1], [0], [0], [1], [0, 0, 1, 1], [], []>} : vector<16x80xbf16>, vector<80x320xbf16>, vector<16x320xf32> -> vector<16x320xf32>
    %22 = arith.addf %16, %21 : vector<16x320xf32>
    %c0_23 = arith.constant 0 : index
    %c0_24 = arith.constant 0 : index
    %23 = vector.load %arg3[%c0_23, %c0_24] : memref<1x320xf32, #tpu.memory_space<vmem>>, vector<1x320xf32>
    %24 = vector.broadcast %23 : vector<1x320xf32> to vector<16x320xf32>
    %25 = arith.addf %22, %24 : vector<16x320xf32>
    %cst_25 = arith.constant 0.000000e+00 : f32
    %26 = vector.broadcast %cst_25 : f32 to vector<16x320xf32>
    %27 = arith.maximumf %25, %26 : vector<16x320xf32>
    %cst_26 = arith.constant 0.000000e+00 : f32
    %28 = vector.broadcast %cst_26 : f32 to vector<1x320xf32>
    %c0_27 = arith.constant 0 : index
    %c0_28 = arith.constant 0 : index
    %29 = vector.load %arg31[%c0_27, %c0_28] : memref<18x320xf32, #tpu.memory_space<vmem>>, vector<1x320xf32>
    tpu.vector_store %arg31[%c0_27, %c0_28], %28 {strides = array<i32>} : memref<18x320xf32, #tpu.memory_space<vmem>>, vector<1x320xf32>,
    %c17_29 = arith.constant 17 : index
    %c0_30 = arith.constant 0 : index
    %30 = vector.load %arg31[%c17_29, %c0_30] : memref<18x320xf32, #tpu.memory_space<vmem>>, vector<1x320xf32>
    tpu.vector_store %arg31[%c17_29, %c0_30], %28 {strides = array<i32>} : memref<18x320xf32, #tpu.memory_space<vmem>>, vector<1x320xf32>,
    %c1_31 = arith.constant 1 : index
    %c0_32 = arith.constant 0 : index
    %31 = vector.load %arg31[%c1_31, %c0_32] : memref<18x320xf32, #tpu.memory_space<vmem>>, vector<16x320xf32>
    tpu.vector_store %arg31[%c1_31, %c0_32], %27 {strides = array<i32>} : memref<18x320xf32, #tpu.memory_space<vmem>>, vector<16x320xf32>,
    %c0_33 = arith.constant 0 : index
    %c0_34 = arith.constant 0 : index
    %32 = vector.load %arg31[%c0_33, %c0_34] : memref<18x320xf32, #tpu.memory_space<vmem>>, vector<16x320xf32>
    %33 = arith.truncf %32 : vector<16x320xf32> to vector<16x320xbf16>
    %c0_35 = arith.constant 0 : index
    %c0_36 = arith.constant 0 : index
    %c0_37 = arith.constant 0 : index
    %34 = vector.load %arg4[%c0_35, %c0_36, %c0_37] : memref<3x320x160xbf16, #tpu.memory_space<vmem>>, vector<1x320x160xbf16>
    %35 = vector.shape_cast %34 : vector<1x320x160xbf16> to vector<320x160xbf16>
    %cst_38 = arith.constant dense<0.000000e+00> : vector<16x160xf32>
    %36 = tpu.matmul %33, %35, %cst_38 {dimension_numbers = #tpu.dot_dimension_numbers<[1], [0], [0], [1], [0, 0, 1, 1], [], []>} : vector<16x320xbf16>, vector<320x160xbf16>, vector<16x160xf32> -> vector<16x160xf32>
    %c1_39 = arith.constant 1 : index
    %c0_40 = arith.constant 0 : index
    %37 = vector.load %arg31[%c1_39, %c0_40] : memref<18x320xf32, #tpu.memory_space<vmem>>, vector<16x320xf32>
    %38 = arith.truncf %37 : vector<16x320xf32> to vector<16x320xbf16>
    %c1_41 = arith.constant 1 : index
    %c0_42 = arith.constant 0 : index
    %c0_43 = arith.constant 0 : index
    %39 = vector.load %arg4[%c1_41, %c0_42, %c0_43] : memref<3x320x160xbf16, #tpu.memory_space<vmem>>, vector<1x320x160xbf16>
    %40 = vector.shape_cast %39 : vector<1x320x160xbf16> to vector<320x160xbf16>
    %cst_44 = arith.constant dense<0.000000e+00> : vector<16x160xf32>
    %41 = tpu.matmul %38, %40, %cst_44 {dimension_numbers = #tpu.dot_dimension_numbers<[1], [0], [0], [1], [0, 0, 1, 1], [], []>} : vector<16x320xbf16>, vector<320x160xbf16>, vector<16x160xf32> -> vector<16x160xf32>
    %42 = arith.addf %36, %41 : vector<16x160xf32>
    %c2_45 = arith.constant 2 : index
    %c0_46 = arith.constant 0 : index
    %43 = vector.load %arg31[%c2_45, %c0_46] : memref<18x320xf32, #tpu.memory_space<vmem>>, vector<16x320xf32>
    %44 = arith.truncf %43 : vector<16x320xf32> to vector<16x320xbf16>
    %c2_47 = arith.constant 2 : index
    %c0_48 = arith.constant 0 : index
    %c0_49 = arith.constant 0 : index
    %45 = vector.load %arg4[%c2_47, %c0_48, %c0_49] : memref<3x320x160xbf16, #tpu.memory_space<vmem>>, vector<1x320x160xbf16>
    %46 = vector.shape_cast %45 : vector<1x320x160xbf16> to vector<320x160xbf16>
    %cst_50 = arith.constant dense<0.000000e+00> : vector<16x160xf32>
    %47 = tpu.matmul %44, %46, %cst_50 {dimension_numbers = #tpu.dot_dimension_numbers<[1], [0], [0], [1], [0, 0, 1, 1], [], []>} : vector<16x320xbf16>, vector<320x160xbf16>, vector<16x160xf32> -> vector<16x160xf32>
    %48 = arith.addf %42, %47 : vector<16x160xf32>
    %c0_51 = arith.constant 0 : index
    %c0_52 = arith.constant 0 : index
    %49 = vector.load %arg6[%c0_51, %c0_52] : memref<1x160xf32, #tpu.memory_space<vmem>>, vector<1x160xf32>
    %50 = vector.broadcast %49 : vector<1x160xf32> to vector<16x160xf32>
    %51 = arith.addf %48, %50 : vector<16x160xf32>
    %cst_53 = arith.constant 0.000000e+00 : f32
    %52 = vector.broadcast %cst_53 : f32 to vector<16x160xf32>
    %53 = arith.maximumf %51, %52 : vector<16x160xf32>
    %c0_54 = arith.constant 0 : index
    %c0_55 = arith.constant 0 : index
    %54 = vector.load %arg31[%c0_54, %c0_55] : memref<18x320xf32, #tpu.memory_space<vmem>>, vector<16x320xf32>
    %55 = arith.truncf %54 : vector<16x320xf32> to vector<16x320xbf16>
    %c0_56 = arith.constant 0 : index
    %c0_57 = arith.constant 0 : index
    %c0_58 = arith.constant 0 : index
    %56 = vector.load %arg5[%c0_56, %c0_57, %c0_58] : memref<3x320x160xbf16, #tpu.memory_space<vmem>>, vector<1x320x160xbf16>
    %57 = vector.shape_cast %56 : vector<1x320x160xbf16> to vector<320x160xbf16>
    %cst_59 = arith.constant dense<0.000000e+00> : vector<16x160xf32>
    %58 = tpu.matmul %55, %57, %cst_59 {dimension_numbers = #tpu.dot_dimension_numbers<[1], [0], [0], [1], [0, 0, 1, 1], [], []>} : vector<16x320xbf16>, vector<320x160xbf16>, vector<16x160xf32> -> vector<16x160xf32>
    %c1_60 = arith.constant 1 : index
    %c0_61 = arith.constant 0 : index
    %59 = vector.load %arg31[%c1_60, %c0_61] : memref<18x320xf32, #tpu.memory_space<vmem>>, vector<16x320xf32>
    %60 = arith.truncf %59 : vector<16x320xf32> to vector<16x320xbf16>
    %c1_62 = arith.constant 1 : index
    %c0_63 = arith.constant 0 : index
    %c0_64 = arith.constant 0 : index
    %61 = vector.load %arg5[%c1_62, %c0_63, %c0_64] : memref<3x320x160xbf16, #tpu.memory_space<vmem>>, vector<1x320x160xbf16>
    %62 = vector.shape_cast %61 : vector<1x320x160xbf16> to vector<320x160xbf16>
    %cst_65 = arith.constant dense<0.000000e+00> : vector<16x160xf32>
    %63 = tpu.matmul %60, %62, %cst_65 {dimension_numbers = #tpu.dot_dimension_numbers<[1], [0], [0], [1], [0, 0, 1, 1], [], []>} : vector<16x320xbf16>, vector<320x160xbf16>, vector<16x160xf32> -> vector<16x160xf32>
    %64 = arith.addf %58, %63 : vector<16x160xf32>
    %c2_66 = arith.constant 2 : index
    %c0_67 = arith.constant 0 : index
    %65 = vector.load %arg31[%c2_66, %c0_67] : memref<18x320xf32, #tpu.memory_space<vmem>>, vector<16x320xf32>
    %66 = arith.truncf %65 : vector<16x320xf32> to vector<16x320xbf16>
    %c2_68 = arith.constant 2 : index
    %c0_69 = arith.constant 0 : index
    %c0_70 = arith.constant 0 : index
    %67 = vector.load %arg5[%c2_68, %c0_69, %c0_70] : memref<3x320x160xbf16, #tpu.memory_space<vmem>>, vector<1x320x160xbf16>
    %68 = vector.shape_cast %67 : vector<1x320x160xbf16> to vector<320x160xbf16>
    %cst_71 = arith.constant dense<0.000000e+00> : vector<16x160xf32>
    %69 = tpu.matmul %66, %68, %cst_71 {dimension_numbers = #tpu.dot_dimension_numbers<[1], [0], [0], [1], [0, 0, 1, 1], [], []>} : vector<16x320xbf16>, vector<320x160xbf16>, vector<16x160xf32> -> vector<16x160xf32>
    %70 = arith.addf %64, %69 : vector<16x160xf32>
    %c0_72 = arith.constant 0 : index
    %c0_73 = arith.constant 0 : index
    %71 = vector.load %arg6[%c0_72, %c0_73] : memref<1x160xf32, #tpu.memory_space<vmem>>, vector<1x160xf32>
    %72 = vector.broadcast %71 : vector<1x160xf32> to vector<16x160xf32>
    %73 = arith.addf %70, %72 : vector<16x160xf32>
    %cst_74 = arith.constant 0.000000e+00 : f32
    %74 = vector.broadcast %cst_74 : f32 to vector<16x160xf32>
    %75 = arith.maximumf %73, %74 : vector<16x160xf32>
    %76 = arith.maximumf %53, %75 : vector<16x160xf32>
    %c0_75 = arith.constant 0 : index
    %c0_76 = arith.constant 0 : index
    %77 = vector.load %arg32[%c0_75, %c0_76] : memref<16x320xf32, #tpu.memory_space<vmem>>, vector<16x160xf32>
    tpu.vector_store %arg32[%c0_75, %c0_76], %76 {strides = array<i32>} : memref<16x320xf32, #tpu.memory_space<vmem>>, vector<16x160xf32>,
    %cst_77 = arith.constant 0.000000e+00 : f32
    %78 = vector.broadcast %cst_77 : f32 to vector<1x160xf32>
    %c0_78 = arith.constant 0 : index
    %c0_79 = arith.constant 0 : index
    %79 = vector.load %arg31[%c0_78, %c0_79] : memref<18x320xf32, #tpu.memory_space<vmem>>, vector<1x160xf32>
    tpu.vector_store %arg31[%c0_78, %c0_79], %78 {strides = array<i32>} : memref<18x320xf32, #tpu.memory_space<vmem>>, vector<1x160xf32>,
    %c9 = arith.constant 9 : index
    %c0_80 = arith.constant 0 : index
    %80 = vector.load %arg31[%c9, %c0_80] : memref<18x320xf32, #tpu.memory_space<vmem>>, vector<1x160xf32>
    tpu.vector_store %arg31[%c9, %c0_80], %78 {strides = array<i32>} : memref<18x320xf32, #tpu.memory_space<vmem>>, vector<1x160xf32>,
    %c0_81 = arith.constant 0 : index
    %c0_82 = arith.constant 0 : index
    %81 = vector.load %arg32[%c0_81, %c0_82] : memref<16x320xf32, #tpu.memory_space<vmem>>, vector<1x160xf32>
    %c1_83 = arith.constant 1 : index
    %c0_84 = arith.constant 0 : index
    %82 = vector.load %arg32[%c1_83, %c0_84] : memref<16x320xf32, #tpu.memory_space<vmem>>, vector<1x160xf32>
    %83 = arith.maximumf %81, %82 : vector<1x160xf32>
    %c1_85 = arith.constant 1 : index
    %c0_86 = arith.constant 0 : index
    %84 = vector.load %arg31[%c1_85, %c0_86] : memref<18x320xf32, #tpu.memory_space<vmem>>, vector<1x160xf32>
    tpu.vector_store %arg31[%c1_85, %c0_86], %83 {strides = array<i32>} : memref<18x320xf32, #tpu.memory_space<vmem>>, vector<1x160xf32>,
    %c2_87 = arith.constant 2 : index
    %c0_88 = arith.constant 0 : index
    %85 = vector.load %arg32[%c2_87, %c0_88] : memref<16x320xf32, #tpu.memory_space<vmem>>, vector<1x160xf32>
    %c3 = arith.constant 3 : index
    %c0_89 = arith.constant 0 : index
    %86 = vector.load %arg32[%c3, %c0_89] : memref<16x320xf32, #tpu.memory_space<vmem>>, vector<1x160xf32>
    %87 = arith.maximumf %85, %86 : vector<1x160xf32>
    %c2_90 = arith.constant 2 : index
    %c0_91 = arith.constant 0 : index
    %88 = vector.load %arg31[%c2_90, %c0_91] : memref<18x320xf32, #tpu.memory_space<vmem>>, vector<1x160xf32>
    tpu.vector_store %arg31[%c2_90, %c0_91], %87 {strides = array<i32>} : memref<18x320xf32, #tpu.memory_space<vmem>>, vector<1x160xf32>,
    %c4 = arith.constant 4 : index
    %c0_92 = arith.constant 0 : index
    %89 = vector.load %arg32[%c4, %c0_92] : memref<16x320xf32, #tpu.memory_space<vmem>>, vector<1x160xf32>
    %c5 = arith.constant 5 : index
    %c0_93 = arith.constant 0 : index
    %90 = vector.load %arg32[%c5, %c0_93] : memref<16x320xf32, #tpu.memory_space<vmem>>, vector<1x160xf32>
    %91 = arith.maximumf %89, %90 : vector<1x160xf32>
    %c3_94 = arith.constant 3 : index
    %c0_95 = arith.constant 0 : index
    %92 = vector.load %arg31[%c3_94, %c0_95] : memref<18x320xf32, #tpu.memory_space<vmem>>, vector<1x160xf32>
    tpu.vector_store %arg31[%c3_94, %c0_95], %91 {strides = array<i32>} : memref<18x320xf32, #tpu.memory_space<vmem>>, vector<1x160xf32>,
    %c6 = arith.constant 6 : index
    %c0_96 = arith.constant 0 : index
    %93 = vector.load %arg32[%c6, %c0_96] : memref<16x320xf32, #tpu.memory_space<vmem>>, vector<1x160xf32>
    %c7 = arith.constant 7 : index
    %c0_97 = arith.constant 0 : index
    %94 = vector.load %arg32[%c7, %c0_97] : memref<16x320xf32, #tpu.memory_space<vmem>>, vector<1x160xf32>
    %95 = arith.maximumf %93, %94 : vector<1x160xf32>
    %c4_98 = arith.constant 4 : index
    %c0_99 = arith.constant 0 : index
    %96 = vector.load %arg31[%c4_98, %c0_99] : memref<18x320xf32, #tpu.memory_space<vmem>>, vector<1x160xf32>
    tpu.vector_store %arg31[%c4_98, %c0_99], %95 {strides = array<i32>} : memref<18x320xf32, #tpu.memory_space<vmem>>, vector<1x160xf32>,
    %c8 = arith.constant 8 : index
    %c0_100 = arith.constant 0 : index
    %97 = vector.load %arg32[%c8, %c0_100] : memref<16x320xf32, #tpu.memory_space<vmem>>, vector<1x160xf32>
    %c9_101 = arith.constant 9 : index
    %c0_102 = arith.constant 0 : index
    %98 = vector.load %arg32[%c9_101, %c0_102] : memref<16x320xf32, #tpu.memory_space<vmem>>, vector<1x160xf32>
    %99 = arith.maximumf %97, %98 : vector<1x160xf32>
    %c5_103 = arith.constant 5 : index
    %c0_104 = arith.constant 0 : index
    %100 = vector.load %arg31[%c5_103, %c0_104] : memref<18x320xf32, #tpu.memory_space<vmem>>, vector<1x160xf32>
    tpu.vector_store %arg31[%c5_103, %c0_104], %99 {strides = array<i32>} : memref<18x320xf32, #tpu.memory_space<vmem>>, vector<1x160xf32>,
    %c10 = arith.constant 10 : index
    %c0_105 = arith.constant 0 : index
    %101 = vector.load %arg32[%c10, %c0_105] : memref<16x320xf32, #tpu.memory_space<vmem>>, vector<1x160xf32>
    %c11 = arith.constant 11 : index
    %c0_106 = arith.constant 0 : index
    %102 = vector.load %arg32[%c11, %c0_106] : memref<16x320xf32, #tpu.memory_space<vmem>>, vector<1x160xf32>
    %103 = arith.maximumf %101, %102 : vector<1x160xf32>
    %c6_107 = arith.constant 6 : index
    %c0_108 = arith.constant 0 : index
    %104 = vector.load %arg31[%c6_107, %c0_108] : memref<18x320xf32, #tpu.memory_space<vmem>>, vector<1x160xf32>
    tpu.vector_store %arg31[%c6_107, %c0_108], %103 {strides = array<i32>} : memref<18x320xf32, #tpu.memory_space<vmem>>, vector<1x160xf32>,
    %c12 = arith.constant 12 : index
    %c0_109 = arith.constant 0 : index
    %105 = vector.load %arg32[%c12, %c0_109] : memref<16x320xf32, #tpu.memory_space<vmem>>, vector<1x160xf32>
    %c13 = arith.constant 13 : index
    %c0_110 = arith.constant 0 : index
    %106 = vector.load %arg32[%c13, %c0_110] : memref<16x320xf32, #tpu.memory_space<vmem>>, vector<1x160xf32>
    %107 = arith.maximumf %105, %106 : vector<1x160xf32>
    %c7_111 = arith.constant 7 : index
    %c0_112 = arith.constant 0 : index
    %108 = vector.load %arg31[%c7_111, %c0_112] : memref<18x320xf32, #tpu.memory_space<vmem>>, vector<1x160xf32>
    tpu.vector_store %arg31[%c7_111, %c0_112], %107 {strides = array<i32>} : memref<18x320xf32, #tpu.memory_space<vmem>>, vector<1x160xf32>,
    %c14 = arith.constant 14 : index
    %c0_113 = arith.constant 0 : index
    %109 = vector.load %arg32[%c14, %c0_113] : memref<16x320xf32, #tpu.memory_space<vmem>>, vector<1x160xf32>
    %c15 = arith.constant 15 : index
    %c0_114 = arith.constant 0 : index
    %110 = vector.load %arg32[%c15, %c0_114] : memref<16x320xf32, #tpu.memory_space<vmem>>, vector<1x160xf32>
    %111 = arith.maximumf %109, %110 : vector<1x160xf32>
    %c8_115 = arith.constant 8 : index
    %c0_116 = arith.constant 0 : index
    %112 = vector.load %arg31[%c8_115, %c0_116] : memref<18x320xf32, #tpu.memory_space<vmem>>, vector<1x160xf32>
    tpu.vector_store %arg31[%c8_115, %c0_116], %111 {strides = array<i32>} : memref<18x320xf32, #tpu.memory_space<vmem>>, vector<1x160xf32>,
    %c0_117 = arith.constant 0 : index
    %c0_118 = arith.constant 0 : index
    %113 = vector.load %arg31[%c0_117, %c0_118] : memref<18x320xf32, #tpu.memory_space<vmem>>, vector<8x160xf32>
    %114 = arith.truncf %113 : vector<8x160xf32> to vector<8x160xbf16>
    %c0_119 = arith.constant 0 : index
    %c0_120 = arith.constant 0 : index
    %c0_121 = arith.constant 0 : index
    %115 = vector.load %arg7[%c0_119, %c0_120, %c0_121] : memref<3x160x320xbf16, #tpu.memory_space<vmem>>, vector<1x160x320xbf16>
    %116 = vector.shape_cast %115 : vector<1x160x320xbf16> to vector<160x320xbf16>
    %cst_122 = arith.constant dense<0.000000e+00> : vector<8x320xf32>
    %117 = tpu.matmul %114, %116, %cst_122 {dimension_numbers = #tpu.dot_dimension_numbers<[1], [0], [0], [1], [0, 0, 1, 1], [], []>} : vector<8x160xbf16>, vector<160x320xbf16>, vector<8x320xf32> -> vector<8x320xf32>
    %c1_123 = arith.constant 1 : index
    %c0_124 = arith.constant 0 : index
    %118 = vector.load %arg31[%c1_123, %c0_124] : memref<18x320xf32, #tpu.memory_space<vmem>>, vector<8x160xf32>
    %119 = arith.truncf %118 : vector<8x160xf32> to vector<8x160xbf16>
    %c1_125 = arith.constant 1 : index
    %c0_126 = arith.constant 0 : index
    %c0_127 = arith.constant 0 : index
    %120 = vector.load %arg7[%c1_125, %c0_126, %c0_127] : memref<3x160x320xbf16, #tpu.memory_space<vmem>>, vector<1x160x320xbf16>
    %121 = vector.shape_cast %120 : vector<1x160x320xbf16> to vector<160x320xbf16>
    %cst_128 = arith.constant dense<0.000000e+00> : vector<8x320xf32>
    %122 = tpu.matmul %119, %121, %cst_128 {dimension_numbers = #tpu.dot_dimension_numbers<[1], [0], [0], [1], [0, 0, 1, 1], [], []>} : vector<8x160xbf16>, vector<160x320xbf16>, vector<8x320xf32> -> vector<8x320xf32>
    %123 = arith.addf %117, %122 : vector<8x320xf32>
    %c2_129 = arith.constant 2 : index
    %c0_130 = arith.constant 0 : index
    %124 = vector.load %arg31[%c2_129, %c0_130] : memref<18x320xf32, #tpu.memory_space<vmem>>, vector<8x160xf32>
    %125 = arith.truncf %124 : vector<8x160xf32> to vector<8x160xbf16>
    %c2_131 = arith.constant 2 : index
    %c0_132 = arith.constant 0 : index
    %c0_133 = arith.constant 0 : index
    %126 = vector.load %arg7[%c2_131, %c0_132, %c0_133] : memref<3x160x320xbf16, #tpu.memory_space<vmem>>, vector<1x160x320xbf16>
    %127 = vector.shape_cast %126 : vector<1x160x320xbf16> to vector<160x320xbf16>
    %cst_134 = arith.constant dense<0.000000e+00> : vector<8x320xf32>
    %128 = tpu.matmul %125, %127, %cst_134 {dimension_numbers = #tpu.dot_dimension_numbers<[1], [0], [0], [1], [0, 0, 1, 1], [], []>} : vector<8x160xbf16>, vector<160x320xbf16>, vector<8x320xf32> -> vector<8x320xf32>
    %129 = arith.addf %123, %128 : vector<8x320xf32>
    %c0_135 = arith.constant 0 : index
    %c0_136 = arith.constant 0 : index
    %130 = vector.load %arg8[%c0_135, %c0_136] : memref<1x320xf32, #tpu.memory_space<vmem>>, vector<1x320xf32>
    %131 = vector.broadcast %130 : vector<1x320xf32> to vector<8x320xf32>
    %132 = arith.addf %129, %131 : vector<8x320xf32>
    %cst_137 = arith.constant 0.000000e+00 : f32
    %133 = vector.broadcast %cst_137 : f32 to vector<8x320xf32>
    %134 = arith.maximumf %132, %133 : vector<8x320xf32>
    %cst_138 = arith.constant 0.000000e+00 : f32
    %135 = vector.broadcast %cst_138 : f32 to vector<1x320xf32>
    %c0_139 = arith.constant 0 : index
    %c0_140 = arith.constant 0 : index
    %136 = vector.load %arg31[%c0_139, %c0_140] : memref<18x320xf32, #tpu.memory_space<vmem>>, vector<1x320xf32>
    tpu.vector_store %arg31[%c0_139, %c0_140], %135 {strides = array<i32>} : memref<18x320xf32, #tpu.memory_space<vmem>>, vector<1x320xf32>,
    %c9_141 = arith.constant 9 : index
    %c0_142 = arith.constant 0 : index
    %137 = vector.load %arg31[%c9_141, %c0_142] : memref<18x320xf32, #tpu.memory_space<vmem>>, vector<1x320xf32>
    tpu.vector_store %arg31[%c9_141, %c0_142], %135 {strides = array<i32>} : memref<18x320xf32, #tpu.memory_space<vmem>>, vector<1x320xf32>,
    %c1_143 = arith.constant 1 : index
    %c0_144 = arith.constant 0 : index
    %138 = vector.load %arg31[%c1_143, %c0_144] : memref<18x320xf32, #tpu.memory_space<vmem>>, vector<8x320xf32>
    tpu.vector_store %arg31[%c1_143, %c0_144], %134 {strides = array<i32>} : memref<18x320xf32, #tpu.memory_space<vmem>>, vector<8x320xf32>,
    %c0_145 = arith.constant 0 : index
    %c0_146 = arith.constant 0 : index
    %139 = vector.load %arg31[%c0_145, %c0_146] : memref<18x320xf32, #tpu.memory_space<vmem>>, vector<8x320xf32>
    %140 = arith.truncf %139 : vector<8x320xf32> to vector<8x320xbf16>
    %c0_147 = arith.constant 0 : index
    %c0_148 = arith.constant 0 : index
    %c0_149 = arith.constant 0 : index
    %141 = vector.load %arg9[%c0_147, %c0_148, %c0_149] : memref<3x320x160xbf16, #tpu.memory_space<vmem>>, vector<1x320x160xbf16>
    %142 = vector.shape_cast %141 : vector<1x320x160xbf16> to vector<320x160xbf16>
    %cst_150 = arith.constant dense<0.000000e+00> : vector<8x160xf32>
    %143 = tpu.matmul %140, %142, %cst_150 {dimension_numbers = #tpu.dot_dimension_numbers<[1], [0], [0], [1], [0, 0, 1, 1], [], []>} : vector<8x320xbf16>, vector<320x160xbf16>, vector<8x160xf32> -> vector<8x160xf32>
    %c1_151 = arith.constant 1 : index
    %c0_152 = arith.constant 0 : index
    %144 = vector.load %arg31[%c1_151, %c0_152] : memref<18x320xf32, #tpu.memory_space<vmem>>, vector<8x320xf32>
    %145 = arith.truncf %144 : vector<8x320xf32> to vector<8x320xbf16>
    %c1_153 = arith.constant 1 : index
    %c0_154 = arith.constant 0 : index
    %c0_155 = arith.constant 0 : index
    %146 = vector.load %arg9[%c1_153, %c0_154, %c0_155] : memref<3x320x160xbf16, #tpu.memory_space<vmem>>, vector<1x320x160xbf16>
    %147 = vector.shape_cast %146 : vector<1x320x160xbf16> to vector<320x160xbf16>
    %cst_156 = arith.constant dense<0.000000e+00> : vector<8x160xf32>
    %148 = tpu.matmul %145, %147, %cst_156 {dimension_numbers = #tpu.dot_dimension_numbers<[1], [0], [0], [1], [0, 0, 1, 1], [], []>} : vector<8x320xbf16>, vector<320x160xbf16>, vector<8x160xf32> -> vector<8x160xf32>
    %149 = arith.addf %143, %148 : vector<8x160xf32>
    %c2_157 = arith.constant 2 : index
    %c0_158 = arith.constant 0 : index
    %150 = vector.load %arg31[%c2_157, %c0_158] : memref<18x320xf32, #tpu.memory_space<vmem>>, vector<8x320xf32>
    %151 = arith.truncf %150 : vector<8x320xf32> to vector<8x320xbf16>
    %c2_159 = arith.constant 2 : index
    %c0_160 = arith.constant 0 : index
    %c0_161 = arith.constant 0 : index
    %152 = vector.load %arg9[%c2_159, %c0_160, %c0_161] : memref<3x320x160xbf16, #tpu.memory_space<vmem>>, vector<1x320x160xbf16>
    %153 = vector.shape_cast %152 : vector<1x320x160xbf16> to vector<320x160xbf16>
    %cst_162 = arith.constant dense<0.000000e+00> : vector<8x160xf32>
    %154 = tpu.matmul %151, %153, %cst_162 {dimension_numbers = #tpu.dot_dimension_numbers<[1], [0], [0], [1], [0, 0, 1, 1], [], []>} : vector<8x320xbf16>, vector<320x160xbf16>, vector<8x160xf32> -> vector<8x160xf32>
    %155 = arith.addf %149, %154 : vector<8x160xf32>
    %c0_163 = arith.constant 0 : index
    %c0_164 = arith.constant 0 : index
    %156 = vector.load %arg11[%c0_163, %c0_164] : memref<1x160xf32, #tpu.memory_space<vmem>>, vector<1x160xf32>
    %157 = vector.broadcast %156 : vector<1x160xf32> to vector<8x160xf32>
    %158 = arith.addf %155, %157 : vector<8x160xf32>
    %cst_165 = arith.constant 0.000000e+00 : f32
    %159 = vector.broadcast %cst_165 : f32 to vector<8x160xf32>
    %160 = arith.maximumf %158, %159 : vector<8x160xf32>
    %c0_166 = arith.constant 0 : index
    %c0_167 = arith.constant 0 : index
    %161 = vector.load %arg31[%c0_166, %c0_167] : memref<18x320xf32, #tpu.memory_space<vmem>>, vector<8x320xf32>
    %162 = arith.truncf %161 : vector<8x320xf32> to vector<8x320xbf16>
    %c0_168 = arith.constant 0 : index
    %c0_169 = arith.constant 0 : index
    %c0_170 = arith.constant 0 : index
    %163 = vector.load %arg10[%c0_168, %c0_169, %c0_170] : memref<3x320x160xbf16, #tpu.memory_space<vmem>>, vector<1x320x160xbf16>
    %164 = vector.shape_cast %163 : vector<1x320x160xbf16> to vector<320x160xbf16>
    %cst_171 = arith.constant dense<0.000000e+00> : vector<8x160xf32>
    %165 = tpu.matmul %162, %164, %cst_171 {dimension_numbers = #tpu.dot_dimension_numbers<[1], [0], [0], [1], [0, 0, 1, 1], [], []>} : vector<8x320xbf16>, vector<320x160xbf16>, vector<8x160xf32> -> vector<8x160xf32>
    %c1_172 = arith.constant 1 : index
    %c0_173 = arith.constant 0 : index
    %166 = vector.load %arg31[%c1_172, %c0_173] : memref<18x320xf32, #tpu.memory_space<vmem>>, vector<8x320xf32>
    %167 = arith.truncf %166 : vector<8x320xf32> to vector<8x320xbf16>
    %c1_174 = arith.constant 1 : index
    %c0_175 = arith.constant 0 : index
    %c0_176 = arith.constant 0 : index
    %168 = vector.load %arg10[%c1_174, %c0_175, %c0_176] : memref<3x320x160xbf16, #tpu.memory_space<vmem>>, vector<1x320x160xbf16>
    %169 = vector.shape_cast %168 : vector<1x320x160xbf16> to vector<320x160xbf16>
    %cst_177 = arith.constant dense<0.000000e+00> : vector<8x160xf32>
    %170 = tpu.matmul %167, %169, %cst_177 {dimension_numbers = #tpu.dot_dimension_numbers<[1], [0], [0], [1], [0, 0, 1, 1], [], []>} : vector<8x320xbf16>, vector<320x160xbf16>, vector<8x160xf32> -> vector<8x160xf32>
    %171 = arith.addf %165, %170 : vector<8x160xf32>
    %c2_178 = arith.constant 2 : index
    %c0_179 = arith.constant 0 : index
    %172 = vector.load %arg31[%c2_178, %c0_179] : memref<18x320xf32, #tpu.memory_space<vmem>>, vector<8x320xf32>
    %173 = arith.truncf %172 : vector<8x320xf32> to vector<8x320xbf16>
    %c2_180 = arith.constant 2 : index
    %c0_181 = arith.constant 0 : index
    %c0_182 = arith.constant 0 : index
    %174 = vector.load %arg10[%c2_180, %c0_181, %c0_182] : memref<3x320x160xbf16, #tpu.memory_space<vmem>>, vector<1x320x160xbf16>
    %175 = vector.shape_cast %174 : vector<1x320x160xbf16> to vector<320x160xbf16>
    %cst_183 = arith.constant dense<0.000000e+00> : vector<8x160xf32>
    %176 = tpu.matmul %173, %175, %cst_183 {dimension_numbers = #tpu.dot_dimension_numbers<[1], [0], [0], [1], [0, 0, 1, 1], [], []>} : vector<8x320xbf16>, vector<320x160xbf16>, vector<8x160xf32> -> vector<8x160xf32>
    %177 = arith.addf %171, %176 : vector<8x160xf32>
    %c0_184 = arith.constant 0 : index
    %c0_185 = arith.constant 0 : index
    %178 = vector.load %arg11[%c0_184, %c0_185] : memref<1x160xf32, #tpu.memory_space<vmem>>, vector<1x160xf32>
    %179 = vector.broadcast %178 : vector<1x160xf32> to vector<8x160xf32>
    %180 = arith.addf %177, %179 : vector<8x160xf32>
    %cst_186 = arith.constant 0.000000e+00 : f32
    %181 = vector.broadcast %cst_186 : f32 to vector<8x160xf32>
    %182 = arith.maximumf %180, %181 : vector<8x160xf32>
    %183 = arith.maximumf %160, %182 : vector<8x160xf32>
    %c0_187 = arith.constant 0 : index
    %c0_188 = arith.constant 0 : index
    %184 = vector.load %arg32[%c0_187, %c0_188] : memref<16x320xf32, #tpu.memory_space<vmem>>, vector<8x160xf32>
    tpu.vector_store %arg32[%c0_187, %c0_188], %183 {strides = array<i32>} : memref<16x320xf32, #tpu.memory_space<vmem>>, vector<8x160xf32>,
    %cst_189 = arith.constant 0.000000e+00 : f32
    %185 = vector.broadcast %cst_189 : f32 to vector<1x160xf32>
    %c0_190 = arith.constant 0 : index
    %c0_191 = arith.constant 0 : index
    %186 = vector.load %arg31[%c0_190, %c0_191] : memref<18x320xf32, #tpu.memory_space<vmem>>, vector<1x160xf32>
    tpu.vector_store %arg31[%c0_190, %c0_191], %185 {strides = array<i32>} : memref<18x320xf32, #tpu.memory_space<vmem>>, vector<1x160xf32>,
    %c5_192 = arith.constant 5 : index
    %c0_193 = arith.constant 0 : index
    %187 = vector.load %arg31[%c5_192, %c0_193] : memref<18x320xf32, #tpu.memory_space<vmem>>, vector<1x160xf32>
    tpu.vector_store %arg31[%c5_192, %c0_193], %185 {strides = array<i32>} : memref<18x320xf32, #tpu.memory_space<vmem>>, vector<1x160xf32>,
    %c0_194 = arith.constant 0 : index
    %c0_195 = arith.constant 0 : index
    %188 = vector.load %arg32[%c0_194, %c0_195] : memref<16x320xf32, #tpu.memory_space<vmem>>, vector<1x160xf32>
    %c1_196 = arith.constant 1 : index
    %c0_197 = arith.constant 0 : index
    %189 = vector.load %arg32[%c1_196, %c0_197] : memref<16x320xf32, #tpu.memory_space<vmem>>, vector<1x160xf32>
    %190 = arith.maximumf %188, %189 : vector<1x160xf32>
    %c1_198 = arith.constant 1 : index
    %c0_199 = arith.constant 0 : index
    %191 = vector.load %arg31[%c1_198, %c0_199] : memref<18x320xf32, #tpu.memory_space<vmem>>, vector<1x160xf32>
    tpu.vector_store %arg31[%c1_198, %c0_199], %190 {strides = array<i32>} : memref<18x320xf32, #tpu.memory_space<vmem>>, vector<1x160xf32>,
    %c2_200 = arith.constant 2 : index
    %c0_201 = arith.constant 0 : index
    %192 = vector.load %arg32[%c2_200, %c0_201] : memref<16x320xf32, #tpu.memory_space<vmem>>, vector<1x160xf32>
    %c3_202 = arith.constant 3 : index
    %c0_203 = arith.constant 0 : index
    %193 = vector.load %arg32[%c3_202, %c0_203] : memref<16x320xf32, #tpu.memory_space<vmem>>, vector<1x160xf32>
    %194 = arith.maximumf %192, %193 : vector<1x160xf32>
    %c2_204 = arith.constant 2 : index
    %c0_205 = arith.constant 0 : index
    %195 = vector.load %arg31[%c2_204, %c0_205] : memref<18x320xf32, #tpu.memory_space<vmem>>, vector<1x160xf32>
    tpu.vector_store %arg31[%c2_204, %c0_205], %194 {strides = array<i32>} : memref<18x320xf32, #tpu.memory_space<vmem>>, vector<1x160xf32>,
    %c4_206 = arith.constant 4 : index
    %c0_207 = arith.constant 0 : index
    %196 = vector.load %arg32[%c4_206, %c0_207] : memref<16x320xf32, #tpu.memory_space<vmem>>, vector<1x160xf32>
    %c5_208 = arith.constant 5 : index
    %c0_209 = arith.constant 0 : index
    %197 = vector.load %arg32[%c5_208, %c0_209] : memref<16x320xf32, #tpu.memory_space<vmem>>, vector<1x160xf32>
    %198 = arith.maximumf %196, %197 : vector<1x160xf32>
    %c3_210 = arith.constant 3 : index
    %c0_211 = arith.constant 0 : index
    %199 = vector.load %arg31[%c3_210, %c0_211] : memref<18x320xf32, #tpu.memory_space<vmem>>, vector<1x160xf32>
    tpu.vector_store %arg31[%c3_210, %c0_211], %198 {strides = array<i32>} : memref<18x320xf32, #tpu.memory_space<vmem>>, vector<1x160xf32>,
    %c6_212 = arith.constant 6 : index
    %c0_213 = arith.constant 0 : index
    %200 = vector.load %arg32[%c6_212, %c0_213] : memref<16x320xf32, #tpu.memory_space<vmem>>, vector<1x160xf32>
    %c7_214 = arith.constant 7 : index
    %c0_215 = arith.constant 0 : index
    %201 = vector.load %arg32[%c7_214, %c0_215] : memref<16x320xf32, #tpu.memory_space<vmem>>, vector<1x160xf32>
    %202 = arith.maximumf %200, %201 : vector<1x160xf32>
    %c4_216 = arith.constant 4 : index
    %c0_217 = arith.constant 0 : index
    %203 = vector.load %arg31[%c4_216, %c0_217] : memref<18x320xf32, #tpu.memory_space<vmem>>, vector<1x160xf32>
    tpu.vector_store %arg31[%c4_216, %c0_217], %202 {strides = array<i32>} : memref<18x320xf32, #tpu.memory_space<vmem>>, vector<1x160xf32>,
    %c0_218 = arith.constant 0 : index
    %c0_219 = arith.constant 0 : index
    %204 = vector.load %arg31[%c0_218, %c0_219] : memref<18x320xf32, #tpu.memory_space<vmem>>, vector<4x160xf32>
    %205 = arith.truncf %204 : vector<4x160xf32> to vector<4x160xbf16>
    %c0_220 = arith.constant 0 : index
    %c0_221 = arith.constant 0 : index
    %c0_222 = arith.constant 0 : index
    %206 = vector.load %arg12[%c0_220, %c0_221, %c0_222] : memref<3x160x320xbf16, #tpu.memory_space<vmem>>, vector<1x160x320xbf16>
    %207 = vector.shape_cast %206 : vector<1x160x320xbf16> to vector<160x320xbf16>
    %cst_223 = arith.constant dense<0.000000e+00> : vector<4x320xf32>
    %208 = tpu.matmul %205, %207, %cst_223 {dimension_numbers = #tpu.dot_dimension_numbers<[1], [0], [0], [1], [0, 0, 1, 1], [], []>} : vector<4x160xbf16>, vector<160x320xbf16>, vector<4x320xf32> -> vector<4x320xf32>
    %c1_224 = arith.constant 1 : index
    %c0_225 = arith.constant 0 : index
    %209 = vector.load %arg31[%c1_224, %c0_225] : memref<18x320xf32, #tpu.memory_space<vmem>>, vector<4x160xf32>
    %210 = arith.truncf %209 : vector<4x160xf32> to vector<4x160xbf16>
    %c1_226 = arith.constant 1 : index
    %c0_227 = arith.constant 0 : index
    %c0_228 = arith.constant 0 : index
    %211 = vector.load %arg12[%c1_226, %c0_227, %c0_228] : memref<3x160x320xbf16, #tpu.memory_space<vmem>>, vector<1x160x320xbf16>
    %212 = vector.shape_cast %211 : vector<1x160x320xbf16> to vector<160x320xbf16>
    %cst_229 = arith.constant dense<0.000000e+00> : vector<4x320xf32>
    %213 = tpu.matmul %210, %212, %cst_229 {dimension_numbers = #tpu.dot_dimension_numbers<[1], [0], [0], [1], [0, 0, 1, 1], [], []>} : vector<4x160xbf16>, vector<160x320xbf16>, vector<4x320xf32> -> vector<4x320xf32>
    %214 = arith.addf %208, %213 : vector<4x320xf32>
    %c2_230 = arith.constant 2 : index
    %c0_231 = arith.constant 0 : index
    %215 = vector.load %arg31[%c2_230, %c0_231] : memref<18x320xf32, #tpu.memory_space<vmem>>, vector<4x160xf32>
    %216 = arith.truncf %215 : vector<4x160xf32> to vector<4x160xbf16>
    %c2_232 = arith.constant 2 : index
    %c0_233 = arith.constant 0 : index
    %c0_234 = arith.constant 0 : index
    %217 = vector.load %arg12[%c2_232, %c0_233, %c0_234] : memref<3x160x320xbf16, #tpu.memory_space<vmem>>, vector<1x160x320xbf16>
    %218 = vector.shape_cast %217 : vector<1x160x320xbf16> to vector<160x320xbf16>
    %cst_235 = arith.constant dense<0.000000e+00> : vector<4x320xf32>
    %219 = tpu.matmul %216, %218, %cst_235 {dimension_numbers = #tpu.dot_dimension_numbers<[1], [0], [0], [1], [0, 0, 1, 1], [], []>} : vector<4x160xbf16>, vector<160x320xbf16>, vector<4x320xf32> -> vector<4x320xf32>
    %220 = arith.addf %214, %219 : vector<4x320xf32>
    %c0_236 = arith.constant 0 : index
    %c0_237 = arith.constant 0 : index
    %221 = vector.load %arg13[%c0_236, %c0_237] : memref<1x320xf32, #tpu.memory_space<vmem>>, vector<1x320xf32>
    %222 = vector.broadcast %221 : vector<1x320xf32> to vector<4x320xf32>
    %223 = arith.addf %220, %222 : vector<4x320xf32>
    %cst_238 = arith.constant 0.000000e+00 : f32
    %224 = vector.broadcast %cst_238 : f32 to vector<4x320xf32>
    %225 = arith.maximumf %223, %224 : vector<4x320xf32>
    %cst_239 = arith.constant 0.000000e+00 : f32
    %226 = vector.broadcast %cst_239 : f32 to vector<1x320xf32>
    %c0_240 = arith.constant 0 : index
    %c0_241 = arith.constant 0 : index
    %227 = vector.load %arg31[%c0_240, %c0_241] : memref<18x320xf32, #tpu.memory_space<vmem>>, vector<1x320xf32>
    tpu.vector_store %arg31[%c0_240, %c0_241], %226 {strides = array<i32>} : memref<18x320xf32, #tpu.memory_space<vmem>>, vector<1x320xf32>,
    %c5_242 = arith.constant 5 : index
    %c0_243 = arith.constant 0 : index
    %228 = vector.load %arg31[%c5_242, %c0_243] : memref<18x320xf32, #tpu.memory_space<vmem>>, vector<1x320xf32>
    tpu.vector_store %arg31[%c5_242, %c0_243], %226 {strides = array<i32>} : memref<18x320xf32, #tpu.memory_space<vmem>>, vector<1x320xf32>,
    %c1_244 = arith.constant 1 : index
    %c0_245 = arith.constant 0 : index
    %229 = vector.load %arg31[%c1_244, %c0_245] : memref<18x320xf32, #tpu.memory_space<vmem>>, vector<4x320xf32>
    tpu.vector_store %arg31[%c1_244, %c0_245], %225 {strides = array<i32>} : memref<18x320xf32, #tpu.memory_space<vmem>>, vector<4x320xf32>,
    %c0_246 = arith.constant 0 : index
    %c0_247 = arith.constant 0 : index
    %230 = vector.load %arg31[%c0_246, %c0_247] : memref<18x320xf32, #tpu.memory_space<vmem>>, vector<4x320xf32>
    %231 = arith.truncf %230 : vector<4x320xf32> to vector<4x320xbf16>
    %c0_248 = arith.constant 0 : index
    %c0_249 = arith.constant 0 : index
    %c0_250 = arith.constant 0 : index
    %232 = vector.load %arg14[%c0_248, %c0_249, %c0_250] : memref<3x320x160xbf16, #tpu.memory_space<vmem>>, vector<1x320x160xbf16>
    %233 = vector.shape_cast %232 : vector<1x320x160xbf16> to vector<320x160xbf16>
    %cst_251 = arith.constant dense<0.000000e+00> : vector<4x160xf32>
    %234 = tpu.matmul %231, %233, %cst_251 {dimension_numbers = #tpu.dot_dimension_numbers<[1], [0], [0], [1], [0, 0, 1, 1], [], []>} : vector<4x320xbf16>, vector<320x160xbf16>, vector<4x160xf32> -> vector<4x160xf32>
    %c1_252 = arith.constant 1 : index
    %c0_253 = arith.constant 0 : index
    %235 = vector.load %arg31[%c1_252, %c0_253] : memref<18x320xf32, #tpu.memory_space<vmem>>, vector<4x320xf32>
    %236 = arith.truncf %235 : vector<4x320xf32> to vector<4x320xbf16>
    %c1_254 = arith.constant 1 : index
    %c0_255 = arith.constant 0 : index
    %c0_256 = arith.constant 0 : index
    %237 = vector.load %arg14[%c1_254, %c0_255, %c0_256] : memref<3x320x160xbf16, #tpu.memory_space<vmem>>, vector<1x320x160xbf16>
    %238 = vector.shape_cast %237 : vector<1x320x160xbf16> to vector<320x160xbf16>
    %cst_257 = arith.constant dense<0.000000e+00> : vector<4x160xf32>
    %239 = tpu.matmul %236, %238, %cst_257 {dimension_numbers = #tpu.dot_dimension_numbers<[1], [0], [0], [1], [0, 0, 1, 1], [], []>} : vector<4x320xbf16>, vector<320x160xbf16>, vector<4x160xf32> -> vector<4x160xf32>
    %240 = arith.addf %234, %239 : vector<4x160xf32>
    %c2_258 = arith.constant 2 : index
    %c0_259 = arith.constant 0 : index
    %241 = vector.load %arg31[%c2_258, %c0_259] : memref<18x320xf32, #tpu.memory_space<vmem>>, vector<4x320xf32>
    %242 = arith.truncf %241 : vector<4x320xf32> to vector<4x320xbf16>
    %c2_260 = arith.constant 2 : index
    %c0_261 = arith.constant 0 : index
    %c0_262 = arith.constant 0 : index
    %243 = vector.load %arg14[%c2_260, %c0_261, %c0_262] : memref<3x320x160xbf16, #tpu.memory_space<vmem>>, vector<1x320x160xbf16>
    %244 = vector.shape_cast %243 : vector<1x320x160xbf16> to vector<320x160xbf16>
    %cst_263 = arith.constant dense<0.000000e+00> : vector<4x160xf32>
    %245 = tpu.matmul %242, %244, %cst_263 {dimension_numbers = #tpu.dot_dimension_numbers<[1], [0], [0], [1], [0, 0, 1, 1], [], []>} : vector<4x320xbf16>, vector<320x160xbf16>, vector<4x160xf32> -> vector<4x160xf32>
    %246 = arith.addf %240, %245 : vector<4x160xf32>
    %c0_264 = arith.constant 0 : index
    %c0_265 = arith.constant 0 : index
    %247 = vector.load %arg16[%c0_264, %c0_265] : memref<1x160xf32, #tpu.memory_space<vmem>>, vector<1x160xf32>
    %248 = vector.broadcast %247 : vector<1x160xf32> to vector<4x160xf32>
    %249 = arith.addf %246, %248 : vector<4x160xf32>
    %cst_266 = arith.constant 0.000000e+00 : f32
    %250 = vector.broadcast %cst_266 : f32 to vector<4x160xf32>
    %251 = arith.maximumf %249, %250 : vector<4x160xf32>
    %c0_267 = arith.constant 0 : index
    %c0_268 = arith.constant 0 : index
    %252 = vector.load %arg31[%c0_267, %c0_268] : memref<18x320xf32, #tpu.memory_space<vmem>>, vector<4x320xf32>
    %253 = arith.truncf %252 : vector<4x320xf32> to vector<4x320xbf16>
    %c0_269 = arith.constant 0 : index
    %c0_270 = arith.constant 0 : index
    %c0_271 = arith.constant 0 : index
    %254 = vector.load %arg15[%c0_269, %c0_270, %c0_271] : memref<3x320x160xbf16, #tpu.memory_space<vmem>>, vector<1x320x160xbf16>
    %255 = vector.shape_cast %254 : vector<1x320x160xbf16> to vector<320x160xbf16>
    %cst_272 = arith.constant dense<0.000000e+00> : vector<4x160xf32>
    %256 = tpu.matmul %253, %255, %cst_272 {dimension_numbers = #tpu.dot_dimension_numbers<[1], [0], [0], [1], [0, 0, 1, 1], [], []>} : vector<4x320xbf16>, vector<320x160xbf16>, vector<4x160xf32> -> vector<4x160xf32>
    %c1_273 = arith.constant 1 : index
    %c0_274 = arith.constant 0 : index
    %257 = vector.load %arg31[%c1_273, %c0_274] : memref<18x320xf32, #tpu.memory_space<vmem>>, vector<4x320xf32>
    %258 = arith.truncf %257 : vector<4x320xf32> to vector<4x320xbf16>
    %c1_275 = arith.constant 1 : index
    %c0_276 = arith.constant 0 : index
    %c0_277 = arith.constant 0 : index
    %259 = vector.load %arg15[%c1_275, %c0_276, %c0_277] : memref<3x320x160xbf16, #tpu.memory_space<vmem>>, vector<1x320x160xbf16>
    %260 = vector.shape_cast %259 : vector<1x320x160xbf16> to vector<320x160xbf16>
    %cst_278 = arith.constant dense<0.000000e+00> : vector<4x160xf32>
    %261 = tpu.matmul %258, %260, %cst_278 {dimension_numbers = #tpu.dot_dimension_numbers<[1], [0], [0], [1], [0, 0, 1, 1], [], []>} : vector<4x320xbf16>, vector<320x160xbf16>, vector<4x160xf32> -> vector<4x160xf32>
    %262 = arith.addf %256, %261 : vector<4x160xf32>
    %c2_279 = arith.constant 2 : index
    %c0_280 = arith.constant 0 : index
    %263 = vector.load %arg31[%c2_279, %c0_280] : memref<18x320xf32, #tpu.memory_space<vmem>>, vector<4x320xf32>
    %264 = arith.truncf %263 : vector<4x320xf32> to vector<4x320xbf16>
    %c2_281 = arith.constant 2 : index
    %c0_282 = arith.constant 0 : index
    %c0_283 = arith.constant 0 : index
    %265 = vector.load %arg15[%c2_281, %c0_282, %c0_283] : memref<3x320x160xbf16, #tpu.memory_space<vmem>>, vector<1x320x160xbf16>
    %266 = vector.shape_cast %265 : vector<1x320x160xbf16> to vector<320x160xbf16>
    %cst_284 = arith.constant dense<0.000000e+00> : vector<4x160xf32>
    %267 = tpu.matmul %264, %266, %cst_284 {dimension_numbers = #tpu.dot_dimension_numbers<[1], [0], [0], [1], [0, 0, 1, 1], [], []>} : vector<4x320xbf16>, vector<320x160xbf16>, vector<4x160xf32> -> vector<4x160xf32>
    %268 = arith.addf %262, %267 : vector<4x160xf32>
    %c0_285 = arith.constant 0 : index
    %c0_286 = arith.constant 0 : index
    %269 = vector.load %arg16[%c0_285, %c0_286] : memref<1x160xf32, #tpu.memory_space<vmem>>, vector<1x160xf32>
    %270 = vector.broadcast %269 : vector<1x160xf32> to vector<4x160xf32>
    %271 = arith.addf %268, %270 : vector<4x160xf32>
    %cst_287 = arith.constant 0.000000e+00 : f32
    %272 = vector.broadcast %cst_287 : f32 to vector<4x160xf32>
    %273 = arith.maximumf %271, %272 : vector<4x160xf32>
    %274 = arith.maximumf %251, %273 : vector<4x160xf32>
    %c0_288 = arith.constant 0 : index
    %c0_289 = arith.constant 0 : index
    %275 = vector.load %arg32[%c0_288, %c0_289] : memref<16x320xf32, #tpu.memory_space<vmem>>, vector<4x160xf32>
    tpu.vector_store %arg32[%c0_288, %c0_289], %274 {strides = array<i32>} : memref<16x320xf32, #tpu.memory_space<vmem>>, vector<4x160xf32>,
    %cst_290 = arith.constant 0.000000e+00 : f32
    %276 = vector.broadcast %cst_290 : f32 to vector<1x160xf32>
    %c0_291 = arith.constant 0 : index
    %c0_292 = arith.constant 0 : index
    %277 = vector.load %arg31[%c0_291, %c0_292] : memref<18x320xf32, #tpu.memory_space<vmem>>, vector<1x160xf32>
    tpu.vector_store %arg31[%c0_291, %c0_292], %276 {strides = array<i32>} : memref<18x320xf32, #tpu.memory_space<vmem>>, vector<1x160xf32>,
    %c3_293 = arith.constant 3 : index
    %c0_294 = arith.constant 0 : index
    %278 = vector.load %arg31[%c3_293, %c0_294] : memref<18x320xf32, #tpu.memory_space<vmem>>, vector<1x160xf32>
    tpu.vector_store %arg31[%c3_293, %c0_294], %276 {strides = array<i32>} : memref<18x320xf32, #tpu.memory_space<vmem>>, vector<1x160xf32>,
    %c0_295 = arith.constant 0 : index
    %c0_296 = arith.constant 0 : index
    %279 = vector.load %arg32[%c0_295, %c0_296] : memref<16x320xf32, #tpu.memory_space<vmem>>, vector<1x160xf32>
    %c1_297 = arith.constant 1 : index
    %c0_298 = arith.constant 0 : index
    %280 = vector.load %arg32[%c1_297, %c0_298] : memref<16x320xf32, #tpu.memory_space<vmem>>, vector<1x160xf32>
    %281 = arith.maximumf %279, %280 : vector<1x160xf32>
    %c1_299 = arith.constant 1 : index
    %c0_300 = arith.constant 0 : index
    %282 = vector.load %arg31[%c1_299, %c0_300] : memref<18x320xf32, #tpu.memory_space<vmem>>, vector<1x160xf32>
    tpu.vector_store %arg31[%c1_299, %c0_300], %281 {strides = array<i32>} : memref<18x320xf32, #tpu.memory_space<vmem>>, vector<1x160xf32>,
    %c2_301 = arith.constant 2 : index
    %c0_302 = arith.constant 0 : index
    %283 = vector.load %arg32[%c2_301, %c0_302] : memref<16x320xf32, #tpu.memory_space<vmem>>, vector<1x160xf32>
    %c3_303 = arith.constant 3 : index
    %c0_304 = arith.constant 0 : index
    %284 = vector.load %arg32[%c3_303, %c0_304] : memref<16x320xf32, #tpu.memory_space<vmem>>, vector<1x160xf32>
    %285 = arith.maximumf %283, %284 : vector<1x160xf32>
    %c2_305 = arith.constant 2 : index
    %c0_306 = arith.constant 0 : index
    %286 = vector.load %arg31[%c2_305, %c0_306] : memref<18x320xf32, #tpu.memory_space<vmem>>, vector<1x160xf32>
    tpu.vector_store %arg31[%c2_305, %c0_306], %285 {strides = array<i32>} : memref<18x320xf32, #tpu.memory_space<vmem>>, vector<1x160xf32>,
    %c1_307 = arith.constant 1 : index
    %c0_308 = arith.constant 0 : index
    %287 = vector.load %arg31[%c1_307, %c0_308] : memref<18x320xf32, #tpu.memory_space<vmem>>, vector<2x160xf32>
    %c0_309 = arith.constant 0 : index
    %c0_310 = arith.constant 0 : index
    %288 = vector.load %arg17[%c0_309, %c0_310] : memref<160x1xf32, #tpu.memory_space<vmem>>, vector<160x1xf32>
    %cst_311 = arith.constant dense<0.000000e+00> : vector<2x1xf32>
    %289 = tpu.matmul %287, %288, %cst_311 {dimension_numbers = #tpu.dot_dimension_numbers<[1], [0], [0], [1], [0, 0, 1, 1], [], []>} : vector<2x160xf32>, vector<160x1xf32>, vector<2x1xf32> -> vector<2x1xf32>
    %cst_312 = arith.constant dense<0xFF800000> : vector<1xf32>
    %290 = vector.multi_reduction <maximumf>, %289, %cst_312 [0] : vector<2x1xf32> to vector<1xf32>
    %291 = vector.shape_cast %290 : vector<1xf32> to vector<1x1xf32>
    %292 = vector.broadcast %291 : vector<1x1xf32> to vector<2x1xf32>
    %293 = arith.subf %289, %292 : vector<2x1xf32>
    %294 = math.exp %293 : vector<2x1xf32>
    %cst_313 = arith.constant dense<0.000000e+00> : vector<1xf32>
    %295 = vector.multi_reduction <add>, %294, %cst_313 [0] : vector<2x1xf32> to vector<1xf32>
    %296 = vector.shape_cast %295 : vector<1xf32> to vector<1x1xf32>
    %297 = vector.broadcast %296 : vector<1x1xf32> to vector<2x1xf32>
    %298 = arith.divf %294, %297 : vector<2x1xf32>
    %299 = vector.broadcast %298 : vector<2x1xf32> to vector<2x160xf32>
    %300 = arith.mulf %287, %299 : vector<2x160xf32>
    %cst_314 = arith.constant dense<0.000000e+00> : vector<160xf32>
    %301 = vector.multi_reduction <add>, %300, %cst_314 [0] : vector<2x160xf32> to vector<160xf32>
    %302 = vector.shape_cast %301 : vector<160xf32> to vector<1x160xf32>
    %c0_315 = arith.constant 0 : index
    %c0_316 = arith.constant 0 : index
    %303 = vector.load %arg18[%c0_315, %c0_316] : memref<160x32xf32, #tpu.memory_space<vmem>>, vector<160x32xf32>
    %cst_317 = arith.constant dense<0.000000e+00> : vector<1x32xf32>
    %304 = tpu.matmul %302, %303, %cst_317 {dimension_numbers = #tpu.dot_dimension_numbers<[1], [0], [0], [1], [0, 0, 1, 1], [], []>} : vector<1x160xf32>, vector<160x32xf32>, vector<1x32xf32> -> vector<1x32xf32>
    %c0_318 = arith.constant 0 : index
    %c0_319 = arith.constant 0 : index
    %305 = vector.load %arg19[%c0_318, %c0_319] : memref<1x32xf32, #tpu.memory_space<vmem>>, vector<1x32xf32>
    %306 = arith.addf %304, %305 : vector<1x32xf32>
    %cst_320 = arith.constant 0.000000e+00 : f32
    %307 = vector.broadcast %cst_320 : f32 to vector<1x32xf32>
    %308 = arith.maximumf %306, %307 : vector<1x32xf32>
    %c0_321 = arith.constant 0 : index
    %c0_322 = arith.constant 0 : index
    %309 = vector.load %arg20[%c0_321, %c0_322] : memref<32x32xf32, #tpu.memory_space<vmem>>, vector<32x32xf32>
    %cst_323 = arith.constant dense<0.000000e+00> : vector<1x32xf32>
    %310 = tpu.matmul %308, %309, %cst_323 {dimension_numbers = #tpu.dot_dimension_numbers<[1], [0], [0], [1], [0, 0, 1, 1], [], []>} : vector<1x32xf32>, vector<32x32xf32>, vector<1x32xf32> -> vector<1x32xf32>
    %c0_324 = arith.constant 0 : index
    %c0_325 = arith.constant 0 : index
    %311 = vector.load %arg21[%c0_324, %c0_325] : memref<1x32xf32, #tpu.memory_space<vmem>>, vector<1x32xf32>
    %312 = arith.addf %310, %311 : vector<1x32xf32>
    %cst_326 = arith.constant 0.000000e+00 : f32
    %313 = vector.broadcast %cst_326 : f32 to vector<1x32xf32>
    %314 = arith.maximumf %312, %313 : vector<1x32xf32>
    %c0_327 = arith.constant 0 : index
    %c0_328 = arith.constant 0 : index
    %315 = vector.load %arg24[%c0_327, %c0_328] : memref<1x32xf32, #tpu.memory_space<vmem>>, vector<1x32xf32>
    %316 = arith.subf %314, %315 : vector<1x32xf32>
    %c0_329 = arith.constant 0 : index
    %c0_330 = arith.constant 0 : index
    %317 = vector.load %arg25[%c0_329, %c0_330] : memref<1x32xf32, #tpu.memory_space<vmem>>, vector<1x32xf32>
    %cst_331 = arith.constant 9.99999974E-6 : f32
    %318 = vector.broadcast %cst_331 : f32 to vector<1x32xf32>
    %319 = arith.addf %317, %318 : vector<1x32xf32>
    %320 = math.rsqrt %319 : vector<1x32xf32>
    %321 = arith.mulf %316, %320 : vector<1x32xf32>
    %c0_332 = arith.constant 0 : index
    %c0_333 = arith.constant 0 : index
    %322 = vector.load %arg22[%c0_332, %c0_333] : memref<1x32xf32, #tpu.memory_space<vmem>>, vector<1x32xf32>
    %323 = arith.mulf %321, %322 : vector<1x32xf32>
    %c0_334 = arith.constant 0 : index
    %c0_335 = arith.constant 0 : index
    %324 = vector.load %arg23[%c0_334, %c0_335] : memref<1x32xf32, #tpu.memory_space<vmem>>, vector<1x32xf32>
    %325 = arith.addf %323, %324 : vector<1x32xf32>
    %c0_336 = arith.constant 0 : index
    %c0_337 = arith.constant 0 : index
    %326 = vector.load %arg26[%c0_336, %c0_337] : memref<32x32xf32, #tpu.memory_space<vmem>>, vector<32x32xf32>
    %cst_338 = arith.constant dense<0.000000e+00> : vector<1x32xf32>
    %327 = tpu.matmul %325, %326, %cst_338 {dimension_numbers = #tpu.dot_dimension_numbers<[1], [0], [0], [1], [0, 0, 1, 1], [], []>} : vector<1x32xf32>, vector<32x32xf32>, vector<1x32xf32> -> vector<1x32xf32>
    %c0_339 = arith.constant 0 : index
    %c0_340 = arith.constant 0 : index
    %328 = vector.load %arg27[%c0_339, %c0_340] : memref<1x32xf32, #tpu.memory_space<vmem>>, vector<1x32xf32>
    %329 = arith.addf %327, %328 : vector<1x32xf32>
    %330 = arith.mulf %329, %329 : vector<1x32xf32>
    %cst_341 = arith.constant dense<0.000000e+00> : vector<1xf32>
    %331 = vector.multi_reduction <add>, %330, %cst_341 [1] : vector<1x32xf32> to vector<1xf32>
    %332 = vector.shape_cast %331 : vector<1xf32> to vector<1x1xf32>
    %cst_342 = arith.constant 1.000000e-24 : f32
    %333 = vector.broadcast %cst_342 : f32 to vector<1x1xf32>
    %334 = arith.maximumf %332, %333 : vector<1x1xf32>
    %335 = math.rsqrt %334 : vector<1x1xf32>
    %336 = vector.broadcast %335 : vector<1x1xf32> to vector<1x32xf32>
    %337 = arith.mulf %329, %336 : vector<1x32xf32>
    %c0_343 = arith.constant 0 : index
    %c0_344 = arith.constant 0 : index
    %338 = vector.load %arg28[%c0_343, %c0_344] : memref<32x8xf32, #tpu.memory_space<vmem>>, vector<32x8xf32>
    %339 = arith.mulf %338, %338 : vector<32x8xf32>
    %cst_345 = arith.constant dense<0.000000e+00> : vector<8xf32>
    %340 = vector.multi_reduction <add>, %339, %cst_345 [0] : vector<32x8xf32> to vector<8xf32>
    %341 = vector.shape_cast %340 : vector<8xf32> to vector<1x8xf32>
    %cst_346 = arith.constant 1.000000e-24 : f32
    %342 = vector.broadcast %cst_346 : f32 to vector<1x8xf32>
    %343 = arith.maximumf %341, %342 : vector<1x8xf32>
    %344 = math.rsqrt %343 : vector<1x8xf32>
    %345 = vector.broadcast %344 : vector<1x8xf32> to vector<32x8xf32>
    %346 = arith.mulf %338, %345 : vector<32x8xf32>
    %cst_347 = arith.constant dense<0.000000e+00> : vector<1x8xf32>
    %347 = tpu.matmul %337, %346, %cst_347 {dimension_numbers = #tpu.dot_dimension_numbers<[1], [0], [0], [1], [0, 0, 1, 1], [], []>} : vector<1x32xf32>, vector<32x8xf32>, vector<1x8xf32> -> vector<1x8xf32>
    %c0_348 = arith.constant 0 : index
    %c0_349 = arith.constant 0 : index
    %c0_350 = arith.constant 0 : index
    %348 = vector.load %arg30[%c0_348, %c0_349, %c0_350] : memref<1x1x8xf32, #tpu.memory_space<vmem>>, vector<1x1x8xf32>
    %349 = vector.shape_cast %348 : vector<1x1x8xf32> to vector<1x8xf32>
    %350 = vector.shape_cast %347 : vector<1x8xf32> to vector<1x1x8xf32>
    tpu.vector_store %arg30[%c0_348, %c0_349, %c0_350], %350 {strides = array<i32>} : memref<1x1x8xf32, #tpu.memory_space<vmem>>, vector<1x1x8xf32>,
    %cst_351 = arith.constant 3.000000e+01 : f32
    %351 = vector.broadcast %cst_351 : f32 to vector<1x8xf32>
    %352 = arith.mulf %351, %347 : vector<1x8xf32>
    %c0_352 = arith.constant 0 : index
    %c0_353 = arith.constant 0 : index
    %c0_354 = arith.constant 0 : index
    %353 = vector.load %arg29[%c0_352, %c0_353, %c0_354] : memref<1x1x8xf32, #tpu.memory_space<vmem>>, vector<1x1x8xf32>
    %354 = vector.shape_cast %353 : vector<1x1x8xf32> to vector<1x8xf32>
    %355 = vector.shape_cast %352 : vector<1x8xf32> to vector<1x1x8xf32>
    tpu.vector_store %arg29[%c0_352, %c0_353, %c0_354], %355 {strides = array<i32>} : memref<1x1x8xf32, #tpu.memory_space<vmem>>, vector<1x1x8xf32>,
    return
  }
  func.func @transform_0(%arg0: i32) -> (i32, i32, i32) {
    %c0_i32 = arith.constant 0 : i32
    %c0_i32_0 = arith.constant 0 : i32
    %c0_i32_1 = arith.constant 0 : i32
    return %arg0, %c0_i32, %c0_i32_0 : i32, i32, i32
  }
  func.func @transform_1(%arg0: i32) -> (i32, i32, i32) {
    %c0_i32 = arith.constant 0 : i32
    %c0_i32_0 = arith.constant 0 : i32
    %c0_i32_1 = arith.constant 0 : i32
    %c0_i32_2 = arith.constant 0 : i32
    return %c0_i32, %c0_i32_0, %c0_i32_1 : i32, i32, i32
  }
  func.func @transform_2(%arg0: i32) -> (i32, i32) {
    %c0_i32 = arith.constant 0 : i32
    %c0_i32_0 = arith.constant 0 : i32
    %c0_i32_1 = arith.constant 0 : i32
    return %c0_i32, %c0_i32_0 : i32, i32
  }
  func.func @transform_3(%arg0: i32) -> (i32, i32, i32) {
    %c0_i32 = arith.constant 0 : i32
    %c0_i32_0 = arith.constant 0 : i32
    %c0_i32_1 = arith.constant 0 : i32
    %c0_i32_2 = arith.constant 0 : i32
    return %c0_i32, %c0_i32_0, %c0_i32_1 : i32, i32, i32
  }
  func.func @transform_4(%arg0: i32) -> (i32, i32, i32) {
    %c0_i32 = arith.constant 0 : i32
    %c0_i32_0 = arith.constant 0 : i32
    %c0_i32_1 = arith.constant 0 : i32
    %c0_i32_2 = arith.constant 0 : i32
    return %c0_i32, %c0_i32_0, %c0_i32_1 : i32, i32, i32
  }
  func.func @transform_5(%arg0: i32) -> (i32, i32) {
    %c0_i32 = arith.constant 0 : i32
    %c0_i32_0 = arith.constant 0 : i32
    %c0_i32_1 = arith.constant 0 : i32
    return %c0_i32, %c0_i32_0 : i32, i32
  }
  func.func @transform_6(%arg0: i32) -> (i32, i32, i32) {
    %c0_i32 = arith.constant 0 : i32
    %c0_i32_0 = arith.constant 0 : i32
    %c0_i32_1 = arith.constant 0 : i32
    %c0_i32_2 = arith.constant 0 : i32
    return %c0_i32, %c0_i32_0, %c0_i32_1 : i32, i32, i32
  }
  func.func @transform_7(%arg0: i32) -> (i32, i32) {
    %c0_i32 = arith.constant 0 : i32
    %c0_i32_0 = arith.constant 0 : i32
    %c0_i32_1 = arith.constant 0 : i32
    return %c0_i32, %c0_i32_0 : i32, i32
  }
  func.func @transform_8(%arg0: i32) -> (i32, i32, i32) {
    %c0_i32 = arith.constant 0 : i32
    %c0_i32_0 = arith.constant 0 : i32
    %c0_i32_1 = arith.constant 0 : i32
    %c0_i32_2 = arith.constant 0 : i32
    return %c0_i32, %c0_i32_0, %c0_i32_1 : i32, i32, i32
  }
  func.func @transform_9(%arg0: i32) -> (i32, i32, i32) {
    %c0_i32 = arith.constant 0 : i32
    %c0_i32_0 = arith.constant 0 : i32
    %c0_i32_1 = arith.constant 0 : i32
    %c0_i32_2 = arith.constant 0 : i32
    return %c0_i32, %c0_i32_0, %c0_i32_1 : i32, i32, i32
  }
  func.func @transform_10(%arg0: i32) -> (i32, i32) {
    %c0_i32 = arith.constant 0 : i32
    %c0_i32_0 = arith.constant 0 : i32
    %c0_i32_1 = arith.constant 0 : i32
    return %c0_i32, %c0_i32_0 : i32, i32
  }
  func.func @transform_11(%arg0: i32) -> (i32, i32, i32) {
    %c0_i32 = arith.constant 0 : i32
    %c0_i32_0 = arith.constant 0 : i32
    %c0_i32_1 = arith.constant 0 : i32
    %c0_i32_2 = arith.constant 0 : i32
    return %c0_i32, %c0_i32_0, %c0_i32_1 : i32, i32, i32
  }
  func.func @transform_12(%arg0: i32) -> (i32, i32) {
    %c0_i32 = arith.constant 0 : i32
    %c0_i32_0 = arith.constant 0 : i32
    %c0_i32_1 = arith.constant 0 : i32
    return %c0_i32, %c0_i32_0 : i32, i32
  }
  func.func @transform_13(%arg0: i32) -> (i32, i32, i32) {
    %c0_i32 = arith.constant 0 : i32
    %c0_i32_0 = arith.constant 0 : i32
    %c0_i32_1 = arith.constant 0 : i32
    %c0_i32_2 = arith.constant 0 : i32
    return %c0_i32, %c0_i32_0, %c0_i32_1 : i32, i32, i32
  }
  func.func @transform_14(%arg0: i32) -> (i32, i32, i32) {
    %c0_i32 = arith.constant 0 : i32
    %c0_i32_0 = arith.constant 0 : i32
    %c0_i32_1 = arith.constant 0 : i32
    %c0_i32_2 = arith.constant 0 : i32
    return %c0_i32, %c0_i32_0, %c0_i32_1 : i32, i32, i32
  }
  func.func @transform_15(%arg0: i32) -> (i32, i32) {
    %c0_i32 = arith.constant 0 : i32
    %c0_i32_0 = arith.constant 0 : i32
    %c0_i32_1 = arith.constant 0 : i32
    return %c0_i32, %c0_i32_0 : i32, i32
  }
  func.func @transform_16(%arg0: i32) -> (i32, i32) {
    %c0_i32 = arith.constant 0 : i32
    %c0_i32_0 = arith.constant 0 : i32
    %c0_i32_1 = arith.constant 0 : i32
    return %c0_i32, %c0_i32_0 : i32, i32
  }
  func.func @transform_17(%arg0: i32) -> (i32, i32) {
    %c0_i32 = arith.constant 0 : i32
    %c0_i32_0 = arith.constant 0 : i32
    %c0_i32_1 = arith.constant 0 : i32
    return %c0_i32, %c0_i32_0 : i32, i32
  }
  func.func @transform_18(%arg0: i32) -> (i32, i32) {
    %c0_i32 = arith.constant 0 : i32
    %c0_i32_0 = arith.constant 0 : i32
    %c0_i32_1 = arith.constant 0 : i32
    return %c0_i32, %c0_i32_0 : i32, i32
  }
  func.func @transform_19(%arg0: i32) -> (i32, i32) {
    %c0_i32 = arith.constant 0 : i32
    %c0_i32_0 = arith.constant 0 : i32
    %c0_i32_1 = arith.constant 0 : i32
    return %c0_i32, %c0_i32_0 : i32, i32
  }
  func.func @transform_20(%arg0: i32) -> (i32, i32) {
    %c0_i32 = arith.constant 0 : i32
    %c0_i32_0 = arith.constant 0 : i32
    %c0_i32_1 = arith.constant 0 : i32
    return %c0_i32, %c0_i32_0 : i32, i32
  }
  func.func @transform_21(%arg0: i32) -> (i32, i32) {
    %c0_i32 = arith.constant 0 : i32
    %c0_i32_0 = arith.constant 0 : i32
    %c0_i32_1 = arith.constant 0 : i32
    return %c0_i32, %c0_i32_0 : i32, i32
  }
  func.func @transform_22(%arg0: i32) -> (i32, i32) {
    %c0_i32 = arith.constant 0 : i32
    %c0_i32_0 = arith.constant 0 : i32
    %c0_i32_1 = arith.constant 0 : i32
    return %c0_i32, %c0_i32_0 : i32, i32
  }
  func.func @transform_23(%arg0: i32) -> (i32, i32) {
    %c0_i32 = arith.constant 0 : i32
    %c0_i32_0 = arith.constant 0 : i32
    %c0_i32_1 = arith.constant 0 : i32
    return %c0_i32, %c0_i32_0 : i32, i32
  }
  func.func @transform_24(%arg0: i32) -> (i32, i32) {
    %c0_i32 = arith.constant 0 : i32
    %c0_i32_0 = arith.constant 0 : i32
    %c0_i32_1 = arith.constant 0 : i32
    return %c0_i32, %c0_i32_0 : i32, i32
  }
  func.func @transform_25(%arg0: i32) -> (i32, i32) {
    %c0_i32 = arith.constant 0 : i32
    %c0_i32_0 = arith.constant 0 : i32
    %c0_i32_1 = arith.constant 0 : i32
    return %c0_i32, %c0_i32_0 : i32, i32
  }
  func.func @transform_26(%arg0: i32) -> (i32, i32) {
    %c0_i32 = arith.constant 0 : i32
    %c0_i32_0 = arith.constant 0 : i32
    %c0_i32_1 = arith.constant 0 : i32
    return %c0_i32, %c0_i32_0 : i32, i32
  }
  func.func @transform_27(%arg0: i32) -> (i32, i32) {
    %c0_i32 = arith.constant 0 : i32
    %c0_i32_0 = arith.constant 0 : i32
    %c0_i32_1 = arith.constant 0 : i32
    return %c0_i32, %c0_i32_0 : i32, i32
  }
  func.func @transform_28(%arg0: i32) -> (i32, i32, i32) {
    %c0_i32 = arith.constant 0 : i32
    %c0_i32_0 = arith.constant 0 : i32
    %c0_i32_1 = arith.constant 0 : i32
    return %arg0, %c0_i32, %c0_i32_0 : i32, i32, i32
  }
  func.func @transform_29(%arg0: i32) -> (i32, i32, i32) {
    %c0_i32 = arith.constant 0 : i32
    %c0_i32_0 = arith.constant 0 : i32
    %c0_i32_1 = arith.constant 0 : i32
    return %arg0, %c0_i32, %c0_i32_0 : i32, i32, i32
  }
}

</mosaic_0001>

<llo_original>
// kernel: speaker_classifier_forward.1
$region0: #{speaker_classifier_forward.1}
  #allocation0 [shape = 'u32[]', space=smem, size = 0x4, offset = 0x4, fixed_abs, tag = 'smem constant byte address 0x4 - core index']
  #allocation1 [shape = 'u32[144,128]{1,0:T(1,128)}', space=vmem, size = 0x12000, scoped, tag = 'internal scratch']
  #allocation2 [shape = 'f32[18,320]{1,0:T(8,128)}', space=vmem, size = 0x9000, scoped, tag = 'scratch operand']
  #allocation3 [shape = 'f32[16,320]{1,0:T(8,128)}', space=vmem, size = 0x6000, scoped, tag = 'scratch operand']
  %s0 = inlined_call_operand.smem [shape: u32[30], index: -1, kind: input, shape index: {}]
  %s1 = sld [smem:[%s0]]
  %s2 = scalar_lea.smem %s0, 1
  %s3 = sld [smem:[%s2]]
  %s4 = scalar_lea.smem %s0, 2
  %s5 = sld [smem:[%s4]]
  %s6 = scalar_lea.smem %s0, 3
  %s7 = sld [smem:[%s6]]
  %s8 = scalar_lea.smem %s0, 4
  %s9 = sld [smem:[%s8]]
  %s10 = scalar_lea.smem %s0, 5
  %s11 = sld [smem:[%s10]]
  %s12 = scalar_lea.smem %s0, 6
  %s13 = sld [smem:[%s12]]
  %s14 = scalar_lea.smem %s0, 7
  %s15 = sld [smem:[%s14]]
  %s16 = scalar_lea.smem %s0, 8
  %s17 = sld [smem:[%s16]]
  %s18 = scalar_lea.smem %s0, 9
  %s19 = sld [smem:[%s18]]
  %s20 = scalar_lea.smem %s0, 10
  %s21 = sld [smem:[%s20]]
  %s22 = scalar_lea.smem %s0, 11
  %s23 = sld [smem:[%s22]]
  %s24 = scalar_lea.smem %s0, 12
  %s25 = sld [smem:[%s24]]
  %s26 = scalar_lea.smem %s0, 13
  %s27 = sld [smem:[%s26]]
  %s28 = scalar_lea.smem %s0, 14
  %s29 = sld [smem:[%s28]]
  %s30 = scalar_lea.smem %s0, 15
  %s31 = sld [smem:[%s30]]
  %s32 = scalar_lea.smem %s0, 16
  %s33 = sld [smem:[%s32]]
  %s34 = scalar_lea.smem %s0, 17
  %s35 = sld [smem:[%s34]]
  %s36 = scalar_lea.smem %s0, 18
  %s37 = sld [smem:[%s36]]
  %s38 = scalar_lea.smem %s0, 19
  %s39 = sld [smem:[%s38]]
  %s40 = scalar_lea.smem %s0, 20
  %s41 = sld [smem:[%s40]]
  %s42 = scalar_lea.smem %s0, 21
  %s43 = sld [smem:[%s42]]
  %s44 = scalar_lea.smem %s0, 22
  %s45 = sld [smem:[%s44]]
  %s46 = scalar_lea.smem %s0, 23
  %s47 = sld [smem:[%s46]]
  %s48 = scalar_lea.smem %s0, 24
  %s49 = sld [smem:[%s48]]
  %s50 = scalar_lea.smem %s0, 25
  %s51 = sld [smem:[%s50]]
  %s52 = scalar_lea.smem %s0, 26
  %s53 = sld [smem:[%s52]]
  %s54 = scalar_lea.smem %s0, 27
  %s55 = sld [smem:[%s54]]
  %s56 = scalar_lea.smem %s0, 28
  %s57 = sld [smem:[%s56]]
  %s58 = scalar_lea.smem %s0, 29
  %s59 = sld [smem:[%s58]]
  %60 = xla_tuple %s57, %s59
  %s61 = sld [smem:[#allocation0]]
  $region153: #{speaker_classifier_forward.1} parent=0
    _
  %s63 = ssub.s32 1, %s61
  %s64 = scalar_select 0, %s63, %s61
  $region1: #{speaker_classifier_forward.1} parent=0
    #allocation4 [shape = 'u8[1024]{0}', space=vmem, size = 0x400, scoped, tag = 'output window, operand 0']
    #allocation5 [shape = 's32[2]{0}', space=sflag, size = 0x8, scoped, tag = 'scoped memory for speaker_classifier_forward.1']
    #allocation6 [shape = 'u8[1024]{0}', space=vmem, size = 0x400, scoped, tag = 'output window, operand 1']
    #allocation7 [shape = 's32[2]{0}', space=sflag, size = 0x8, scoped, tag = 'scoped memory for speaker_classifier_forward.1']
    %65 = vsyncpa [#allocation5], 0
    %s66 = scalar_lea.sflag [#allocation5], 1
    %67 = vsyncpa %s66, 0
    %68 = vsyncpa [#allocation7], 0
    %s69 = scalar_lea.sflag [#allocation7], 1
    %70 = vsyncpa %s69, 0
    loop: start=0, step=1, limit=4
    $region2: #{speaker_classifier_forward.1} parent=1 // loop_pre_header
      _
    $region3: #{speaker_classifier_forward.1} parent=1 // loop_header
      %s72 = sphi 0, %s76
      %p73 = scmp.ge.s32.totalorder %s72, 4
      %s82 = sphi 0, %s84
      %s85 = sphi 0, %s82
      %s86 = sphi 0, %s85
      %s102 = sphi 0, %s86
      %s106 = sphi 0, %s106
      %s108 = sphi 0, %s106
      %s109 = sphi 0, %s108
      %s123 = sphi 0, %s109
      %s127 = sphi 0, %s127
      %s129 = sphi 0, %s127
      %s130 = sphi 0, %s129
      %s144 = sphi 0, %s130
      %s148 = sphi 0, %s148
      %s150 = sphi 0, %s148
      %s151 = sphi 0, %s150
      %s165 = sphi 0, %s151
      %s169 = sphi 0, %s169
      %s171 = sphi 0, %s169
      %s172 = sphi 0, %s171
      %s186 = sphi 0, %s172
      %s190 = sphi 0, %s190
      %s192 = sphi 0, %s190
      %s193 = sphi 0, %s192
      %s207 = sphi 0, %s193
      %s211 = sphi 0, %s211
      %s213 = sphi 0, %s211
      %s214 = sphi 0, %s213
      %s228 = sphi 0, %s214
      %s232 = sphi 0, %s232
      %s234 = sphi 0, %s232
      %s235 = sphi 0, %s234
      %s249 = sphi 0, %s235
      %s253 = sphi 0, %s253
      %s255 = sphi 0, %s253
      %s256 = sphi 0, %s255
      %s270 = sphi 0, %s256
      %s274 = sphi 0, %s274
      %s276 = sphi 0, %s274
      %s277 = sphi 0, %s276
      %s291 = sphi 0, %s277
      %s295 = sphi 0, %s295
      %s297 = sphi 0, %s295
      %s298 = sphi 0, %s297
      %s312 = sphi 0, %s298
      %s316 = sphi 0, %s316
      %s318 = sphi 0, %s316
      %s319 = sphi 0, %s318
      %s333 = sphi 0, %s319
      %s337 = sphi 0, %s337
      %s339 = sphi 0, %s337
      %s340 = sphi 0, %s339
      %s354 = sphi 0, %s340
      %s358 = sphi 0, %s358
      %s360 = sphi 0, %s358
      %s361 = sphi 0, %s360
      %s375 = sphi 0, %s361
      %s379 = sphi 0, %s379
      %s381 = sphi 0, %s379
      %s382 = sphi 0, %s381
      %s396 = sphi 0, %s382
      %s400 = sphi 0, %s400
      %s402 = sphi 0, %s400
      %s403 = sphi 0, %s402
      %s417 = sphi 0, %s403
      %s421 = sphi 0, %s421
      %s423 = sphi 0, %s421
      %s424 = sphi 0, %s423
      %s438 = sphi 0, %s424
      %s442 = sphi 0, %s442
      %s444 = sphi 0, %s442
      %s445 = sphi 0, %s444
      %s459 = sphi 0, %s445
      %s463 = sphi 0, %s463
      %s465 = sphi 0, %s463
      %s466 = sphi 0, %s465
      %s480 = sphi 0, %s466
      %s484 = sphi 0, %s484
      %s486 = sphi 0, %s484
      %s487 = sphi 0, %s486
      %s501 = sphi 0, %s487
      %s505 = sphi 0, %s505
      %s507 = sphi 0, %s505
      %s508 = sphi 0, %s507
      %s522 = sphi 0, %s508
      %s526 = sphi 0, %s526
      %s528 = sphi 0, %s526
      %s529 = sphi 0, %s528
      %s543 = sphi 0, %s529
      %s547 = sphi 0, %s547
      %s549 = sphi 0, %s547
      %s550 = sphi 0, %s549
      %s564 = sphi 0, %s550
      %s568 = sphi 0, %s568
      %s570 = sphi 0, %s568
      %s571 = sphi 0, %s570
      %s585 = sphi 0, %s571
      %s589 = sphi 0, %s589
      %s591 = sphi 0, %s589
      %s592 = sphi 0, %s591
      %s606 = sphi 0, %s592
      %s610 = sphi 0, %s610
      %s612 = sphi 0, %s610
      %s613 = sphi 0, %s612
      %s627 = sphi 0, %s613
      %s631 = sphi 0, %s631
      %s633 = sphi 0, %s631
      %s634 = sphi 0, %s633
      %s648 = sphi 0, %s634
      %s652 = sphi 0, %s652
      %s654 = sphi 0, %s652
      %s655 = sphi 0, %s654
      %s669 = sphi 0, %s655
      %s675 = sphi 0, %s677
      %s678 = sphi 0, %s675
      %s679 = sphi 0, %s678
      %s695 = sphi 0, %s679
      %s701 = sphi 0, %s703
      %s704 = sphi 0, %s701
      %s705 = sphi 0, %s704
      %s721 = sphi 0, %s705
    $region4: #{speaker_classifier_forward.1} parent=1 // loop_header_branch
      %75 = sbr.rel (%p73) target = $region8
    $region5: #{speaker_classifier_forward.1} parent=1 // loop_body
      %s77 = ssub.s32 %s72, 1
      %s78 = ssub.s32 %s72, 2
      %s79 = sadd.s32 %s72, 1
      %s80 = ssub.s32 %s72, %s79
      %p81 = scmp.eq.s32.totalorder %s80, 0
      %s83 = sadd.s32 %s82, 1
      %s84 = scalar_select %p81, %s82, %s83
      %p87 = pneg %p81
      %p88 = scmp.eq.s32.totalorder %s72, 1
      %p89 = por %p87, %p88
      %p90 = scmp.ne.s32.totalorder %s82, %s85
      %p91 = scmp.eq.s32.totalorder %s72, 0
      %p92 = por %p90, %p91
      %p93 = scmp.ne.s32.totalorder %s82, %s85
      %p94 = scmp.eq.s32.totalorder %s77, 1
      %p95 = por %p93, %p94
      %p96 = scmp.ne.s32.totalorder %s85, %s86
      %p97 = scmp.eq.s32.totalorder %s77, 0
      %p98 = por %p96, %p97
      %p99 = scmp.ne.s32.totalorder %s85, %s86
      %p100 = scmp.eq.s32.totalorder %s78, 1
      %p101 = por %p99, %p100
      %p103 = scmp.ne.s32.totalorder %s86, %s102
      %p104 = scmp.eq.s32.totalorder %s78, 0
      %p105 = por %p103, %p104
      %s107 = sadd.s32 %s106, 1
      %p110 = scmp.eq.s32.totalorder %s72, 1
      %p111 = scmp.ne.s32.totalorder %s106, %s108
      %p112 = scmp.eq.s32.totalorder %s72, 0
      %p113 = por %p111, %p112
      %p114 = scmp.ne.s32.totalorder %s106, %s108
      %p115 = scmp.eq.s32.totalorder %s77, 1
      %p116 = por %p114, %p115
      %p117 = scmp.ne.s32.totalorder %s108, %s109
      %p118 = scmp.eq.s32.totalorder %s77, 0
      %p119 = por %p117, %p118
      %p120 = scmp.ne.s32.totalorder %s108, %s109
      %p121 = scmp.eq.s32.totalorder %s78, 1
      %p122 = por %p120, %p121
      %p124 = scmp.ne.s32.totalorder %s109, %s123
      %p125 = scmp.eq.s32.totalorder %s78, 0
      %p126 = por %p124, %p125
      %s128 = sadd.s32 %s127, 1
      %p131 = scmp.eq.s32.totalorder %s72, 1
      %p132 = scmp.ne.s32.totalorder %s127, %s129
      %p133 = scmp.eq.s32.totalorder %s72, 0
      %p134 = por %p132, %p133
      %p135 = scmp.ne.s32.totalorder %s127, %s129
      %p136 = scmp.eq.s32.totalorder %s77, 1
      %p137 = por %p135, %p136
      %p138 = scmp.ne.s32.totalorder %s129, %s130
      %p139 = scmp.eq.s32.totalorder %s77, 0
      %p140 = por %p138, %p139
      %p141 = scmp.ne.s32.totalorder %s129, %s130
      %p142 = scmp.eq.s32.totalorder %s78, 1
      %p143 = por %p141, %p142
      %p145 = scmp.ne.s32.totalorder %s130, %s144
      %p146 = scmp.eq.s32.totalorder %s78, 0
      %p147 = por %p145, %p146
      %s149 = sadd.s32 %s148, 1
      %p152 = scmp.eq.s32.totalorder %s72, 1
      %p153 = scmp.ne.s32.totalorder %s148, %s150
      %p154 = scmp.eq.s32.totalorder %s72, 0
      %p155 = por %p153, %p154
      %p156 = scmp.ne.s32.totalorder %s148, %s150
      %p157 = scmp.eq.s32.totalorder %s77, 1
      %p158 = por %p156, %p157
      %p159 = scmp.ne.s32.totalorder %s150, %s151
      %p160 = scmp.eq.s32.totalorder %s77, 0
      %p161 = por %p159, %p160
      %p162 = scmp.ne.s32.totalorder %s150, %s151
      %p163 = scmp.eq.s32.totalorder %s78, 1
      %p164 = por %p162, %p163
      %p166 = scmp.ne.s32.totalorder %s151, %s165
      %p167 = scmp.eq.s32.totalorder %s78, 0
      %p168 = por %p166, %p167
      %s170 = sadd.s32 %s169, 1
      %p173 = scmp.eq.s32.totalorder %s72, 1
      %p174 = scmp.ne.s32.totalorder %s169, %s171
      %p175 = scmp.eq.s32.totalorder %s72, 0
      %p176 = por %p174, %p175
      %p177 = scmp.ne.s32.totalorder %s169, %s171
      %p178 = scmp.eq.s32.totalorder %s77, 1
      %p179 = por %p177, %p178
      %p180 = scmp.ne.s32.totalorder %s171, %s172
      %p181 = scmp.eq.s32.totalorder %s77, 0
      %p182 = por %p180, %p181
      %p183 = scmp.ne.s32.totalorder %s171, %s172
      %p184 = scmp.eq.s32.totalorder %s78, 1
      %p185 = por %p183, %p184
      %p187 = scmp.ne.s32.totalorder %s172, %s186
      %p188 = scmp.eq.s32.totalorder %s78, 0
      %p189 = por %p187, %p188
      %s191 = sadd.s32 %s190, 1
      %p194 = scmp.eq.s32.totalorder %s72, 1
      %p195 = scmp.ne.s32.totalorder %s190, %s192
      %p196 = scmp.eq.s32.totalorder %s72, 0
      %p197 = por %p195, %p196
      %p198 = scmp.ne.s32.totalorder %s190, %s192
      %p199 = scmp.eq.s32.totalorder %s77, 1
      %p200 = por %p198, %p199
      %p201 = scmp.ne.s32.totalorder %s192, %s193
      %p202 = scmp.eq.s32.totalorder %s77, 0
      %p203 = por %p201, %p202
      %p204 = scmp.ne.s32.totalorder %s192, %s193
      %p205 = scmp.eq.s32.totalorder %s78, 1
      %p206 = por %p204, %p205
      %p208 = scmp.ne.s32.totalorder %s193, %s207
      %p209 = scmp.eq.s32.totalorder %s78, 0
      %p210 = por %p208, %p209
      %s212 = sadd.s32 %s211, 1
      %p215 = scmp.eq.s32.totalorder %s72, 1
      %p216 = scmp.ne.s32.totalorder %s211, %s213
      %p217 = scmp.eq.s32.totalorder %s72, 0
      %p218 = por %p216, %p217
      %p219 = scmp.ne.s32.totalorder %s211, %s213
      %p220 = scmp.eq.s32.totalorder %s77, 1
      %p221 = por %p219, %p220
      %p222 = scmp.ne.s32.totalorder %s213, %s214
      %p223 = scmp.eq.s32.totalorder %s77, 0
      %p224 = por %p222, %p223
      %p225 = scmp.ne.s32.totalorder %s213, %s214
      %p226 = scmp.eq.s32.totalorder %s78, 1
      %p227 = por %p225, %p226
      %p229 = scmp.ne.s32.totalorder %s214, %s228
      %p230 = scmp.eq.s32.totalorder %s78, 0
      %p231 = por %p229, %p230
      %s233 = sadd.s32 %s232, 1
      %p236 = scmp.eq.s32.totalorder %s72, 1
      %p237 = scmp.ne.s32.totalorder %s232, %s234
      %p238 = scmp.eq.s32.totalorder %s72, 0
      %p239 = por %p237, %p238
      %p240 = scmp.ne.s32.totalorder %s232, %s234
      %p241 = scmp.eq.s32.totalorder %s77, 1
      %p242 = por %p240, %p241
      %p243 = scmp.ne.s32.totalorder %s234, %s235
      %p244 = scmp.eq.s32.totalorder %s77, 0
      %p245 = por %p243, %p244
      %p246 = scmp.ne.s32.totalorder %s234, %s235
      %p247 = scmp.eq.s32.totalorder %s78, 1
      %p248 = por %p246, %p247
      %p250 = scmp.ne.s32.totalorder %s235, %s249
      %p251 = scmp.eq.s32.totalorder %s78, 0
      %p252 = por %p250, %p251
      %s254 = sadd.s32 %s253, 1
      %p257 = scmp.eq.s32.totalorder %s72, 1
      %p258 = scmp.ne.s32.totalorder %s253, %s255
      %p259 = scmp.eq.s32.totalorder %s72, 0
      %p260 = por %p258, %p259
      %p261 = scmp.ne.s32.totalorder %s253, %s255
      %p262 = scmp.eq.s32.totalorder %s77, 1
      %p263 = por %p261, %p262
      %p264 = scmp.ne.s32.totalorder %s255, %s256
      %p265 = scmp.eq.s32.totalorder %s77, 0
      %p266 = por %p264, %p265
      %p267 = scmp.ne.s32.totalorder %s255, %s256
      %p268 = scmp.eq.s32.totalorder %s78, 1
      %p269 = por %p267, %p268
      %p271 = scmp.ne.s32.totalorder %s256, %s270
      %p272 = scmp.eq.s32.totalorder %s78, 0
      %p273 = por %p271, %p272
      %s275 = sadd.s32 %s274, 1
      %p278 = scmp.eq.s32.totalorder %s72, 1
      %p279 = scmp.ne.s32.totalorder %s274, %s276
      %p280 = scmp.eq.s32.totalorder %s72, 0
      %p281 = por %p279, %p280
      %p282 = scmp.ne.s32.totalorder %s274, %s276
      %p283 = scmp.eq.s32.totalorder %s77, 1
      %p284 = por %p282, %p283
      %p285 = scmp.ne.s32.totalorder %s276, %s277
      %p286 = scmp.eq.s32.totalorder %s77, 0
      %p287 = por %p285, %p286
      %p288 = scmp.ne.s32.totalorder %s276, %s277
      %p289 = scmp.eq.s32.totalorder %s78, 1
      %p290 = por %p288, %p289
      %p292 = scmp.ne.s32.totalorder %s277, %s291
      %p293 = scmp.eq.s32.totalorder %s78, 0
      %p294 = por %p292, %p293
      %s296 = sadd.s32 %s295, 1
      %p299 = scmp.eq.s32.totalorder %s72, 1
      %p300 = scmp.ne.s32.totalorder %s295, %s297
      %p301 = scmp.eq.s32.totalorder %s72, 0
      %p302 = por %p300, %p301
      %p303 = scmp.ne.s32.totalorder %s295, %s297
      %p304 = scmp.eq.s32.totalorder %s77, 1
      %p305 = por %p303, %p304
      %p306 = scmp.ne.s32.totalorder %s297, %s298
      %p307 = scmp.eq.s32.totalorder %s77, 0
      %p308 = por %p306, %p307
      %p309 = scmp.ne.s32.totalorder %s297, %s298
      %p310 = scmp.eq.s32.totalorder %s78, 1
      %p311 = por %p309, %p310
      %p313 = scmp.ne.s32.totalorder %s298, %s312
      %p314 = scmp.eq.s32.totalorder %s78, 0
      %p315 = por %p313, %p314
      %s317 = sadd.s32 %s316, 1
      %p320 = scmp.eq.s32.totalorder %s72, 1
      %p321 = scmp.ne.s32.totalorder %s316, %s318
      %p322 = scmp.eq.s32.totalorder %s72, 0
      %p323 = por %p321, %p322
      %p324 = scmp.ne.s32.totalorder %s316, %s318
      %p325 = scmp.eq.s32.totalorder %s77, 1
      %p326 = por %p324, %p325
      %p327 = scmp.ne.s32.totalorder %s318, %s319
      %p328 = scmp.eq.s32.totalorder %s77, 0
      %p329 = por %p327, %p328
      %p330 = scmp.ne.s32.totalorder %s318, %s319
      %p331 = scmp.eq.s32.totalorder %s78, 1
      %p332 = por %p330, %p331
      %p334 = scmp.ne.s32.totalorder %s319, %s333
      %p335 = scmp.eq.s32.totalorder %s78, 0
      %p336 = por %p334, %p335
      %s338 = sadd.s32 %s337, 1
      %p341 = scmp.eq.s32.totalorder %s72, 1
      %p342 = scmp.ne.s32.totalorder %s337, %s339
      %p343 = scmp.eq.s32.totalorder %s72, 0
      %p344 = por %p342, %p343
      %p345 = scmp.ne.s32.totalorder %s337, %s339
      %p346 = scmp.eq.s32.totalorder %s77, 1
      %p347 = por %p345, %p346
      %p348 = scmp.ne.s32.totalorder %s339, %s340
      %p349 = scmp.eq.s32.totalorder %s77, 0
      %p350 = por %p348, %p349
      %p351 = scmp.ne.s32.totalorder %s339, %s340
      %p352 = scmp.eq.s32.totalorder %s78, 1
      %p353 = por %p351, %p352
      %p355 = scmp.ne.s32.totalorder %s340, %s354
      %p356 = scmp.eq.s32.totalorder %s78, 0
      %p357 = por %p355, %p356
      %s359 = sadd.s32 %s358, 1
      %p362 = scmp.eq.s32.totalorder %s72, 1
      %p363 = scmp.ne.s32.totalorder %s358, %s360
      %p364 = scmp.eq.s32.totalorder %s72, 0
      %p365 = por %p363, %p364
      %p366 = scmp.ne.s32.totalorder %s358, %s360
      %p367 = scmp.eq.s32.totalorder %s77, 1
      %p368 = por %p366, %p367
      %p369 = scmp.ne.s32.totalorder %s360, %s361
      %p370 = scmp.eq.s32.totalorder %s77, 0
      %p371 = por %p369, %p370
      %p372 = scmp.ne.s32.totalorder %s360, %s361
      %p373 = scmp.eq.s32.totalorder %s78, 1
      %p374 = por %p372, %p373
      %p376 = scmp.ne.s32.totalorder %s361, %s375
      %p377 = scmp.eq.s32.totalorder %s78, 0
      %p378 = por %p376, %p377
      %s380 = sadd.s32 %s379, 1
      %p383 = scmp.eq.s32.totalorder %s72, 1
      %p384 = scmp.ne.s32.totalorder %s379, %s381
      %p385 = scmp.eq.s32.totalorder %s72, 0
      %p386 = por %p384, %p385
      %p387 = scmp.ne.s32.totalorder %s379, %s381
      %p388 = scmp.eq.s32.totalorder %s77, 1
      %p389 = por %p387, %p388
      %p390 = scmp.ne.s32.totalorder %s381, %s382
      %p391 = scmp.eq.s32.totalorder %s77, 0
      %p392 = por %p390, %p391
      %p393 = scmp.ne.s32.totalorder %s381, %s382
      %p394 = scmp.eq.s32.totalorder %s78, 1
      %p395 = por %p393, %p394
      %p397 = scmp.ne.s32.totalorder %s382, %s396
      %p398 = scmp.eq.s32.totalorder %s78, 0
      %p399 = por %p397, %p398
      %s401 = sadd.s32 %s400, 1
      %p404 = scmp.eq.s32.totalorder %s72, 1
      %p405 = scmp.ne.s32.totalorder %s400, %s402
      %p406 = scmp.eq.s32.totalorder %s72, 0
      %p407 = por %p405, %p406
      %p408 = scmp.ne.s32.totalorder %s400, %s402
      %p409 = scmp.eq.s32.totalorder %s77, 1
      %p410 = por %p408, %p409
      %p411 = scmp.ne.s32.totalorder %s402, %s403
      %p412 = scmp.eq.s32.totalorder %s77, 0
      %p413 = por %p411, %p412
      %p414 = scmp.ne.s32.totalorder %s402, %s403
      %p415 = scmp.eq.s32.totalorder %s78, 1
      %p416 = por %p414, %p415
      %p418 = scmp.ne.s32.totalorder %s403, %s417
      %p419 = scmp.eq.s32.totalorder %s78, 0
      %p420 = por %p418, %p419
      %s422 = sadd.s32 %s421, 1
      %p425 = scmp.eq.s32.totalorder %s72, 1
      %p426 = scmp.ne.s32.totalorder %s421, %s423
      %p427 = scmp.eq.s32.totalorder %s72, 0
      %p428 = por %p426, %p427
      %p429 = scmp.ne.s32.totalorder %s421, %s423
      %p430 = scmp.eq.s32.totalorder %s77, 1
      %p431 = por %p429, %p430
      %p432 = scmp.ne.s32.totalorder %s423, %s424
      %p433 = scmp.eq.s32.totalorder %s77, 0
      %p434 = por %p432, %p433
      %p435 = scmp.ne.s32.totalorder %s423, %s424
      %p436 = scmp.eq.s32.totalorder %s78, 1
      %p437 = por %p435, %p436
      %p439 = scmp.ne.s32.totalorder %s424, %s438
      %p440 = scmp.eq.s32.totalorder %s78, 0
      %p441 = por %p439, %p440
      %s443 = sadd.s32 %s442, 1
      %p446 = scmp.eq.s32.totalorder %s72, 1
      %p447 = scmp.ne.s32.totalorder %s442, %s444
      %p448 = scmp.eq.s32.totalorder %s72, 0
      %p449 = por %p447, %p448
      %p450 = scmp.ne.s32.totalorder %s442, %s444
      %p451 = scmp.eq.s32.totalorder %s77, 1
      %p452 = por %p450, %p451
      %p453 = scmp.ne.s32.totalorder %s444, %s445
      %p454 = scmp.eq.s32.totalorder %s77, 0
      %p455 = por %p453, %p454
      %p456 = scmp.ne.s32.totalorder %s444, %s445
      %p457 = scmp.eq.s32.totalorder %s78, 1
      %p458 = por %p456, %p457
      %p460 = scmp.ne.s32.totalorder %s445, %s459
      %p461 = scmp.eq.s32.totalorder %s78, 0
      %p462 = por %p460, %p461
      %s464 = sadd.s32 %s463, 1
      %p467 = scmp.eq.s32.totalorder %s72, 1
      %p468 = scmp.ne.s32.totalorder %s463, %s465
      %p469 = scmp.eq.s32.totalorder %s72, 0
      %p470 = por %p468, %p469
      %p471 = scmp.ne.s32.totalorder %s463, %s465
      %p472 = scmp.eq.s32.totalorder %s77, 1
      %p473 = por %p471, %p472
      %p474 = scmp.ne.s32.totalorder %s465, %s466
      %p475 = scmp.eq.s32.totalorder %s77, 0
      %p476 = por %p474, %p475
      %p477 = scmp.ne.s32.totalorder %s465, %s466
      %p478 = scmp.eq.s32.totalorder %s78, 1
      %p479 = por %p477, %p478
      %p481 = scmp.ne.s32.totalorder %s466, %s480
      %p482 = scmp.eq.s32.totalorder %s78, 0
      %p483 = por %p481, %p482
      %s485 = sadd.s32 %s484, 1
      %p488 = scmp.eq.s32.totalorder %s72, 1
      %p489 = scmp.ne.s32.totalorder %s484, %s486
      %p490 = scmp.eq.s32.totalorder %s72, 0
      %p491 = por %p489, %p490
      %p492 = scmp.ne.s32.totalorder %s484, %s486
      %p493 = scmp.eq.s32.totalorder %s77, 1
      %p494 = por %p492, %p493
      %p495 = scmp.ne.s32.totalorder %s486, %s487
      %p496 = scmp.eq.s32.totalorder %s77, 0
      %p497 = por %p495, %p496
      %p498 = scmp.ne.s32.totalorder %s486, %s487
      %p499 = scmp.eq.s32.totalorder %s78, 1
      %p500 = por %p498, %p499
      %p502 = scmp.ne.s32.totalorder %s487, %s501
      %p503 = scmp.eq.s32.totalorder %s78, 0
      %p504 = por %p502, %p503
      %s506 = sadd.s32 %s505, 1
      %p509 = scmp.eq.s32.totalorder %s72, 1
      %p510 = scmp.ne.s32.totalorder %s505, %s507
      %p511 = scmp.eq.s32.totalorder %s72, 0
      %p512 = por %p510, %p511
      %p513 = scmp.ne.s32.totalorder %s505, %s507
      %p514 = scmp.eq.s32.totalorder %s77, 1
      %p515 = por %p513, %p514
      %p516 = scmp.ne.s32.totalorder %s507, %s508
      %p517 = scmp.eq.s32.totalorder %s77, 0
      %p518 = por %p516, %p517
      %p519 = scmp.ne.s32.totalorder %s507, %s508
      %p520 = scmp.eq.s32.totalorder %s78, 1
      %p521 = por %p519, %p520
      %p523 = scmp.ne.s32.totalorder %s508, %s522
      %p524 = scmp.eq.s32.totalorder %s78, 0
      %p525 = por %p523, %p524
      %s527 = sadd.s32 %s526, 1
      %p530 = scmp.eq.s32.totalorder %s72, 1
      %p531 = scmp.ne.s32.totalorder %s526, %s528
      %p532 = scmp.eq.s32.totalorder %s72, 0
      %p533 = por %p531, %p532
      %p534 = scmp.ne.s32.totalorder %s526, %s528
      %p535 = scmp.eq.s32.totalorder %s77, 1
      %p536 = por %p534, %p535
      %p537 = scmp.ne.s32.totalorder %s528, %s529
      %p538 = scmp.eq.s32.totalorder %s77, 0
      %p539 = por %p537, %p538
      %p540 = scmp.ne.s32.totalorder %s528, %s529
      %p541 = scmp.eq.s32.totalorder %s78, 1
      %p542 = por %p540, %p541
      %p544 = scmp.ne.s32.totalorder %s529, %s543
      %p545 = scmp.eq.s32.totalorder %s78, 0
      %p546 = por %p544, %p545
      %s548 = sadd.s32 %s547, 1
      %p551 = scmp.eq.s32.totalorder %s72, 1
      %p552 = scmp.ne.s32.totalorder %s547, %s549
      %p553 = scmp.eq.s32.totalorder %s72, 0
      %p554 = por %p552, %p553
      %p555 = scmp.ne.s32.totalorder %s547, %s549
      %p556 = scmp.eq.s32.totalorder %s77, 1
      %p557 = por %p555, %p556
      %p558 = scmp.ne.s32.totalorder %s549, %s550
      %p559 = scmp.eq.s32.totalorder %s77, 0
      %p560 = por %p558, %p559
      %p561 = scmp.ne.s32.totalorder %s549, %s550
      %p562 = scmp.eq.s32.totalorder %s78, 1
      %p563 = por %p561, %p562
      %p565 = scmp.ne.s32.totalorder %s550, %s564
      %p566 = scmp.eq.s32.totalorder %s78, 0
      %p567 = por %p565, %p566
      %s569 = sadd.s32 %s568, 1
      %p572 = scmp.eq.s32.totalorder %s72, 1
      %p573 = scmp.ne.s32.totalorder %s568, %s570
      %p574 = scmp.eq.s32.totalorder %s72, 0
      %p575 = por %p573, %p574
      %p576 = scmp.ne.s32.totalorder %s568, %s570
      %p577 = scmp.eq.s32.totalorder %s77, 1
      %p578 = por %p576, %p577
      %p579 = scmp.ne.s32.totalorder %s570, %s571
      %p580 = scmp.eq.s32.totalorder %s77, 0
      %p581 = por %p579, %p580
      %p582 = scmp.ne.s32.totalorder %s570, %s571
      %p583 = scmp.eq.s32.totalorder %s78, 1
      %p584 = por %p582, %p583
      %p586 = scmp.ne.s32.totalorder %s571, %s585
      %p587 = scmp.eq.s32.totalorder %s78, 0
      %p588 = por %p586, %p587
      %s590 = sadd.s32 %s589, 1
      %p593 = scmp.eq.s32.totalorder %s72, 1
      %p594 = scmp.ne.s32.totalorder %s589, %s591
      %p595 = scmp.eq.s32.totalorder %s72, 0
      %p596 = por %p594, %p595
      %p597 = scmp.ne.s32.totalorder %s589, %s591
      %p598 = scmp.eq.s32.totalorder %s77, 1
      %p599 = por %p597, %p598
      %p600 = scmp.ne.s32.totalorder %s591, %s592
      %p601 = scmp.eq.s32.totalorder %s77, 0
      %p602 = por %p600, %p601
      %p603 = scmp.ne.s32.totalorder %s591, %s592
      %p604 = scmp.eq.s32.totalorder %s78, 1
      %p605 = por %p603, %p604
      %p607 = scmp.ne.s32.totalorder %s592, %s606
      %p608 = scmp.eq.s32.totalorder %s78, 0
      %p609 = por %p607, %p608
      %s611 = sadd.s32 %s610, 1
      %p614 = scmp.eq.s32.totalorder %s72, 1
      %p615 = scmp.ne.s32.totalorder %s610, %s612
      %p616 = scmp.eq.s32.totalorder %s72, 0
      %p617 = por %p615, %p616
      %p618 = scmp.ne.s32.totalorder %s610, %s612
      %p619 = scmp.eq.s32.totalorder %s77, 1
      %p620 = por %p618, %p619
      %p621 = scmp.ne.s32.totalorder %s612, %s613
      %p622 = scmp.eq.s32.totalorder %s77, 0
      %p623 = por %p621, %p622
      %p624 = scmp.ne.s32.totalorder %s612, %s613
      %p625 = scmp.eq.s32.totalorder %s78, 1
      %p626 = por %p624, %p625
      %p628 = scmp.ne.s32.totalorder %s613, %s627
      %p629 = scmp.eq.s32.totalorder %s78, 0
      %p630 = por %p628, %p629
      %s632 = sadd.s32 %s631, 1
      %p635 = scmp.eq.s32.totalorder %s72, 1
      %p636 = scmp.ne.s32.totalorder %s631, %s633
      %p637 = scmp.eq.s32.totalorder %s72, 0
      %p638 = por %p636, %p637
      %p639 = scmp.ne.s32.totalorder %s631, %s633
      %p640 = scmp.eq.s32.totalorder %s77, 1
      %p641 = por %p639, %p640
      %p642 = scmp.ne.s32.totalorder %s633, %s634
      %p643 = scmp.eq.s32.totalorder %s77, 0
      %p644 = por %p642, %p643
      %p645 = scmp.ne.s32.totalorder %s633, %s634
      %p646 = scmp.eq.s32.totalorder %s78, 1
      %p647 = por %p645, %p646
      %p649 = scmp.ne.s32.totalorder %s634, %s648
      %p650 = scmp.eq.s32.totalorder %s78, 0
      %p651 = por %p649, %p650
      %s653 = sadd.s32 %s652, 1
      %p656 = scmp.eq.s32.totalorder %s72, 1
      %p657 = scmp.ne.s32.totalorder %s652, %s654
      %p658 = scmp.eq.s32.totalorder %s72, 0
      %p659 = por %p657, %p658
      %p660 = scmp.ne.s32.totalorder %s652, %s654
      %p661 = scmp.eq.s32.totalorder %s77, 1
      %p662 = por %p660, %p661
      %p663 = scmp.ne.s32.totalorder %s654, %s655
      %p664 = scmp.eq.s32.totalorder %s77, 0
      %p665 = por %p663, %p664
      %p666 = scmp.ne.s32.totalorder %s654, %s655
      %p667 = scmp.eq.s32.totalorder %s78, 1
      %p668 = por %p666, %p667
      %p670 = scmp.ne.s32.totalorder %s655, %s669
      %p671 = scmp.eq.s32.totalorder %s78, 0
      %p672 = por %p670, %p671
      %s673 = ssub.s32 %s72, %s79
      %p674 = scmp.eq.s32.totalorder %s673, 0
      %s676 = sadd.s32 %s675, 1
      %s677 = scalar_select %p674, %s675, %s676
      %p680 = pneg %p674
      %p681 = scmp.eq.s32.totalorder %s72, 1
      %p682 = por %p680, %p681
      %p683 = scmp.ne.s32.totalorder %s675, %s678
      %p684 = scmp.eq.s32.totalorder %s72, 0
      %p685 = por %p683, %p684
      %p686 = scmp.ne.s32.totalorder %s675, %s678
      %p687 = scmp.eq.s32.totalorder %s77, 1
      %p688 = por %p686, %p687
      %p689 = scmp.ne.s32.totalorder %s678, %s679
      %p690 = scmp.eq.s32.totalorder %s77, 0
      %p691 = por %p689, %p690
      %p692 = scmp.ne.s32.totalorder %s678, %s679
      %p693 = scmp.eq.s32.totalorder %s78, 1
      %p694 = por %p692, %p693
      %p696 = scmp.ne.s32.totalorder %s679, %s695
      %p697 = scmp.eq.s32.totalorder %s78, 0
      %p698 = por %p696, %p697
      %s699 = ssub.s32 %s72, %s79
      %p700 = scmp.eq.s32.totalorder %s699, 0
      %s702 = sadd.s32 %s701, 1
      %s703 = scalar_select %p700, %s701, %s702
      %p706 = pneg %p700
      %p707 = scmp.eq.s32.totalorder %s72, 1
      %p708 = por %p706, %p707
      %p709 = scmp.ne.s32.totalorder %s701, %s704
      %p710 = scmp.eq.s32.totalorder %s72, 0
      %p711 = por %p709, %p710
      %p712 = scmp.ne.s32.totalorder %s701, %s704
      %p713 = scmp.eq.s32.totalorder %s77, 1
      %p714 = por %p712, %p713
      %p715 = scmp.ne.s32.totalorder %s704, %s705
      %p716 = scmp.eq.s32.totalorder %s77, 0
      %p717 = por %p715, %p716
      %p718 = scmp.ne.s32.totalorder %s704, %s705
      %p719 = scmp.eq.s32.totalorder %s78, 1
      %p720 = por %p718, %p719
      %p722 = scmp.ne.s32.totalorder %s705, %s721
      %p723 = scmp.eq.s32.totalorder %s78, 0
      %p724 = por %p722, %p723
      %p725 = scmp.le.s32.totalorder 1, %s72
      %p726 = scmp.lt.s32.totalorder %s72, 3
      %p727 = pnand %p725, %p726
      %p728 = pneg %p727
      // Predicated region
      $region9: #{speaker_classifier_forward.1} parent=5 // pred_check
        _
      $region10: #{speaker_classifier_forward.1} parent=5 // pred_check_branch
        %730 = sbr.rel (%p727) target = $region12
      $region11: #{speaker_classifier_forward.1} parent=5 // pred_region
        %s731 = ssub.s32 %s72, 1
        // Predicated region
        $region13: #{speaker_classifier_forward.1} parent=11 // pred_check
          %p732 = pneg %p119
        $region14: #{speaker_classifier_forward.1} parent=11 // pred_check_branch
          %734 = sbr.rel (%p732) target = $region16
        $region15: #{speaker_classifier_forward.1} parent=11 // pred_region
          _
        $region16: #{speaker_classifier_forward.1} parent=11 // pred_fallthru
          _
        // Predicated region
        $region17: #{speaker_classifier_forward.1} parent=11 // pred_check
          %p735 = pneg %p140
        $region18: #{speaker_classifier_forward.1} parent=11 // pred_check_branch
          %737 = sbr.rel (%p735) target = $region20
        $region19: #{speaker_classifier_forward.1} parent=11 // pred_region
          _
        $region20: #{speaker_classifier_forward.1} parent=11 // pred_fallthru
          _
        // Predicated region
        $region21: #{speaker_classifier_forward.1} parent=11 // pred_check
          %p738 = pneg %p161
        $region22: #{speaker_classifier_forward.1} parent=11 // pred_check_branch
          %740 = sbr.rel (%p738) target = $region24
        $region23: #{speaker_classifier_forward.1} parent=11 // pred_region
          _
        $region24: #{speaker_classifier_forward.1} parent=11 // pred_fallthru
          _
        // Predicated region
        $region25: #{speaker_classifier_forward.1} parent=11 // pred_check
          %p741 = pneg %p182
        $region26: #{speaker_classifier_forward.1} parent=11 // pred_check_branch
          %743 = sbr.rel (%p741) target = $region28
        $region27: #{speaker_classifier_forward.1} parent=11 // pred_region
          _
        $region28: #{speaker_classifier_forward.1} parent=11 // pred_fallthru
          _
        // Predicated region
        $region29: #{speaker_classifier_forward.1} parent=11 // pred_check
          %p744 = pneg %p203
        $region30: #{speaker_classifier_forward.1} parent=11 // pred_check_branch
          %746 = sbr.rel (%p744) target = $region32
        $region31: #{speaker_classifier_forward.1} parent=11 // pred_region
          _
        $region32: #{speaker_classifier_forward.1} parent=11 // pred_fallthru
          _
        // Predicated region
        $region33: #{speaker_classifier_forward.1} parent=11 // pred_check
          %p747 = pneg %p224
        $region34: #{speaker_classifier_forward.1} parent=11 // pred_check_branch
          %749 = sbr.rel (%p747) target = $region36
        $region35: #{speaker_classifier_forward.1} parent=11 // pred_region
          _
        $region36: #{speaker_classifier_forward.1} parent=11 // pred_fallthru
          _
        // Predicated region
        $region37: #{speaker_classifier_forward.1} parent=11 // pred_check
          %p750 = pneg %p245
        $region38: #{speaker_classifier_forward.1} parent=11 // pred_check_branch
          %752 = sbr.rel (%p750) target = $region40
        $region39: #{speaker_classifier_forward.1} parent=11 // pred_region
          _
        $region40: #{speaker_classifier_forward.1} parent=11 // pred_fallthru
          _
        // Predicated region
        $region41: #{speaker_classifier_forward.1} parent=11 // pred_check
          %p753 = pneg %p266
        $region42: #{speaker_classifier_forward.1} parent=11 // pred_check_branch
          %755 = sbr.rel (%p753) target = $region44
        $region43: #{speaker_classifier_forward.1} parent=11 // pred_region
          _
        $region44: #{speaker_classifier_forward.1} parent=11 // pred_fallthru
          _
        // Predicated region
        $region45: #{speaker_classifier_forward.1} parent=11 // pred_check
          %p756 = pneg %p287
        $region46: #{speaker_classifier_forward.1} parent=11 // pred_check_branch
          %758 = sbr.rel (%p756) target = $region48
        $region47: #{speaker_classifier_forward.1} parent=11 // pred_region
          _
        $region48: #{speaker_classifier_forward.1} parent=11 // pred_fallthru
          _
        // Predicated region
        $region49: #{speaker_classifier_forward.1} parent=11 // pred_check
          %p759 = pneg %p308
        $region50: #{speaker_classifier_forward.1} parent=11 // pred_check_branch
          %761 = sbr.rel (%p759) target = $region52
        $region51: #{speaker_classifier_forward.1} parent=11 // pred_region
          _
        $region52: #{speaker_classifier_forward.1} parent=11 // pred_fallthru
          _
        // Predicated region
        $region53: #{speaker_classifier_forward.1} parent=11 // pred_check
          %p762 = pneg %p329
        $region54: #{speaker_classifier_forward.1} parent=11 // pred_check_branch
          %764 = sbr.rel (%p762) target = $region56
        $region55: #{speaker_classifier_forward.1} parent=11 // pred_region
          _
        $region56: #{speaker_classifier_forward.1} parent=11 // pred_fallthru
          _
        // Predicated region
        $region57: #{speaker_classifier_forward.1} parent=11 // pred_check
          %p765 = pneg %p350
        $region58: #{speaker_classifier_forward.1} parent=11 // pred_check_branch
          %767 = sbr.rel (%p765) target = $region60
        $region59: #{speaker_classifier_forward.1} parent=11 // pred_region
          _
        $region60: #{speaker_classifier_forward.1} parent=11 // pred_fallthru
          _
        // Predicated region
        $region61: #{speaker_classifier_forward.1} parent=11 // pred_check
          %p768 = pneg %p371
        $region62: #{speaker_classifier_forward.1} parent=11 // pred_check_branch
          %770 = sbr.rel (%p768) target = $region64
        $region63: #{speaker_classifier_forward.1} parent=11 // pred_region
          _
        $region64: #{speaker_classifier_forward.1} parent=11 // pred_fallthru
          _
        // Predicated region
        $region65: #{speaker_classifier_forward.1} parent=11 // pred_check
          %p771 = pneg %p392
        $region66: #{speaker_classifier_forward.1} parent=11 // pred_check_branch
          %773 = sbr.rel (%p771) target = $region68
        $region67: #{speaker_classifier_forward.1} parent=11 // pred_region
          _
        $region68: #{speaker_classifier_forward.1} parent=11 // pred_fallthru
          _
        // Predicated region
        $region69: #{speaker_classifier_forward.1} parent=11 // pred_check
          %p774 = pneg %p413
        $region70: #{speaker_classifier_forward.1} parent=11 // pred_check_branch
          %776 = sbr.rel (%p774) target = $region72
        $region71: #{speaker_classifier_forward.1} parent=11 // pred_region
          _
        $region72: #{speaker_classifier_forward.1} parent=11 // pred_fallthru
          _
        // Predicated region
        $region73: #{speaker_classifier_forward.1} parent=11 // pred_check
          %p777 = pneg %p434
        $region74: #{speaker_classifier_forward.1} parent=11 // pred_check_branch
          %779 = sbr.rel (%p777) target = $region76
        $region75: #{speaker_classifier_forward.1} parent=11 // pred_region
          _
        $region76: #{speaker_classifier_forward.1} parent=11 // pred_fallthru
          _
        // Predicated region
        $region77: #{speaker_classifier_forward.1} parent=11 // pred_check
          %p780 = pneg %p455
        $region78: #{speaker_classifier_forward.1} parent=11 // pred_check_branch
          %782 = sbr.rel (%p780) target = $region80
        $region79: #{speaker_classifier_forward.1} parent=11 // pred_region
          _
        $region80: #{speaker_classifier_forward.1} parent=11 // pred_fallthru
          _
        // Predicated region
        $region81: #{speaker_classifier_forward.1} parent=11 // pred_check
          %p783 = pneg %p476
        $region82: #{speaker_classifier_forward.1} parent=11 // pred_check_branch
          %785 = sbr.rel (%p783) target = $region84
        $region83: #{speaker_classifier_forward.1} parent=11 // pred_region
          _
        $region84: #{speaker_classifier_forward.1} parent=11 // pred_fallthru
          _
        // Predicated region
        $region85: #{speaker_classifier_forward.1} parent=11 // pred_check
          %p786 = pneg %p497
        $region86: #{speaker_classifier_forward.1} parent=11 // pred_check_branch
          %788 = sbr.rel (%p786) target = $region88
        $region87: #{speaker_classifier_forward.1} parent=11 // pred_region
          _
        $region88: #{speaker_classifier_forward.1} parent=11 // pred_fallthru
          _
        // Predicated region
        $region89: #{speaker_classifier_forward.1} parent=11 // pred_check
          %p789 = pneg %p518
        $region90: #{speaker_classifier_forward.1} parent=11 // pred_check_branch
          %791 = sbr.rel (%p789) target = $region92
        $region91: #{speaker_classifier_forward.1} parent=11 // pred_region
          _
        $region92: #{speaker_classifier_forward.1} parent=11 // pred_fallthru
          _
        // Predicated region
        $region93: #{speaker_classifier_forward.1} parent=11 // pred_check
          %p792 = pneg %p539
        $region94: #{speaker_classifier_forward.1} parent=11 // pred_check_branch
          %794 = sbr.rel (%p792) target = $region96
        $region95: #{speaker_classifier_forward.1} parent=11 // pred_region
          _
        $region96: #{speaker_classifier_forward.1} parent=11 // pred_fallthru
          _
        // Predicated region
        $region97: #{speaker_classifier_forward.1} parent=11 // pred_check
          %p795 = pneg %p560
        $region98: #{speaker_classifier_forward.1} parent=11 // pred_check_branch
          %797 = sbr.rel (%p795) target = $region100
        $region99: #{speaker_classifier_forward.1} parent=11 // pred_region
          _
        $region100: #{speaker_classifier_forward.1} parent=11 // pred_fallthru
          _
        // Predicated region
        $region101: #{speaker_classifier_forward.1} parent=11 // pred_check
          %p798 = pneg %p581
        $region102: #{speaker_classifier_forward.1} parent=11 // pred_check_branch
          %800 = sbr.rel (%p798) target = $region104
        $region103: #{speaker_classifier_forward.1} parent=11 // pred_region
          _
        $region104: #{speaker_classifier_forward.1} parent=11 // pred_fallthru
          _
        // Predicated region
        $region105: #{speaker_classifier_forward.1} parent=11 // pred_check
          %p801 = pneg %p602
        $region106: #{speaker_classifier_forward.1} parent=11 // pred_check_branch
          %803 = sbr.rel (%p801) target = $region108
        $region107: #{speaker_classifier_forward.1} parent=11 // pred_region
          _
        $region108: #{speaker_classifier_forward.1} parent=11 // pred_fallthru
          _
        // Predicated region
        $region109: #{speaker_classifier_forward.1} parent=11 // pred_check
          %p804 = pneg %p623
        $region110: #{speaker_classifier_forward.1} parent=11 // pred_check_branch
          %806 = sbr.rel (%p804) target = $region112
        $region111: #{speaker_classifier_forward.1} parent=11 // pred_region
          _
        $region112: #{speaker_classifier_forward.1} parent=11 // pred_fallthru
          _
        // Predicated region
        $region113: #{speaker_classifier_forward.1} parent=11 // pred_check
          %p807 = pneg %p644
        $region114: #{speaker_classifier_forward.1} parent=11 // pred_check_branch
          %809 = sbr.rel (%p807) target = $region116
        $region115: #{speaker_classifier_forward.1} parent=11 // pred_region
          _
        $region116: #{speaker_classifier_forward.1} parent=11 // pred_fallthru
          _
        // Predicated region
        $region117: #{speaker_classifier_forward.1} parent=11 // pred_check
          %p810 = pneg %p665
        $region118: #{speaker_classifier_forward.1} parent=11 // pred_check_branch
          %812 = sbr.rel (%p810) target = $region120
        $region119: #{speaker_classifier_forward.1} parent=11 // pred_region
          _
        $region120: #{speaker_classifier_forward.1} parent=11 // pred_fallthru
          _
      $region12: #{speaker_classifier_forward.1} parent=5 // pred_fallthru
        _
      %p813 = scmp.lt.s32.totalorder %s72, 2
      // Predicated region
      $region121: #{speaker_classifier_forward.1} parent=5 // pred_check
        %p814 = pneg %p813
      $region122: #{speaker_classifier_forward.1} parent=5 // pred_check_branch
        %816 = sbr.rel (%p814) target = $region124
      $region123: #{speaker_classifier_forward.1} parent=5 // pred_region
        // Predicated region
        $region125: #{speaker_classifier_forward.1} parent=123 // pred_check
          %p817 = pneg %p92
        $region126: #{speaker_classifier_forward.1} parent=123 // pred_check_branch
          %819 = sbr.rel (%p817) target = $region128
        $region127: #{speaker_classifier_forward.1} parent=123 // pred_region
          %p820 = scmp.lt.s32.totalorder %s72, 1
          %s821 = scalar_select %p820, %s72, 1
          %s822 = smul.addr %s821, 2
          %s823 = smul.addr %s822, 8
          %s824 = scalar_lea.vmem %s1, %s823
        $region128: #{speaker_classifier_forward.1} parent=123 // pred_fallthru
          _
      $region124: #{speaker_classifier_forward.1} parent=5 // pred_fallthru
        _
      %p825 = scmp.le.s32.totalorder 1, %s72
      %p826 = scmp.lt.s32.totalorder %s72, 3
      %p827 = pnand %p825, %p826
      %p828 = pneg %p827
      // Predicated region
      $region129: #{speaker_classifier_forward.1} parent=5 // pred_check
        _
      $region130: #{speaker_classifier_forward.1} parent=5 // pred_check_branch
        %830 = sbr.rel (%p827) target = $region132
      $region131: #{speaker_classifier_forward.1} parent=5 // pred_region
        %s831 = ssub.s32 %s72, 1
        %p832 = scmp.lt.s32.totalorder %s77, 1
        %s833 = scalar_select %p832, %s77, 1
        %s834 = smul.addr %s833, 2
        %s835 = smul.addr %s834, 8
        %s836 = scalar_lea.vmem %s1, %s835
        %p837 = pneg %p98
        %p838 = pneg %p95
        %p839 = pneg %p119
        %p840 = pneg %p116
        %p841 = pneg %p140
        %p842 = pneg %p137
        %p843 = pneg %p161
        %p844 = pneg %p158
        %p845 = pneg %p182
        %p846 = pneg %p179
        %p847 = pneg %p203
        %p848 = pneg %p200
        %p849 = pneg %p224
        %p850 = pneg %p221
        %p851 = pneg %p245
        %p852 = pneg %p242
        %p853 = pneg %p266
        %p854 = pneg %p263
        %p855 = pneg %p287
        %p856 = pneg %p284
        %p857 = pneg %p308
        %p858 = pneg %p305
        %p859 = pneg %p329
        %p860 = pneg %p326
        %p861 = pneg %p350
        %p862 = pneg %p347
        %p863 = pneg %p371
        %p864 = pneg %p368
        %p865 = pneg %p392
        %p866 = pneg %p389
        %p867 = pneg %p413
        %p868 = pneg %p410
        %p869 = pneg %p434
        %p870 = pneg %p431
        %p871 = pneg %p455
        %p872 = pneg %p452
        %p873 = pneg %p476
        %p874 = pneg %p473
        %p875 = pneg %p497
        %p876 = pneg %p494
        %p877 = pneg %p518
        %p878 = pneg %p515
        %p879 = pneg %p539
        %p880 = pneg %p536
        %p881 = pneg %p560
        %p882 = pneg %p557
        %p883 = pneg %p581
        %p884 = pneg %p578
        %p885 = pneg %p602
        %p886 = pneg %p599
        %p887 = pneg %p623
        %p888 = pneg %p620
        %p889 = pneg %p644
        %p890 = pneg %p641
        %p891 = pneg %p665
        %p892 = pneg %p662
        %p893 = pneg %p691
        %p894 = pneg %p688
        %s895 = sand.u32 %s678, 1
        %s896 = scalar_lea.sflag [#allocation5], %s895
        %s897 = sand.u32 %s678, 1
        %s898 = scalar_lea.vmem [#allocation4], %s897
        %p899 = pneg %p717
        %p900 = pneg %p714
        %s901 = sand.u32 %s704, 1
        %s902 = scalar_lea.sflag [#allocation7], %s901
        %s903 = sand.u32 %s704, 1
        %s904 = scalar_lea.vmem [#allocation6], %s903
        %p905 = scmp.lt.s32.totalorder %s77, 1
        %s906 = scalar_select %p905, %s77, 1
        %s907 = smul.addr %s906, 2
        %s908 = smul.addr %s907, 8
        %s909 = scalar_lea.vmem %s1, %s908
        %v911 = vld [vmem:[%s909] sm:$0xff]
        %v912 = vld [vmem:[%s909 + $0x8] sm:$0xff]
        %vm913 = vcmask 647168
        %914 = vst.msk [vmem:[#allocation2] sm:$0x1] %vm913, 0.0
        %915 = vst.msk [vmem:[#allocation2 + $0x31] sm:$0x1] %vm913, 0.0
        %vm918 = vcmask 1040384
        %v919 = vrot.slane %v911, 7
        %v920 = vrot.slane %v912, 7
        %v921 = vsel %vm918, %v919, %v920
        %vm925 = vcmask 654337
        %926 = vst.msk [vmem:[#allocation2] sm:$0xfe] %vm925, %v919
        %vm927 = vcmask 654336
        %928 = vst.msk [vmem:[#allocation2 + $0x18] sm:$0xff] %vm927, %v921
        %929 = vst.msk [vmem:[#allocation2 + $0x30] sm:$0x1] %vm913, %v920
        %v930 = vld [vmem:[#allocation2] sm:$0xff]
        %v931 = vld [vmem:[#allocation2 + $0x18] sm:$0xff]
        %v932 = vpack.c.bf16 %v931, %v930
        %v933 = vld [vmem:[%s3] sm:$0xff]
        %v934 = vld [vmem:[%s3 + $0x8] sm:$0xf]
        %v935 = vld [vmem:[%s3 + $0xc] sm:$0xff]
        %v936 = vld [vmem:[%s3 + $0x14] sm:$0xf]
        %v937 = vld [vmem:[%s3 + $0x18] sm:$0xff]
        %v938 = vld [vmem:[%s3 + $0x20] sm:$0xf]
        %v939 = vld [vmem:[%s3 + $0x24] sm:$0xff]
        %v940 = vld [vmem:[%s3 + $0x2c] sm:$0xf]
        %v941 = vld [vmem:[%s3 + $0x30] sm:$0xff]
        %v942 = vld [vmem:[%s3 + $0x38] sm:$0xf]
        %v943 = vld [vmem:[%s3 + $0x3c] sm:$0xff]
        %v944 = vld [vmem:[%s3 + $0x44] sm:$0xf]
        %v945 = vld [vmem:[%s3 + $0x48] sm:$0xff]
        %v946 = vld [vmem:[%s3 + $0x50] sm:$0xf]
        %v947 = vld [vmem:[%s3 + $0x54] sm:$0xff]
        %v948 = vld [vmem:[%s3 + $0x5c] sm:$0xf]
        %v949 = vld [vmem:[%s3 + $0x60] sm:$0xff]
        %v950 = vld [vmem:[%s3 + $0x68] sm:$0xf]
        %v951 = vld [vmem:[%s3 + $0x6c] sm:$0xff]
        %v952 = vld [vmem:[%s3 + $0x74] sm:$0xf]
        %v953 = vld [vmem:[#allocation2] sm:$0xfe]
        %v954 = vld [vmem:[#allocation2 + $0x30] sm:$0x1]
        %v955 = vpack.c.bf16 %v931, %v953
        %v956 = vpack.c.bf16 %v954, %v954
        %s957 = scalar_lea.vmem %s3, 120
        %v958 = vld [vmem:[%s957] sm:$0xff]
        %v959 = vld [vmem:[%s957 + $0x8] sm:$0xf]
        %v960 = vld [vmem:[%s957 + $0xc] sm:$0xff]
        %v961 = vld [vmem:[%s957 + $0x14] sm:$0xf]
        %v962 = vld [vmem:[%s957 + $0x18] sm:$0xff]
        %v963 = vld [vmem:[%s957 + $0x20] sm:$0xf]
        %v964 = vld [vmem:[%s957 + $0x24] sm:$0xff]
        %v965 = vld [vmem:[%s957 + $0x2c] sm:$0xf]
        %v966 = vld [vmem:[%s957 + $0x30] sm:$0xff]
        %v967 = vld [vmem:[%s957 + $0x38] sm:$0xf]
        %v968 = vld [vmem:[%s957 + $0x3c] sm:$0xff]
        %v969 = vld [vmem:[%s957 + $0x44] sm:$0xf]
        %v970 = vld [vmem:[%s957 + $0x48] sm:$0xff]
        %v971 = vld [vmem:[%s957 + $0x50] sm:$0xf]
        %v972 = vld [vmem:[%s957 + $0x54] sm:$0xff]
        %v973 = vld [vmem:[%s957 + $0x5c] sm:$0xf]
        %v974 = vld [vmem:[%s957 + $0x60] sm:$0xff]
        %v975 = vld [vmem:[%s957 + $0x68] sm:$0xf]
        %v976 = vld [vmem:[%s957 + $0x6c] sm:$0xff]
        %v977 = vld [vmem:[%s957 + $0x74] sm:$0xf]
        %vm978 = vsmask.f32 7424
        %v980 = vshrl.u32 %v955, 16
        %v982 = vshll.u32 %v955, 16
        %v984 = vrot.slane %v982, 1
        %v985 = vor.u32 %v980, %v984
        %v987 = vshll.u32 %v956, 16
        %v989 = vrot.slane %v987, 1
        %v990 = vsel %vm978, %v985, %v989
        %v1011 = vunpack.c.l.b16 %v958
        %v1012 = vunpack.c.h.b16 %v958
        %v1013 = vunpack.c.l.b16 %v959
        %v1014 = vunpack.c.l.b16 %v960
        %v1015 = vunpack.c.h.b16 %v960
        %v1016 = vunpack.c.l.b16 %v961
        %v1017 = vunpack.c.l.b16 %v962
        %v1018 = vunpack.c.h.b16 %v962
        %v1019 = vunpack.c.l.b16 %v963
        %v1020 = vunpack.c.l.b16 %v964
        %v1021 = vunpack.c.h.b16 %v964
        %v1022 = vunpack.c.l.b16 %v965
        %v1023 = vunpack.c.l.b16 %v966
        %v1024 = vunpack.c.h.b16 %v966
        %v1025 = vunpack.c.l.b16 %v967
        %v1026 = vunpack.c.l.b16 %v968
        %v1027 = vunpack.c.h.b16 %v968
        %v1028 = vunpack.c.l.b16 %v969
        %v1029 = vunpack.c.l.b16 %v970
        %v1030 = vunpack.c.h.b16 %v970
        %v1031 = vunpack.c.l.b16 %v971
        %v1032 = vunpack.c.l.b16 %v972
        %v1033 = vunpack.c.h.b16 %v972
        %v1034 = vunpack.c.l.b16 %v973
        %v1035 = vunpack.c.l.b16 %v974
        %v1036 = vunpack.c.h.b16 %v974
        %v1037 = vunpack.c.l.b16 %v975
        %v1038 = vunpack.c.l.b16 %v976
        %v1039 = vunpack.c.h.b16 %v976
        %v1040 = vunpack.c.l.b16 %v977
        %v1041 = vpack.c.b16 %v1014, %v1011
        %v1042 = vpack.c.b16 %v1015, %v1012
        %v1043 = vpack.c.b16 %v1016, %v1013
        %v1044 = vpack.c.b16 %v1020, %v1017
        %v1045 = vpack.c.b16 %v1021, %v1018
        %v1046 = vpack.c.b16 %v1022, %v1019
        %v1047 = vpack.c.b16 %v1026, %v1023
        %v1048 = vpack.c.b16 %v1027, %v1024
        %v1049 = vpack.c.b16 %v1028, %v1025
        %v1050 = vpack.c.b16 %v1032, %v1029
        %v1051 = vpack.c.b16 %v1033, %v1030
        %v1052 = vpack.c.b16 %v1034, %v1031
        %v1053 = vpack.c.b16 %v1038, %v1035
        %v1054 = vpack.c.b16 %v1039, %v1036
        %v1055 = vpack.c.b16 %v1040, %v1037
        %v1072 = vsel %vm927, %v990, 0
        %1074 = vmatprep.subr.bf16.mxu0 0
        %1075 = vmatpush1.bf16.msra.mxu0 0
        %1076 = vmatprep.subr.bf16.mxu0 0
        %1077 = vmatpush1.bf16.msra.mxu0 0
        %1078 = vmatprep.subr.bf16.mxu0 0
        %1079 = vmatpush1.bf16.msra.mxu0 0
        %1080 = vmatprep.subr.bf16.mxu0 %v1054
        %1081 = vmatpush1.bf16.msra.mxu0 %v1053
        %1082 = vmatprep.subr.bf16.mxu0 %v1051
        %1083 = vmatpush1.bf16.msra.mxu0 %v1050
        %1084 = vmatprep.subr.bf16.mxu0 %v1048
        %1085 = vmatpush1.bf16.msra.mxu0 %v1047
        %1086 = vmatprep.subr.bf16.mxu0 %v1045
        %1087 = vmatpush1.bf16.msra.mxu0 %v1044
        %1088 = vmatprep.subr.bf16.mxu0 %v1042
        %1089 = vmatpush1.bf16.msra.mxu0 %v1041
        %1090 = vmatprep.subr.bf16.mxu0 0
        %1091 = vmatpush2.bf16.msra.mxu0 0
        %1092 = vmatprep.subr.bf16.mxu0 0
        %1093 = vmatpush2.bf16.msra.mxu0 0
        %1094 = vmatprep.subr.bf16.mxu0 0
        %1095 = vmatpush2.bf16.msra.mxu0 0
        %1096 = vmatprep.subr.bf16.mxu0 0
        %1097 = vmatpush2.bf16.msra.mxu0 0
        %1098 = vmatprep.subr.bf16.mxu0 0
        %1099 = vmatpush2.bf16.msra.mxu0 0
        %1100 = vmatprep.subr.bf16.mxu0 0
        %1101 = vmatpush2.bf16.msra.mxu0 0
        %1102 = vmatprep.subr.bf16.mxu0 0
        %1103 = vmatpush2.bf16.msra.mxu0 0
        %1104 = vmatprep.subr.bf16.mxu0 0
        %1105 = vmatpush2.bf16.msra.mxu0 0
        %1106 = vmatprep.mubr.bf16.mxu0 0
        %1107 = vmatmul.mubr.bf16.gmra.mxu0 %v1072
        %v1108 = vpop.f32.mrf.mxu0
        %v1109 = vadd.f32 0.0, %v1108
        %v1110 = vpop.f32.mrf.mxu0
        %v1111 = vadd.f32 0.0, %v1110
        %v1112 = vpop.f32.mrf.mxu0
        %v1113 = vadd.f32 0.0, %v1112
        %v1114 = vpop.f32.mrf.mxu0
        %v1115 = vadd.f32 0.0, %v1114
        %1116 = vdwg.mxu0
        %1117 = vmatprep.subr.bf16.mxu0 0
        %1118 = vmatpush1.bf16.msra.mxu0 0
        %1119 = vmatprep.subr.bf16.mxu0 0
        %1120 = vmatpush1.bf16.msra.mxu0 0
        %1121 = vmatprep.subr.bf16.mxu0 0
        %1122 = vmatpush1.bf16.msra.mxu0 0
        %1123 = vmatprep.subr.bf16.mxu0 0
        %1124 = vmatpush1.bf16.msra.mxu0 %v1055
        %1125 = vmatprep.subr.bf16.mxu0 0
        %1126 = vmatpush1.bf16.msra.mxu0 %v1052
        %1127 = vmatprep.subr.bf16.mxu0 0
        %1128 = vmatpush1.bf16.msra.mxu0 %v1049
        %1129 = vmatprep.subr.bf16.mxu0 0
        %1130 = vmatpush1.bf16.msra.mxu0 %v1046
        %1131 = vmatprep.subr.bf16.mxu0 0
        %1132 = vmatpush1.bf16.msra.mxu0 %v1043
        %1133 = vmatprep.subr.bf16.mxu0 0
        %1134 = vmatpush2.bf16.msra.mxu0 0
        %1135 = vmatprep.subr.bf16.mxu0 0
        %1136 = vmatpush2.bf16.msra.mxu0 0
        %1137 = vmatprep.subr.bf16.mxu0 0
        %1138 = vmatpush2.bf16.msra.mxu0 0
        %1139 = vmatprep.subr.bf16.mxu0 0
        %1140 = vmatpush2.bf16.msra.mxu0 0
        %1141 = vmatprep.subr.bf16.mxu0 0
        %1142 = vmatpush2.bf16.msra.mxu0 0
        %1143 = vmatprep.subr.bf16.mxu0 0
        %1144 = vmatpush2.bf16.msra.mxu0 0
        %1145 = vmatprep.subr.bf16.mxu0 0
        %1146 = vmatpush2.bf16.msra.mxu0 0
        %1147 = vmatprep.subr.bf16.mxu0 0
        %1148 = vmatpush2.bf16.msra.mxu0 0
        %1149 = vmatprep.mubr.bf16.mxu0 0
        %1150 = vmatmul.mubr.bf16.gmra.mxu0 %v1072
        %v1151 = vpop.f32.mrf.mxu0
        %v1152 = vadd.f32 0.0, %v1151
        %v1153 = vpop.f32.mrf.mxu0
        %v1154 = vpop.f32.mrf.mxu0
        %v1155 = vadd.f32 0.0, %v1154
        %v1156 = vpop.f32.mrf.mxu0
        %1157 = vdwg.mxu0
        %v1178 = vunpack.c.l.b16 %v933
        %v1179 = vunpack.c.h.b16 %v933
        %v1180 = vunpack.c.l.b16 %v934
        %v1181 = vunpack.c.l.b16 %v935
        %v1182 = vunpack.c.h.b16 %v935
        %v1183 = vunpack.c.l.b16 %v936
        %v1184 = vunpack.c.l.b16 %v937
        %v1185 = vunpack.c.h.b16 %v937
        %v1186 = vunpack.c.l.b16 %v938
        %v1187 = vunpack.c.l.b16 %v939
        %v1188 = vunpack.c.h.b16 %v939
        %v1189 = vunpack.c.l.b16 %v940
        %v1190 = vunpack.c.l.b16 %v941
        %v1191 = vunpack.c.h.b16 %v941
        %v1192 = vunpack.c.l.b16 %v942
        %v1193 = vunpack.c.l.b16 %v943
        %v1194 = vunpack.c.h.b16 %v943
        %v1195 = vunpack.c.l.b16 %v944
        %v1196 = vunpack.c.l.b16 %v945
        %v1197 = vunpack.c.h.b16 %v945
        %v1198 = vunpack.c.l.b16 %v946
        %v1199 = vunpack.c.l.b16 %v947
        %v1200 = vunpack.c.h.b16 %v947
        %v1201 = vunpack.c.l.b16 %v948
        %v1202 = vunpack.c.l.b16 %v949
        %v1203 = vunpack.c.h.b16 %v949
        %v1204 = vunpack.c.l.b16 %v950
        %v1205 = vunpack.c.l.b16 %v951
        %v1206 = vunpack.c.h.b16 %v951
        %v1207 = vunpack.c.l.b16 %v952
        %v1208 = vpack.c.b16 %v1181, %v1178
        %v1209 = vpack.c.b16 %v1182, %v1179
        %v1210 = vpack.c.b16 %v1183, %v1180
        %v1211 = vpack.c.b16 %v1187, %v1184
        %v1212 = vpack.c.b16 %v1188, %v1185
        %v1213 = vpack.c.b16 %v1189, %v1186
        %v1214 = vpack.c.b16 %v1193, %v1190
        %v1215 = vpack.c.b16 %v1194, %v1191
        %v1216 = vpack.c.b16 %v1195, %v1192
        %v1217 = vpack.c.b16 %v1199, %v1196
        %v1218 = vpack.c.b16 %v1200, %v1197
        %v1219 = vpack.c.b16 %v1201, %v1198
        %v1220 = vpack.c.b16 %v1205, %v1202
        %v1221 = vpack.c.b16 %v1206, %v1203
        %v1222 = vpack.c.b16 %v1207, %v1204
        %v1239 = vsel %vm927, %v932, 0
        %1241 = vmatprep.subr.bf16.mxu0 0
        %1242 = vmatpush1.bf16.msra.mxu0 0
        %1243 = vmatprep.subr.bf16.mxu0 0
        %1244 = vmatpush1.bf16.msra.mxu0 0
        %1245 = vmatprep.subr.bf16.mxu0 0
        %1246 = vmatpush1.bf16.msra.mxu0 0
        %1247 = vmatprep.subr.bf16.mxu0 %v1221
        %1248 = vmatpush1.bf16.msra.mxu0 %v1220
        %1249 = vmatprep.subr.bf16.mxu0 %v1218
        %1250 = vmatpush1.bf16.msra.mxu0 %v1217
        %1251 = vmatprep.subr.bf16.mxu0 %v1215
        %1252 = vmatpush1.bf16.msra.mxu0 %v1214
        %1253 = vmatprep.subr.bf16.mxu0 %v1212
        %1254 = vmatpush1.bf16.msra.mxu0 %v1211
        %1255 = vmatprep.subr.bf16.mxu0 %v1209
        %1256 = vmatpush1.bf16.msra.mxu0 %v1208
        %1257 = vmatprep.subr.bf16.mxu0 0
        %1258 = vmatpush2.bf16.msra.mxu0 0
        %1259 = vmatprep.subr.bf16.mxu0 0
        %1260 = vmatpush2.bf16.msra.mxu0 0
        %1261 = vmatprep.subr.bf16.mxu0 0
        %1262 = vmatpush2.bf16.msra.mxu0 0
        %1263 = vmatprep.subr.bf16.mxu0 0
        %1264 = vmatpush2.bf16.msra.mxu0 0
        %1265 = vmatprep.subr.bf16.mxu0 0
        %1266 = vmatpush2.bf16.msra.mxu0 0
        %1267 = vmatprep.subr.bf16.mxu0 0
        %1268 = vmatpush2.bf16.msra.mxu0 0
        %1269 = vmatprep.subr.bf16.mxu0 0
        %1270 = vmatpush2.bf16.msra.mxu0 0
        %1271 = vmatprep.subr.bf16.mxu0 0
        %1272 = vmatpush2.bf16.msra.mxu0 0
        %1273 = vmatprep.mubr.bf16.mxu0 0
        %1274 = vmatmul.mubr.bf16.gmra.mxu0 %v1239
        %v1275 = vpop.f32.mrf.mxu0
        %v1276 = vadd.f32 %v1109, %v1275
        %v1277 = vpop.f32.mrf.mxu0
        %v1278 = vadd.f32 %v1111, %v1277
        %v1279 = vpop.f32.mrf.mxu0
        %v1280 = vadd.f32 %v1113, %v1279
        %v1281 = vpop.f32.mrf.mxu0
        %v1282 = vadd.f32 %v1115, %v1281
        %1283 = vdwg.mxu0
        %1284 = vmatprep.subr.bf16.mxu0 0
        %1285 = vmatpush1.bf16.msra.mxu0 0
        %1286 = vmatprep.subr.bf16.mxu0 0
        %1287 = vmatpush1.bf16.msra.mxu0 0
        %1288 = vmatprep.subr.bf16.mxu0 0
        %1289 = vmatpush1.bf16.msra.mxu0 0
        %1290 = vmatprep.subr.bf16.mxu0 0
        %1291 = vmatpush1.bf16.msra.mxu0 %v1222
        %1292 = vmatprep.subr.bf16.mxu0 0
        %1293 = vmatpush1.bf16.msra.mxu0 %v1219
        %1294 = vmatprep.subr.bf16.mxu0 0
        %1295 = vmatpush1.bf16.msra.mxu0 %v1216
        %1296 = vmatprep.subr.bf16.mxu0 0
        %1297 = vmatpush1.bf16.msra.mxu0 %v1213
        %1298 = vmatprep.subr.bf16.mxu0 0
        %1299 = vmatpush1.bf16.msra.mxu0 %v1210
        %1300 = vmatprep.subr.bf16.mxu0 0
        %1301 = vmatpush2.bf16.msra.mxu0 0
        %1302 = vmatprep.subr.bf16.mxu0 0
        %1303 = vmatpush2.bf16.msra.mxu0 0
        %1304 = vmatprep.subr.bf16.mxu0 0
        %1305 = vmatpush2.bf16.msra.mxu0 0
        %1306 = vmatprep.subr.bf16.mxu0 0
        %1307 = vmatpush2.bf16.msra.mxu0 0
        %1308 = vmatprep.subr.bf16.mxu0 0
        %1309 = vmatpush2.bf16.msra.mxu0 0
        %1310 = vmatprep.subr.bf16.mxu0 0
        %1311 = vmatpush2.bf16.msra.mxu0 0
        %1312 = vmatprep.subr.bf16.mxu0 0
        %1313 = vmatpush2.bf16.msra.mxu0 0
        %1314 = vmatprep.subr.bf16.mxu0 0
        %1315 = vmatpush2.bf16.msra.mxu0 0
        %1316 = vmatprep.mubr.bf16.mxu0 0
        %1317 = vmatmul.mubr.bf16.gmra.mxu0 %v1239
        %v1318 = vpop.f32.mrf.mxu0
        %v1319 = vadd.f32 %v1152, %v1318
        %v1320 = vpop.f32.mrf.mxu0
        %v1321 = vpop.f32.mrf.mxu0
        %v1322 = vadd.f32 %v1155, %v1321
        %v1323 = vpop.f32.mrf.mxu0
        %1324 = vdwg.mxu0
        %v1325 = vld [vmem:[#allocation2] sm:$0xfc]
        %v1326 = vld [vmem:[#allocation2 + $0x30] sm:$0x3]
        %v1327 = vpack.c.bf16 %v931, %v1325
        %v1328 = vpack.c.bf16 %v1326, %v1326
        %s1329 = scalar_lea.vmem %s3, 240
        %v1330 = vld [vmem:[%s1329] sm:$0xff]
        %v1331 = vld [vmem:[%s1329 + $0x8] sm:$0xf]
        %v1332 = vld [vmem:[%s1329 + $0xc] sm:$0xff]
        %v1333 = vld [vmem:[%s1329 + $0x14] sm:$0xf]
        %v1334 = vld [vmem:[%s1329 + $0x18] sm:$0xff]
        %v1335 = vld [vmem:[%s1329 + $0x20] sm:$0xf]
        %v1336 = vld [vmem:[%s1329 + $0x24] sm:$0xff]
        %v1337 = vld [vmem:[%s1329 + $0x2c] sm:$0xf]
        %v1338 = vld [vmem:[%s1329 + $0x30] sm:$0xff]
        %v1339 = vld [vmem:[%s1329 + $0x38] sm:$0xf]
        %v1340 = vld [vmem:[%s1329 + $0x3c] sm:$0xff]
        %v1341 = vld [vmem:[%s1329 + $0x44] sm:$0xf]
        %v1342 = vld [vmem:[%s1329 + $0x48] sm:$0xff]
        %v1343 = vld [vmem:[%s1329 + $0x50] sm:$0xf]
        %v1344 = vld [vmem:[%s1329 + $0x54] sm:$0xff]
        %v1345 = vld [vmem:[%s1329 + $0x5c] sm:$0xf]
        %v1346 = vld [vmem:[%s1329 + $0x60] sm:$0xff]
        %v1347 = vld [vmem:[%s1329 + $0x68] sm:$0xf]
        %v1348 = vld [vmem:[%s1329 + $0x6c] sm:$0xff]
        %v1349 = vld [vmem:[%s1329 + $0x74] sm:$0xf]
        %vm1352 = vcmask 1046528
        %v1353 = vrot.slane %v1327, 1
        %v1354 = vrot.slane %v1328, 1
        %v1355 = vsel %vm1352, %v1353, %v1354
        %v1376 = vunpack.c.l.b16 %v1330
        %v1377 = vunpack.c.h.b16 %v1330
        %v1378 = vunpack.c.l.b16 %v1331
        %v1379 = vunpack.c.l.b16 %v1332
        %v1380 = vunpack.c.h.b16 %v1332
        %v1381 = vunpack.c.l.b16 %v1333
        %v1382 = vunpack.c.l.b16 %v1334
        %v1383 = vunpack.c.h.b16 %v1334
        %v1384 = vunpack.c.l.b16 %v1335
        %v1385 = vunpack.c.l.b16 %v1336
        %v1386 = vunpack.c.h.b16 %v1336
        %v1387 = vunpack.c.l.b16 %v1337
        %v1388 = vunpack.c.l.b16 %v1338
        %v1389 = vunpack.c.h.b16 %v1338
        %v1390 = vunpack.c.l.b16 %v1339
        %v1391 = vunpack.c.l.b16 %v1340
        %v1392 = vunpack.c.h.b16 %v1340
        %v1393 = vunpack.c.l.b16 %v1341
        %v1394 = vunpack.c.l.b16 %v1342
        %v1395 = vunpack.c.h.b16 %v1342
        %v1396 = vunpack.c.l.b16 %v1343
        %v1397 = vunpack.c.l.b16 %v1344
        %v1398 = vunpack.c.h.b16 %v1344
        %v1399 = vunpack.c.l.b16 %v1345
        %v1400 = vunpack.c.l.b16 %v1346
        %v1401 = vunpack.c.h.b16 %v1346
        %v1402 = vunpack.c.l.b16 %v1347
        %v1403 = vunpack.c.l.b16 %v1348
        %v1404 = vunpack.c.h.b16 %v1348
        %v1405 = vunpack.c.l.b16 %v1349
        %v1406 = vpack.c.b16 %v1379, %v1376
        %v1407 = vpack.c.b16 %v1380, %v1377
        %v1408 = vpack.c.b16 %v1381, %v1378
        %v1409 = vpack.c.b16 %v1385, %v1382
        %v1410 = vpack.c.b16 %v1386, %v1383
        %v1411 = vpack.c.b16 %v1387, %v1384
        %v1412 = vpack.c.b16 %v1391, %v1388
        %v1413 = vpack.c.b16 %v1392, %v1389
        %v1414 = vpack.c.b16 %v1393, %v1390
        %v1415 = vpack.c.b16 %v1397, %v1394
        %v1416 = vpack.c.b16 %v1398, %v1395
        %v1417 = vpack.c.b16 %v1399, %v1396
        %v1418 = vpack.c.b16 %v1403, %v1400
        %v1419 = vpack.c.b16 %v1404, %v1401
        %v1420 = vpack.c.b16 %v1405, %v1402
        %v1437 = vsel %vm927, %v1355, 0
        %1439 = vmatprep.subr.bf16.mxu0 0
        %1440 = vmatpush1.bf16.msra.mxu0 0
        %1441 = vmatprep.subr.bf16.mxu0 0
        %1442 = vmatpush1.bf16.msra.mxu0 0
        %1443 = vmatprep.subr.bf16.mxu0 0
        %1444 = vmatpush1.bf16.msra.mxu0 0
        %1445 = vmatprep.subr.bf16.mxu0 %v1419
        %1446 = vmatpush1.bf16.msra.mxu0 %v1418
        %1447 = vmatprep.subr.bf16.mxu0 %v1416
        %1448 = vmatpush1.bf16.msra.mxu0 %v1415
        %1449 = vmatprep.subr.bf16.mxu0 %v1413
        %1450 = vmatpush1.bf16.msra.mxu0 %v1412
        %1451 = vmatprep.subr.bf16.mxu0 %v1410
        %1452 = vmatpush1.bf16.msra.mxu0 %v1409
        %1453 = vmatprep.subr.bf16.mxu0 %v1407
        %1454 = vmatpush1.bf16.msra.mxu0 %v1406
        %1455 = vmatprep.subr.bf16.mxu0 0
        %1456 = vmatpush2.bf16.msra.mxu0 0
        %1457 = vmatprep.subr.bf16.mxu0 0
        %1458 = vmatpush2.bf16.msra.mxu0 0
        %1459 = vmatprep.subr.bf16.mxu0 0
        %1460 = vmatpush2.bf16.msra.mxu0 0
        %1461 = vmatprep.subr.bf16.mxu0 0
        %1462 = vmatpush2.bf16.msra.mxu0 0
        %1463 = vmatprep.subr.bf16.mxu0 0
        %1464 = vmatpush2.bf16.msra.mxu0 0
        %1465 = vmatprep.subr.bf16.mxu0 0
        %1466 = vmatpush2.bf16.msra.mxu0 0
        %1467 = vmatprep.subr.bf16.mxu0 0
        %1468 = vmatpush2.bf16.msra.mxu0 0
        %1469 = vmatprep.subr.bf16.mxu0 0
        %1470 = vmatpush2.bf16.msra.mxu0 0
        %1471 = vmatprep.mubr.bf16.mxu0 0
        %1472 = vmatmul.mubr.bf16.gmra.mxu0 %v1437
        %v1473 = vpop.f32.mrf.mxu0
        %v1474 = vadd.f32 0.0, %v1473
        %v1475 = vpop.f32.mrf.mxu0
        %v1476 = vadd.f32 0.0, %v1475
        %v1477 = vpop.f32.mrf.mxu0
        %v1478 = vadd.f32 0.0, %v1477
        %v1479 = vpop.f32.mrf.mxu0
        %v1480 = vadd.f32 0.0, %v1479
        %1481 = vdwg.mxu0
        %1482 = vmatprep.subr.bf16.mxu0 0
        %1483 = vmatpush1.bf16.msra.mxu0 0
        %1484 = vmatprep.subr.bf16.mxu0 0
        %1485 = vmatpush1.bf16.msra.mxu0 0
        %1486 = vmatprep.subr.bf16.mxu0 0
        %1487 = vmatpush1.bf16.msra.mxu0 0
        %1488 = vmatprep.subr.bf16.mxu0 0
        %1489 = vmatpush1.bf16.msra.mxu0 %v1420
        %1490 = vmatprep.subr.bf16.mxu0 0
        %1491 = vmatpush1.bf16.msra.mxu0 %v1417
        %1492 = vmatprep.subr.bf16.mxu0 0
        %1493 = vmatpush1.bf16.msra.mxu0 %v1414
        %1494 = vmatprep.subr.bf16.mxu0 0
        %1495 = vmatpush1.bf16.msra.mxu0 %v1411
        %1496 = vmatprep.subr.bf16.mxu0 0
        %1497 = vmatpush1.bf16.msra.mxu0 %v1408
        %1498 = vmatprep.subr.bf16.mxu0 0
        %1499 = vmatpush2.bf16.msra.mxu0 0
        %1500 = vmatprep.subr.bf16.mxu0 0
        %1501 = vmatpush2.bf16.msra.mxu0 0
        %1502 = vmatprep.subr.bf16.mxu0 0
        %1503 = vmatpush2.bf16.msra.mxu0 0
        %1504 = vmatprep.subr.bf16.mxu0 0
        %1505 = vmatpush2.bf16.msra.mxu0 0
        %1506 = vmatprep.subr.bf16.mxu0 0
        %1507 = vmatpush2.bf16.msra.mxu0 0
        %1508 = vmatprep.subr.bf16.mxu0 0
        %1509 = vmatpush2.bf16.msra.mxu0 0
        %1510 = vmatprep.subr.bf16.mxu0 0
        %1511 = vmatpush2.bf16.msra.mxu0 0
        %1512 = vmatprep.subr.bf16.mxu0 0
        %1513 = vmatpush2.bf16.msra.mxu0 0
        %1514 = vmatprep.mubr.bf16.mxu0 0
        %1515 = vmatmul.mubr.bf16.gmra.mxu0 %v1437
        %v1516 = vpop.f32.mrf.mxu0
        %v1517 = vadd.f32 0.0, %v1516
        %v1518 = vpop.f32.mrf.mxu0
        %v1519 = vpop.f32.mrf.mxu0
        %v1520 = vadd.f32 0.0, %v1519
        %v1521 = vpop.f32.mrf.mxu0
        %1522 = vdwg.mxu0
        %v1523 = vadd.f32 %v1276, %v1474
        %v1524 = vadd.f32 %v1278, %v1476
        %v1525 = vadd.f32 %v1319, %v1517
        %v1526 = vadd.f32 %v1280, %v1478
        %v1527 = vadd.f32 %v1282, %v1480
        %v1528 = vadd.f32 %v1322, %v1520
        %v1529 = vld [vmem:[%s5] sm:$0x7]
        %v1531 = vlaneseq
        %v1532 = vshrl.u32 %v1531, 7
        %v1533 = vsub.s32 0, %v1532
        %v1534 = vrot.slane %v1529, %v1533
        %v1535 = vlaneseq
        %v1536 = vshrl.u32 %v1535, 7
        %v1537 = vsub.s32 1, %v1536
        %v1538 = vrot.slane %v1529, %v1537
        %v1539 = vlaneseq
        %v1540 = vshrl.u32 %v1539, 7
        %v1541 = vsub.s32 2, %v1540
        %v1542 = vrot.slane %v1529, %v1541
        %v1546 = vadd.f32 %v1523, %v1534
        %v1547 = vadd.f32 %v1524, %v1538
        %v1548 = vadd.f32 %v1525, %v1542
        %v1549 = vadd.f32 %v1526, %v1534
        %v1550 = vadd.f32 %v1527, %v1538
        %v1551 = vadd.f32 %v1528, %v1542
        %v1552 = vmax.f32 %v1546, 0.0
        %v1553 = vmax.f32 %v1547, 0.0
        %v1554 = vmax.f32 %v1548, 0.0
        %v1555 = vmax.f32 %v1549, 0.0
        %v1556 = vmax.f32 %v1550, 0.0
        %v1557 = vmax.f32 %v1551, 0.0
        %v1558 = vlaneseq
        %vm1559 = vcmp.ge.s32.totalorder %v1558, 0
        %vm1560 = vcmp.lt.s32.totalorder %v1558, 320
        %vm1561 = vmand %vm1559, %vm1560
        %1562 = vst.msk [vmem:[#allocation2] ss:$8 sm:$0x7] %vm1561, 0.0
        %1563 = vst.msk [vmem:[#allocation2] ss:$8 sm:$0x0] %vm1561, 0.0
        %s1564 = scalar_lea.vmem [#allocation2], 49
        %1565 = vst.msk [vmem:[%s1564] ss:$8 sm:$0x7] %vm1561, 0.0
        %1566 = vst.msk [vmem:[%s1564] ss:$8 sm:$0x0] %vm1561, 0.0
        %v1573 = vrot.slane %v1552, 7
        %v1574 = vrot.slane %v1553, 7
        %v1575 = vrot.slane %v1554, 7
        %v1576 = vrot.slane %v1555, 7
        %v1577 = vsel %vm918, %v1573, %v1576
        %v1578 = vrot.slane %v1556, 7
        %v1579 = vsel %vm918, %v1574, %v1578
        %v1580 = vrot.slane %v1557, 7
        %v1581 = vsel %vm918, %v1575, %v1580
        %1591 = vst [vmem:[#allocation2] sm:$0xfe] %v1573
        %1592 = vst [vmem:[#allocation2 + $0x8] sm:$0xfe] %v1574
        %vm1593 = vcmask 523265
        %1594 = vst.msk [vmem:[#allocation2 + $0x10] sm:$0xfe] %vm1593, %v1575
        %1595 = vst [vmem:[#allocation2 + $0x18] sm:$0xff] %v1577
        %1596 = vst [vmem:[#allocation2 + $0x20] sm:$0xff] %v1579
        %vm1597 = vcmask 523264
        %1598 = vst.msk [vmem:[#allocation2 + $0x28] sm:$0xff] %vm1597, %v1581
        %1599 = vst [vmem:[#allocation2 + $0x30] sm:$0x1] %v1576
        %1600 = vst [vmem:[#allocation2 + $0x38] sm:$0x1] %v1578
        %vm1601 = vcmask 516096
        %1602 = vst.msk [vmem:[#allocation2 + $0x40] sm:$0x1] %vm1601, %v1580
        %v1603 = vld [vmem:[#allocation2] sm:$0xff]
        %v1604 = vld [vmem:[#allocation2 + $0x8] sm:$0xff]
        %v1605 = vld [vmem:[#allocation2 + $0x10] sm:$0xff]
        %v1606 = vld [vmem:[#allocation2 + $0x18] sm:$0xff]
        %v1607 = vld [vmem:[#allocation2 + $0x20] sm:$0xff]
        %v1608 = vld [vmem:[#allocation2 + $0x28] sm:$0xff]
        %v1609 = vpack.c.bf16 %v1606, %v1603
        %v1610 = vpack.c.bf16 %v1607, %v1604
        %v1611 = vpack.c.bf16 %v1608, %v1605
        %v1612 = vld [vmem:[%s7] sm:$0xff]
        %v1613 = vld [vmem:[%s7 + $0x8] sm:$0xff]
        %v1614 = vld [vmem:[%s7 + $0x10] sm:$0xff]
        %v1615 = vld [vmem:[%s7 + $0x18] sm:$0xff]
        %v1616 = vld [vmem:[%s7 + $0x20] sm:$0xff]
        %v1617 = vld [vmem:[%s7 + $0x28] sm:$0xff]
        %v1618 = vld [vmem:[%s7 + $0x30] sm:$0xff]
        %v1619 = vld [vmem:[%s7 + $0x38] sm:$0xff]
        %v1620 = vld [vmem:[%s7 + $0x40] sm:$0xff]
        %v1621 = vld [vmem:[%s7 + $0x48] sm:$0xff]
        %v1622 = vld [vmem:[%s7 + $0x50] sm:$0xff]
        %v1623 = vld [vmem:[%s7 + $0x58] sm:$0xff]
        %v1624 = vld [vmem:[%s7 + $0x60] sm:$0xff]
        %v1625 = vld [vmem:[%s7 + $0x68] sm:$0xff]
        %v1626 = vld [vmem:[%s7 + $0x70] sm:$0xff]
        %v1627 = vld [vmem:[%s7 + $0x78] sm:$0xff]
        %v1628 = vld [vmem:[%s7 + $0x80] sm:$0xff]
        %v1629 = vld [vmem:[%s7 + $0x88] sm:$0xff]
        %v1630 = vld [vmem:[%s7 + $0x90] sm:$0xff]
        %v1631 = vld [vmem:[%s7 + $0x98] sm:$0xff]
        %v1632 = vld [vmem:[%s7 + $0xa0] sm:$0xff]
        %v1633 = vld [vmem:[%s7 + $0xa8] sm:$0xff]
        %v1634 = vld [vmem:[%s7 + $0xb0] sm:$0xff]
        %v1635 = vld [vmem:[%s7 + $0xb8] sm:$0xff]
        %v1636 = vld [vmem:[%s7 + $0xc0] sm:$0xff]
        %v1637 = vld [vmem:[%s7 + $0xc8] sm:$0xff]
        %v1638 = vld [vmem:[%s7 + $0xd0] sm:$0xff]
        %v1639 = vld [vmem:[%s7 + $0xd8] sm:$0xff]
        %v1640 = vld [vmem:[%s7 + $0xe0] sm:$0xff]
        %v1641 = vld [vmem:[%s7 + $0xe8] sm:$0xff]
        %v1642 = vld [vmem:[%s7 + $0xf0] sm:$0xff]
        %v1643 = vld [vmem:[%s7 + $0xf8] sm:$0xff]
        %v1644 = vld [vmem:[%s7 + $0x100] sm:$0xff]
        %v1645 = vld [vmem:[%s7 + $0x108] sm:$0xff]
        %v1646 = vld [vmem:[%s7 + $0x110] sm:$0xff]
        %v1647 = vld [vmem:[%s7 + $0x118] sm:$0xff]
        %v1648 = vld [vmem:[%s7 + $0x120] sm:$0xff]
        %v1649 = vld [vmem:[%s7 + $0x128] sm:$0xff]
        %v1650 = vld [vmem:[%s7 + $0x130] sm:$0xff]
        %v1651 = vld [vmem:[%s7 + $0x138] sm:$0xff]
        %v1652 = vld [vmem:[#allocation2] sm:$0xfe]
        %v1653 = vld [vmem:[#allocation2 + $0x8] sm:$0xfe]
        %v1654 = vld [vmem:[#allocation2 + $0x10] sm:$0xfe]
        %v1655 = vld [vmem:[#allocation2 + $0x30] sm:$0x1]
        %v1656 = vld [vmem:[#allocation2 + $0x38] sm:$0x1]
        %v1657 = vld [vmem:[#allocation2 + $0x40] sm:$0x1]
        %v1658 = vpack.c.bf16 %v1606, %v1652
        %v1659 = vpack.c.bf16 %v1607, %v1653
        %v1660 = vpack.c.bf16 %v1608, %v1654
        %v1661 = vpack.c.bf16 %v1655, %v1655
        %v1662 = vpack.c.bf16 %v1656, %v1656
        %v1663 = vpack.c.bf16 %v1657, %v1657
        %s1664 = scalar_lea.vmem %s7, 320
        %v1665 = vld [vmem:[%s1664] sm:$0xff]
        %v1666 = vld [vmem:[%s1664 + $0x8] sm:$0xff]
        %v1667 = vld [vmem:[%s1664 + $0x10] sm:$0xff]
        %v1668 = vld [vmem:[%s1664 + $0x18] sm:$0xff]
        %v1669 = vld [vmem:[%s1664 + $0x20] sm:$0xff]
        %v1670 = vld [vmem:[%s1664 + $0x28] sm:$0xff]
        %v1671 = vld [vmem:[%s1664 + $0x30] sm:$0xff]
        %v1672 = vld [vmem:[%s1664 + $0x38] sm:$0xff]
        %v1673 = vld [vmem:[%s1664 + $0x40] sm:$0xff]
        %v1674 = vld [vmem:[%s1664 + $0x48] sm:$0xff]
        %v1675 = vld [vmem:[%s1664 + $0x50] sm:$0xff]
        %v1676 = vld [vmem:[%s1664 + $0x58] sm:$0xff]
        %v1677 = vld [vmem:[%s1664 + $0x60] sm:$0xff]
        %v1678 = vld [vmem:[%s1664 + $0x68] sm:$0xff]
        %v1679 = vld [vmem:[%s1664 + $0x70] sm:$0xff]
        %v1680 = vld [vmem:[%s1664 + $0x78] sm:$0xff]
        %v1681 = vld [vmem:[%s1664 + $0x80] sm:$0xff]
        %v1682 = vld [vmem:[%s1664 + $0x88] sm:$0xff]
        %v1683 = vld [vmem:[%s1664 + $0x90] sm:$0xff]
        %v1684 = vld [vmem:[%s1664 + $0x98] sm:$0xff]
        %v1685 = vld [vmem:[%s1664 + $0xa0] sm:$0xff]
        %v1686 = vld [vmem:[%s1664 + $0xa8] sm:$0xff]
        %v1687 = vld [vmem:[%s1664 + $0xb0] sm:$0xff]
        %v1688 = vld [vmem:[%s1664 + $0xb8] sm:$0xff]
        %v1689 = vld [vmem:[%s1664 + $0xc0] sm:$0xff]
        %v1690 = vld [vmem:[%s1664 + $0xc8] sm:$0xff]
        %v1691 = vld [vmem:[%s1664 + $0xd0] sm:$0xff]
        %v1692 = vld [vmem:[%s1664 + $0xd8] sm:$0xff]
        %v1693 = vld [vmem:[%s1664 + $0xe0] sm:$0xff]
        %v1694 = vld [vmem:[%s1664 + $0xe8] sm:$0xff]
        %v1695 = vld [vmem:[%s1664 + $0xf0] sm:$0xff]
        %v1696 = vld [vmem:[%s1664 + $0xf8] sm:$0xff]
        %v1697 = vld [vmem:[%s1664 + $0x100] sm:$0xff]
        %v1698 = vld [vmem:[%s1664 + $0x108] sm:$0xff]
        %v1699 = vld [vmem:[%s1664 + $0x110] sm:$0xff]
        %v1700 = vld [vmem:[%s1664 + $0x118] sm:$0xff]
        %v1701 = vld [vmem:[%s1664 + $0x120] sm:$0xff]
        %v1702 = vld [vmem:[%s1664 + $0x128] sm:$0xff]
        %v1703 = vld [vmem:[%s1664 + $0x130] sm:$0xff]
        %v1704 = vld [vmem:[%s1664 + $0x138] sm:$0xff]
        %v1706 = vshrl.u32 %v1658, 16
        %v1708 = vshll.u32 %v1658, 16
        %v1710 = vrot.slane %v1708, 1
        %v1711 = vor.u32 %v1706, %v1710
        %v1713 = vshll.u32 %v1661, 16
        %v1715 = vrot.slane %v1713, 1
        %v1716 = vsel %vm978, %v1711, %v1715
        %v1718 = vshrl.u32 %v1659, 16
        %v1720 = vshll.u32 %v1659, 16
        %v1722 = vrot.slane %v1720, 1
        %v1723 = vor.u32 %v1718, %v1722
        %v1725 = vshll.u32 %v1662, 16
        %v1727 = vrot.slane %v1725, 1
        %v1728 = vsel %vm978, %v1723, %v1727
        %v1730 = vshrl.u32 %v1660, 16
        %v1732 = vshll.u32 %v1660, 16
        %v1734 = vrot.slane %v1732, 1
        %v1735 = vor.u32 %v1730, %v1734
        %v1737 = vshll.u32 %v1663, 16
        %v1739 = vrot.slane %v1737, 1
        %v1740 = vsel %vm978, %v1735, %v1739
        %v1783 = vunpack.c.l.b16 %v1665
        %v1784 = vunpack.c.h.b16 %v1665
        %v1785 = vunpack.c.l.b16 %v1666
        %v1786 = vunpack.c.h.b16 %v1666
        %v1787 = vunpack.c.l.b16 %v1667
        %v1788 = vunpack.c.h.b16 %v1667
        %v1789 = vunpack.c.l.b16 %v1668
        %v1790 = vunpack.c.h.b16 %v1668
        %v1791 = vunpack.c.l.b16 %v1669
        %v1792 = vunpack.c.h.b16 %v1669
        %v1793 = vunpack.c.l.b16 %v1670
        %v1794 = vunpack.c.h.b16 %v1670
        %v1795 = vunpack.c.l.b16 %v1671
        %v1796 = vunpack.c.h.b16 %v1671
        %v1797 = vunpack.c.l.b16 %v1672
        %v1798 = vunpack.c.h.b16 %v1672
        %v1799 = vunpack.c.l.b16 %v1673
        %v1800 = vunpack.c.h.b16 %v1673
        %v1801 = vunpack.c.l.b16 %v1674
        %v1802 = vunpack.c.h.b16 %v1674
        %v1803 = vunpack.c.l.b16 %v1675
        %v1804 = vunpack.c.h.b16 %v1675
        %v1805 = vunpack.c.l.b16 %v1676
        %v1806 = vunpack.c.h.b16 %v1676
        %v1807 = vunpack.c.l.b16 %v1677
        %v1808 = vunpack.c.h.b16 %v1677
        %v1809 = vunpack.c.l.b16 %v1678
        %v1810 = vunpack.c.h.b16 %v1678
        %v1811 = vunpack.c.l.b16 %v1679
        %v1812 = vunpack.c.h.b16 %v1679
        %v1813 = vunpack.c.l.b16 %v1680
        %v1814 = vunpack.c.h.b16 %v1680
        %v1815 = vunpack.c.l.b16 %v1681
        %v1816 = vunpack.c.h.b16 %v1681
        %v1817 = vunpack.c.l.b16 %v1682
        %v1818 = vunpack.c.h.b16 %v1682
        %v1819 = vunpack.c.l.b16 %v1683
        %v1820 = vunpack.c.h.b16 %v1683
        %v1821 = vunpack.c.l.b16 %v1684
        %v1822 = vunpack.c.h.b16 %v1684
        %v1823 = vunpack.c.l.b16 %v1685
        %v1824 = vunpack.c.h.b16 %v1685
        %v1825 = vunpack.c.l.b16 %v1686
        %v1826 = vunpack.c.h.b16 %v1686
        %v1827 = vunpack.c.l.b16 %v1687
        %v1828 = vunpack.c.h.b16 %v1687
        %v1829 = vunpack.c.l.b16 %v1688
        %v1830 = vunpack.c.h.b16 %v1688
        %v1831 = vunpack.c.l.b16 %v1689
        %v1832 = vunpack.c.h.b16 %v1689
        %v1833 = vunpack.c.l.b16 %v1690
        %v1834 = vunpack.c.h.b16 %v1690
        %v1835 = vunpack.c.l.b16 %v1691
        %v1836 = vunpack.c.h.b16 %v1691
        %v1837 = vunpack.c.l.b16 %v1692
        %v1838 = vunpack.c.h.b16 %v1692
        %v1839 = vunpack.c.l.b16 %v1693
        %v1840 = vunpack.c.h.b16 %v1693
        %v1841 = vunpack.c.l.b16 %v1694
        %v1842 = vunpack.c.h.b16 %v1694
        %v1843 = vunpack.c.l.b16 %v1695
        %v1844 = vunpack.c.h.b16 %v1695
        %v1845 = vunpack.c.l.b16 %v1696
        %v1846 = vunpack.c.h.b16 %v1696
        %v1847 = vunpack.c.l.b16 %v1697
        %v1848 = vunpack.c.h.b16 %v1697
        %v1849 = vunpack.c.l.b16 %v1698
        %v1850 = vunpack.c.h.b16 %v1698
        %v1851 = vunpack.c.l.b16 %v1699
        %v1852 = vunpack.c.h.b16 %v1699
        %v1853 = vunpack.c.l.b16 %v1700
        %v1854 = vunpack.c.h.b16 %v1700
        %v1855 = vunpack.c.l.b16 %v1701
        %v1856 = vunpack.c.h.b16 %v1701
        %v1857 = vunpack.c.l.b16 %v1702
        %v1858 = vunpack.c.h.b16 %v1702
        %v1859 = vunpack.c.l.b16 %v1703
        %v1860 = vunpack.c.h.b16 %v1703
        %v1861 = vunpack.c.l.b16 %v1704
        %v1862 = vunpack.c.h.b16 %v1704
        %v1863 = vpack.c.b16 %v1785, %v1783
        %v1864 = vpack.c.b16 %v1786, %v1784
        %v1865 = vpack.c.b16 %v1789, %v1787
        %v1866 = vpack.c.b16 %v1790, %v1788
        %v1867 = vpack.c.b16 %v1793, %v1791
        %v1868 = vpack.c.b16 %v1794, %v1792
        %v1869 = vpack.c.b16 %v1797, %v1795
        %v1870 = vpack.c.b16 %v1798, %v1796
        %v1871 = vpack.c.b16 %v1801, %v1799
        %v1872 = vpack.c.b16 %v1802, %v1800
        %v1873 = vpack.c.b16 %v1805, %v1803
        %v1874 = vpack.c.b16 %v1806, %v1804
        %v1875 = vpack.c.b16 %v1809, %v1807
        %v1876 = vpack.c.b16 %v1810, %v1808
        %v1877 = vpack.c.b16 %v1813, %v1811
        %v1878 = vpack.c.b16 %v1814, %v1812
        %v1879 = vpack.c.b16 %v1817, %v1815
        %v1880 = vpack.c.b16 %v1818, %v1816
        %v1881 = vpack.c.b16 %v1821, %v1819
        %v1882 = vpack.c.b16 %v1822, %v1820
        %v1883 = vpack.c.b16 %v1825, %v1823
        %v1884 = vpack.c.b16 %v1826, %v1824
        %v1885 = vpack.c.b16 %v1829, %v1827
        %v1886 = vpack.c.b16 %v1830, %v1828
        %v1887 = vpack.c.b16 %v1833, %v1831
        %v1888 = vpack.c.b16 %v1834, %v1832
        %v1889 = vpack.c.b16 %v1837, %v1835
        %v1890 = vpack.c.b16 %v1838, %v1836
        %v1891 = vpack.c.b16 %v1841, %v1839
        %v1892 = vpack.c.b16 %v1842, %v1840
        %v1893 = vpack.c.b16 %v1845, %v1843
        %v1894 = vpack.c.b16 %v1846, %v1844
        %v1895 = vpack.c.b16 %v1849, %v1847
        %v1896 = vpack.c.b16 %v1850, %v1848
        %v1897 = vpack.c.b16 %v1853, %v1851
        %v1898 = vpack.c.b16 %v1854, %v1852
        %v1899 = vpack.c.b16 %v1857, %v1855
        %v1900 = vpack.c.b16 %v1858, %v1856
        %v1901 = vpack.c.b16 %v1861, %v1859
        %v1902 = vpack.c.b16 %v1862, %v1860
        %v1944 = vsel %vm1597, %v1740, 0
        %1946 = vmatprep.subr.bf16.mxu0 %v1878
        %1947 = vmatpush1.bf16.msra.mxu0 %v1877
        %1948 = vmatprep.subr.bf16.mxu0 %v1876
        %1949 = vmatpush1.bf16.msra.mxu0 %v1875
        %1950 = vmatprep.subr.bf16.mxu0 %v1874
        %1951 = vmatpush1.bf16.msra.mxu0 %v1873
        %1952 = vmatprep.subr.bf16.mxu0 %v1872
        %1953 = vmatpush1.bf16.msra.mxu0 %v1871
        %1954 = vmatprep.subr.bf16.mxu0 %v1870
        %1955 = vmatpush1.bf16.msra.mxu0 %v1869
        %1956 = vmatprep.subr.bf16.mxu0 %v1868
        %1957 = vmatpush1.bf16.msra.mxu0 %v1867
        %1958 = vmatprep.subr.bf16.mxu0 %v1866
        %1959 = vmatpush1.bf16.msra.mxu0 %v1865
        %1960 = vmatprep.subr.bf16.mxu0 %v1864
        %1961 = vmatpush1.bf16.msra.mxu0 %v1863
        %1962 = vmatprep.subr.bf16.mxu0 %v1894
        %1963 = vmatpush2.bf16.msra.mxu0 %v1893
        %1964 = vmatprep.subr.bf16.mxu0 %v1892
        %1965 = vmatpush2.bf16.msra.mxu0 %v1891
        %1966 = vmatprep.subr.bf16.mxu0 %v1890
        %1967 = vmatpush2.bf16.msra.mxu0 %v1889
        %1968 = vmatprep.subr.bf16.mxu0 %v1888
        %1969 = vmatpush2.bf16.msra.mxu0 %v1887
        %1970 = vmatprep.subr.bf16.mxu0 %v1886
        %1971 = vmatpush2.bf16.msra.mxu0 %v1885
        %1972 = vmatprep.subr.bf16.mxu0 %v1884
        %1973 = vmatpush2.bf16.msra.mxu0 %v1883
        %1974 = vmatprep.subr.bf16.mxu0 %v1882
        %1975 = vmatpush2.bf16.msra.mxu0 %v1881
        %1976 = vmatprep.subr.bf16.mxu0 %v1880
        %1977 = vmatpush2.bf16.msra.mxu0 %v1879
        %1978 = vmatprep.mubr.bf16.mxu0 %v1728
        %1979 = vmatmul.mubr.bf16.gmra.mxu0 %v1716
        %v1980 = vpop.f32.mrf.mxu0
        %v1981 = vadd.f32 0.0, %v1980
        %v1982 = vpop.f32.mrf.mxu0
        %v1983 = vadd.f32 0.0, %v1982
        %v1984 = vpop.f32.mrf.mxu0
        %v1985 = vadd.f32 0.0, %v1984
        %v1986 = vpop.f32.mrf.mxu0
        %v1987 = vadd.f32 0.0, %v1986
        %1988 = vdwg.mxu0
        %1989 = vmatprep.subr.bf16.mxu0 0
        %1990 = vmatpush1.bf16.msra.mxu0 0
        %1991 = vmatprep.subr.bf16.mxu0 0
        %1992 = vmatpush1.bf16.msra.mxu0 0
        %1993 = vmatprep.subr.bf16.mxu0 0
        %1994 = vmatpush1.bf16.msra.mxu0 0
        %1995 = vmatprep.subr.bf16.mxu0 0
        %1996 = vmatpush1.bf16.msra.mxu0 0
        %1997 = vmatprep.subr.bf16.mxu0 %v1902
        %1998 = vmatpush1.bf16.msra.mxu0 %v1901
        %1999 = vmatprep.subr.bf16.mxu0 %v1900
        %2000 = vmatpush1.bf16.msra.mxu0 %v1899
        %2001 = vmatprep.subr.bf16.mxu0 %v1898
        %2002 = vmatpush1.bf16.msra.mxu0 %v1897
        %2003 = vmatprep.subr.bf16.mxu0 %v1896
        %2004 = vmatpush1.bf16.msra.mxu0 %v1895
        %2005 = vmatprep.subr.bf16.mxu0 0
        %2006 = vmatpush2.bf16.msra.mxu0 0
        %2007 = vmatprep.subr.bf16.mxu0 0
        %2008 = vmatpush2.bf16.msra.mxu0 0
        %2009 = vmatprep.subr.bf16.mxu0 0
        %2010 = vmatpush2.bf16.msra.mxu0 0
        %2011 = vmatprep.subr.bf16.mxu0 0
        %2012 = vmatpush2.bf16.msra.mxu0 0
        %2013 = vmatprep.subr.bf16.mxu0 0
        %2014 = vmatpush2.bf16.msra.mxu0 0
        %2015 = vmatprep.subr.bf16.mxu0 0
        %2016 = vmatpush2.bf16.msra.mxu0 0
        %2017 = vmatprep.subr.bf16.mxu0 0
        %2018 = vmatpush2.bf16.msra.mxu0 0
        %2019 = vmatprep.subr.bf16.mxu0 0
        %2020 = vmatpush2.bf16.msra.mxu0 0
        %2021 = vmatprep.mubr.bf16.mxu0 0
        %2022 = vmatmul.mubr.bf16.gmra.mxu0 %v1944
        %v2023 = vpop.f32.mrf.mxu0
        %v2024 = vadd.f32 %v1981, %v2023
        %v2025 = vpop.f32.mrf.mxu0
        %v2026 = vadd.f32 %v1983, %v2025
        %v2027 = vpop.f32.mrf.mxu0
        %v2028 = vadd.f32 %v1985, %v2027
        %v2029 = vpop.f32.mrf.mxu0
        %v2030 = vadd.f32 %v1987, %v2029
        %2031 = vdwg.mxu0
        %v2072 = vunpack.c.l.b16 %v1612
        %v2073 = vunpack.c.h.b16 %v1612
        %v2074 = vunpack.c.l.b16 %v1613
        %v2075 = vunpack.c.h.b16 %v1613
        %v2076 = vunpack.c.l.b16 %v1614
        %v2077 = vunpack.c.h.b16 %v1614
        %v2078 = vunpack.c.l.b16 %v1615
        %v2079 = vunpack.c.h.b16 %v1615
        %v2080 = vunpack.c.l.b16 %v1616
        %v2081 = vunpack.c.h.b16 %v1616
        %v2082 = vunpack.c.l.b16 %v1617
        %v2083 = vunpack.c.h.b16 %v1617
        %v2084 = vunpack.c.l.b16 %v1618
        %v2085 = vunpack.c.h.b16 %v1618
        %v2086 = vunpack.c.l.b16 %v1619
        %v2087 = vunpack.c.h.b16 %v1619
        %v2088 = vunpack.c.l.b16 %v1620
        %v2089 = vunpack.c.h.b16 %v1620
        %v2090 = vunpack.c.l.b16 %v1621
        %v2091 = vunpack.c.h.b16 %v1621
        %v2092 = vunpack.c.l.b16 %v1622
        %v2093 = vunpack.c.h.b16 %v1622
        %v2094 = vunpack.c.l.b16 %v1623
        %v2095 = vunpack.c.h.b16 %v1623
        %v2096 = vunpack.c.l.b16 %v1624
        %v2097 = vunpack.c.h.b16 %v1624
        %v2098 = vunpack.c.l.b16 %v1625
        %v2099 = vunpack.c.h.b16 %v1625
        %v2100 = vunpack.c.l.b16 %v1626
        %v2101 = vunpack.c.h.b16 %v1626
        %v2102 = vunpack.c.l.b16 %v1627
        %v2103 = vunpack.c.h.b16 %v1627
        %v2104 = vunpack.c.l.b16 %v1628
        %v2105 = vunpack.c.h.b16 %v1628
        %v2106 = vunpack.c.l.b16 %v1629
        %v2107 = vunpack.c.h.b16 %v1629
        %v2108 = vunpack.c.l.b16 %v1630
        %v2109 = vunpack.c.h.b16 %v1630
        %v2110 = vunpack.c.l.b16 %v1631
        %v2111 = vunpack.c.h.b16 %v1631
        %v2112 = vunpack.c.l.b16 %v1632
        %v2113 = vunpack.c.h.b16 %v1632
        %v2114 = vunpack.c.l.b16 %v1633
        %v2115 = vunpack.c.h.b16 %v1633
        %v2116 = vunpack.c.l.b16 %v1634
        %v2117 = vunpack.c.h.b16 %v1634
        %v2118 = vunpack.c.l.b16 %v1635
        %v2119 = vunpack.c.h.b16 %v1635
        %v2120 = vunpack.c.l.b16 %v1636
        %v2121 = vunpack.c.h.b16 %v1636
        %v2122 = vunpack.c.l.b16 %v1637
        %v2123 = vunpack.c.h.b16 %v1637
        %v2124 = vunpack.c.l.b16 %v1638
        %v2125 = vunpack.c.h.b16 %v1638
        %v2126 = vunpack.c.l.b16 %v1639
        %v2127 = vunpack.c.h.b16 %v1639
        %v2128 = vunpack.c.l.b16 %v1640
        %v2129 = vunpack.c.h.b16 %v1640
        %v2130 = vunpack.c.l.b16 %v1641
        %v2131 = vunpack.c.h.b16 %v1641
        %v2132 = vunpack.c.l.b16 %v1642
        %v2133 = vunpack.c.h.b16 %v1642
        %v2134 = vunpack.c.l.b16 %v1643
        %v2135 = vunpack.c.h.b16 %v1643
        %v2136 = vunpack.c.l.b16 %v1644
        %v2137 = vunpack.c.h.b16 %v1644
        %v2138 = vunpack.c.l.b16 %v1645
        %v2139 = vunpack.c.h.b16 %v1645
        %v2140 = vunpack.c.l.b16 %v1646
        %v2141 = vunpack.c.h.b16 %v1646
        %v2142 = vunpack.c.l.b16 %v1647
        %v2143 = vunpack.c.h.b16 %v1647
        %v2144 = vunpack.c.l.b16 %v1648
        %v2145 = vunpack.c.h.b16 %v1648
        %v2146 = vunpack.c.l.b16 %v1649
        %v2147 = vunpack.c.h.b16 %v1649
        %v2148 = vunpack.c.l.b16 %v1650
        %v2149 = vunpack.c.h.b16 %v1650
        %v2150 = vunpack.c.l.b16 %v1651
        %v2151 = vunpack.c.h.b16 %v1651
        %v2152 = vpack.c.b16 %v2074, %v2072
        %v2153 = vpack.c.b16 %v2075, %v2073
        %v2154 = vpack.c.b16 %v2078, %v2076
        %v2155 = vpack.c.b16 %v2079, %v2077
        %v2156 = vpack.c.b16 %v2082, %v2080
        %v2157 = vpack.c.b16 %v2083, %v2081
        %v2158 = vpack.c.b16 %v2086, %v2084
        %v2159 = vpack.c.b16 %v2087, %v2085
        %v2160 = vpack.c.b16 %v2090, %v2088
        %v2161 = vpack.c.b16 %v2091, %v2089
        %v2162 = vpack.c.b16 %v2094, %v2092
        %v2163 = vpack.c.b16 %v2095, %v2093
        %v2164 = vpack.c.b16 %v2098, %v2096
        %v2165 = vpack.c.b16 %v2099, %v2097
        %v2166 = vpack.c.b16 %v2102, %v2100
        %v2167 = vpack.c.b16 %v2103, %v2101
        %v2168 = vpack.c.b16 %v2106, %v2104
        %v2169 = vpack.c.b16 %v2107, %v2105
        %v2170 = vpack.c.b16 %v2110, %v2108
        %v2171 = vpack.c.b16 %v2111, %v2109
        %v2172 = vpack.c.b16 %v2114, %v2112
        %v2173 = vpack.c.b16 %v2115, %v2113
        %v2174 = vpack.c.b16 %v2118, %v2116
        %v2175 = vpack.c.b16 %v2119, %v2117
        %v2176 = vpack.c.b16 %v2122, %v2120
        %v2177 = vpack.c.b16 %v2123, %v2121
        %v2178 = vpack.c.b16 %v2126, %v2124
        %v2179 = vpack.c.b16 %v2127, %v2125
        %v2180 = vpack.c.b16 %v2130, %v2128
        %v2181 = vpack.c.b16 %v2131, %v2129
        %v2182 = vpack.c.b16 %v2134, %v2132
        %v2183 = vpack.c.b16 %v2135, %v2133
        %v2184 = vpack.c.b16 %v2138, %v2136
        %v2185 = vpack.c.b16 %v2139, %v2137
        %v2186 = vpack.c.b16 %v2142, %v2140
        %v2187 = vpack.c.b16 %v2143, %v2141
        %v2188 = vpack.c.b16 %v2146, %v2144
        %v2189 = vpack.c.b16 %v2147, %v2145
        %v2190 = vpack.c.b16 %v2150, %v2148
        %v2191 = vpack.c.b16 %v2151, %v2149
        %v2233 = vsel %vm1597, %v1611, 0
        %2235 = vmatprep.subr.bf16.mxu0 %v2167
        %2236 = vmatpush1.bf16.msra.mxu0 %v2166
        %2237 = vmatprep.subr.bf16.mxu0 %v2165
        %2238 = vmatpush1.bf16.msra.mxu0 %v2164
        %2239 = vmatprep.subr.bf16.mxu0 %v2163
        %2240 = vmatpush1.bf16.msra.mxu0 %v2162
        %2241 = vmatprep.subr.bf16.mxu0 %v2161
        %2242 = vmatpush1.bf16.msra.mxu0 %v2160
        %2243 = vmatprep.subr.bf16.mxu0 %v2159
        %2244 = vmatpush1.bf16.msra.mxu0 %v2158
        %2245 = vmatprep.subr.bf16.mxu0 %v2157
        %2246 = vmatpush1.bf16.msra.mxu0 %v2156
        %2247 = vmatprep.subr.bf16.mxu0 %v2155
        %2248 = vmatpush1.bf16.msra.mxu0 %v2154
        %2249 = vmatprep.subr.bf16.mxu0 %v2153
        %2250 = vmatpush1.bf16.msra.mxu0 %v2152
        %2251 = vmatprep.subr.bf16.mxu0 %v2183
        %2252 = vmatpush2.bf16.msra.mxu0 %v2182
        %2253 = vmatprep.subr.bf16.mxu0 %v2181
        %2254 = vmatpush2.bf16.msra.mxu0 %v2180
        %2255 = vmatprep.subr.bf16.mxu0 %v2179
        %2256 = vmatpush2.bf16.msra.mxu0 %v2178
        %2257 = vmatprep.subr.bf16.mxu0 %v2177
        %2258 = vmatpush2.bf16.msra.mxu0 %v2176
        %2259 = vmatprep.subr.bf16.mxu0 %v2175
        %2260 = vmatpush2.bf16.msra.mxu0 %v2174
        %2261 = vmatprep.subr.bf16.mxu0 %v2173
        %2262 = vmatpush2.bf16.msra.mxu0 %v2172
        %2263 = vmatprep.subr.bf16.mxu0 %v2171
        %2264 = vmatpush2.bf16.msra.mxu0 %v2170
        %2265 = vmatprep.subr.bf16.mxu0 %v2169
        %2266 = vmatpush2.bf16.msra.mxu0 %v2168
        %2267 = vmatprep.mubr.bf16.mxu0 %v1610
        %2268 = vmatmul.mubr.bf16.gmra.mxu0 %v1609
        %v2269 = vpop.f32.mrf.mxu0
        %v2270 = vadd.f32 %v2024, %v2269
        %v2271 = vpop.f32.mrf.mxu0
        %v2272 = vadd.f32 %v2026, %v2271
        %v2273 = vpop.f32.mrf.mxu0
        %v2274 = vadd.f32 %v2028, %v2273
        %v2275 = vpop.f32.mrf.mxu0
        %v2276 = vadd.f32 %v2030, %v2275
        %2277 = vdwg.mxu0
        %2278 = vmatprep.subr.bf16.mxu0 0
        %2279 = vmatpush1.bf16.msra.mxu0 0
        %2280 = vmatprep.subr.bf16.mxu0 0
        %2281 = vmatpush1.bf16.msra.mxu0 0
        %2282 = vmatprep.subr.bf16.mxu0 0
        %2283 = vmatpush1.bf16.msra.mxu0 0
        %2284 = vmatprep.subr.bf16.mxu0 0
        %2285 = vmatpush1.bf16.msra.mxu0 0
        %2286 = vmatprep.subr.bf16.mxu0 %v2191
        %2287 = vmatpush1.bf16.msra.mxu0 %v2190
        %2288 = vmatprep.subr.bf16.mxu0 %v2189
        %2289 = vmatpush1.bf16.msra.mxu0 %v2188
        %2290 = vmatprep.subr.bf16.mxu0 %v2187
        %2291 = vmatpush1.bf16.msra.mxu0 %v2186
        %2292 = vmatprep.subr.bf16.mxu0 %v2185
        %2293 = vmatpush1.bf16.msra.mxu0 %v2184
        %2294 = vmatprep.subr.bf16.mxu0 0
        %2295 = vmatpush2.bf16.msra.mxu0 0
        %2296 = vmatprep.subr.bf16.mxu0 0
        %2297 = vmatpush2.bf16.msra.mxu0 0
        %2298 = vmatprep.subr.bf16.mxu0 0
        %2299 = vmatpush2.bf16.msra.mxu0 0
        %2300 = vmatprep.subr.bf16.mxu0 0
        %2301 = vmatpush2.bf16.msra.mxu0 0
        %2302 = vmatprep.subr.bf16.mxu0 0
        %2303 = vmatpush2.bf16.msra.mxu0 0
        %2304 = vmatprep.subr.bf16.mxu0 0
        %2305 = vmatpush2.bf16.msra.mxu0 0
        %2306 = vmatprep.subr.bf16.mxu0 0
        %2307 = vmatpush2.bf16.msra.mxu0 0
        %2308 = vmatprep.subr.bf16.mxu0 0
        %2309 = vmatpush2.bf16.msra.mxu0 0
        %2310 = vmatprep.mubr.bf16.mxu0 0
        %2311 = vmatmul.mubr.bf16.gmra.mxu0 %v2233
        %v2312 = vpop.f32.mrf.mxu0
        %v2313 = vadd.f32 %v2270, %v2312
        %v2314 = vpop.f32.mrf.mxu0
        %v2315 = vadd.f32 %v2272, %v2314
        %v2316 = vpop.f32.mrf.mxu0
        %v2317 = vadd.f32 %v2274, %v2316
        %v2318 = vpop.f32.mrf.mxu0
        %v2319 = vadd.f32 %v2276, %v2318
        %2320 = vdwg.mxu0
        %v2321 = vld [vmem:[#allocation2] sm:$0xfc]
        %v2322 = vld [vmem:[#allocation2 + $0x8] sm:$0xfc]
        %v2323 = vld [vmem:[#allocation2 + $0x10] sm:$0xfc]
        %v2324 = vld [vmem:[#allocation2 + $0x30] sm:$0x3]
        %v2325 = vld [vmem:[#allocation2 + $0x38] sm:$0x3]
        %v2326 = vld [vmem:[#allocation2 + $0x40] sm:$0x3]
        %v2327 = vpack.c.bf16 %v1606, %v2321
        %v2328 = vpack.c.bf16 %v1607, %v2322
        %v2329 = vpack.c.bf16 %v1608, %v2323
        %v2330 = vpack.c.bf16 %v2324, %v2324
        %v2331 = vpack.c.bf16 %v2325, %v2325
        %v2332 = vpack.c.bf16 %v2326, %v2326
        %s2333 = scalar_lea.vmem %s7, 640
        %v2334 = vld [vmem:[%s2333] sm:$0xff]
        %v2335 = vld [vmem:[%s2333 + $0x8] sm:$0xff]
        %v2336 = vld [vmem:[%s2333 + $0x10] sm:$0xff]
        %v2337 = vld [vmem:[%s2333 + $0x18] sm:$0xff]
        %v2338 = vld [vmem:[%s2333 + $0x20] sm:$0xff]
        %v2339 = vld [vmem:[%s2333 + $0x28] sm:$0xff]
        %v2340 = vld [vmem:[%s2333 + $0x30] sm:$0xff]
        %v2341 = vld [vmem:[%s2333 + $0x38] sm:$0xff]
        %v2342 = vld [vmem:[%s2333 + $0x40] sm:$0xff]
        %v2343 = vld [vmem:[%s2333 + $0x48] sm:$0xff]
        %v2344 = vld [vmem:[%s2333 + $0x50] sm:$0xff]
        %v2345 = vld [vmem:[%s2333 + $0x58] sm:$0xff]
        %v2346 = vld [vmem:[%s2333 + $0x60] sm:$0xff]
        %v2347 = vld [vmem:[%s2333 + $0x68] sm:$0xff]
        %v2348 = vld [vmem:[%s2333 + $0x70] sm:$0xff]
        %v2349 = vld [vmem:[%s2333 + $0x78] sm:$0xff]
        %v2350 = vld [vmem:[%s2333 + $0x80] sm:$0xff]
        %v2351 = vld [vmem:[%s2333 + $0x88] sm:$0xff]
        %v2352 = vld [vmem:[%s2333 + $0x90] sm:$0xff]
        %v2353 = vld [vmem:[%s2333 + $0x98] sm:$0xff]
        %v2354 = vld [vmem:[%s2333 + $0xa0] sm:$0xff]
        %v2355 = vld [vmem:[%s2333 + $0xa8] sm:$0xff]
        %v2356 = vld [vmem:[%s2333 + $0xb0] sm:$0xff]
        %v2357 = vld [vmem:[%s2333 + $0xb8] sm:$0xff]
        %v2358 = vld [vmem:[%s2333 + $0xc0] sm:$0xff]
        %v2359 = vld [vmem:[%s2333 + $0xc8] sm:$0xff]
        %v2360 = vld [vmem:[%s2333 + $0xd0] sm:$0xff]
        %v2361 = vld [vmem:[%s2333 + $0xd8] sm:$0xff]
        %v2362 = vld [vmem:[%s2333 + $0xe0] sm:$0xff]
        %v2363 = vld [vmem:[%s2333 + $0xe8] sm:$0xff]
        %v2364 = vld [vmem:[%s2333 + $0xf0] sm:$0xff]
        %v2365 = vld [vmem:[%s2333 + $0xf8] sm:$0xff]
        %v2366 = vld [vmem:[%s2333 + $0x100] sm:$0xff]
        %v2367 = vld [vmem:[%s2333 + $0x108] sm:$0xff]
        %v2368 = vld [vmem:[%s2333 + $0x110] sm:$0xff]
        %v2369 = vld [vmem:[%s2333 + $0x118] sm:$0xff]
        %v2370 = vld [vmem:[%s2333 + $0x120] sm:$0xff]
        %v2371 = vld [vmem:[%s2333 + $0x128] sm:$0xff]
        %v2372 = vld [vmem:[%s2333 + $0x130] sm:$0xff]
        %v2373 = vld [vmem:[%s2333 + $0x138] sm:$0xff]
        %v2380 = vrot.slane %v2327, 1
        %v2381 = vrot.slane %v2330, 1
        %v2382 = vsel %vm1352, %v2380, %v2381
        %v2383 = vrot.slane %v2328, 1
        %v2384 = vrot.slane %v2331, 1
        %v2385 = vsel %vm1352, %v2383, %v2384
        %v2386 = vrot.slane %v2329, 1
        %v2387 = vrot.slane %v2332, 1
        %v2388 = vsel %vm1352, %v2386, %v2387
        %v2431 = vunpack.c.l.b16 %v2334
        %v2432 = vunpack.c.h.b16 %v2334
        %v2433 = vunpack.c.l.b16 %v2335
        %v2434 = vunpack.c.h.b16 %v2335
        %v2435 = vunpack.c.l.b16 %v2336
        %v2436 = vunpack.c.h.b16 %v2336
        %v2437 = vunpack.c.l.b16 %v2337
        %v2438 = vunpack.c.h.b16 %v2337
        %v2439 = vunpack.c.l.b16 %v2338
        %v2440 = vunpack.c.h.b16 %v2338
        %v2441 = vunpack.c.l.b16 %v2339
        %v2442 = vunpack.c.h.b16 %v2339
        %v2443 = vunpack.c.l.b16 %v2340
        %v2444 = vunpack.c.h.b16 %v2340
        %v2445 = vunpack.c.l.b16 %v2341
        %v2446 = vunpack.c.h.b16 %v2341
        %v2447 = vunpack.c.l.b16 %v2342
        %v2448 = vunpack.c.h.b16 %v2342
        %v2449 = vunpack.c.l.b16 %v2343
        %v2450 = vunpack.c.h.b16 %v2343
        %v2451 = vunpack.c.l.b16 %v2344
        %v2452 = vunpack.c.h.b16 %v2344
        %v2453 = vunpack.c.l.b16 %v2345
        %v2454 = vunpack.c.h.b16 %v2345
        %v2455 = vunpack.c.l.b16 %v2346
        %v2456 = vunpack.c.h.b16 %v2346
        %v2457 = vunpack.c.l.b16 %v2347
        %v2458 = vunpack.c.h.b16 %v2347
        %v2459 = vunpack.c.l.b16 %v2348
        %v2460 = vunpack.c.h.b16 %v2348
        %v2461 = vunpack.c.l.b16 %v2349
        %v2462 = vunpack.c.h.b16 %v2349
        %v2463 = vunpack.c.l.b16 %v2350
        %v2464 = vunpack.c.h.b16 %v2350
        %v2465 = vunpack.c.l.b16 %v2351
        %v2466 = vunpack.c.h.b16 %v2351
        %v2467 = vunpack.c.l.b16 %v2352
        %v2468 = vunpack.c.h.b16 %v2352
        %v2469 = vunpack.c.l.b16 %v2353
        %v2470 = vunpack.c.h.b16 %v2353
        %v2471 = vunpack.c.l.b16 %v2354
        %v2472 = vunpack.c.h.b16 %v2354
        %v2473 = vunpack.c.l.b16 %v2355
        %v2474 = vunpack.c.h.b16 %v2355
        %v2475 = vunpack.c.l.b16 %v2356
        %v2476 = vunpack.c.h.b16 %v2356
        %v2477 = vunpack.c.l.b16 %v2357
        %v2478 = vunpack.c.h.b16 %v2357
        %v2479 = vunpack.c.l.b16 %v2358
        %v2480 = vunpack.c.h.b16 %v2358
        %v2481 = vunpack.c.l.b16 %v2359
        %v2482 = vunpack.c.h.b16 %v2359
        %v2483 = vunpack.c.l.b16 %v2360
        %v2484 = vunpack.c.h.b16 %v2360
        %v2485 = vunpack.c.l.b16 %v2361
        %v2486 = vunpack.c.h.b16 %v2361
        %v2487 = vunpack.c.l.b16 %v2362
        %v2488 = vunpack.c.h.b16 %v2362
        %v2489 = vunpack.c.l.b16 %v2363
        %v2490 = vunpack.c.h.b16 %v2363
        %v2491 = vunpack.c.l.b16 %v2364
        %v2492 = vunpack.c.h.b16 %v2364
        %v2493 = vunpack.c.l.b16 %v2365
        %v2494 = vunpack.c.h.b16 %v2365
        %v2495 = vunpack.c.l.b16 %v2366
        %v2496 = vunpack.c.h.b16 %v2366
        %v2497 = vunpack.c.l.b16 %v2367
        %v2498 = vunpack.c.h.b16 %v2367
        %v2499 = vunpack.c.l.b16 %v2368
        %v2500 = vunpack.c.h.b16 %v2368
        %v2501 = vunpack.c.l.b16 %v2369
        %v2502 = vunpack.c.h.b16 %v2369
        %v2503 = vunpack.c.l.b16 %v2370
        %v2504 = vunpack.c.h.b16 %v2370
        %v2505 = vunpack.c.l.b16 %v2371
        %v2506 = vunpack.c.h.b16 %v2371
        %v2507 = vunpack.c.l.b16 %v2372
        %v2508 = vunpack.c.h.b16 %v2372
        %v2509 = vunpack.c.l.b16 %v2373
        %v2510 = vunpack.c.h.b16 %v2373
        %v2511 = vpack.c.b16 %v2433, %v2431
        %v2512 = vpack.c.b16 %v2434, %v2432
        %v2513 = vpack.c.b16 %v2437, %v2435
        %v2514 = vpack.c.b16 %v2438, %v2436
        %v2515 = vpack.c.b16 %v2441, %v2439
        %v2516 = vpack.c.b16 %v2442, %v2440
        %v2517 = vpack.c.b16 %v2445, %v2443
        %v2518 = vpack.c.b16 %v2446, %v2444
        %v2519 = vpack.c.b16 %v2449, %v2447
        %v2520 = vpack.c.b16 %v2450, %v2448
        %v2521 = vpack.c.b16 %v2453, %v2451
        %v2522 = vpack.c.b16 %v2454, %v2452
        %v2523 = vpack.c.b16 %v2457, %v2455
        %v2524 = vpack.c.b16 %v2458, %v2456
        %v2525 = vpack.c.b16 %v2461, %v2459
        %v2526 = vpack.c.b16 %v2462, %v2460
        %v2527 = vpack.c.b16 %v2465, %v2463
        %v2528 = vpack.c.b16 %v2466, %v2464
        %v2529 = vpack.c.b16 %v2469, %v2467
        %v2530 = vpack.c.b16 %v2470, %v2468
        %v2531 = vpack.c.b16 %v2473, %v2471
        %v2532 = vpack.c.b16 %v2474, %v2472
        %v2533 = vpack.c.b16 %v2477, %v2475
        %v2534 = vpack.c.b16 %v2478, %v2476
        %v2535 = vpack.c.b16 %v2481, %v2479
        %v2536 = vpack.c.b16 %v2482, %v2480
        %v2537 = vpack.c.b16 %v2485, %v2483
        %v2538 = vpack.c.b16 %v2486, %v2484
        %v2539 = vpack.c.b16 %v2489, %v2487
        %v2540 = vpack.c.b16 %v2490, %v2488
        %v2541 = vpack.c.b16 %v2493, %v2491
        %v2542 = vpack.c.b16 %v2494, %v2492
        %v2543 = vpack.c.b16 %v2497, %v2495
        %v2544 = vpack.c.b16 %v2498, %v2496
        %v2545 = vpack.c.b16 %v2501, %v2499
        %v2546 = vpack.c.b16 %v2502, %v2500
        %v2547 = vpack.c.b16 %v2505, %v2503
        %v2548 = vpack.c.b16 %v2506, %v2504
        %v2549 = vpack.c.b16 %v2509, %v2507
        %v2550 = vpack.c.b16 %v2510, %v2508
        %v2592 = vsel %vm1597, %v2388, 0
        %2594 = vmatprep.subr.bf16.mxu0 %v2526
        %2595 = vmatpush1.bf16.msra.mxu0 %v2525
        %2596 = vmatprep.subr.bf16.mxu0 %v2524
        %2597 = vmatpush1.bf16.msra.mxu0 %v2523
        %2598 = vmatprep.subr.bf16.mxu0 %v2522
        %2599 = vmatpush1.bf16.msra.mxu0 %v2521
        %2600 = vmatprep.subr.bf16.mxu0 %v2520
        %2601 = vmatpush1.bf16.msra.mxu0 %v2519
        %2602 = vmatprep.subr.bf16.mxu0 %v2518
        %2603 = vmatpush1.bf16.msra.mxu0 %v2517
        %2604 = vmatprep.subr.bf16.mxu0 %v2516
        %2605 = vmatpush1.bf16.msra.mxu0 %v2515
        %2606 = vmatprep.subr.bf16.mxu0 %v2514
        %2607 = vmatpush1.bf16.msra.mxu0 %v2513
        %2608 = vmatprep.subr.bf16.mxu0 %v2512
        %2609 = vmatpush1.bf16.msra.mxu0 %v2511
        %2610 = vmatprep.subr.bf16.mxu0 %v2542
        %2611 = vmatpush2.bf16.msra.mxu0 %v2541
        %2612 = vmatprep.subr.bf16.mxu0 %v2540
        %2613 = vmatpush2.bf16.msra.mxu0 %v2539
        %2614 = vmatprep.subr.bf16.mxu0 %v2538
        %2615 = vmatpush2.bf16.msra.mxu0 %v2537
        %2616 = vmatprep.subr.bf16.mxu0 %v2536
        %2617 = vmatpush2.bf16.msra.mxu0 %v2535
        %2618 = vmatprep.subr.bf16.mxu0 %v2534
        %2619 = vmatpush2.bf16.msra.mxu0 %v2533
        %2620 = vmatprep.subr.bf16.mxu0 %v2532
        %2621 = vmatpush2.bf16.msra.mxu0 %v2531
        %2622 = vmatprep.subr.bf16.mxu0 %v2530
        %2623 = vmatpush2.bf16.msra.mxu0 %v2529
        %2624 = vmatprep.subr.bf16.mxu0 %v2528
        %2625 = vmatpush2.bf16.msra.mxu0 %v2527
        %2626 = vmatprep.mubr.bf16.mxu0 %v2385
        %2627 = vmatmul.mubr.bf16.gmra.mxu0 %v2382
        %v2628 = vpop.f32.mrf.mxu0
        %v2629 = vadd.f32 0.0, %v2628
        %v2630 = vpop.f32.mrf.mxu0
        %v2631 = vadd.f32 0.0, %v2630
        %v2632 = vpop.f32.mrf.mxu0
        %v2633 = vadd.f32 0.0, %v2632
        %v2634 = vpop.f32.mrf.mxu0
        %v2635 = vadd.f32 0.0, %v2634
        %2636 = vdwg.mxu0
        %2637 = vmatprep.subr.bf16.mxu0 0
        %2638 = vmatpush1.bf16.msra.mxu0 0
        %2639 = vmatprep.subr.bf16.mxu0 0
        %2640 = vmatpush1.bf16.msra.mxu0 0
        %2641 = vmatprep.subr.bf16.mxu0 0
        %2642 = vmatpush1.bf16.msra.mxu0 0
        %2643 = vmatprep.subr.bf16.mxu0 0
        %2644 = vmatpush1.bf16.msra.mxu0 0
        %2645 = vmatprep.subr.bf16.mxu0 %v2550
        %2646 = vmatpush1.bf16.msra.mxu0 %v2549
        %2647 = vmatprep.subr.bf16.mxu0 %v2548
        %2648 = vmatpush1.bf16.msra.mxu0 %v2547
        %2649 = vmatprep.subr.bf16.mxu0 %v2546
        %2650 = vmatpush1.bf16.msra.mxu0 %v2545
        %2651 = vmatprep.subr.bf16.mxu0 %v2544
        %2652 = vmatpush1.bf16.msra.mxu0 %v2543
        %2653 = vmatprep.subr.bf16.mxu0 0
        %2654 = vmatpush2.bf16.msra.mxu0 0
        %2655 = vmatprep.subr.bf16.mxu0 0
        %2656 = vmatpush2.bf16.msra.mxu0 0
        %2657 = vmatprep.subr.bf16.mxu0 0
        %2658 = vmatpush2.bf16.msra.mxu0 0
        %2659 = vmatprep.subr.bf16.mxu0 0
        %2660 = vmatpush2.bf16.msra.mxu0 0
        %2661 = vmatprep.subr.bf16.mxu0 0
        %2662 = vmatpush2.bf16.msra.mxu0 0
        %2663 = vmatprep.subr.bf16.mxu0 0
        %2664 = vmatpush2.bf16.msra.mxu0 0
        %2665 = vmatprep.subr.bf16.mxu0 0
        %2666 = vmatpush2.bf16.msra.mxu0 0
        %2667 = vmatprep.subr.bf16.mxu0 0
        %2668 = vmatpush2.bf16.msra.mxu0 0
        %2669 = vmatprep.mubr.bf16.mxu0 0
        %2670 = vmatmul.mubr.bf16.gmra.mxu0 %v2592
        %v2671 = vpop.f32.mrf.mxu0
        %v2672 = vadd.f32 %v2629, %v2671
        %v2673 = vpop.f32.mrf.mxu0
        %v2674 = vadd.f32 %v2631, %v2673
        %v2675 = vpop.f32.mrf.mxu0
        %v2676 = vadd.f32 %v2633, %v2675
        %v2677 = vpop.f32.mrf.mxu0
        %v2678 = vadd.f32 %v2635, %v2677
        %2679 = vdwg.mxu0
        %v2680 = vadd.f32 %v2313, %v2672
        %v2681 = vadd.f32 %v2315, %v2674
        %v2682 = vadd.f32 %v2317, %v2676
        %v2683 = vadd.f32 %v2319, %v2678
        %v2684 = vld [vmem:[%s11] sm:$0x3]
        %v2686 = vlaneseq
        %v2687 = vshrl.u32 %v2686, 7
        %v2688 = vsub.s32 0, %v2687
        %v2689 = vrot.slane %v2684, %v2688
        %v2690 = vlaneseq
        %v2691 = vshrl.u32 %v2690, 7
        %v2692 = vsub.s32 1, %v2691
        %v2693 = vrot.slane %v2684, %v2692
        %v2696 = vadd.f32 %v2680, %v2689
        %v2697 = vadd.f32 %v2681, %v2693
        %v2698 = vadd.f32 %v2682, %v2689
        %v2699 = vadd.f32 %v2683, %v2693
        %v2700 = vmax.f32 %v2696, 0.0
        %v2701 = vmax.f32 %v2697, 0.0
        %v2702 = vmax.f32 %v2698, 0.0
        %v2703 = vmax.f32 %v2699, 0.0
        %v2704 = vld [vmem:[%s9] sm:$0xff]
        %v2705 = vld [vmem:[%s9 + $0x8] sm:$0xff]
        %v2706 = vld [vmem:[%s9 + $0x10] sm:$0xff]
        %v2707 = vld [vmem:[%s9 + $0x18] sm:$0xff]
        %v2708 = vld [vmem:[%s9 + $0x20] sm:$0xff]
        %v2709 = vld [vmem:[%s9 + $0x28] sm:$0xff]
        %v2710 = vld [vmem:[%s9 + $0x30] sm:$0xff]
        %v2711 = vld [vmem:[%s9 + $0x38] sm:$0xff]
        %v2712 = vld [vmem:[%s9 + $0x40] sm:$0xff]
        %v2713 = vld [vmem:[%s9 + $0x48] sm:$0xff]
        %v2714 = vld [vmem:[%s9 + $0x50] sm:$0xff]
        %v2715 = vld [vmem:[%s9 + $0x58] sm:$0xff]
        %v2716 = vld [vmem:[%s9 + $0x60] sm:$0xff]
        %v2717 = vld [vmem:[%s9 + $0x68] sm:$0xff]
        %v2718 = vld [vmem:[%s9 + $0x70] sm:$0xff]
        %v2719 = vld [vmem:[%s9 + $0x78] sm:$0xff]
        %v2720 = vld [vmem:[%s9 + $0x80] sm:$0xff]
        %v2721 = vld [vmem:[%s9 + $0x88] sm:$0xff]
        %v2722 = vld [vmem:[%s9 + $0x90] sm:$0xff]
        %v2723 = vld [vmem:[%s9 + $0x98] sm:$0xff]
        %v2724 = vld [vmem:[%s9 + $0xa0] sm:$0xff]
        %v2725 = vld [vmem:[%s9 + $0xa8] sm:$0xff]
        %v2726 = vld [vmem:[%s9 + $0xb0] sm:$0xff]
        %v2727 = vld [vmem:[%s9 + $0xb8] sm:$0xff]
        %v2728 = vld [vmem:[%s9 + $0xc0] sm:$0xff]
        %v2729 = vld [vmem:[%s9 + $0xc8] sm:$0xff]
        %v2730 = vld [vmem:[%s9 + $0xd0] sm:$0xff]
        %v2731 = vld [vmem:[%s9 + $0xd8] sm:$0xff]
        %v2732 = vld [vmem:[%s9 + $0xe0] sm:$0xff]
        %v2733 = vld [vmem:[%s9 + $0xe8] sm:$0xff]
        %v2734 = vld [vmem:[%s9 + $0xf0] sm:$0xff]
        %v2735 = vld [vmem:[%s9 + $0xf8] sm:$0xff]
        %v2736 = vld [vmem:[%s9 + $0x100] sm:$0xff]
        %v2737 = vld [vmem:[%s9 + $0x108] sm:$0xff]
        %v2738 = vld [vmem:[%s9 + $0x110] sm:$0xff]
        %v2739 = vld [vmem:[%s9 + $0x118] sm:$0xff]
        %v2740 = vld [vmem:[%s9 + $0x120] sm:$0xff]
        %v2741 = vld [vmem:[%s9 + $0x128] sm:$0xff]
        %v2742 = vld [vmem:[%s9 + $0x130] sm:$0xff]
        %v2743 = vld [vmem:[%s9 + $0x138] sm:$0xff]
        %s2744 = scalar_lea.vmem %s9, 320
        %v2745 = vld [vmem:[%s2744] sm:$0xff]
        %v2746 = vld [vmem:[%s2744 + $0x8] sm:$0xff]
        %v2747 = vld [vmem:[%s2744 + $0x10] sm:$0xff]
        %v2748 = vld [vmem:[%s2744 + $0x18] sm:$0xff]
        %v2749 = vld [vmem:[%s2744 + $0x20] sm:$0xff]
        %v2750 = vld [vmem:[%s2744 + $0x28] sm:$0xff]
        %v2751 = vld [vmem:[%s2744 + $0x30] sm:$0xff]
        %v2752 = vld [vmem:[%s2744 + $0x38] sm:$0xff]
        %v2753 = vld [vmem:[%s2744 + $0x40] sm:$0xff]
        %v2754 = vld [vmem:[%s2744 + $0x48] sm:$0xff]
        %v2755 = vld [vmem:[%s2744 + $0x50] sm:$0xff]
        %v2756 = vld [vmem:[%s2744 + $0x58] sm:$0xff]
        %v2757 = vld [vmem:[%s2744 + $0x60] sm:$0xff]
        %v2758 = vld [vmem:[%s2744 + $0x68] sm:$0xff]
        %v2759 = vld [vmem:[%s2744 + $0x70] sm:$0xff]
        %v2760 = vld [vmem:[%s2744 + $0x78] sm:$0xff]
        %v2761 = vld [vmem:[%s2744 + $0x80] sm:$0xff]
        %v2762 = vld [vmem:[%s2744 + $0x88] sm:$0xff]
        %v2763 = vld [vmem:[%s2744 + $0x90] sm:$0xff]
        %v2764 = vld [vmem:[%s2744 + $0x98] sm:$0xff]
        %v2765 = vld [vmem:[%s2744 + $0xa0] sm:$0xff]
        %v2766 = vld [vmem:[%s2744 + $0xa8] sm:$0xff]
        %v2767 = vld [vmem:[%s2744 + $0xb0] sm:$0xff]
        %v2768 = vld [vmem:[%s2744 + $0xb8] sm:$0xff]
        %v2769 = vld [vmem:[%s2744 + $0xc0] sm:$0xff]
        %v2770 = vld [vmem:[%s2744 + $0xc8] sm:$0xff]
        %v2771 = vld [vmem:[%s2744 + $0xd0] sm:$0xff]
        %v2772 = vld [vmem:[%s2744 + $0xd8] sm:$0xff]
        %v2773 = vld [vmem:[%s2744 + $0xe0] sm:$0xff]
        %v2774 = vld [vmem:[%s2744 + $0xe8] sm:$0xff]
        %v2775 = vld [vmem:[%s2744 + $0xf0] sm:$0xff]
        %v2776 = vld [vmem:[%s2744 + $0xf8] sm:$0xff]
        %v2777 = vld [vmem:[%s2744 + $0x100] sm:$0xff]
        %v2778 = vld [vmem:[%s2744 + $0x108] sm:$0xff]
        %v2779 = vld [vmem:[%s2744 + $0x110] sm:$0xff]
        %v2780 = vld [vmem:[%s2744 + $0x118] sm:$0xff]
        %v2781 = vld [vmem:[%s2744 + $0x120] sm:$0xff]
        %v2782 = vld [vmem:[%s2744 + $0x128] sm:$0xff]
        %v2783 = vld [vmem:[%s2744 + $0x130] sm:$0xff]
        %v2784 = vld [vmem:[%s2744 + $0x138] sm:$0xff]
        %v2825 = vunpack.c.l.b16 %v2745
        %v2826 = vunpack.c.h.b16 %v2745
        %v2827 = vunpack.c.l.b16 %v2746
        %v2828 = vunpack.c.h.b16 %v2746
        %v2829 = vunpack.c.l.b16 %v2747
        %v2830 = vunpack.c.h.b16 %v2747
        %v2831 = vunpack.c.l.b16 %v2748
        %v2832 = vunpack.c.h.b16 %v2748
        %v2833 = vunpack.c.l.b16 %v2749
        %v2834 = vunpack.c.h.b16 %v2749
        %v2835 = vunpack.c.l.b16 %v2750
        %v2836 = vunpack.c.h.b16 %v2750
        %v2837 = vunpack.c.l.b16 %v2751
        %v2838 = vunpack.c.h.b16 %v2751
        %v2839 = vunpack.c.l.b16 %v2752
        %v2840 = vunpack.c.h.b16 %v2752
        %v2841 = vunpack.c.l.b16 %v2753
        %v2842 = vunpack.c.h.b16 %v2753
        %v2843 = vunpack.c.l.b16 %v2754
        %v2844 = vunpack.c.h.b16 %v2754
        %v2845 = vunpack.c.l.b16 %v2755
        %v2846 = vunpack.c.h.b16 %v2755
        %v2847 = vunpack.c.l.b16 %v2756
        %v2848 = vunpack.c.h.b16 %v2756
        %v2849 = vunpack.c.l.b16 %v2757
        %v2850 = vunpack.c.h.b16 %v2757
        %v2851 = vunpack.c.l.b16 %v2758
        %v2852 = vunpack.c.h.b16 %v2758
        %v2853 = vunpack.c.l.b16 %v2759
        %v2854 = vunpack.c.h.b16 %v2759
        %v2855 = vunpack.c.l.b16 %v2760
        %v2856 = vunpack.c.h.b16 %v2760
        %v2857 = vunpack.c.l.b16 %v2761
        %v2858 = vunpack.c.h.b16 %v2761
        %v2859 = vunpack.c.l.b16 %v2762
        %v2860 = vunpack.c.h.b16 %v2762
        %v2861 = vunpack.c.l.b16 %v2763
        %v2862 = vunpack.c.h.b16 %v2763
        %v2863 = vunpack.c.l.b16 %v2764
        %v2864 = vunpack.c.h.b16 %v2764
        %v2865 = vunpack.c.l.b16 %v2765
        %v2866 = vunpack.c.h.b16 %v2765
        %v2867 = vunpack.c.l.b16 %v2766
        %v2868 = vunpack.c.h.b16 %v2766
        %v2869 = vunpack.c.l.b16 %v2767
        %v2870 = vunpack.c.h.b16 %v2767
        %v2871 = vunpack.c.l.b16 %v2768
        %v2872 = vunpack.c.h.b16 %v2768
        %v2873 = vunpack.c.l.b16 %v2769
        %v2874 = vunpack.c.h.b16 %v2769
        %v2875 = vunpack.c.l.b16 %v2770
        %v2876 = vunpack.c.h.b16 %v2770
        %v2877 = vunpack.c.l.b16 %v2771
        %v2878 = vunpack.c.h.b16 %v2771
        %v2879 = vunpack.c.l.b16 %v2772
        %v2880 = vunpack.c.h.b16 %v2772
        %v2881 = vunpack.c.l.b16 %v2773
        %v2882 = vunpack.c.h.b16 %v2773
        %v2883 = vunpack.c.l.b16 %v2774
        %v2884 = vunpack.c.h.b16 %v2774
        %v2885 = vunpack.c.l.b16 %v2775
        %v2886 = vunpack.c.h.b16 %v2775
        %v2887 = vunpack.c.l.b16 %v2776
        %v2888 = vunpack.c.h.b16 %v2776
        %v2889 = vunpack.c.l.b16 %v2777
        %v2890 = vunpack.c.h.b16 %v2777
        %v2891 = vunpack.c.l.b16 %v2778
        %v2892 = vunpack.c.h.b16 %v2778
        %v2893 = vunpack.c.l.b16 %v2779
        %v2894 = vunpack.c.h.b16 %v2779
        %v2895 = vunpack.c.l.b16 %v2780
        %v2896 = vunpack.c.h.b16 %v2780
        %v2897 = vunpack.c.l.b16 %v2781
        %v2898 = vunpack.c.h.b16 %v2781
        %v2899 = vunpack.c.l.b16 %v2782
        %v2900 = vunpack.c.h.b16 %v2782
        %v2901 = vunpack.c.l.b16 %v2783
        %v2902 = vunpack.c.h.b16 %v2783
        %v2903 = vunpack.c.l.b16 %v2784
        %v2904 = vunpack.c.h.b16 %v2784
        %v2905 = vpack.c.b16 %v2827, %v2825
        %v2906 = vpack.c.b16 %v2828, %v2826
        %v2907 = vpack.c.b16 %v2831, %v2829
        %v2908 = vpack.c.b16 %v2832, %v2830
        %v2909 = vpack.c.b16 %v2835, %v2833
        %v2910 = vpack.c.b16 %v2836, %v2834
        %v2911 = vpack.c.b16 %v2839, %v2837
        %v2912 = vpack.c.b16 %v2840, %v2838
        %v2913 = vpack.c.b16 %v2843, %v2841
        %v2914 = vpack.c.b16 %v2844, %v2842
        %v2915 = vpack.c.b16 %v2847, %v2845
        %v2916 = vpack.c.b16 %v2848, %v2846
        %v2917 = vpack.c.b16 %v2851, %v2849
        %v2918 = vpack.c.b16 %v2852, %v2850
        %v2919 = vpack.c.b16 %v2855, %v2853
        %v2920 = vpack.c.b16 %v2856, %v2854
        %v2921 = vpack.c.b16 %v2859, %v2857
        %v2922 = vpack.c.b16 %v2860, %v2858
        %v2923 = vpack.c.b16 %v2863, %v2861
        %v2924 = vpack.c.b16 %v2864, %v2862
        %v2925 = vpack.c.b16 %v2867, %v2865
        %v2926 = vpack.c.b16 %v2868, %v2866
        %v2927 = vpack.c.b16 %v2871, %v2869
        %v2928 = vpack.c.b16 %v2872, %v2870
        %v2929 = vpack.c.b16 %v2875, %v2873
        %v2930 = vpack.c.b16 %v2876, %v2874
        %v2931 = vpack.c.b16 %v2879, %v2877
        %v2932 = vpack.c.b16 %v2880, %v2878
        %v2933 = vpack.c.b16 %v2883, %v2881
        %v2934 = vpack.c.b16 %v2884, %v2882
        %v2935 = vpack.c.b16 %v2887, %v2885
        %v2936 = vpack.c.b16 %v2888, %v2886
        %v2937 = vpack.c.b16 %v2891, %v2889
        %v2938 = vpack.c.b16 %v2892, %v2890
        %v2939 = vpack.c.b16 %v2895, %v2893
        %v2940 = vpack.c.b16 %v2896, %v2894
        %v2941 = vpack.c.b16 %v2899, %v2897
        %v2942 = vpack.c.b16 %v2900, %v2898
        %v2943 = vpack.c.b16 %v2903, %v2901
        %v2944 = vpack.c.b16 %v2904, %v2902
        %2985 = vmatprep.subr.bf16.mxu0 %v2920
        %2986 = vmatpush1.bf16.msra.mxu0 %v2919
        %2987 = vmatprep.subr.bf16.mxu0 %v2918
        %2988 = vmatpush1.bf16.msra.mxu0 %v2917
        %2989 = vmatprep.subr.bf16.mxu0 %v2916
        %2990 = vmatpush1.bf16.msra.mxu0 %v2915
        %2991 = vmatprep.subr.bf16.mxu0 %v2914
        %2992 = vmatpush1.bf16.msra.mxu0 %v2913
        %2993 = vmatprep.subr.bf16.mxu0 %v2912
        %2994 = vmatpush1.bf16.msra.mxu0 %v2911
        %2995 = vmatprep.subr.bf16.mxu0 %v2910
        %2996 = vmatpush1.bf16.msra.mxu0 %v2909
        %2997 = vmatprep.subr.bf16.mxu0 %v2908
        %2998 = vmatpush1.bf16.msra.mxu0 %v2907
        %2999 = vmatprep.subr.bf16.mxu0 %v2906
        %3000 = vmatpush1.bf16.msra.mxu0 %v2905
        %3001 = vmatprep.subr.bf16.mxu0 %v2936
        %3002 = vmatpush2.bf16.msra.mxu0 %v2935
        %3003 = vmatprep.subr.bf16.mxu0 %v2934
        %3004 = vmatpush2.bf16.msra.mxu0 %v2933
        %3005 = vmatprep.subr.bf16.mxu0 %v2932
        %3006 = vmatpush2.bf16.msra.mxu0 %v2931
        %3007 = vmatprep.subr.bf16.mxu0 %v2930
        %3008 = vmatpush2.bf16.msra.mxu0 %v2929
        %3009 = vmatprep.subr.bf16.mxu0 %v2928
        %3010 = vmatpush2.bf16.msra.mxu0 %v2927
        %3011 = vmatprep.subr.bf16.mxu0 %v2926
        %3012 = vmatpush2.bf16.msra.mxu0 %v2925
        %3013 = vmatprep.subr.bf16.mxu0 %v2924
        %3014 = vmatpush2.bf16.msra.mxu0 %v2923
        %3015 = vmatprep.subr.bf16.mxu0 %v2922
        %3016 = vmatpush2.bf16.msra.mxu0 %v2921
        %3017 = vmatprep.mubr.bf16.mxu0 %v1728
        %3018 = vmatmul.mubr.bf16.gmra.mxu0 %v1716
        %v3019 = vpop.f32.mrf.mxu0
        %v3020 = vadd.f32 0.0, %v3019
        %v3021 = vpop.f32.mrf.mxu0
        %v3022 = vadd.f32 0.0, %v3021
        %v3023 = vpop.f32.mrf.mxu0
        %v3024 = vadd.f32 0.0, %v3023
        %v3025 = vpop.f32.mrf.mxu0
        %v3026 = vadd.f32 0.0, %v3025
        %3027 = vdwg.mxu0
        %3028 = vmatprep.subr.bf16.mxu0 0
        %3029 = vmatpush1.bf16.msra.mxu0 0
        %3030 = vmatprep.subr.bf16.mxu0 0
        %3031 = vmatpush1.bf16.msra.mxu0 0
        %3032 = vmatprep.subr.bf16.mxu0 0
        %3033 = vmatpush1.bf16.msra.mxu0 0
        %3034 = vmatprep.subr.bf16.mxu0 0
        %3035 = vmatpush1.bf16.msra.mxu0 0
        %3036 = vmatprep.subr.bf16.mxu0 %v2944
        %3037 = vmatpush1.bf16.msra.mxu0 %v2943
        %3038 = vmatprep.subr.bf16.mxu0 %v2942
        %3039 = vmatpush1.bf16.msra.mxu0 %v2941
        %3040 = vmatprep.subr.bf16.mxu0 %v2940
        %3041 = vmatpush1.bf16.msra.mxu0 %v2939
        %3042 = vmatprep.subr.bf16.mxu0 %v2938
        %3043 = vmatpush1.bf16.msra.mxu0 %v2937
        %3044 = vmatprep.subr.bf16.mxu0 0
        %3045 = vmatpush2.bf16.msra.mxu0 0
        %3046 = vmatprep.subr.bf16.mxu0 0
        %3047 = vmatpush2.bf16.msra.mxu0 0
        %3048 = vmatprep.subr.bf16.mxu0 0
        %3049 = vmatpush2.bf16.msra.mxu0 0
        %3050 = vmatprep.subr.bf16.mxu0 0
        %3051 = vmatpush2.bf16.msra.mxu0 0
        %3052 = vmatprep.subr.bf16.mxu0 0
        %3053 = vmatpush2.bf16.msra.mxu0 0
        %3054 = vmatprep.subr.bf16.mxu0 0
        %3055 = vmatpush2.bf16.msra.mxu0 0
        %3056 = vmatprep.subr.bf16.mxu0 0
        %3057 = vmatpush2.bf16.msra.mxu0 0
        %3058 = vmatprep.subr.bf16.mxu0 0
        %3059 = vmatpush2.bf16.msra.mxu0 0
        %3060 = vmatprep.mubr.bf16.mxu0 0
        %3061 = vmatmul.mubr.bf16.gmra.mxu0 %v1944
        %v3062 = vpop.f32.mrf.mxu0
        %v3063 = vadd.f32 %v3020, %v3062
        %v3064 = vpop.f32.mrf.mxu0
        %v3065 = vadd.f32 %v3022, %v3064
        %v3066 = vpop.f32.mrf.mxu0
        %v3067 = vadd.f32 %v3024, %v3066
        %v3068 = vpop.f32.mrf.mxu0
        %v3069 = vadd.f32 %v3026, %v3068
        %3070 = vdwg.mxu0
        %v3111 = vunpack.c.l.b16 %v2704
        %v3112 = vunpack.c.h.b16 %v2704
        %v3113 = vunpack.c.l.b16 %v2705
        %v3114 = vunpack.c.h.b16 %v2705
        %v3115 = vunpack.c.l.b16 %v2706
        %v3116 = vunpack.c.h.b16 %v2706
        %v3117 = vunpack.c.l.b16 %v2707
        %v3118 = vunpack.c.h.b16 %v2707
        %v3119 = vunpack.c.l.b16 %v2708
        %v3120 = vunpack.c.h.b16 %v2708
        %v3121 = vunpack.c.l.b16 %v2709
        %v3122 = vunpack.c.h.b16 %v2709
        %v3123 = vunpack.c.l.b16 %v2710
        %v3124 = vunpack.c.h.b16 %v2710
        %v3125 = vunpack.c.l.b16 %v2711
        %v3126 = vunpack.c.h.b16 %v2711
        %v3127 = vunpack.c.l.b16 %v2712
        %v3128 = vunpack.c.h.b16 %v2712
        %v3129 = vunpack.c.l.b16 %v2713
        %v3130 = vunpack.c.h.b16 %v2713
        %v3131 = vunpack.c.l.b16 %v2714
        %v3132 = vunpack.c.h.b16 %v2714
        %v3133 = vunpack.c.l.b16 %v2715
        %v3134 = vunpack.c.h.b16 %v2715
        %v3135 = vunpack.c.l.b16 %v2716
        %v3136 = vunpack.c.h.b16 %v2716
        %v3137 = vunpack.c.l.b16 %v2717
        %v3138 = vunpack.c.h.b16 %v2717
        %v3139 = vunpack.c.l.b16 %v2718
        %v3140 = vunpack.c.h.b16 %v2718
        %v3141 = vunpack.c.l.b16 %v2719
        %v3142 = vunpack.c.h.b16 %v2719
        %v3143 = vunpack.c.l.b16 %v2720
        %v3144 = vunpack.c.h.b16 %v2720
        %v3145 = vunpack.c.l.b16 %v2721
        %v3146 = vunpack.c.h.b16 %v2721
        %v3147 = vunpack.c.l.b16 %v2722
        %v3148 = vunpack.c.h.b16 %v2722
        %v3149 = vunpack.c.l.b16 %v2723
        %v3150 = vunpack.c.h.b16 %v2723
        %v3151 = vunpack.c.l.b16 %v2724
        %v3152 = vunpack.c.h.b16 %v2724
        %v3153 = vunpack.c.l.b16 %v2725
        %v3154 = vunpack.c.h.b16 %v2725
        %v3155 = vunpack.c.l.b16 %v2726
        %v3156 = vunpack.c.h.b16 %v2726
        %v3157 = vunpack.c.l.b16 %v2727
        %v3158 = vunpack.c.h.b16 %v2727
        %v3159 = vunpack.c.l.b16 %v2728
        %v3160 = vunpack.c.h.b16 %v2728
        %v3161 = vunpack.c.l.b16 %v2729
        %v3162 = vunpack.c.h.b16 %v2729
        %v3163 = vunpack.c.l.b16 %v2730
        %v3164 = vunpack.c.h.b16 %v2730
        %v3165 = vunpack.c.l.b16 %v2731
        %v3166 = vunpack.c.h.b16 %v2731
        %v3167 = vunpack.c.l.b16 %v2732
        %v3168 = vunpack.c.h.b16 %v2732
        %v3169 = vunpack.c.l.b16 %v2733
        %v3170 = vunpack.c.h.b16 %v2733
        %v3171 = vunpack.c.l.b16 %v2734
        %v3172 = vunpack.c.h.b16 %v2734
        %v3173 = vunpack.c.l.b16 %v2735
        %v3174 = vunpack.c.h.b16 %v2735
        %v3175 = vunpack.c.l.b16 %v2736
        %v3176 = vunpack.c.h.b16 %v2736
        %v3177 = vunpack.c.l.b16 %v2737
        %v3178 = vunpack.c.h.b16 %v2737
        %v3179 = vunpack.c.l.b16 %v2738
        %v3180 = vunpack.c.h.b16 %v2738
        %v3181 = vunpack.c.l.b16 %v2739
        %v3182 = vunpack.c.h.b16 %v2739
        %v3183 = vunpack.c.l.b16 %v2740
        %v3184 = vunpack.c.h.b16 %v2740
        %v3185 = vunpack.c.l.b16 %v2741
        %v3186 = vunpack.c.h.b16 %v2741
        %v3187 = vunpack.c.l.b16 %v2742
        %v3188 = vunpack.c.h.b16 %v2742
        %v3189 = vunpack.c.l.b16 %v2743
        %v3190 = vunpack.c.h.b16 %v2743
        %v3191 = vpack.c.b16 %v3113, %v3111
        %v3192 = vpack.c.b16 %v3114, %v3112
        %v3193 = vpack.c.b16 %v3117, %v3115
        %v3194 = vpack.c.b16 %v3118, %v3116
        %v3195 = vpack.c.b16 %v3121, %v3119
        %v3196 = vpack.c.b16 %v3122, %v3120
        %v3197 = vpack.c.b16 %v3125, %v3123
        %v3198 = vpack.c.b16 %v3126, %v3124
        %v3199 = vpack.c.b16 %v3129, %v3127
        %v3200 = vpack.c.b16 %v3130, %v3128
        %v3201 = vpack.c.b16 %v3133, %v3131
        %v3202 = vpack.c.b16 %v3134, %v3132
        %v3203 = vpack.c.b16 %v3137, %v3135
        %v3204 = vpack.c.b16 %v3138, %v3136
        %v3205 = vpack.c.b16 %v3141, %v3139
        %v3206 = vpack.c.b16 %v3142, %v3140
        %v3207 = vpack.c.b16 %v3145, %v3143
        %v3208 = vpack.c.b16 %v3146, %v3144
        %v3209 = vpack.c.b16 %v3149, %v3147
        %v3210 = vpack.c.b16 %v3150, %v3148
        %v3211 = vpack.c.b16 %v3153, %v3151
        %v3212 = vpack.c.b16 %v3154, %v3152
        %v3213 = vpack.c.b16 %v3157, %v3155
        %v3214 = vpack.c.b16 %v3158, %v3156
        %v3215 = vpack.c.b16 %v3161, %v3159
        %v3216 = vpack.c.b16 %v3162, %v3160
        %v3217 = vpack.c.b16 %v3165, %v3163
        %v3218 = vpack.c.b16 %v3166, %v3164
        %v3219 = vpack.c.b16 %v3169, %v3167
        %v3220 = vpack.c.b16 %v3170, %v3168
        %v3221 = vpack.c.b16 %v3173, %v3171
        %v3222 = vpack.c.b16 %v3174, %v3172
        %v3223 = vpack.c.b16 %v3177, %v3175
        %v3224 = vpack.c.b16 %v3178, %v3176
        %v3225 = vpack.c.b16 %v3181, %v3179
        %v3226 = vpack.c.b16 %v3182, %v3180
        %v3227 = vpack.c.b16 %v3185, %v3183
        %v3228 = vpack.c.b16 %v3186, %v3184
        %v3229 = vpack.c.b16 %v3189, %v3187
        %v3230 = vpack.c.b16 %v3190, %v3188
        %3271 = vmatprep.subr.bf16.mxu0 %v3206
        %3272 = vmatpush1.bf16.msra.mxu0 %v3205
        %3273 = vmatprep.subr.bf16.mxu0 %v3204
        %3274 = vmatpush1.bf16.msra.mxu0 %v3203
        %3275 = vmatprep.subr.bf16.mxu0 %v3202
        %3276 = vmatpush1.bf16.msra.mxu0 %v3201
        %3277 = vmatprep.subr.bf16.mxu0 %v3200
        %3278 = vmatpush1.bf16.msra.mxu0 %v3199
        %3279 = vmatprep.subr.bf16.mxu0 %v3198
        %3280 = vmatpush1.bf16.msra.mxu0 %v3197
        %3281 = vmatprep.subr.bf16.mxu0 %v3196
        %3282 = vmatpush1.bf16.msra.mxu0 %v3195
        %3283 = vmatprep.subr.bf16.mxu0 %v3194
        %3284 = vmatpush1.bf16.msra.mxu0 %v3193
        %3285 = vmatprep.subr.bf16.mxu0 %v3192
        %3286 = vmatpush1.bf16.msra.mxu0 %v3191
        %3287 = vmatprep.subr.bf16.mxu0 %v3222
        %3288 = vmatpush2.bf16.msra.mxu0 %v3221
        %3289 = vmatprep.subr.bf16.mxu0 %v3220
        %3290 = vmatpush2.bf16.msra.mxu0 %v3219
        %3291 = vmatprep.subr.bf16.mxu0 %v3218
        %3292 = vmatpush2.bf16.msra.mxu0 %v3217
        %3293 = vmatprep.subr.bf16.mxu0 %v3216
        %3294 = vmatpush2.bf16.msra.mxu0 %v3215
        %3295 = vmatprep.subr.bf16.mxu0 %v3214
        %3296 = vmatpush2.bf16.msra.mxu0 %v3213
        %3297 = vmatprep.subr.bf16.mxu0 %v3212
        %3298 = vmatpush2.bf16.msra.mxu0 %v3211
        %3299 = vmatprep.subr.bf16.mxu0 %v3210
        %3300 = vmatpush2.bf16.msra.mxu0 %v3209
        %3301 = vmatprep.subr.bf16.mxu0 %v3208
        %3302 = vmatpush2.bf16.msra.mxu0 %v3207
        %3303 = vmatprep.mubr.bf16.mxu0 %v1610
        %3304 = vmatmul.mubr.bf16.gmra.mxu0 %v1609
        %v3305 = vpop.f32.mrf.mxu0
        %v3306 = vadd.f32 %v3063, %v3305
        %v3307 = vpop.f32.mrf.mxu0
        %v3308 = vadd.f32 %v3065, %v3307
        %v3309 = vpop.f32.mrf.mxu0
        %v3310 = vadd.f32 %v3067, %v3309
        %v3311 = vpop.f32.mrf.mxu0
        %v3312 = vadd.f32 %v3069, %v3311
        %3313 = vdwg.mxu0
        %3314 = vmatprep.subr.bf16.mxu0 0
        %3315 = vmatpush1.bf16.msra.mxu0 0
        %3316 = vmatprep.subr.bf16.mxu0 0
        %3317 = vmatpush1.bf16.msra.mxu0 0
        %3318 = vmatprep.subr.bf16.mxu0 0
        %3319 = vmatpush1.bf16.msra.mxu0 0
        %3320 = vmatprep.subr.bf16.mxu0 0
        %3321 = vmatpush1.bf16.msra.mxu0 0
        %3322 = vmatprep.subr.bf16.mxu0 %v3230
        %3323 = vmatpush1.bf16.msra.mxu0 %v3229
        %3324 = vmatprep.subr.bf16.mxu0 %v3228
        %3325 = vmatpush1.bf16.msra.mxu0 %v3227
        %3326 = vmatprep.subr.bf16.mxu0 %v3226
        %3327 = vmatpush1.bf16.msra.mxu0 %v3225
        %3328 = vmatprep.subr.bf16.mxu0 %v3224
        %3329 = vmatpush1.bf16.msra.mxu0 %v3223
        %3330 = vmatprep.subr.bf16.mxu0 0
        %3331 = vmatpush2.bf16.msra.mxu0 0
        %3332 = vmatprep.subr.bf16.mxu0 0
        %3333 = vmatpush2.bf16.msra.mxu0 0
        %3334 = vmatprep.subr.bf16.mxu0 0
        %3335 = vmatpush2.bf16.msra.mxu0 0
        %3336 = vmatprep.subr.bf16.mxu0 0
        %3337 = vmatpush2.bf16.msra.mxu0 0
        %3338 = vmatprep.subr.bf16.mxu0 0
        %3339 = vmatpush2.bf16.msra.mxu0 0
        %3340 = vmatprep.subr.bf16.mxu0 0
        %3341 = vmatpush2.bf16.msra.mxu0 0
        %3342 = vmatprep.subr.bf16.mxu0 0
        %3343 = vmatpush2.bf16.msra.mxu0 0
        %3344 = vmatprep.subr.bf16.mxu0 0
        %3345 = vmatpush2.bf16.msra.mxu0 0
        %3346 = vmatprep.mubr.bf16.mxu0 0
        %3347 = vmatmul.mubr.bf16.gmra.mxu0 %v2233
        %v3348 = vpop.f32.mrf.mxu0
        %v3349 = vadd.f32 %v3306, %v3348
        %v3350 = vpop.f32.mrf.mxu0
        %v3351 = vadd.f32 %v3308, %v3350
        %v3352 = vpop.f32.mrf.mxu0
        %v3353 = vadd.f32 %v3310, %v3352
        %v3354 = vpop.f32.mrf.mxu0
        %v3355 = vadd.f32 %v3312, %v3354
        %3356 = vdwg.mxu0
        %s3357 = scalar_lea.vmem %s9, 640
        %v3358 = vld [vmem:[%s3357] sm:$0xff]
        %v3359 = vld [vmem:[%s3357 + $0x8] sm:$0xff]
        %v3360 = vld [vmem:[%s3357 + $0x10] sm:$0xff]
        %v3361 = vld [vmem:[%s3357 + $0x18] sm:$0xff]
        %v3362 = vld [vmem:[%s3357 + $0x20] sm:$0xff]
        %v3363 = vld [vmem:[%s3357 + $0x28] sm:$0xff]
        %v3364 = vld [vmem:[%s3357 + $0x30] sm:$0xff]
        %v3365 = vld [vmem:[%s3357 + $0x38] sm:$0xff]
        %v3366 = vld [vmem:[%s3357 + $0x40] sm:$0xff]
        %v3367 = vld [vmem:[%s3357 + $0x48] sm:$0xff]
        %v3368 = vld [vmem:[%s3357 + $0x50] sm:$0xff]
        %v3369 = vld [vmem:[%s3357 + $0x58] sm:$0xff]
        %v3370 = vld [vmem:[%s3357 + $0x60] sm:$0xff]
        %v3371 = vld [vmem:[%s3357 + $0x68] sm:$0xff]
        %v3372 = vld [vmem:[%s3357 + $0x70] sm:$0xff]
        %v3373 = vld [vmem:[%s3357 + $0x78] sm:$0xff]
        %v3374 = vld [vmem:[%s3357 + $0x80] sm:$0xff]
        %v3375 = vld [vmem:[%s3357 + $0x88] sm:$0xff]
        %v3376 = vld [vmem:[%s3357 + $0x90] sm:$0xff]
        %v3377 = vld [vmem:[%s3357 + $0x98] sm:$0xff]
        %v3378 = vld [vmem:[%s3357 + $0xa0] sm:$0xff]
        %v3379 = vld [vmem:[%s3357 + $0xa8] sm:$0xff]
        %v3380 = vld [vmem:[%s3357 + $0xb0] sm:$0xff]
        %v3381 = vld [vmem:[%s3357 + $0xb8] sm:$0xff]
        %v3382 = vld [vmem:[%s3357 + $0xc0] sm:$0xff]
        %v3383 = vld [vmem:[%s3357 + $0xc8] sm:$0xff]
        %v3384 = vld [vmem:[%s3357 + $0xd0] sm:$0xff]
        %v3385 = vld [vmem:[%s3357 + $0xd8] sm:$0xff]
        %v3386 = vld [vmem:[%s3357 + $0xe0] sm:$0xff]
        %v3387 = vld [vmem:[%s3357 + $0xe8] sm:$0xff]
        %v3388 = vld [vmem:[%s3357 + $0xf0] sm:$0xff]
        %v3389 = vld [vmem:[%s3357 + $0xf8] sm:$0xff]
        %v3390 = vld [vmem:[%s3357 + $0x100] sm:$0xff]
        %v3391 = vld [vmem:[%s3357 + $0x108] sm:$0xff]
        %v3392 = vld [vmem:[%s3357 + $0x110] sm:$0xff]
        %v3393 = vld [vmem:[%s3357 + $0x118] sm:$0xff]
        %v3394 = vld [vmem:[%s3357 + $0x120] sm:$0xff]
        %v3395 = vld [vmem:[%s3357 + $0x128] sm:$0xff]
        %v3396 = vld [vmem:[%s3357 + $0x130] sm:$0xff]
        %v3397 = vld [vmem:[%s3357 + $0x138] sm:$0xff]
        %v3438 = vunpack.c.l.b16 %v3358
        %v3439 = vunpack.c.h.b16 %v3358
        %v3440 = vunpack.c.l.b16 %v3359
        %v3441 = vunpack.c.h.b16 %v3359
        %v3442 = vunpack.c.l.b16 %v3360
        %v3443 = vunpack.c.h.b16 %v3360
        %v3444 = vunpack.c.l.b16 %v3361
        %v3445 = vunpack.c.h.b16 %v3361
        %v3446 = vunpack.c.l.b16 %v3362
        %v3447 = vunpack.c.h.b16 %v3362
        %v3448 = vunpack.c.l.b16 %v3363
        %v3449 = vunpack.c.h.b16 %v3363
        %v3450 = vunpack.c.l.b16 %v3364
        %v3451 = vunpack.c.h.b16 %v3364
        %v3452 = vunpack.c.l.b16 %v3365
        %v3453 = vunpack.c.h.b16 %v3365
        %v3454 = vunpack.c.l.b16 %v3366
        %v3455 = vunpack.c.h.b16 %v3366
        %v3456 = vunpack.c.l.b16 %v3367
        %v3457 = vunpack.c.h.b16 %v3367
        %v3458 = vunpack.c.l.b16 %v3368
        %v3459 = vunpack.c.h.b16 %v3368
        %v3460 = vunpack.c.l.b16 %v3369
        %v3461 = vunpack.c.h.b16 %v3369
        %v3462 = vunpack.c.l.b16 %v3370
        %v3463 = vunpack.c.h.b16 %v3370
        %v3464 = vunpack.c.l.b16 %v3371
        %v3465 = vunpack.c.h.b16 %v3371
        %v3466 = vunpack.c.l.b16 %v3372
        %v3467 = vunpack.c.h.b16 %v3372
        %v3468 = vunpack.c.l.b16 %v3373
        %v3469 = vunpack.c.h.b16 %v3373
        %v3470 = vunpack.c.l.b16 %v3374
        %v3471 = vunpack.c.h.b16 %v3374
        %v3472 = vunpack.c.l.b16 %v3375
        %v3473 = vunpack.c.h.b16 %v3375
        %v3474 = vunpack.c.l.b16 %v3376
        %v3475 = vunpack.c.h.b16 %v3376
        %v3476 = vunpack.c.l.b16 %v3377
        %v3477 = vunpack.c.h.b16 %v3377
        %v3478 = vunpack.c.l.b16 %v3378
        %v3479 = vunpack.c.h.b16 %v3378
        %v3480 = vunpack.c.l.b16 %v3379
        %v3481 = vunpack.c.h.b16 %v3379
        %v3482 = vunpack.c.l.b16 %v3380
        %v3483 = vunpack.c.h.b16 %v3380
        %v3484 = vunpack.c.l.b16 %v3381
        %v3485 = vunpack.c.h.b16 %v3381
        %v3486 = vunpack.c.l.b16 %v3382
        %v3487 = vunpack.c.h.b16 %v3382
        %v3488 = vunpack.c.l.b16 %v3383
        %v3489 = vunpack.c.h.b16 %v3383
        %v3490 = vunpack.c.l.b16 %v3384
        %v3491 = vunpack.c.h.b16 %v3384
        %v3492 = vunpack.c.l.b16 %v3385
        %v3493 = vunpack.c.h.b16 %v3385
        %v3494 = vunpack.c.l.b16 %v3386
        %v3495 = vunpack.c.h.b16 %v3386
        %v3496 = vunpack.c.l.b16 %v3387
        %v3497 = vunpack.c.h.b16 %v3387
        %v3498 = vunpack.c.l.b16 %v3388
        %v3499 = vunpack.c.h.b16 %v3388
        %v3500 = vunpack.c.l.b16 %v3389
        %v3501 = vunpack.c.h.b16 %v3389
        %v3502 = vunpack.c.l.b16 %v3390
        %v3503 = vunpack.c.h.b16 %v3390
        %v3504 = vunpack.c.l.b16 %v3391
        %v3505 = vunpack.c.h.b16 %v3391
        %v3506 = vunpack.c.l.b16 %v3392
        %v3507 = vunpack.c.h.b16 %v3392
        %v3508 = vunpack.c.l.b16 %v3393
        %v3509 = vunpack.c.h.b16 %v3393
        %v3510 = vunpack.c.l.b16 %v3394
        %v3511 = vunpack.c.h.b16 %v3394
        %v3512 = vunpack.c.l.b16 %v3395
        %v3513 = vunpack.c.h.b16 %v3395
        %v3514 = vunpack.c.l.b16 %v3396
        %v3515 = vunpack.c.h.b16 %v3396
        %v3516 = vunpack.c.l.b16 %v3397
        %v3517 = vunpack.c.h.b16 %v3397
        %v3518 = vpack.c.b16 %v3440, %v3438
        %v3519 = vpack.c.b16 %v3441, %v3439
        %v3520 = vpack.c.b16 %v3444, %v3442
        %v3521 = vpack.c.b16 %v3445, %v3443
        %v3522 = vpack.c.b16 %v3448, %v3446
        %v3523 = vpack.c.b16 %v3449, %v3447
        %v3524 = vpack.c.b16 %v3452, %v3450
        %v3525 = vpack.c.b16 %v3453, %v3451
        %v3526 = vpack.c.b16 %v3456, %v3454
        %v3527 = vpack.c.b16 %v3457, %v3455
        %v3528 = vpack.c.b16 %v3460, %v3458
        %v3529 = vpack.c.b16 %v3461, %v3459
        %v3530 = vpack.c.b16 %v3464, %v3462
        %v3531 = vpack.c.b16 %v3465, %v3463
        %v3532 = vpack.c.b16 %v3468, %v3466
        %v3533 = vpack.c.b16 %v3469, %v3467
        %v3534 = vpack.c.b16 %v3472, %v3470
        %v3535 = vpack.c.b16 %v3473, %v3471
        %v3536 = vpack.c.b16 %v3476, %v3474
        %v3537 = vpack.c.b16 %v3477, %v3475
        %v3538 = vpack.c.b16 %v3480, %v3478
        %v3539 = vpack.c.b16 %v3481, %v3479
        %v3540 = vpack.c.b16 %v3484, %v3482
        %v3541 = vpack.c.b16 %v3485, %v3483
        %v3542 = vpack.c.b16 %v3488, %v3486
        %v3543 = vpack.c.b16 %v3489, %v3487
        %v3544 = vpack.c.b16 %v3492, %v3490
        %v3545 = vpack.c.b16 %v3493, %v3491
        %v3546 = vpack.c.b16 %v3496, %v3494
        %v3547 = vpack.c.b16 %v3497, %v3495
        %v3548 = vpack.c.b16 %v3500, %v3498
        %v3549 = vpack.c.b16 %v3501, %v3499
        %v3550 = vpack.c.b16 %v3504, %v3502
        %v3551 = vpack.c.b16 %v3505, %v3503
        %v3552 = vpack.c.b16 %v3508, %v3506
        %v3553 = vpack.c.b16 %v3509, %v3507
        %v3554 = vpack.c.b16 %v3512, %v3510
        %v3555 = vpack.c.b16 %v3513, %v3511
        %v3556 = vpack.c.b16 %v3516, %v3514
        %v3557 = vpack.c.b16 %v3517, %v3515
        %3598 = vmatprep.subr.bf16.mxu0 %v3533
        %3599 = vmatpush1.bf16.msra.mxu0 %v3532
        %3600 = vmatprep.subr.bf16.mxu0 %v3531
        %3601 = vmatpush1.bf16.msra.mxu0 %v3530
        %3602 = vmatprep.subr.bf16.mxu0 %v3529
        %3603 = vmatpush1.bf16.msra.mxu0 %v3528
        %3604 = vmatprep.subr.bf16.mxu0 %v3527
        %3605 = vmatpush1.bf16.msra.mxu0 %v3526
        %3606 = vmatprep.subr.bf16.mxu0 %v3525
        %3607 = vmatpush1.bf16.msra.mxu0 %v3524
        %3608 = vmatprep.subr.bf16.mxu0 %v3523
        %3609 = vmatpush1.bf16.msra.mxu0 %v3522
        %3610 = vmatprep.subr.bf16.mxu0 %v3521
        %3611 = vmatpush1.bf16.msra.mxu0 %v3520
        %3612 = vmatprep.subr.bf16.mxu0 %v3519
        %3613 = vmatpush1.bf16.msra.mxu0 %v3518
        %3614 = vmatprep.subr.bf16.mxu0 %v3549
        %3615 = vmatpush2.bf16.msra.mxu0 %v3548
        %3616 = vmatprep.subr.bf16.mxu0 %v3547
        %3617 = vmatpush2.bf16.msra.mxu0 %v3546
        %3618 = vmatprep.subr.bf16.mxu0 %v3545
        %3619 = vmatpush2.bf16.msra.mxu0 %v3544
        %3620 = vmatprep.subr.bf16.mxu0 %v3543
        %3621 = vmatpush2.bf16.msra.mxu0 %v3542
        %3622 = vmatprep.subr.bf16.mxu0 %v3541
        %3623 = vmatpush2.bf16.msra.mxu0 %v3540
        %3624 = vmatprep.subr.bf16.mxu0 %v3539
        %3625 = vmatpush2.bf16.msra.mxu0 %v3538
        %3626 = vmatprep.subr.bf16.mxu0 %v3537
        %3627 = vmatpush2.bf16.msra.mxu0 %v3536
        %3628 = vmatprep.subr.bf16.mxu0 %v3535
        %3629 = vmatpush2.bf16.msra.mxu0 %v3534
        %3630 = vmatprep.mubr.bf16.mxu0 %v2385
        %3631 = vmatmul.mubr.bf16.gmra.mxu0 %v2382
        %v3632 = vpop.f32.mrf.mxu0
        %v3633 = vadd.f32 0.0, %v3632
        %v3634 = vpop.f32.mrf.mxu0
        %v3635 = vadd.f32 0.0, %v3634
        %v3636 = vpop.f32.mrf.mxu0
        %v3637 = vadd.f32 0.0, %v3636
        %v3638 = vpop.f32.mrf.mxu0
        %v3639 = vadd.f32 0.0, %v3638
        %3640 = vdwg.mxu0
        %3641 = vmatprep.subr.bf16.mxu0 0
        %3642 = vmatpush1.bf16.msra.mxu0 0
        %3643 = vmatprep.subr.bf16.mxu0 0
        %3644 = vmatpush1.bf16.msra.mxu0 0
        %3645 = vmatprep.subr.bf16.mxu0 0
        %3646 = vmatpush1.bf16.msra.mxu0 0
        %3647 = vmatprep.subr.bf16.mxu0 0
        %3648 = vmatpush1.bf16.msra.mxu0 0
        %3649 = vmatprep.subr.bf16.mxu0 %v3557
        %3650 = vmatpush1.bf16.msra.mxu0 %v3556
        %3651 = vmatprep.subr.bf16.mxu0 %v3555
        %3652 = vmatpush1.bf16.msra.mxu0 %v3554
        %3653 = vmatprep.subr.bf16.mxu0 %v3553
        %3654 = vmatpush1.bf16.msra.mxu0 %v3552
        %3655 = vmatprep.subr.bf16.mxu0 %v3551
        %3656 = vmatpush1.bf16.msra.mxu0 %v3550
        %3657 = vmatprep.subr.bf16.mxu0 0
        %3658 = vmatpush2.bf16.msra.mxu0 0
        %3659 = vmatprep.subr.bf16.mxu0 0
        %3660 = vmatpush2.bf16.msra.mxu0 0
        %3661 = vmatprep.subr.bf16.mxu0 0
        %3662 = vmatpush2.bf16.msra.mxu0 0
        %3663 = vmatprep.subr.bf16.mxu0 0
        %3664 = vmatpush2.bf16.msra.mxu0 0
        %3665 = vmatprep.subr.bf16.mxu0 0
        %3666 = vmatpush2.bf16.msra.mxu0 0
        %3667 = vmatprep.subr.bf16.mxu0 0
        %3668 = vmatpush2.bf16.msra.mxu0 0
        %3669 = vmatprep.subr.bf16.mxu0 0
        %3670 = vmatpush2.bf16.msra.mxu0 0
        %3671 = vmatprep.subr.bf16.mxu0 0
        %3672 = vmatpush2.bf16.msra.mxu0 0
        %3673 = vmatprep.mubr.bf16.mxu0 0
        %3674 = vmatmul.mubr.bf16.gmra.mxu0 %v2592
        %v3675 = vpop.f32.mrf.mxu0
        %v3676 = vadd.f32 %v3633, %v3675
        %v3677 = vpop.f32.mrf.mxu0
        %v3678 = vadd.f32 %v3635, %v3677
        %v3679 = vpop.f32.mrf.mxu0
        %v3680 = vadd.f32 %v3637, %v3679
        %v3681 = vpop.f32.mrf.mxu0
        %v3682 = vadd.f32 %v3639, %v3681
        %3683 = vdwg.mxu0
        %v3684 = vadd.f32 %v3349, %v3676
        %v3685 = vadd.f32 %v3351, %v3678
        %v3686 = vadd.f32 %v3353, %v3680
        %v3687 = vadd.f32 %v3355, %v3682
        %v3688 = vadd.f32 %v3684, %v2689
        %v3689 = vadd.f32 %v3685, %v2693
        %v3690 = vadd.f32 %v3686, %v2689
        %v3691 = vadd.f32 %v3687, %v2693
        %v3692 = vmax.f32 %v3688, 0.0
        %v3693 = vmax.f32 %v3689, 0.0
        %v3694 = vmax.f32 %v3690, 0.0
        %v3695 = vmax.f32 %v3691, 0.0
        %v3696 = vmax.f32 %v2700, %v3692
        %v3697 = vmax.f32 %v2701, %v3693
        %v3698 = vmax.f32 %v2702, %v3694
        %v3699 = vmax.f32 %v2703, %v3695
        %3700 = vst [vmem:[#allocation3] sm:$0xff] %v3696
        %vm3701 = vcmask 261120
        %3702 = vst.msk [vmem:[#allocation3 + $0x8] sm:$0xff] %vm3701, %v3697
        %3703 = vst [vmem:[#allocation3 + $0x18] sm:$0xff] %v3698
        %3704 = vst.msk [vmem:[#allocation3 + $0x20] sm:$0xff] %vm3701, %v3699
        %vm3705 = vcmp.lt.s32.totalorder %v1558, 160
        %vm3706 = vmand %vm1559, %vm3705
        %3707 = vst.msk [vmem:[#allocation2] ss:$8 sm:$0x3] %vm3706, 0.0
        %3708 = vst.msk [vmem:[#allocation2] ss:$8 sm:$0x0] %vm3706, 0.0
        %s3709 = scalar_lea.vmem [#allocation2], 25
        %3710 = vst.msk [vmem:[%s3709] ss:$8 sm:$0x3] %vm3706, 0.0
        %3711 = vst.msk [vmem:[%s3709] ss:$8 sm:$0x0] %vm3706, 0.0
        %v3712 = vld [vmem:[#allocation3] ss:$8 sm:$0x3]
        %s3713 = scalar_lea.vmem [#allocation3], 1
        %v3714 = vld [vmem:[%s3713] ss:$8 sm:$0x3]
        %v3715 = vmax.f32 %v3712, %v3714
        %s3716 = scalar_lea.vmem [#allocation2], 1
        %3717 = vst.msk [vmem:[%s3716] ss:$8 sm:$0x3] %vm3706, %v3715
        %3718 = vst.msk [vmem:[%s3716] ss:$8 sm:$0x0] %vm3706, %v3715
        %s3719 = scalar_lea.vmem [#allocation3], 2
        %v3720 = vld [vmem:[%s3719] ss:$8 sm:$0x3]
        %s3721 = scalar_lea.vmem [#allocation3], 3
        %v3722 = vld [vmem:[%s3721] ss:$8 sm:$0x3]
        %v3723 = vmax.f32 %v3720, %v3722
        %s3724 = scalar_lea.vmem [#allocation2], 2
        %3725 = vst.msk [vmem:[%s3724] ss:$8 sm:$0x3] %vm3706, %v3723
        %3726 = vst.msk [vmem:[%s3724] ss:$8 sm:$0x0] %vm3706, %v3723
        %s3727 = scalar_lea.vmem [#allocation3], 4
        %v3728 = vld [vmem:[%s3727] ss:$8 sm:$0x3]
        %s3729 = scalar_lea.vmem [#allocation3], 5
        %v3730 = vld [vmem:[%s3729] ss:$8 sm:$0x3]
        %v3731 = vmax.f32 %v3728, %v3730
        %s3732 = scalar_lea.vmem [#allocation2], 3
        %3733 = vst.msk [vmem:[%s3732] ss:$8 sm:$0x3] %vm3706, %v3731
        %3734 = vst.msk [vmem:[%s3732] ss:$8 sm:$0x0] %vm3706, %v3731
        %s3735 = scalar_lea.vmem [#allocation3], 6
        %v3736 = vld [vmem:[%s3735] ss:$8 sm:$0x3]
        %s3737 = scalar_lea.vmem [#allocation3], 7
        %v3738 = vld [vmem:[%s3737] ss:$8 sm:$0x3]
        %v3739 = vmax.f32 %v3736, %v3738
        %s3740 = scalar_lea.vmem [#allocation2], 4
        %3741 = vst.msk [vmem:[%s3740] ss:$8 sm:$0x3] %vm3706, %v3739
        %3742 = vst.msk [vmem:[%s3740] ss:$8 sm:$0x0] %vm3706, %v3739
        %s3743 = scalar_lea.vmem [#allocation3], 24
        %v3744 = vld [vmem:[%s3743] ss:$8 sm:$0x3]
        %s3745 = scalar_lea.vmem [#allocation3], 25
        %v3746 = vld [vmem:[%s3745] ss:$8 sm:$0x3]
        %v3747 = vmax.f32 %v3744, %v3746
        %s3748 = scalar_lea.vmem [#allocation2], 5
        %3749 = vst.msk [vmem:[%s3748] ss:$8 sm:$0x3] %vm3706, %v3747
        %3750 = vst.msk [vmem:[%s3748] ss:$8 sm:$0x0] %vm3706, %v3747
        %s3751 = scalar_lea.vmem [#allocation3], 26
        %v3752 = vld [vmem:[%s3751] ss:$8 sm:$0x3]
        %s3753 = scalar_lea.vmem [#allocation3], 27
        %v3754 = vld [vmem:[%s3753] ss:$8 sm:$0x3]
        %v3755 = vmax.f32 %v3752, %v3754
        %s3756 = scalar_lea.vmem [#allocation2], 6
        %3757 = vst.msk [vmem:[%s3756] ss:$8 sm:$0x3] %vm3706, %v3755
        %3758 = vst.msk [vmem:[%s3756] ss:$8 sm:$0x0] %vm3706, %v3755
        %s3759 = scalar_lea.vmem [#allocation3], 28
        %v3760 = vld [vmem:[%s3759] ss:$8 sm:$0x3]
        %s3761 = scalar_lea.vmem [#allocation3], 29
        %v3762 = vld [vmem:[%s3761] ss:$8 sm:$0x3]
        %v3763 = vmax.f32 %v3760, %v3762
        %s3764 = scalar_lea.vmem [#allocation2], 7
        %3765 = vst.msk [vmem:[%s3764] ss:$8 sm:$0x3] %vm3706, %v3763
        %3766 = vst.msk [vmem:[%s3764] ss:$8 sm:$0x0] %vm3706, %v3763
        %s3767 = scalar_lea.vmem [#allocation3], 30
        %v3768 = vld [vmem:[%s3767] ss:$8 sm:$0x3]
        %s3769 = scalar_lea.vmem [#allocation3], 31
        %v3770 = vld [vmem:[%s3769] ss:$8 sm:$0x3]
        %v3771 = vmax.f32 %v3768, %v3770
        %s3772 = scalar_lea.vmem [#allocation2], 24
        %3773 = vst.msk [vmem:[%s3772] ss:$8 sm:$0x3] %vm3706, %v3771
        %3774 = vst.msk [vmem:[%s3772] ss:$8 sm:$0x0] %vm3706, %v3771
        %v3775 = vld [vmem:[#allocation2] sm:$0xff]
        %v3776 = vld [vmem:[#allocation2 + $0x8] sm:$0xff]
        %v3777 = vpack.c.bf16 %v3775, %v3775
        %v3778 = vpack.c.bf16 %v3776, %v3776
        %v3779 = vld [vmem:[%s13] sm:$0xff]
        %v3780 = vld [vmem:[%s13 + $0x8] sm:$0xf]
        %v3781 = vld [vmem:[%s13 + $0xc] sm:$0xff]
        %v3782 = vld [vmem:[%s13 + $0x14] sm:$0xf]
        %v3783 = vld [vmem:[%s13 + $0x18] sm:$0xff]
        %v3784 = vld [vmem:[%s13 + $0x20] sm:$0xf]
        %v3785 = vld [vmem:[%s13 + $0x24] sm:$0xff]
        %v3786 = vld [vmem:[%s13 + $0x2c] sm:$0xf]
        %v3787 = vld [vmem:[%s13 + $0x30] sm:$0xff]
        %v3788 = vld [vmem:[%s13 + $0x38] sm:$0xf]
        %v3789 = vld [vmem:[%s13 + $0x3c] sm:$0xff]
        %v3790 = vld [vmem:[%s13 + $0x44] sm:$0xf]
        %v3791 = vld [vmem:[%s13 + $0x48] sm:$0xff]
        %v3792 = vld [vmem:[%s13 + $0x50] sm:$0xf]
        %v3793 = vld [vmem:[%s13 + $0x54] sm:$0xff]
        %v3794 = vld [vmem:[%s13 + $0x5c] sm:$0xf]
        %v3795 = vld [vmem:[%s13 + $0x60] sm:$0xff]
        %v3796 = vld [vmem:[%s13 + $0x68] sm:$0xf]
        %v3797 = vld [vmem:[%s13 + $0x6c] sm:$0xff]
        %v3798 = vld [vmem:[%s13 + $0x74] sm:$0xf]
        %v3799 = vld [vmem:[%s13 + $0x78] sm:$0xff]
        %v3800 = vld [vmem:[%s13 + $0x80] sm:$0xf]
        %v3801 = vld [vmem:[%s13 + $0x84] sm:$0xff]
        %v3802 = vld [vmem:[%s13 + $0x8c] sm:$0xf]
        %v3803 = vld [vmem:[%s13 + $0x90] sm:$0xff]
        %v3804 = vld [vmem:[%s13 + $0x98] sm:$0xf]
        %v3805 = vld [vmem:[%s13 + $0x9c] sm:$0xff]
        %v3806 = vld [vmem:[%s13 + $0xa4] sm:$0xf]
        %v3807 = vld [vmem:[%s13 + $0xa8] sm:$0xff]
        %v3808 = vld [vmem:[%s13 + $0xb0] sm:$0xf]
        %v3809 = vld [vmem:[%s13 + $0xb4] sm:$0xff]
        %v3810 = vld [vmem:[%s13 + $0xbc] sm:$0xf]
        %v3811 = vld [vmem:[%s13 + $0xc0] sm:$0xff]
        %v3812 = vld [vmem:[%s13 + $0xc8] sm:$0xf]
        %v3813 = vld [vmem:[%s13 + $0xcc] sm:$0xff]
        %v3814 = vld [vmem:[%s13 + $0xd4] sm:$0xf]
        %v3815 = vld [vmem:[%s13 + $0xd8] sm:$0xff]
        %v3816 = vld [vmem:[%s13 + $0xe0] sm:$0xf]
        %v3817 = vld [vmem:[%s13 + $0xe4] sm:$0xff]
        %v3818 = vld [vmem:[%s13 + $0xec] sm:$0xf]
        %v3819 = vld [vmem:[#allocation2] sm:$0xfe]
        %v3820 = vld [vmem:[#allocation2 + $0x8] sm:$0xfe]
        %v3821 = vld [vmem:[#allocation2 + $0x18] sm:$0x1]
        %v3822 = vld [vmem:[#allocation2 + $0x20] sm:$0x1]
        %v3823 = vpack.c.bf16 %v3821, %v3819
        %v3824 = vpack.c.bf16 %v3822, %v3820
        %s3825 = scalar_lea.vmem %s13, 240
        %v3826 = vld [vmem:[%s3825] sm:$0xff]
        %v3827 = vld [vmem:[%s3825 + $0x8] sm:$0xf]
        %v3828 = vld [vmem:[%s3825 + $0xc] sm:$0xff]
        %v3829 = vld [vmem:[%s3825 + $0x14] sm:$0xf]
        %v3830 = vld [vmem:[%s3825 + $0x18] sm:$0xff]
        %v3831 = vld [vmem:[%s3825 + $0x20] sm:$0xf]
        %v3832 = vld [vmem:[%s3825 + $0x24] sm:$0xff]
        %v3833 = vld [vmem:[%s3825 + $0x2c] sm:$0xf]
        %v3834 = vld [vmem:[%s3825 + $0x30] sm:$0xff]
        %v3835 = vld [vmem:[%s3825 + $0x38] sm:$0xf]
        %v3836 = vld [vmem:[%s3825 + $0x3c] sm:$0xff]
        %v3837 = vld [vmem:[%s3825 + $0x44] sm:$0xf]
        %v3838 = vld [vmem:[%s3825 + $0x48] sm:$0xff]
        %v3839 = vld [vmem:[%s3825 + $0x50] sm:$0xf]
        %v3840 = vld [vmem:[%s3825 + $0x54] sm:$0xff]
        %v3841 = vld [vmem:[%s3825 + $0x5c] sm:$0xf]
        %v3842 = vld [vmem:[%s3825 + $0x60] sm:$0xff]
        %v3843 = vld [vmem:[%s3825 + $0x68] sm:$0xf]
        %v3844 = vld [vmem:[%s3825 + $0x6c] sm:$0xff]
        %v3845 = vld [vmem:[%s3825 + $0x74] sm:$0xf]
        %v3846 = vld [vmem:[%s3825 + $0x78] sm:$0xff]
        %v3847 = vld [vmem:[%s3825 + $0x80] sm:$0xf]
        %v3848 = vld [vmem:[%s3825 + $0x84] sm:$0xff]
        %v3849 = vld [vmem:[%s3825 + $0x8c] sm:$0xf]
        %v3850 = vld [vmem:[%s3825 + $0x90] sm:$0xff]
        %v3851 = vld [vmem:[%s3825 + $0x98] sm:$0xf]
        %v3852 = vld [vmem:[%s3825 + $0x9c] sm:$0xff]
        %v3853 = vld [vmem:[%s3825 + $0xa4] sm:$0xf]
        %v3854 = vld [vmem:[%s3825 + $0xa8] sm:$0xff]
        %v3855 = vld [vmem:[%s3825 + $0xb0] sm:$0xf]
        %v3856 = vld [vmem:[%s3825 + $0xb4] sm:$0xff]
        %v3857 = vld [vmem:[%s3825 + $0xbc] sm:$0xf]
        %v3858 = vld [vmem:[%s3825 + $0xc0] sm:$0xff]
        %v3859 = vld [vmem:[%s3825 + $0xc8] sm:$0xf]
        %v3860 = vld [vmem:[%s3825 + $0xcc] sm:$0xff]
        %v3861 = vld [vmem:[%s3825 + $0xd4] sm:$0xf]
        %v3862 = vld [vmem:[%s3825 + $0xd8] sm:$0xff]
        %v3863 = vld [vmem:[%s3825 + $0xe0] sm:$0xf]
        %v3864 = vld [vmem:[%s3825 + $0xe4] sm:$0xff]
        %v3865 = vld [vmem:[%s3825 + $0xec] sm:$0xf]
        %v3867 = vshrl.u32 %v3823, 16
        %v3869 = vshll.u32 %v3823, 16
        %v3871 = vrot.slane %v3869, 1
        %v3872 = vor.u32 %v3867, %v3871
        %v3874 = vshrl.u32 %v3824, 16
        %v3876 = vshll.u32 %v3824, 16
        %v3878 = vrot.slane %v3876, 1
        %v3879 = vor.u32 %v3874, %v3878
        %v3921 = vunpack.c.l.b16 %v3826
        %v3922 = vunpack.c.h.b16 %v3826
        %v3923 = vunpack.c.l.b16 %v3827
        %v3924 = vunpack.c.l.b16 %v3828
        %v3925 = vunpack.c.h.b16 %v3828
        %v3926 = vunpack.c.l.b16 %v3829
        %v3927 = vunpack.c.l.b16 %v3830
        %v3928 = vunpack.c.h.b16 %v3830
        %v3929 = vunpack.c.l.b16 %v3831
        %v3930 = vunpack.c.l.b16 %v3832
        %v3931 = vunpack.c.h.b16 %v3832
        %v3932 = vunpack.c.l.b16 %v3833
        %v3933 = vunpack.c.l.b16 %v3834
        %v3934 = vunpack.c.h.b16 %v3834
        %v3935 = vunpack.c.l.b16 %v3835
        %v3936 = vunpack.c.l.b16 %v3836
        %v3937 = vunpack.c.h.b16 %v3836
        %v3938 = vunpack.c.l.b16 %v3837
        %v3939 = vunpack.c.l.b16 %v3838
        %v3940 = vunpack.c.h.b16 %v3838
        %v3941 = vunpack.c.l.b16 %v3839
        %v3942 = vunpack.c.l.b16 %v3840
        %v3943 = vunpack.c.h.b16 %v3840
        %v3944 = vunpack.c.l.b16 %v3841
        %v3945 = vunpack.c.l.b16 %v3842
        %v3946 = vunpack.c.h.b16 %v3842
        %v3947 = vunpack.c.l.b16 %v3843
        %v3948 = vunpack.c.l.b16 %v3844
        %v3949 = vunpack.c.h.b16 %v3844
        %v3950 = vunpack.c.l.b16 %v3845
        %v3951 = vunpack.c.l.b16 %v3846
        %v3952 = vunpack.c.h.b16 %v3846
        %v3953 = vunpack.c.l.b16 %v3847
        %v3954 = vunpack.c.l.b16 %v3848
        %v3955 = vunpack.c.h.b16 %v3848
        %v3956 = vunpack.c.l.b16 %v3849
        %v3957 = vunpack.c.l.b16 %v3850
        %v3958 = vunpack.c.h.b16 %v3850
        %v3959 = vunpack.c.l.b16 %v3851
        %v3960 = vunpack.c.l.b16 %v3852
        %v3961 = vunpack.c.h.b16 %v3852
        %v3962 = vunpack.c.l.b16 %v3853
        %v3963 = vunpack.c.l.b16 %v3854
        %v3964 = vunpack.c.h.b16 %v3854
        %v3965 = vunpack.c.l.b16 %v3855
        %v3966 = vunpack.c.l.b16 %v3856
        %v3967 = vunpack.c.h.b16 %v3856
        %v3968 = vunpack.c.l.b16 %v3857
        %v3969 = vunpack.c.l.b16 %v3858
        %v3970 = vunpack.c.h.b16 %v3858
        %v3971 = vunpack.c.l.b16 %v3859
        %v3972 = vunpack.c.l.b16 %v3860
        %v3973 = vunpack.c.h.b16 %v3860
        %v3974 = vunpack.c.l.b16 %v3861
        %v3975 = vunpack.c.l.b16 %v3862
        %v3976 = vunpack.c.h.b16 %v3862
        %v3977 = vunpack.c.l.b16 %v3863
        %v3978 = vunpack.c.l.b16 %v3864
        %v3979 = vunpack.c.h.b16 %v3864
        %v3980 = vunpack.c.l.b16 %v3865
        %v3981 = vpack.c.b16 %v3924, %v3921
        %v3982 = vpack.c.b16 %v3925, %v3922
        %v3983 = vpack.c.b16 %v3926, %v3923
        %v3984 = vpack.c.b16 %v3930, %v3927
        %v3985 = vpack.c.b16 %v3931, %v3928
        %v3986 = vpack.c.b16 %v3932, %v3929
        %v3987 = vpack.c.b16 %v3936, %v3933
        %v3988 = vpack.c.b16 %v3937, %v3934
        %v3989 = vpack.c.b16 %v3938, %v3935
        %v3990 = vpack.c.b16 %v3942, %v3939
        %v3991 = vpack.c.b16 %v3943, %v3940
        %v3992 = vpack.c.b16 %v3944, %v3941
        %v3993 = vpack.c.b16 %v3948, %v3945
        %v3994 = vpack.c.b16 %v3949, %v3946
        %v3995 = vpack.c.b16 %v3950, %v3947
        %v3996 = vpack.c.b16 %v3954, %v3951
        %v3997 = vpack.c.b16 %v3955, %v3952
        %v3998 = vpack.c.b16 %v3956, %v3953
        %v3999 = vpack.c.b16 %v3960, %v3957
        %v4000 = vpack.c.b16 %v3961, %v3958
        %v4001 = vpack.c.b16 %v3962, %v3959
        %v4002 = vpack.c.b16 %v3966, %v3963
        %v4003 = vpack.c.b16 %v3967, %v3964
        %v4004 = vpack.c.b16 %v3968, %v3965
        %v4005 = vpack.c.b16 %v3972, %v3969
        %v4006 = vpack.c.b16 %v3973, %v3970
        %v4007 = vpack.c.b16 %v3974, %v3971
        %v4008 = vpack.c.b16 %v3978, %v3975
        %v4009 = vpack.c.b16 %v3979, %v3976
        %v4010 = vpack.c.b16 %v3980, %v3977
        %v4042 = vsel %vm3701, %v3879, 0
        %4044 = vmatprep.subr.bf16.mxu0 %v4003
        %4045 = vmatpush1.bf16.msra.mxu0 %v4002
        %4046 = vmatprep.subr.bf16.mxu0 %v4000
        %4047 = vmatpush1.bf16.msra.mxu0 %v3999
        %4048 = vmatprep.subr.bf16.mxu0 %v3997
        %4049 = vmatpush1.bf16.msra.mxu0 %v3996
        %4050 = vmatprep.subr.bf16.mxu0 %v3994
        %4051 = vmatpush1.bf16.msra.mxu0 %v3993
        %4052 = vmatprep.subr.bf16.mxu0 %v3991
        %4053 = vmatpush1.bf16.msra.mxu0 %v3990
        %4054 = vmatprep.subr.bf16.mxu0 %v3988
        %4055 = vmatpush1.bf16.msra.mxu0 %v3987
        %4056 = vmatprep.subr.bf16.mxu0 %v3985
        %4057 = vmatpush1.bf16.msra.mxu0 %v3984
        %4058 = vmatprep.subr.bf16.mxu0 %v3982
        %4059 = vmatpush1.bf16.msra.mxu0 %v3981
        %4060 = vmatprep.subr.bf16.mxu0 0
        %4061 = vmatpush2.bf16.msra.mxu0 0
        %4062 = vmatprep.subr.bf16.mxu0 0
        %4063 = vmatpush2.bf16.msra.mxu0 0
        %4064 = vmatprep.subr.bf16.mxu0 0
        %4065 = vmatpush2.bf16.msra.mxu0 0
        %4066 = vmatprep.subr.bf16.mxu0 0
        %4067 = vmatpush2.bf16.msra.mxu0 0
        %4068 = vmatprep.subr.bf16.mxu0 0
        %4069 = vmatpush2.bf16.msra.mxu0 0
        %4070 = vmatprep.subr.bf16.mxu0 0
        %4071 = vmatpush2.bf16.msra.mxu0 0
        %4072 = vmatprep.subr.bf16.mxu0 %v4009
        %4073 = vmatpush2.bf16.msra.mxu0 %v4008
        %4074 = vmatprep.subr.bf16.mxu0 %v4006
        %4075 = vmatpush2.bf16.msra.mxu0 %v4005
        %4076 = vmatprep.mubr.bf16.mxu0 %v4042
        %4077 = vmatmul.mubr.bf16.gmra.mxu0 %v3872
        %v4078 = vpop.f32.mrf.mxu0
        %v4079 = vadd.f32 0.0, %v4078
        %v4080 = vpop.f32.mrf.mxu0
        %v4081 = vadd.f32 0.0, %v4080
        %v4082 = vpop.f32.mrf.mxu0
        %v4083 = vpop.f32.mrf.mxu0
        %4084 = vdwg.mxu0
        %4085 = vmatprep.subr.bf16.mxu0 0
        %4086 = vmatpush1.bf16.msra.mxu0 %v4004
        %4087 = vmatprep.subr.bf16.mxu0 0
        %4088 = vmatpush1.bf16.msra.mxu0 %v4001
        %4089 = vmatprep.subr.bf16.mxu0 0
        %4090 = vmatpush1.bf16.msra.mxu0 %v3998
        %4091 = vmatprep.subr.bf16.mxu0 0
        %4092 = vmatpush1.bf16.msra.mxu0 %v3995
        %4093 = vmatprep.subr.bf16.mxu0 0
        %4094 = vmatpush1.bf16.msra.mxu0 %v3992
        %4095 = vmatprep.subr.bf16.mxu0 0
        %4096 = vmatpush1.bf16.msra.mxu0 %v3989
        %4097 = vmatprep.subr.bf16.mxu0 0
        %4098 = vmatpush1.bf16.msra.mxu0 %v3986
        %4099 = vmatprep.subr.bf16.mxu0 0
        %4100 = vmatpush1.bf16.msra.mxu0 %v3983
        %4101 = vmatprep.subr.bf16.mxu0 0
        %4102 = vmatpush2.bf16.msra.mxu0 0
        %4103 = vmatprep.subr.bf16.mxu0 0
        %4104 = vmatpush2.bf16.msra.mxu0 0
        %4105 = vmatprep.subr.bf16.mxu0 0
        %4106 = vmatpush2.bf16.msra.mxu0 0
        %4107 = vmatprep.subr.bf16.mxu0 0
        %4108 = vmatpush2.bf16.msra.mxu0 0
        %4109 = vmatprep.subr.bf16.mxu0 0
        %4110 = vmatpush2.bf16.msra.mxu0 0
        %4111 = vmatprep.subr.bf16.mxu0 0
        %4112 = vmatpush2.bf16.msra.mxu0 0
        %4113 = vmatprep.subr.bf16.mxu0 0
        %4114 = vmatpush2.bf16.msra.mxu0 %v4010
        %4115 = vmatprep.subr.bf16.mxu0 0
        %4116 = vmatpush2.bf16.msra.mxu0 %v4007
        %4117 = vmatprep.mubr.bf16.mxu0 %v4042
        %4118 = vmatmul.mubr.bf16.gmra.mxu0 %v3872
        %v4119 = vpop.f32.mrf.mxu0
        %v4120 = vadd.f32 0.0, %v4119
        %v4121 = vpop.f32.mrf.mxu0
        %v4122 = vpop.f32.mrf.mxu0
        %v4123 = vpop.f32.mrf.mxu0
        %4124 = vdwg.mxu0
        %v4165 = vunpack.c.l.b16 %v3779
        %v4166 = vunpack.c.h.b16 %v3779
        %v4167 = vunpack.c.l.b16 %v3780
        %v4168 = vunpack.c.l.b16 %v3781
        %v4169 = vunpack.c.h.b16 %v3781
        %v4170 = vunpack.c.l.b16 %v3782
        %v4171 = vunpack.c.l.b16 %v3783
        %v4172 = vunpack.c.h.b16 %v3783
        %v4173 = vunpack.c.l.b16 %v3784
        %v4174 = vunpack.c.l.b16 %v3785
        %v4175 = vunpack.c.h.b16 %v3785
        %v4176 = vunpack.c.l.b16 %v3786
        %v4177 = vunpack.c.l.b16 %v3787
        %v4178 = vunpack.c.h.b16 %v3787
        %v4179 = vunpack.c.l.b16 %v3788
        %v4180 = vunpack.c.l.b16 %v3789
        %v4181 = vunpack.c.h.b16 %v3789
        %v4182 = vunpack.c.l.b16 %v3790
        %v4183 = vunpack.c.l.b16 %v3791
        %v4184 = vunpack.c.h.b16 %v3791
        %v4185 = vunpack.c.l.b16 %v3792
        %v4186 = vunpack.c.l.b16 %v3793
        %v4187 = vunpack.c.h.b16 %v3793
        %v4188 = vunpack.c.l.b16 %v3794
        %v4189 = vunpack.c.l.b16 %v3795
        %v4190 = vunpack.c.h.b16 %v3795
        %v4191 = vunpack.c.l.b16 %v3796
        %v4192 = vunpack.c.l.b16 %v3797
        %v4193 = vunpack.c.h.b16 %v3797
        %v4194 = vunpack.c.l.b16 %v3798
        %v4195 = vunpack.c.l.b16 %v3799
        %v4196 = vunpack.c.h.b16 %v3799
        %v4197 = vunpack.c.l.b16 %v3800
        %v4198 = vunpack.c.l.b16 %v3801
        %v4199 = vunpack.c.h.b16 %v3801
        %v4200 = vunpack.c.l.b16 %v3802
        %v4201 = vunpack.c.l.b16 %v3803
        %v4202 = vunpack.c.h.b16 %v3803
        %v4203 = vunpack.c.l.b16 %v3804
        %v4204 = vunpack.c.l.b16 %v3805
        %v4205 = vunpack.c.h.b16 %v3805
        %v4206 = vunpack.c.l.b16 %v3806
        %v4207 = vunpack.c.l.b16 %v3807
        %v4208 = vunpack.c.h.b16 %v3807
        %v4209 = vunpack.c.l.b16 %v3808
        %v4210 = vunpack.c.l.b16 %v3809
        %v4211 = vunpack.c.h.b16 %v3809
        %v4212 = vunpack.c.l.b16 %v3810
        %v4213 = vunpack.c.l.b16 %v3811
        %v4214 = vunpack.c.h.b16 %v3811
        %v4215 = vunpack.c.l.b16 %v3812
        %v4216 = vunpack.c.l.b16 %v3813
        %v4217 = vunpack.c.h.b16 %v3813
        %v4218 = vunpack.c.l.b16 %v3814
        %v4219 = vunpack.c.l.b16 %v3815
        %v4220 = vunpack.c.h.b16 %v3815
        %v4221 = vunpack.c.l.b16 %v3816
        %v4222 = vunpack.c.l.b16 %v3817
        %v4223 = vunpack.c.h.b16 %v3817
        %v4224 = vunpack.c.l.b16 %v3818
        %v4225 = vpack.c.b16 %v4168, %v4165
        %v4226 = vpack.c.b16 %v4169, %v4166
        %v4227 = vpack.c.b16 %v4170, %v4167
        %v4228 = vpack.c.b16 %v4174, %v4171
        %v4229 = vpack.c.b16 %v4175, %v4172
        %v4230 = vpack.c.b16 %v4176, %v4173
        %v4231 = vpack.c.b16 %v4180, %v4177
        %v4232 = vpack.c.b16 %v4181, %v4178
        %v4233 = vpack.c.b16 %v4182, %v4179
        %v4234 = vpack.c.b16 %v4186, %v4183
        %v4235 = vpack.c.b16 %v4187, %v4184
        %v4236 = vpack.c.b16 %v4188, %v4185
        %v4237 = vpack.c.b16 %v4192, %v4189
        %v4238 = vpack.c.b16 %v4193, %v4190
        %v4239 = vpack.c.b16 %v4194, %v4191
        %v4240 = vpack.c.b16 %v4198, %v4195
        %v4241 = vpack.c.b16 %v4199, %v4196
        %v4242 = vpack.c.b16 %v4200, %v4197
        %v4243 = vpack.c.b16 %v4204, %v4201
        %v4244 = vpack.c.b16 %v4205, %v4202
        %v4245 = vpack.c.b16 %v4206, %v4203
        %v4246 = vpack.c.b16 %v4210, %v4207
        %v4247 = vpack.c.b16 %v4211, %v4208
        %v4248 = vpack.c.b16 %v4212, %v4209
        %v4249 = vpack.c.b16 %v4216, %v4213
        %v4250 = vpack.c.b16 %v4217, %v4214
        %v4251 = vpack.c.b16 %v4218, %v4215
        %v4252 = vpack.c.b16 %v4222, %v4219
        %v4253 = vpack.c.b16 %v4223, %v4220
        %v4254 = vpack.c.b16 %v4224, %v4221
        %v4286 = vsel %vm3701, %v3778, 0
        %4288 = vmatprep.subr.bf16.mxu0 %v4247
        %4289 = vmatpush1.bf16.msra.mxu0 %v4246
        %4290 = vmatprep.subr.bf16.mxu0 %v4244
        %4291 = vmatpush1.bf16.msra.mxu0 %v4243
        %4292 = vmatprep.subr.bf16.mxu0 %v4241
        %4293 = vmatpush1.bf16.msra.mxu0 %v4240
        %4294 = vmatprep.subr.bf16.mxu0 %v4238
        %4295 = vmatpush1.bf16.msra.mxu0 %v4237
        %4296 = vmatprep.subr.bf16.mxu0 %v4235
        %4297 = vmatpush1.bf16.msra.mxu0 %v4234
        %4298 = vmatprep.subr.bf16.mxu0 %v4232
        %4299 = vmatpush1.bf16.msra.mxu0 %v4231
        %4300 = vmatprep.subr.bf16.mxu0 %v4229
        %4301 = vmatpush1.bf16.msra.mxu0 %v4228
        %4302 = vmatprep.subr.bf16.mxu0 %v4226
        %4303 = vmatpush1.bf16.msra.mxu0 %v4225
        %4304 = vmatprep.subr.bf16.mxu0 0
        %4305 = vmatpush2.bf16.msra.mxu0 0
        %4306 = vmatprep.subr.bf16.mxu0 0
        %4307 = vmatpush2.bf16.msra.mxu0 0
        %4308 = vmatprep.subr.bf16.mxu0 0
        %4309 = vmatpush2.bf16.msra.mxu0 0
        %4310 = vmatprep.subr.bf16.mxu0 0
        %4311 = vmatpush2.bf16.msra.mxu0 0
        %4312 = vmatprep.subr.bf16.mxu0 0
        %4313 = vmatpush2.bf16.msra.mxu0 0
        %4314 = vmatprep.subr.bf16.mxu0 0
        %4315 = vmatpush2.bf16.msra.mxu0 0
        %4316 = vmatprep.subr.bf16.mxu0 %v4253
        %4317 = vmatpush2.bf16.msra.mxu0 %v4252
        %4318 = vmatprep.subr.bf16.mxu0 %v4250
        %4319 = vmatpush2.bf16.msra.mxu0 %v4249
        %4320 = vmatprep.mubr.bf16.mxu0 %v4286
        %4321 = vmatmul.mubr.bf16.gmra.mxu0 %v3777
        %v4322 = vpop.f32.mrf.mxu0
        %v4323 = vadd.f32 %v4079, %v4322
        %v4324 = vpop.f32.mrf.mxu0
        %v4325 = vadd.f32 %v4081, %v4324
        %v4326 = vpop.f32.mrf.mxu0
        %v4327 = vpop.f32.mrf.mxu0
        %4328 = vdwg.mxu0
        %4329 = vmatprep.subr.bf16.mxu0 0
        %4330 = vmatpush1.bf16.msra.mxu0 %v4248
        %4331 = vmatprep.subr.bf16.mxu0 0
        %4332 = vmatpush1.bf16.msra.mxu0 %v4245
        %4333 = vmatprep.subr.bf16.mxu0 0
        %4334 = vmatpush1.bf16.msra.mxu0 %v4242
        %4335 = vmatprep.subr.bf16.mxu0 0
        %4336 = vmatpush1.bf16.msra.mxu0 %v4239
        %4337 = vmatprep.subr.bf16.mxu0 0
        %4338 = vmatpush1.bf16.msra.mxu0 %v4236
        %4339 = vmatprep.subr.bf16.mxu0 0
        %4340 = vmatpush1.bf16.msra.mxu0 %v4233
        %4341 = vmatprep.subr.bf16.mxu0 0
        %4342 = vmatpush1.bf16.msra.mxu0 %v4230
        %4343 = vmatprep.subr.bf16.mxu0 0
        %4344 = vmatpush1.bf16.msra.mxu0 %v4227
        %4345 = vmatprep.subr.bf16.mxu0 0
        %4346 = vmatpush2.bf16.msra.mxu0 0
        %4347 = vmatprep.subr.bf16.mxu0 0
        %4348 = vmatpush2.bf16.msra.mxu0 0
        %4349 = vmatprep.subr.bf16.mxu0 0
        %4350 = vmatpush2.bf16.msra.mxu0 0
        %4351 = vmatprep.subr.bf16.mxu0 0
        %4352 = vmatpush2.bf16.msra.mxu0 0
        %4353 = vmatprep.subr.bf16.mxu0 0
        %4354 = vmatpush2.bf16.msra.mxu0 0
        %4355 = vmatprep.subr.bf16.mxu0 0
        %4356 = vmatpush2.bf16.msra.mxu0 0
        %4357 = vmatprep.subr.bf16.mxu0 0
        %4358 = vmatpush2.bf16.msra.mxu0 %v4254
        %4359 = vmatprep.subr.bf16.mxu0 0
        %4360 = vmatpush2.bf16.msra.mxu0 %v4251
        %4361 = vmatprep.mubr.bf16.mxu0 %v4286
        %4362 = vmatmul.mubr.bf16.gmra.mxu0 %v3777
        %v4363 = vpop.f32.mrf.mxu0
        %v4364 = vadd.f32 %v4120, %v4363
        %v4365 = vpop.f32.mrf.mxu0
        %v4366 = vpop.f32.mrf.mxu0
        %v4367 = vpop.f32.mrf.mxu0
        %4368 = vdwg.mxu0
        %v4369 = vld [vmem:[#allocation2] sm:$0xfc]
        %v4370 = vld [vmem:[#allocation2 + $0x8] sm:$0xfc]
        %v4371 = vld [vmem:[#allocation2 + $0x18] sm:$0x3]
        %v4372 = vld [vmem:[#allocation2 + $0x20] sm:$0x3]
        %v4373 = vpack.c.bf16 %v4371, %v4369
        %v4374 = vpack.c.bf16 %v4372, %v4370
        %s4375 = scalar_lea.vmem %s13, 480
        %v4376 = vld [vmem:[%s4375] sm:$0xff]
        %v4377 = vld [vmem:[%s4375 + $0x8] sm:$0xf]
        %v4378 = vld [vmem:[%s4375 + $0xc] sm:$0xff]
        %v4379 = vld [vmem:[%s4375 + $0x14] sm:$0xf]
        %v4380 = vld [vmem:[%s4375 + $0x18] sm:$0xff]
        %v4381 = vld [vmem:[%s4375 + $0x20] sm:$0xf]
        %v4382 = vld [vmem:[%s4375 + $0x24] sm:$0xff]
        %v4383 = vld [vmem:[%s4375 + $0x2c] sm:$0xf]
        %v4384 = vld [vmem:[%s4375 + $0x30] sm:$0xff]
        %v4385 = vld [vmem:[%s4375 + $0x38] sm:$0xf]
        %v4386 = vld [vmem:[%s4375 + $0x3c] sm:$0xff]
        %v4387 = vld [vmem:[%s4375 + $0x44] sm:$0xf]
        %v4388 = vld [vmem:[%s4375 + $0x48] sm:$0xff]
        %v4389 = vld [vmem:[%s4375 + $0x50] sm:$0xf]
        %v4390 = vld [vmem:[%s4375 + $0x54] sm:$0xff]
        %v4391 = vld [vmem:[%s4375 + $0x5c] sm:$0xf]
        %v4392 = vld [vmem:[%s4375 + $0x60] sm:$0xff]
        %v4393 = vld [vmem:[%s4375 + $0x68] sm:$0xf]
        %v4394 = vld [vmem:[%s4375 + $0x6c] sm:$0xff]
        %v4395 = vld [vmem:[%s4375 + $0x74] sm:$0xf]
        %v4396 = vld [vmem:[%s4375 + $0x78] sm:$0xff]
        %v4397 = vld [vmem:[%s4375 + $0x80] sm:$0xf]
        %v4398 = vld [vmem:[%s4375 + $0x84] sm:$0xff]
        %v4399 = vld [vmem:[%s4375 + $0x8c] sm:$0xf]
        %v4400 = vld [vmem:[%s4375 + $0x90] sm:$0xff]
        %v4401 = vld [vmem:[%s4375 + $0x98] sm:$0xf]
        %v4402 = vld [vmem:[%s4375 + $0x9c] sm:$0xff]
        %v4403 = vld [vmem:[%s4375 + $0xa4] sm:$0xf]
        %v4404 = vld [vmem:[%s4375 + $0xa8] sm:$0xff]
        %v4405 = vld [vmem:[%s4375 + $0xb0] sm:$0xf]
        %v4406 = vld [vmem:[%s4375 + $0xb4] sm:$0xff]
        %v4407 = vld [vmem:[%s4375 + $0xbc] sm:$0xf]
        %v4408 = vld [vmem:[%s4375 + $0xc0] sm:$0xff]
        %v4409 = vld [vmem:[%s4375 + $0xc8] sm:$0xf]
        %v4410 = vld [vmem:[%s4375 + $0xcc] sm:$0xff]
        %v4411 = vld [vmem:[%s4375 + $0xd4] sm:$0xf]
        %v4412 = vld [vmem:[%s4375 + $0xd8] sm:$0xff]
        %v4413 = vld [vmem:[%s4375 + $0xe0] sm:$0xf]
        %v4414 = vld [vmem:[%s4375 + $0xe4] sm:$0xff]
        %v4415 = vld [vmem:[%s4375 + $0xec] sm:$0xf]
        %v4418 = vrot.slane %v4373, 1
        %v4419 = vrot.slane %v4374, 1
        %v4461 = vunpack.c.l.b16 %v4376
        %v4462 = vunpack.c.h.b16 %v4376
        %v4463 = vunpack.c.l.b16 %v4377
        %v4464 = vunpack.c.l.b16 %v4378
        %v4465 = vunpack.c.h.b16 %v4378
        %v4466 = vunpack.c.l.b16 %v4379
        %v4467 = vunpack.c.l.b16 %v4380
        %v4468 = vunpack.c.h.b16 %v4380
        %v4469 = vunpack.c.l.b16 %v4381
        %v4470 = vunpack.c.l.b16 %v4382
        %v4471 = vunpack.c.h.b16 %v4382
        %v4472 = vunpack.c.l.b16 %v4383
        %v4473 = vunpack.c.l.b16 %v4384
        %v4474 = vunpack.c.h.b16 %v4384
        %v4475 = vunpack.c.l.b16 %v4385
        %v4476 = vunpack.c.l.b16 %v4386
        %v4477 = vunpack.c.h.b16 %v4386
        %v4478 = vunpack.c.l.b16 %v4387
        %v4479 = vunpack.c.l.b16 %v4388
        %v4480 = vunpack.c.h.b16 %v4388
        %v4481 = vunpack.c.l.b16 %v4389
        %v4482 = vunpack.c.l.b16 %v4390
        %v4483 = vunpack.c.h.b16 %v4390
        %v4484 = vunpack.c.l.b16 %v4391
        %v4485 = vunpack.c.l.b16 %v4392
        %v4486 = vunpack.c.h.b16 %v4392
        %v4487 = vunpack.c.l.b16 %v4393
        %v4488 = vunpack.c.l.b16 %v4394
        %v4489 = vunpack.c.h.b16 %v4394
        %v4490 = vunpack.c.l.b16 %v4395
        %v4491 = vunpack.c.l.b16 %v4396
        %v4492 = vunpack.c.h.b16 %v4396
        %v4493 = vunpack.c.l.b16 %v4397
        %v4494 = vunpack.c.l.b16 %v4398
        %v4495 = vunpack.c.h.b16 %v4398
        %v4496 = vunpack.c.l.b16 %v4399
        %v4497 = vunpack.c.l.b16 %v4400
        %v4498 = vunpack.c.h.b16 %v4400
        %v4499 = vunpack.c.l.b16 %v4401
        %v4500 = vunpack.c.l.b16 %v4402
        %v4501 = vunpack.c.h.b16 %v4402
        %v4502 = vunpack.c.l.b16 %v4403
        %v4503 = vunpack.c.l.b16 %v4404
        %v4504 = vunpack.c.h.b16 %v4404
        %v4505 = vunpack.c.l.b16 %v4405
        %v4506 = vunpack.c.l.b16 %v4406
        %v4507 = vunpack.c.h.b16 %v4406
        %v4508 = vunpack.c.l.b16 %v4407
        %v4509 = vunpack.c.l.b16 %v4408
        %v4510 = vunpack.c.h.b16 %v4408
        %v4511 = vunpack.c.l.b16 %v4409
        %v4512 = vunpack.c.l.b16 %v4410
        %v4513 = vunpack.c.h.b16 %v4410
        %v4514 = vunpack.c.l.b16 %v4411
        %v4515 = vunpack.c.l.b16 %v4412
        %v4516 = vunpack.c.h.b16 %v4412
        %v4517 = vunpack.c.l.b16 %v4413
        %v4518 = vunpack.c.l.b16 %v4414
        %v4519 = vunpack.c.h.b16 %v4414
        %v4520 = vunpack.c.l.b16 %v4415
        %v4521 = vpack.c.b16 %v4464, %v4461
        %v4522 = vpack.c.b16 %v4465, %v4462
        %v4523 = vpack.c.b16 %v4466, %v4463
        %v4524 = vpack.c.b16 %v4470, %v4467
        %v4525 = vpack.c.b16 %v4471, %v4468
        %v4526 = vpack.c.b16 %v4472, %v4469
        %v4527 = vpack.c.b16 %v4476, %v4473
        %v4528 = vpack.c.b16 %v4477, %v4474
        %v4529 = vpack.c.b16 %v4478, %v4475
        %v4530 = vpack.c.b16 %v4482, %v4479
        %v4531 = vpack.c.b16 %v4483, %v4480
        %v4532 = vpack.c.b16 %v4484, %v4481
        %v4533 = vpack.c.b16 %v4488, %v4485
        %v4534 = vpack.c.b16 %v4489, %v4486
        %v4535 = vpack.c.b16 %v4490, %v4487
        %v4536 = vpack.c.b16 %v4494, %v4491
        %v4537 = vpack.c.b16 %v4495, %v4492
        %v4538 = vpack.c.b16 %v4496, %v4493
        %v4539 = vpack.c.b16 %v4500, %v4497
        %v4540 = vpack.c.b16 %v4501, %v4498
        %v4541 = vpack.c.b16 %v4502, %v4499
        %v4542 = vpack.c.b16 %v4506, %v4503
        %v4543 = vpack.c.b16 %v4507, %v4504
        %v4544 = vpack.c.b16 %v4508, %v4505
        %v4545 = vpack.c.b16 %v4512, %v4509
        %v4546 = vpack.c.b16 %v4513, %v4510
        %v4547 = vpack.c.b16 %v4514, %v4511
        %v4548 = vpack.c.b16 %v4518, %v4515
        %v4549 = vpack.c.b16 %v4519, %v4516
        %v4550 = vpack.c.b16 %v4520, %v4517
        %v4582 = vsel %vm3701, %v4419, 0
        %4584 = vmatprep.subr.bf16.mxu0 %v4543
        %4585 = vmatpush1.bf16.msra.mxu0 %v4542
        %4586 = vmatprep.subr.bf16.mxu0 %v4540
        %4587 = vmatpush1.bf16.msra.mxu0 %v4539
        %4588 = vmatprep.subr.bf16.mxu0 %v4537
        %4589 = vmatpush1.bf16.msra.mxu0 %v4536
        %4590 = vmatprep.subr.bf16.mxu0 %v4534
        %4591 = vmatpush1.bf16.msra.mxu0 %v4533
        %4592 = vmatprep.subr.bf16.mxu0 %v4531
        %4593 = vmatpush1.bf16.msra.mxu0 %v4530
        %4594 = vmatprep.subr.bf16.mxu0 %v4528
        %4595 = vmatpush1.bf16.msra.mxu0 %v4527
        %4596 = vmatprep.subr.bf16.mxu0 %v4525
        %4597 = vmatpush1.bf16.msra.mxu0 %v4524
        %4598 = vmatprep.subr.bf16.mxu0 %v4522
        %4599 = vmatpush1.bf16.msra.mxu0 %v4521
        %4600 = vmatprep.subr.bf16.mxu0 0
        %4601 = vmatpush2.bf16.msra.mxu0 0
        %4602 = vmatprep.subr.bf16.mxu0 0
        %4603 = vmatpush2.bf16.msra.mxu0 0
        %4604 = vmatprep.subr.bf16.mxu0 0
        %4605 = vmatpush2.bf16.msra.mxu0 0
        %4606 = vmatprep.subr.bf16.mxu0 0
        %4607 = vmatpush2.bf16.msra.mxu0 0
        %4608 = vmatprep.subr.bf16.mxu0 0
        %4609 = vmatpush2.bf16.msra.mxu0 0
        %4610 = vmatprep.subr.bf16.mxu0 0
        %4611 = vmatpush2.bf16.msra.mxu0 0
        %4612 = vmatprep.subr.bf16.mxu0 %v4549
        %4613 = vmatpush2.bf16.msra.mxu0 %v4548
        %4614 = vmatprep.subr.bf16.mxu0 %v4546
        %4615 = vmatpush2.bf16.msra.mxu0 %v4545
        %4616 = vmatprep.mubr.bf16.mxu0 %v4582
        %4617 = vmatmul.mubr.bf16.gmra.mxu0 %v4418
        %v4618 = vpop.f32.mrf.mxu0
        %v4619 = vadd.f32 0.0, %v4618
        %v4620 = vpop.f32.mrf.mxu0
        %v4621 = vadd.f32 0.0, %v4620
        %v4622 = vpop.f32.mrf.mxu0
        %v4623 = vpop.f32.mrf.mxu0
        %4624 = vdwg.mxu0
        %4625 = vmatprep.subr.bf16.mxu0 0
        %4626 = vmatpush1.bf16.msra.mxu0 %v4544
        %4627 = vmatprep.subr.bf16.mxu0 0
        %4628 = vmatpush1.bf16.msra.mxu0 %v4541
        %4629 = vmatprep.subr.bf16.mxu0 0
        %4630 = vmatpush1.bf16.msra.mxu0 %v4538
        %4631 = vmatprep.subr.bf16.mxu0 0
        %4632 = vmatpush1.bf16.msra.mxu0 %v4535
        %4633 = vmatprep.subr.bf16.mxu0 0
        %4634 = vmatpush1.bf16.msra.mxu0 %v4532
        %4635 = vmatprep.subr.bf16.mxu0 0
        %4636 = vmatpush1.bf16.msra.mxu0 %v4529
        %4637 = vmatprep.subr.bf16.mxu0 0
        %4638 = vmatpush1.bf16.msra.mxu0 %v4526
        %4639 = vmatprep.subr.bf16.mxu0 0
        %4640 = vmatpush1.bf16.msra.mxu0 %v4523
        %4641 = vmatprep.subr.bf16.mxu0 0
        %4642 = vmatpush2.bf16.msra.mxu0 0
        %4643 = vmatprep.subr.bf16.mxu0 0
        %4644 = vmatpush2.bf16.msra.mxu0 0
        %4645 = vmatprep.subr.bf16.mxu0 0
        %4646 = vmatpush2.bf16.msra.mxu0 0
        %4647 = vmatprep.subr.bf16.mxu0 0
        %4648 = vmatpush2.bf16.msra.mxu0 0
        %4649 = vmatprep.subr.bf16.mxu0 0
        %4650 = vmatpush2.bf16.msra.mxu0 0
        %4651 = vmatprep.subr.bf16.mxu0 0
        %4652 = vmatpush2.bf16.msra.mxu0 0
        %4653 = vmatprep.subr.bf16.mxu0 0
        %4654 = vmatpush2.bf16.msra.mxu0 %v4550
        %4655 = vmatprep.subr.bf16.mxu0 0
        %4656 = vmatpush2.bf16.msra.mxu0 %v4547
        %4657 = vmatprep.mubr.bf16.mxu0 %v4582
        %4658 = vmatmul.mubr.bf16.gmra.mxu0 %v4418
        %v4659 = vpop.f32.mrf.mxu0
        %v4660 = vadd.f32 0.0, %v4659
        %v4661 = vpop.f32.mrf.mxu0
        %v4662 = vpop.f32.mrf.mxu0
        %v4663 = vpop.f32.mrf.mxu0
        %4664 = vdwg.mxu0
        %v4665 = vadd.f32 %v4323, %v4619
        %v4666 = vadd.f32 %v4325, %v4621
        %v4667 = vadd.f32 %v4364, %v4660
        %v4668 = vld [vmem:[%s15] sm:$0x7]
        %v4670 = vlaneseq
        %v4671 = vshrl.u32 %v4670, 7
        %v4672 = vsub.s32 0, %v4671
        %v4673 = vrot.slane %v4668, %v4672
        %v4674 = vlaneseq
        %v4675 = vshrl.u32 %v4674, 7
        %v4676 = vsub.s32 1, %v4675
        %v4677 = vrot.slane %v4668, %v4676
        %v4678 = vlaneseq
        %v4679 = vshrl.u32 %v4678, 7
        %v4680 = vsub.s32 2, %v4679
        %v4681 = vrot.slane %v4668, %v4680
        %v4685 = vadd.f32 %v4665, %v4673
        %v4686 = vadd.f32 %v4666, %v4677
        %v4687 = vadd.f32 %v4667, %v4681
        %v4688 = vmax.f32 %v4685, 0.0
        %v4689 = vmax.f32 %v4686, 0.0
        %v4690 = vmax.f32 %v4687, 0.0
        %4691 = vst.msk [vmem:[#allocation2] ss:$8 sm:$0x7] %vm1561, 0.0
        %4692 = vst.msk [vmem:[#allocation2] ss:$8 sm:$0x0] %vm1561, 0.0
        %4693 = vst.msk [vmem:[%s3709] ss:$8 sm:$0x7] %vm1561, 0.0
        %4694 = vst.msk [vmem:[%s3709] ss:$8 sm:$0x0] %vm1561, 0.0
        %v4698 = vrot.slane %v4688, 7
        %v4699 = vrot.slane %v4689, 7
        %v4700 = vrot.slane %v4690, 7
        %4704 = vst [vmem:[#allocation2] sm:$0xfe] %v4698
        %4705 = vst [vmem:[#allocation2 + $0x8] sm:$0xfe] %v4699
        %4706 = vst.msk [vmem:[#allocation2 + $0x10] sm:$0xfe] %vm1593, %v4700
        %4707 = vst [vmem:[#allocation2 + $0x18] sm:$0x1] %v4698
        %4708 = vst [vmem:[#allocation2 + $0x20] sm:$0x1] %v4699
        %4709 = vst.msk [vmem:[#allocation2 + $0x28] sm:$0x1] %vm1601, %v4700
        %v4710 = vld [vmem:[#allocation2] sm:$0xff]
        %v4711 = vld [vmem:[#allocation2 + $0x8] sm:$0xff]
        %v4712 = vld [vmem:[#allocation2 + $0x10] sm:$0xff]
        %v4713 = vpack.c.bf16 %v4710, %v4710
        %v4714 = vpack.c.bf16 %v4711, %v4711
        %v4715 = vpack.c.bf16 %v4712, %v4712
        %v4716 = vld [vmem:[%s17] sm:$0xff]
        %v4717 = vld [vmem:[%s17 + $0x8] sm:$0xff]
        %v4718 = vld [vmem:[%s17 + $0x10] sm:$0xff]
        %v4719 = vld [vmem:[%s17 + $0x18] sm:$0xff]
        %v4720 = vld [vmem:[%s17 + $0x20] sm:$0xff]
        %v4721 = vld [vmem:[%s17 + $0x28] sm:$0xff]
        %v4722 = vld [vmem:[%s17 + $0x30] sm:$0xff]
        %v4723 = vld [vmem:[%s17 + $0x38] sm:$0xff]
        %v4724 = vld [vmem:[%s17 + $0x40] sm:$0xff]
        %v4725 = vld [vmem:[%s17 + $0x48] sm:$0xff]
        %v4726 = vld [vmem:[%s17 + $0x50] sm:$0xff]
        %v4727 = vld [vmem:[%s17 + $0x58] sm:$0xff]
        %v4728 = vld [vmem:[%s17 + $0x60] sm:$0xff]
        %v4729 = vld [vmem:[%s17 + $0x68] sm:$0xff]
        %v4730 = vld [vmem:[%s17 + $0x70] sm:$0xff]
        %v4731 = vld [vmem:[%s17 + $0x78] sm:$0xff]
        %v4732 = vld [vmem:[%s17 + $0x80] sm:$0xff]
        %v4733 = vld [vmem:[%s17 + $0x88] sm:$0xff]
        %v4734 = vld [vmem:[%s17 + $0x90] sm:$0xff]
        %v4735 = vld [vmem:[%s17 + $0x98] sm:$0xff]
        %v4736 = vld [vmem:[%s17 + $0xa0] sm:$0xff]
        %v4737 = vld [vmem:[%s17 + $0xa8] sm:$0xff]
        %v4738 = vld [vmem:[%s17 + $0xb0] sm:$0xff]
        %v4739 = vld [vmem:[%s17 + $0xb8] sm:$0xff]
        %v4740 = vld [vmem:[%s17 + $0xc0] sm:$0xff]
        %v4741 = vld [vmem:[%s17 + $0xc8] sm:$0xff]
        %v4742 = vld [vmem:[%s17 + $0xd0] sm:$0xff]
        %v4743 = vld [vmem:[%s17 + $0xd8] sm:$0xff]
        %v4744 = vld [vmem:[%s17 + $0xe0] sm:$0xff]
        %v4745 = vld [vmem:[%s17 + $0xe8] sm:$0xff]
        %v4746 = vld [vmem:[%s17 + $0xf0] sm:$0xff]
        %v4747 = vld [vmem:[%s17 + $0xf8] sm:$0xff]
        %v4748 = vld [vmem:[%s17 + $0x100] sm:$0xff]
        %v4749 = vld [vmem:[%s17 + $0x108] sm:$0xff]
        %v4750 = vld [vmem:[%s17 + $0x110] sm:$0xff]
        %v4751 = vld [vmem:[%s17 + $0x118] sm:$0xff]
        %v4752 = vld [vmem:[%s17 + $0x120] sm:$0xff]
        %v4753 = vld [vmem:[%s17 + $0x128] sm:$0xff]
        %v4754 = vld [vmem:[%s17 + $0x130] sm:$0xff]
        %v4755 = vld [vmem:[%s17 + $0x138] sm:$0xff]
        %v4756 = vld [vmem:[#allocation2] sm:$0xfe]
        %v4757 = vld [vmem:[#allocation2 + $0x8] sm:$0xfe]
        %v4758 = vld [vmem:[#allocation2 + $0x10] sm:$0xfe]
        %v4759 = vld [vmem:[#allocation2 + $0x18] sm:$0x1]
        %v4760 = vld [vmem:[#allocation2 + $0x20] sm:$0x1]
        %v4761 = vld [vmem:[#allocation2 + $0x28] sm:$0x1]
        %v4762 = vpack.c.bf16 %v4759, %v4756
        %v4763 = vpack.c.bf16 %v4760, %v4757
        %v4764 = vpack.c.bf16 %v4761, %v4758
        %s4765 = scalar_lea.vmem %s17, 320
        %v4766 = vld [vmem:[%s4765] sm:$0xff]
        %v4767 = vld [vmem:[%s4765 + $0x8] sm:$0xff]
        %v4768 = vld [vmem:[%s4765 + $0x10] sm:$0xff]
        %v4769 = vld [vmem:[%s4765 + $0x18] sm:$0xff]
        %v4770 = vld [vmem:[%s4765 + $0x20] sm:$0xff]
        %v4771 = vld [vmem:[%s4765 + $0x28] sm:$0xff]
        %v4772 = vld [vmem:[%s4765 + $0x30] sm:$0xff]
        %v4773 = vld [vmem:[%s4765 + $0x38] sm:$0xff]
        %v4774 = vld [vmem:[%s4765 + $0x40] sm:$0xff]
        %v4775 = vld [vmem:[%s4765 + $0x48] sm:$0xff]
        %v4776 = vld [vmem:[%s4765 + $0x50] sm:$0xff]
        %v4777 = vld [vmem:[%s4765 + $0x58] sm:$0xff]
        %v4778 = vld [vmem:[%s4765 + $0x60] sm:$0xff]
        %v4779 = vld [vmem:[%s4765 + $0x68] sm:$0xff]
        %v4780 = vld [vmem:[%s4765 + $0x70] sm:$0xff]
        %v4781 = vld [vmem:[%s4765 + $0x78] sm:$0xff]
        %v4782 = vld [vmem:[%s4765 + $0x80] sm:$0xff]
        %v4783 = vld [vmem:[%s4765 + $0x88] sm:$0xff]
        %v4784 = vld [vmem:[%s4765 + $0x90] sm:$0xff]
        %v4785 = vld [vmem:[%s4765 + $0x98] sm:$0xff]
        %v4786 = vld [vmem:[%s4765 + $0xa0] sm:$0xff]
        %v4787 = vld [vmem:[%s4765 + $0xa8] sm:$0xff]
        %v4788 = vld [vmem:[%s4765 + $0xb0] sm:$0xff]
        %v4789 = vld [vmem:[%s4765 + $0xb8] sm:$0xff]
        %v4790 = vld [vmem:[%s4765 + $0xc0] sm:$0xff]
        %v4791 = vld [vmem:[%s4765 + $0xc8] sm:$0xff]
        %v4792 = vld [vmem:[%s4765 + $0xd0] sm:$0xff]
        %v4793 = vld [vmem:[%s4765 + $0xd8] sm:$0xff]
        %v4794 = vld [vmem:[%s4765 + $0xe0] sm:$0xff]
        %v4795 = vld [vmem:[%s4765 + $0xe8] sm:$0xff]
        %v4796 = vld [vmem:[%s4765 + $0xf0] sm:$0xff]
        %v4797 = vld [vmem:[%s4765 + $0xf8] sm:$0xff]
        %v4798 = vld [vmem:[%s4765 + $0x100] sm:$0xff]
        %v4799 = vld [vmem:[%s4765 + $0x108] sm:$0xff]
        %v4800 = vld [vmem:[%s4765 + $0x110] sm:$0xff]
        %v4801 = vld [vmem:[%s4765 + $0x118] sm:$0xff]
        %v4802 = vld [vmem:[%s4765 + $0x120] sm:$0xff]
        %v4803 = vld [vmem:[%s4765 + $0x128] sm:$0xff]
        %v4804 = vld [vmem:[%s4765 + $0x130] sm:$0xff]
        %v4805 = vld [vmem:[%s4765 + $0x138] sm:$0xff]
        %v4807 = vshrl.u32 %v4762, 16
        %v4809 = vshll.u32 %v4762, 16
        %v4811 = vrot.slane %v4809, 1
        %v4812 = vor.u32 %v4807, %v4811
        %v4814 = vshrl.u32 %v4763, 16
        %v4816 = vshll.u32 %v4763, 16
        %v4818 = vrot.slane %v4816, 1
        %v4819 = vor.u32 %v4814, %v4818
        %v4821 = vshrl.u32 %v4764, 16
        %v4823 = vshll.u32 %v4764, 16
        %v4825 = vrot.slane %v4823, 1
        %v4826 = vor.u32 %v4821, %v4825
        %v4869 = vunpack.c.l.b16 %v4766
        %v4870 = vunpack.c.h.b16 %v4766
        %v4871 = vunpack.c.l.b16 %v4767
        %v4872 = vunpack.c.h.b16 %v4767
        %v4873 = vunpack.c.l.b16 %v4768
        %v4874 = vunpack.c.h.b16 %v4768
        %v4875 = vunpack.c.l.b16 %v4769
        %v4876 = vunpack.c.h.b16 %v4769
        %v4877 = vunpack.c.l.b16 %v4770
        %v4878 = vunpack.c.h.b16 %v4770
        %v4879 = vunpack.c.l.b16 %v4771
        %v4880 = vunpack.c.h.b16 %v4771
        %v4881 = vunpack.c.l.b16 %v4772
        %v4882 = vunpack.c.h.b16 %v4772
        %v4883 = vunpack.c.l.b16 %v4773
        %v4884 = vunpack.c.h.b16 %v4773
        %v4885 = vunpack.c.l.b16 %v4774
        %v4886 = vunpack.c.h.b16 %v4774
        %v4887 = vunpack.c.l.b16 %v4775
        %v4888 = vunpack.c.h.b16 %v4775
        %v4889 = vunpack.c.l.b16 %v4776
        %v4890 = vunpack.c.h.b16 %v4776
        %v4891 = vunpack.c.l.b16 %v4777
        %v4892 = vunpack.c.h.b16 %v4777
        %v4893 = vunpack.c.l.b16 %v4778
        %v4894 = vunpack.c.h.b16 %v4778
        %v4895 = vunpack.c.l.b16 %v4779
        %v4896 = vunpack.c.h.b16 %v4779
        %v4897 = vunpack.c.l.b16 %v4780
        %v4898 = vunpack.c.h.b16 %v4780
        %v4899 = vunpack.c.l.b16 %v4781
        %v4900 = vunpack.c.h.b16 %v4781
        %v4901 = vunpack.c.l.b16 %v4782
        %v4902 = vunpack.c.h.b16 %v4782
        %v4903 = vunpack.c.l.b16 %v4783
        %v4904 = vunpack.c.h.b16 %v4783
        %v4905 = vunpack.c.l.b16 %v4784
        %v4906 = vunpack.c.h.b16 %v4784
        %v4907 = vunpack.c.l.b16 %v4785
        %v4908 = vunpack.c.h.b16 %v4785
        %v4909 = vunpack.c.l.b16 %v4786
        %v4910 = vunpack.c.h.b16 %v4786
        %v4911 = vunpack.c.l.b16 %v4787
        %v4912 = vunpack.c.h.b16 %v4787
        %v4913 = vunpack.c.l.b16 %v4788
        %v4914 = vunpack.c.h.b16 %v4788
        %v4915 = vunpack.c.l.b16 %v4789
        %v4916 = vunpack.c.h.b16 %v4789
        %v4917 = vunpack.c.l.b16 %v4790
        %v4918 = vunpack.c.h.b16 %v4790
        %v4919 = vunpack.c.l.b16 %v4791
        %v4920 = vunpack.c.h.b16 %v4791
        %v4921 = vunpack.c.l.b16 %v4792
        %v4922 = vunpack.c.h.b16 %v4792
        %v4923 = vunpack.c.l.b16 %v4793
        %v4924 = vunpack.c.h.b16 %v4793
        %v4925 = vunpack.c.l.b16 %v4794
        %v4926 = vunpack.c.h.b16 %v4794
        %v4927 = vunpack.c.l.b16 %v4795
        %v4928 = vunpack.c.h.b16 %v4795
        %v4929 = vunpack.c.l.b16 %v4796
        %v4930 = vunpack.c.h.b16 %v4796
        %v4931 = vunpack.c.l.b16 %v4797
        %v4932 = vunpack.c.h.b16 %v4797
        %v4933 = vunpack.c.l.b16 %v4798
        %v4934 = vunpack.c.h.b16 %v4798
        %v4935 = vunpack.c.l.b16 %v4799
        %v4936 = vunpack.c.h.b16 %v4799
        %v4937 = vunpack.c.l.b16 %v4800
        %v4938 = vunpack.c.h.b16 %v4800
        %v4939 = vunpack.c.l.b16 %v4801
        %v4940 = vunpack.c.h.b16 %v4801
        %v4941 = vunpack.c.l.b16 %v4802
        %v4942 = vunpack.c.h.b16 %v4802
        %v4943 = vunpack.c.l.b16 %v4803
        %v4944 = vunpack.c.h.b16 %v4803
        %v4945 = vunpack.c.l.b16 %v4804
        %v4946 = vunpack.c.h.b16 %v4804
        %v4947 = vunpack.c.l.b16 %v4805
        %v4948 = vunpack.c.h.b16 %v4805
        %v4949 = vpack.c.b16 %v4871, %v4869
        %v4950 = vpack.c.b16 %v4872, %v4870
        %v4951 = vpack.c.b16 %v4875, %v4873
        %v4952 = vpack.c.b16 %v4876, %v4874
        %v4953 = vpack.c.b16 %v4879, %v4877
        %v4954 = vpack.c.b16 %v4880, %v4878
        %v4955 = vpack.c.b16 %v4883, %v4881
        %v4956 = vpack.c.b16 %v4884, %v4882
        %v4957 = vpack.c.b16 %v4887, %v4885
        %v4958 = vpack.c.b16 %v4888, %v4886
        %v4959 = vpack.c.b16 %v4891, %v4889
        %v4960 = vpack.c.b16 %v4892, %v4890
        %v4961 = vpack.c.b16 %v4895, %v4893
        %v4962 = vpack.c.b16 %v4896, %v4894
        %v4963 = vpack.c.b16 %v4899, %v4897
        %v4964 = vpack.c.b16 %v4900, %v4898
        %v4965 = vpack.c.b16 %v4903, %v4901
        %v4966 = vpack.c.b16 %v4904, %v4902
        %v4967 = vpack.c.b16 %v4907, %v4905
        %v4968 = vpack.c.b16 %v4908, %v4906
        %v4969 = vpack.c.b16 %v4911, %v4909
        %v4970 = vpack.c.b16 %v4912, %v4910
        %v4971 = vpack.c.b16 %v4915, %v4913
        %v4972 = vpack.c.b16 %v4916, %v4914
        %v4973 = vpack.c.b16 %v4919, %v4917
        %v4974 = vpack.c.b16 %v4920, %v4918
        %v4975 = vpack.c.b16 %v4923, %v4921
        %v4976 = vpack.c.b16 %v4924, %v4922
        %v4977 = vpack.c.b16 %v4927, %v4925
        %v4978 = vpack.c.b16 %v4928, %v4926
        %v4979 = vpack.c.b16 %v4931, %v4929
        %v4980 = vpack.c.b16 %v4932, %v4930
        %v4981 = vpack.c.b16 %v4935, %v4933
        %v4982 = vpack.c.b16 %v4936, %v4934
        %v4983 = vpack.c.b16 %v4939, %v4937
        %v4984 = vpack.c.b16 %v4940, %v4938
        %v4985 = vpack.c.b16 %v4943, %v4941
        %v4986 = vpack.c.b16 %v4944, %v4942
        %v4987 = vpack.c.b16 %v4947, %v4945
        %v4988 = vpack.c.b16 %v4948, %v4946
        %v5030 = vsel %vm1597, %v4826, 0
        %5032 = vmatprep.subr.bf16.mxu0 %v4964
        %5033 = vmatpush1.bf16.msra.mxu0 %v4963
        %5034 = vmatprep.subr.bf16.mxu0 %v4962
        %5035 = vmatpush1.bf16.msra.mxu0 %v4961
        %5036 = vmatprep.subr.bf16.mxu0 %v4960
        %5037 = vmatpush1.bf16.msra.mxu0 %v4959
        %5038 = vmatprep.subr.bf16.mxu0 %v4958
        %5039 = vmatpush1.bf16.msra.mxu0 %v4957
        %5040 = vmatprep.subr.bf16.mxu0 %v4956
        %5041 = vmatpush1.bf16.msra.mxu0 %v4955
        %5042 = vmatprep.subr.bf16.mxu0 %v4954
        %5043 = vmatpush1.bf16.msra.mxu0 %v4953
        %5044 = vmatprep.subr.bf16.mxu0 %v4952
        %5045 = vmatpush1.bf16.msra.mxu0 %v4951
        %5046 = vmatprep.subr.bf16.mxu0 %v4950
        %5047 = vmatpush1.bf16.msra.mxu0 %v4949
        %5048 = vmatprep.subr.bf16.mxu0 %v4980
        %5049 = vmatpush2.bf16.msra.mxu0 %v4979
        %5050 = vmatprep.subr.bf16.mxu0 %v4978
        %5051 = vmatpush2.bf16.msra.mxu0 %v4977
        %5052 = vmatprep.subr.bf16.mxu0 %v4976
        %5053 = vmatpush2.bf16.msra.mxu0 %v4975
        %5054 = vmatprep.subr.bf16.mxu0 %v4974
        %5055 = vmatpush2.bf16.msra.mxu0 %v4973
        %5056 = vmatprep.subr.bf16.mxu0 %v4972
        %5057 = vmatpush2.bf16.msra.mxu0 %v4971
        %5058 = vmatprep.subr.bf16.mxu0 %v4970
        %5059 = vmatpush2.bf16.msra.mxu0 %v4969
        %5060 = vmatprep.subr.bf16.mxu0 %v4968
        %5061 = vmatpush2.bf16.msra.mxu0 %v4967
        %5062 = vmatprep.subr.bf16.mxu0 %v4966
        %5063 = vmatpush2.bf16.msra.mxu0 %v4965
        %5064 = vmatprep.mubr.bf16.mxu0 %v4819
        %5065 = vmatmul.mubr.bf16.gmra.mxu0 %v4812
        %v5066 = vpop.f32.mrf.mxu0
        %v5067 = vadd.f32 0.0, %v5066
        %v5068 = vpop.f32.mrf.mxu0
        %v5069 = vadd.f32 0.0, %v5068
        %v5070 = vpop.f32.mrf.mxu0
        %v5071 = vpop.f32.mrf.mxu0
        %5072 = vdwg.mxu0
        %5073 = vmatprep.subr.bf16.mxu0 0
        %5074 = vmatpush1.bf16.msra.mxu0 0
        %5075 = vmatprep.subr.bf16.mxu0 0
        %5076 = vmatpush1.bf16.msra.mxu0 0
        %5077 = vmatprep.subr.bf16.mxu0 0
        %5078 = vmatpush1.bf16.msra.mxu0 0
        %5079 = vmatprep.subr.bf16.mxu0 0
        %5080 = vmatpush1.bf16.msra.mxu0 0
        %5081 = vmatprep.subr.bf16.mxu0 %v4988
        %5082 = vmatpush1.bf16.msra.mxu0 %v4987
        %5083 = vmatprep.subr.bf16.mxu0 %v4986
        %5084 = vmatpush1.bf16.msra.mxu0 %v4985
        %5085 = vmatprep.subr.bf16.mxu0 %v4984
        %5086 = vmatpush1.bf16.msra.mxu0 %v4983
        %5087 = vmatprep.subr.bf16.mxu0 %v4982
        %5088 = vmatpush1.bf16.msra.mxu0 %v4981
        %5089 = vmatprep.subr.bf16.mxu0 0
        %5090 = vmatpush2.bf16.msra.mxu0 0
        %5091 = vmatprep.subr.bf16.mxu0 0
        %5092 = vmatpush2.bf16.msra.mxu0 0
        %5093 = vmatprep.subr.bf16.mxu0 0
        %5094 = vmatpush2.bf16.msra.mxu0 0
        %5095 = vmatprep.subr.bf16.mxu0 0
        %5096 = vmatpush2.bf16.msra.mxu0 0
        %5097 = vmatprep.subr.bf16.mxu0 0
        %5098 = vmatpush2.bf16.msra.mxu0 0
        %5099 = vmatprep.subr.bf16.mxu0 0
        %5100 = vmatpush2.bf16.msra.mxu0 0
        %5101 = vmatprep.subr.bf16.mxu0 0
        %5102 = vmatpush2.bf16.msra.mxu0 0
        %5103 = vmatprep.subr.bf16.mxu0 0
        %5104 = vmatpush2.bf16.msra.mxu0 0
        %5105 = vmatprep.mubr.bf16.mxu0 0
        %5106 = vmatmul.mubr.bf16.gmra.mxu0 %v5030
        %v5107 = vpop.f32.mrf.mxu0
        %v5108 = vadd.f32 %v5067, %v5107
        %v5109 = vpop.f32.mrf.mxu0
        %v5110 = vadd.f32 %v5069, %v5109
        %v5111 = vpop.f32.mrf.mxu0
        %v5112 = vpop.f32.mrf.mxu0
        %5113 = vdwg.mxu0
        %v5154 = vunpack.c.l.b16 %v4716
        %v5155 = vunpack.c.h.b16 %v4716
        %v5156 = vunpack.c.l.b16 %v4717
        %v5157 = vunpack.c.h.b16 %v4717
        %v5158 = vunpack.c.l.b16 %v4718
        %v5159 = vunpack.c.h.b16 %v4718
        %v5160 = vunpack.c.l.b16 %v4719
        %v5161 = vunpack.c.h.b16 %v4719
        %v5162 = vunpack.c.l.b16 %v4720
        %v5163 = vunpack.c.h.b16 %v4720
        %v5164 = vunpack.c.l.b16 %v4721
        %v5165 = vunpack.c.h.b16 %v4721
        %v5166 = vunpack.c.l.b16 %v4722
        %v5167 = vunpack.c.h.b16 %v4722
        %v5168 = vunpack.c.l.b16 %v4723
        %v5169 = vunpack.c.h.b16 %v4723
        %v5170 = vunpack.c.l.b16 %v4724
        %v5171 = vunpack.c.h.b16 %v4724
        %v5172 = vunpack.c.l.b16 %v4725
        %v5173 = vunpack.c.h.b16 %v4725
        %v5174 = vunpack.c.l.b16 %v4726
        %v5175 = vunpack.c.h.b16 %v4726
        %v5176 = vunpack.c.l.b16 %v4727
        %v5177 = vunpack.c.h.b16 %v4727
        %v5178 = vunpack.c.l.b16 %v4728
        %v5179 = vunpack.c.h.b16 %v4728
        %v5180 = vunpack.c.l.b16 %v4729
        %v5181 = vunpack.c.h.b16 %v4729
        %v5182 = vunpack.c.l.b16 %v4730
        %v5183 = vunpack.c.h.b16 %v4730
        %v5184 = vunpack.c.l.b16 %v4731
        %v5185 = vunpack.c.h.b16 %v4731
        %v5186 = vunpack.c.l.b16 %v4732
        %v5187 = vunpack.c.h.b16 %v4732
        %v5188 = vunpack.c.l.b16 %v4733
        %v5189 = vunpack.c.h.b16 %v4733
        %v5190 = vunpack.c.l.b16 %v4734
        %v5191 = vunpack.c.h.b16 %v4734
        %v5192 = vunpack.c.l.b16 %v4735
        %v5193 = vunpack.c.h.b16 %v4735
        %v5194 = vunpack.c.l.b16 %v4736
        %v5195 = vunpack.c.h.b16 %v4736
        %v5196 = vunpack.c.l.b16 %v4737
        %v5197 = vunpack.c.h.b16 %v4737
        %v5198 = vunpack.c.l.b16 %v4738
        %v5199 = vunpack.c.h.b16 %v4738
        %v5200 = vunpack.c.l.b16 %v4739
        %v5201 = vunpack.c.h.b16 %v4739
        %v5202 = vunpack.c.l.b16 %v4740
        %v5203 = vunpack.c.h.b16 %v4740
        %v5204 = vunpack.c.l.b16 %v4741
        %v5205 = vunpack.c.h.b16 %v4741
        %v5206 = vunpack.c.l.b16 %v4742
        %v5207 = vunpack.c.h.b16 %v4742
        %v5208 = vunpack.c.l.b16 %v4743
        %v5209 = vunpack.c.h.b16 %v4743
        %v5210 = vunpack.c.l.b16 %v4744
        %v5211 = vunpack.c.h.b16 %v4744
        %v5212 = vunpack.c.l.b16 %v4745
        %v5213 = vunpack.c.h.b16 %v4745
        %v5214 = vunpack.c.l.b16 %v4746
        %v5215 = vunpack.c.h.b16 %v4746
        %v5216 = vunpack.c.l.b16 %v4747
        %v5217 = vunpack.c.h.b16 %v4747
        %v5218 = vunpack.c.l.b16 %v4748
        %v5219 = vunpack.c.h.b16 %v4748
        %v5220 = vunpack.c.l.b16 %v4749
        %v5221 = vunpack.c.h.b16 %v4749
        %v5222 = vunpack.c.l.b16 %v4750
        %v5223 = vunpack.c.h.b16 %v4750
        %v5224 = vunpack.c.l.b16 %v4751
        %v5225 = vunpack.c.h.b16 %v4751
        %v5226 = vunpack.c.l.b16 %v4752
        %v5227 = vunpack.c.h.b16 %v4752
        %v5228 = vunpack.c.l.b16 %v4753
        %v5229 = vunpack.c.h.b16 %v4753
        %v5230 = vunpack.c.l.b16 %v4754
        %v5231 = vunpack.c.h.b16 %v4754
        %v5232 = vunpack.c.l.b16 %v4755
        %v5233 = vunpack.c.h.b16 %v4755
        %v5234 = vpack.c.b16 %v5156, %v5154
        %v5235 = vpack.c.b16 %v5157, %v5155
        %v5236 = vpack.c.b16 %v5160, %v5158
        %v5237 = vpack.c.b16 %v5161, %v5159
        %v5238 = vpack.c.b16 %v5164, %v5162
        %v5239 = vpack.c.b16 %v5165, %v5163
        %v5240 = vpack.c.b16 %v5168, %v5166
        %v5241 = vpack.c.b16 %v5169, %v5167
        %v5242 = vpack.c.b16 %v5172, %v5170
        %v5243 = vpack.c.b16 %v5173, %v5171
        %v5244 = vpack.c.b16 %v5176, %v5174
        %v5245 = vpack.c.b16 %v5177, %v5175
        %v5246 = vpack.c.b16 %v5180, %v5178
        %v5247 = vpack.c.b16 %v5181, %v5179
        %v5248 = vpack.c.b16 %v5184, %v5182
        %v5249 = vpack.c.b16 %v5185, %v5183
        %v5250 = vpack.c.b16 %v5188, %v5186
        %v5251 = vpack.c.b16 %v5189, %v5187
        %v5252 = vpack.c.b16 %v5192, %v5190
        %v5253 = vpack.c.b16 %v5193, %v5191
        %v5254 = vpack.c.b16 %v5196, %v5194
        %v5255 = vpack.c.b16 %v5197, %v5195
        %v5256 = vpack.c.b16 %v5200, %v5198
        %v5257 = vpack.c.b16 %v5201, %v5199
        %v5258 = vpack.c.b16 %v5204, %v5202
        %v5259 = vpack.c.b16 %v5205, %v5203
        %v5260 = vpack.c.b16 %v5208, %v5206
        %v5261 = vpack.c.b16 %v5209, %v5207
        %v5262 = vpack.c.b16 %v5212, %v5210
        %v5263 = vpack.c.b16 %v5213, %v5211
        %v5264 = vpack.c.b16 %v5216, %v5214
        %v5265 = vpack.c.b16 %v5217, %v5215
        %v5266 = vpack.c.b16 %v5220, %v5218
        %v5267 = vpack.c.b16 %v5221, %v5219
        %v5268 = vpack.c.b16 %v5224, %v5222
        %v5269 = vpack.c.b16 %v5225, %v5223
        %v5270 = vpack.c.b16 %v5228, %v5226
        %v5271 = vpack.c.b16 %v5229, %v5227
        %v5272 = vpack.c.b16 %v5232, %v5230
        %v5273 = vpack.c.b16 %v5233, %v5231
        %v5315 = vsel %vm1597, %v4715, 0
        %5317 = vmatprep.subr.bf16.mxu0 %v5249
        %5318 = vmatpush1.bf16.msra.mxu0 %v5248
        %5319 = vmatprep.subr.bf16.mxu0 %v5247
        %5320 = vmatpush1.bf16.msra.mxu0 %v5246
        %5321 = vmatprep.subr.bf16.mxu0 %v5245
        %5322 = vmatpush1.bf16.msra.mxu0 %v5244
        %5323 = vmatprep.subr.bf16.mxu0 %v5243
        %5324 = vmatpush1.bf16.msra.mxu0 %v5242
        %5325 = vmatprep.subr.bf16.mxu0 %v5241
        %5326 = vmatpush1.bf16.msra.mxu0 %v5240
        %5327 = vmatprep.subr.bf16.mxu0 %v5239
        %5328 = vmatpush1.bf16.msra.mxu0 %v5238
        %5329 = vmatprep.subr.bf16.mxu0 %v5237
        %5330 = vmatpush1.bf16.msra.mxu0 %v5236
        %5331 = vmatprep.subr.bf16.mxu0 %v5235
        %5332 = vmatpush1.bf16.msra.mxu0 %v5234
        %5333 = vmatprep.subr.bf16.mxu0 %v5265
        %5334 = vmatpush2.bf16.msra.mxu0 %v5264
        %5335 = vmatprep.subr.bf16.mxu0 %v5263
        %5336 = vmatpush2.bf16.msra.mxu0 %v5262
        %5337 = vmatprep.subr.bf16.mxu0 %v5261
        %5338 = vmatpush2.bf16.msra.mxu0 %v5260
        %5339 = vmatprep.subr.bf16.mxu0 %v5259
        %5340 = vmatpush2.bf16.msra.mxu0 %v5258
        %5341 = vmatprep.subr.bf16.mxu0 %v5257
        %5342 = vmatpush2.bf16.msra.mxu0 %v5256
        %5343 = vmatprep.subr.bf16.mxu0 %v5255
        %5344 = vmatpush2.bf16.msra.mxu0 %v5254
        %5345 = vmatprep.subr.bf16.mxu0 %v5253
        %5346 = vmatpush2.bf16.msra.mxu0 %v5252
        %5347 = vmatprep.subr.bf16.mxu0 %v5251
        %5348 = vmatpush2.bf16.msra.mxu0 %v5250
        %5349 = vmatprep.mubr.bf16.mxu0 %v4714
        %5350 = vmatmul.mubr.bf16.gmra.mxu0 %v4713
        %v5351 = vpop.f32.mrf.mxu0
        %v5352 = vadd.f32 %v5108, %v5351
        %v5353 = vpop.f32.mrf.mxu0
        %v5354 = vadd.f32 %v5110, %v5353
        %v5355 = vpop.f32.mrf.mxu0
        %v5356 = vpop.f32.mrf.mxu0
        %5357 = vdwg.mxu0
        %5358 = vmatprep.subr.bf16.mxu0 0
        %5359 = vmatpush1.bf16.msra.mxu0 0
        %5360 = vmatprep.subr.bf16.mxu0 0
        %5361 = vmatpush1.bf16.msra.mxu0 0
        %5362 = vmatprep.subr.bf16.mxu0 0
        %5363 = vmatpush1.bf16.msra.mxu0 0
        %5364 = vmatprep.subr.bf16.mxu0 0
        %5365 = vmatpush1.bf16.msra.mxu0 0
        %5366 = vmatprep.subr.bf16.mxu0 %v5273
        %5367 = vmatpush1.bf16.msra.mxu0 %v5272
        %5368 = vmatprep.subr.bf16.mxu0 %v5271
        %5369 = vmatpush1.bf16.msra.mxu0 %v5270
        %5370 = vmatprep.subr.bf16.mxu0 %v5269
        %5371 = vmatpush1.bf16.msra.mxu0 %v5268
        %5372 = vmatprep.subr.bf16.mxu0 %v5267
        %5373 = vmatpush1.bf16.msra.mxu0 %v5266
        %5374 = vmatprep.subr.bf16.mxu0 0
        %5375 = vmatpush2.bf16.msra.mxu0 0
        %5376 = vmatprep.subr.bf16.mxu0 0
        %5377 = vmatpush2.bf16.msra.mxu0 0
        %5378 = vmatprep.subr.bf16.mxu0 0
        %5379 = vmatpush2.bf16.msra.mxu0 0
        %5380 = vmatprep.subr.bf16.mxu0 0
        %5381 = vmatpush2.bf16.msra.mxu0 0
        %5382 = vmatprep.subr.bf16.mxu0 0
        %5383 = vmatpush2.bf16.msra.mxu0 0
        %5384 = vmatprep.subr.bf16.mxu0 0
        %5385 = vmatpush2.bf16.msra.mxu0 0
        %5386 = vmatprep.subr.bf16.mxu0 0
        %5387 = vmatpush2.bf16.msra.mxu0 0
        %5388 = vmatprep.subr.bf16.mxu0 0
        %5389 = vmatpush2.bf16.msra.mxu0 0
        %5390 = vmatprep.mubr.bf16.mxu0 0
        %5391 = vmatmul.mubr.bf16.gmra.mxu0 %v5315
        %v5392 = vpop.f32.mrf.mxu0
        %v5393 = vadd.f32 %v5352, %v5392
        %v5394 = vpop.f32.mrf.mxu0
        %v5395 = vadd.f32 %v5354, %v5394
        %v5396 = vpop.f32.mrf.mxu0
        %v5397 = vpop.f32.mrf.mxu0
        %5398 = vdwg.mxu0
        %v5399 = vld [vmem:[#allocation2] sm:$0xfc]
        %v5400 = vld [vmem:[#allocation2 + $0x8] sm:$0xfc]
        %v5401 = vld [vmem:[#allocation2 + $0x10] sm:$0xfc]
        %v5402 = vld [vmem:[#allocation2 + $0x18] sm:$0x3]
        %v5403 = vld [vmem:[#allocation2 + $0x20] sm:$0x3]
        %v5404 = vld [vmem:[#allocation2 + $0x28] sm:$0x3]
        %v5405 = vpack.c.bf16 %v5402, %v5399
        %v5406 = vpack.c.bf16 %v5403, %v5400
        %v5407 = vpack.c.bf16 %v5404, %v5401
        %s5408 = scalar_lea.vmem %s17, 640
        %v5409 = vld [vmem:[%s5408] sm:$0xff]
        %v5410 = vld [vmem:[%s5408 + $0x8] sm:$0xff]
        %v5411 = vld [vmem:[%s5408 + $0x10] sm:$0xff]
        %v5412 = vld [vmem:[%s5408 + $0x18] sm:$0xff]
        %v5413 = vld [vmem:[%s5408 + $0x20] sm:$0xff]
        %v5414 = vld [vmem:[%s5408 + $0x28] sm:$0xff]
        %v5415 = vld [vmem:[%s5408 + $0x30] sm:$0xff]
        %v5416 = vld [vmem:[%s5408 + $0x38] sm:$0xff]
        %v5417 = vld [vmem:[%s5408 + $0x40] sm:$0xff]
        %v5418 = vld [vmem:[%s5408 + $0x48] sm:$0xff]
        %v5419 = vld [vmem:[%s5408 + $0x50] sm:$0xff]
        %v5420 = vld [vmem:[%s5408 + $0x58] sm:$0xff]
        %v5421 = vld [vmem:[%s5408 + $0x60] sm:$0xff]
        %v5422 = vld [vmem:[%s5408 + $0x68] sm:$0xff]
        %v5423 = vld [vmem:[%s5408 + $0x70] sm:$0xff]
        %v5424 = vld [vmem:[%s5408 + $0x78] sm:$0xff]
        %v5425 = vld [vmem:[%s5408 + $0x80] sm:$0xff]
        %v5426 = vld [vmem:[%s5408 + $0x88] sm:$0xff]
        %v5427 = vld [vmem:[%s5408 + $0x90] sm:$0xff]
        %v5428 = vld [vmem:[%s5408 + $0x98] sm:$0xff]
        %v5429 = vld [vmem:[%s5408 + $0xa0] sm:$0xff]
        %v5430 = vld [vmem:[%s5408 + $0xa8] sm:$0xff]
        %v5431 = vld [vmem:[%s5408 + $0xb0] sm:$0xff]
        %v5432 = vld [vmem:[%s5408 + $0xb8] sm:$0xff]
        %v5433 = vld [vmem:[%s5408 + $0xc0] sm:$0xff]
        %v5434 = vld [vmem:[%s5408 + $0xc8] sm:$0xff]
        %v5435 = vld [vmem:[%s5408 + $0xd0] sm:$0xff]
        %v5436 = vld [vmem:[%s5408 + $0xd8] sm:$0xff]
        %v5437 = vld [vmem:[%s5408 + $0xe0] sm:$0xff]
        %v5438 = vld [vmem:[%s5408 + $0xe8] sm:$0xff]
        %v5439 = vld [vmem:[%s5408 + $0xf0] sm:$0xff]
        %v5440 = vld [vmem:[%s5408 + $0xf8] sm:$0xff]
        %v5441 = vld [vmem:[%s5408 + $0x100] sm:$0xff]
        %v5442 = vld [vmem:[%s5408 + $0x108] sm:$0xff]
        %v5443 = vld [vmem:[%s5408 + $0x110] sm:$0xff]
        %v5444 = vld [vmem:[%s5408 + $0x118] sm:$0xff]
        %v5445 = vld [vmem:[%s5408 + $0x120] sm:$0xff]
        %v5446 = vld [vmem:[%s5408 + $0x128] sm:$0xff]
        %v5447 = vld [vmem:[%s5408 + $0x130] sm:$0xff]
        %v5448 = vld [vmem:[%s5408 + $0x138] sm:$0xff]
        %v5452 = vrot.slane %v5405, 1
        %v5453 = vrot.slane %v5406, 1
        %v5454 = vrot.slane %v5407, 1
        %v5497 = vunpack.c.l.b16 %v5409
        %v5498 = vunpack.c.h.b16 %v5409
        %v5499 = vunpack.c.l.b16 %v5410
        %v5500 = vunpack.c.h.b16 %v5410
        %v5501 = vunpack.c.l.b16 %v5411
        %v5502 = vunpack.c.h.b16 %v5411
        %v5503 = vunpack.c.l.b16 %v5412
        %v5504 = vunpack.c.h.b16 %v5412
        %v5505 = vunpack.c.l.b16 %v5413
        %v5506 = vunpack.c.h.b16 %v5413
        %v5507 = vunpack.c.l.b16 %v5414
        %v5508 = vunpack.c.h.b16 %v5414
        %v5509 = vunpack.c.l.b16 %v5415
        %v5510 = vunpack.c.h.b16 %v5415
        %v5511 = vunpack.c.l.b16 %v5416
        %v5512 = vunpack.c.h.b16 %v5416
        %v5513 = vunpack.c.l.b16 %v5417
        %v5514 = vunpack.c.h.b16 %v5417
        %v5515 = vunpack.c.l.b16 %v5418
        %v5516 = vunpack.c.h.b16 %v5418
        %v5517 = vunpack.c.l.b16 %v5419
        %v5518 = vunpack.c.h.b16 %v5419
        %v5519 = vunpack.c.l.b16 %v5420
        %v5520 = vunpack.c.h.b16 %v5420
        %v5521 = vunpack.c.l.b16 %v5421
        %v5522 = vunpack.c.h.b16 %v5421
        %v5523 = vunpack.c.l.b16 %v5422
        %v5524 = vunpack.c.h.b16 %v5422
        %v5525 = vunpack.c.l.b16 %v5423
        %v5526 = vunpack.c.h.b16 %v5423
        %v5527 = vunpack.c.l.b16 %v5424
        %v5528 = vunpack.c.h.b16 %v5424
        %v5529 = vunpack.c.l.b16 %v5425
        %v5530 = vunpack.c.h.b16 %v5425
        %v5531 = vunpack.c.l.b16 %v5426
        %v5532 = vunpack.c.h.b16 %v5426
        %v5533 = vunpack.c.l.b16 %v5427
        %v5534 = vunpack.c.h.b16 %v5427
        %v5535 = vunpack.c.l.b16 %v5428
        %v5536 = vunpack.c.h.b16 %v5428
        %v5537 = vunpack.c.l.b16 %v5429
        %v5538 = vunpack.c.h.b16 %v5429
        %v5539 = vunpack.c.l.b16 %v5430
        %v5540 = vunpack.c.h.b16 %v5430
        %v5541 = vunpack.c.l.b16 %v5431
        %v5542 = vunpack.c.h.b16 %v5431
        %v5543 = vunpack.c.l.b16 %v5432
        %v5544 = vunpack.c.h.b16 %v5432
        %v5545 = vunpack.c.l.b16 %v5433
        %v5546 = vunpack.c.h.b16 %v5433
        %v5547 = vunpack.c.l.b16 %v5434
        %v5548 = vunpack.c.h.b16 %v5434
        %v5549 = vunpack.c.l.b16 %v5435
        %v5550 = vunpack.c.h.b16 %v5435
        %v5551 = vunpack.c.l.b16 %v5436
        %v5552 = vunpack.c.h.b16 %v5436
        %v5553 = vunpack.c.l.b16 %v5437
        %v5554 = vunpack.c.h.b16 %v5437
        %v5555 = vunpack.c.l.b16 %v5438
        %v5556 = vunpack.c.h.b16 %v5438
        %v5557 = vunpack.c.l.b16 %v5439
        %v5558 = vunpack.c.h.b16 %v5439
        %v5559 = vunpack.c.l.b16 %v5440
        %v5560 = vunpack.c.h.b16 %v5440
        %v5561 = vunpack.c.l.b16 %v5441
        %v5562 = vunpack.c.h.b16 %v5441
        %v5563 = vunpack.c.l.b16 %v5442
        %v5564 = vunpack.c.h.b16 %v5442
        %v5565 = vunpack.c.l.b16 %v5443
        %v5566 = vunpack.c.h.b16 %v5443
        %v5567 = vunpack.c.l.b16 %v5444
        %v5568 = vunpack.c.h.b16 %v5444
        %v5569 = vunpack.c.l.b16 %v5445
        %v5570 = vunpack.c.h.b16 %v5445
        %v5571 = vunpack.c.l.b16 %v5446
        %v5572 = vunpack.c.h.b16 %v5446
        %v5573 = vunpack.c.l.b16 %v5447
        %v5574 = vunpack.c.h.b16 %v5447
        %v5575 = vunpack.c.l.b16 %v5448
        %v5576 = vunpack.c.h.b16 %v5448
        %v5577 = vpack.c.b16 %v5499, %v5497
        %v5578 = vpack.c.b16 %v5500, %v5498
        %v5579 = vpack.c.b16 %v5503, %v5501
        %v5580 = vpack.c.b16 %v5504, %v5502
        %v5581 = vpack.c.b16 %v5507, %v5505
        %v5582 = vpack.c.b16 %v5508, %v5506
        %v5583 = vpack.c.b16 %v5511, %v5509
        %v5584 = vpack.c.b16 %v5512, %v5510
        %v5585 = vpack.c.b16 %v5515, %v5513
        %v5586 = vpack.c.b16 %v5516, %v5514
        %v5587 = vpack.c.b16 %v5519, %v5517
        %v5588 = vpack.c.b16 %v5520, %v5518
        %v5589 = vpack.c.b16 %v5523, %v5521
        %v5590 = vpack.c.b16 %v5524, %v5522
        %v5591 = vpack.c.b16 %v5527, %v5525
        %v5592 = vpack.c.b16 %v5528, %v5526
        %v5593 = vpack.c.b16 %v5531, %v5529
        %v5594 = vpack.c.b16 %v5532, %v5530
        %v5595 = vpack.c.b16 %v5535, %v5533
        %v5596 = vpack.c.b16 %v5536, %v5534
        %v5597 = vpack.c.b16 %v5539, %v5537
        %v5598 = vpack.c.b16 %v5540, %v5538
        %v5599 = vpack.c.b16 %v5543, %v5541
        %v5600 = vpack.c.b16 %v5544, %v5542
        %v5601 = vpack.c.b16 %v5547, %v5545
        %v5602 = vpack.c.b16 %v5548, %v5546
        %v5603 = vpack.c.b16 %v5551, %v5549
        %v5604 = vpack.c.b16 %v5552, %v5550
        %v5605 = vpack.c.b16 %v5555, %v5553
        %v5606 = vpack.c.b16 %v5556, %v5554
        %v5607 = vpack.c.b16 %v5559, %v5557
        %v5608 = vpack.c.b16 %v5560, %v5558
        %v5609 = vpack.c.b16 %v5563, %v5561
        %v5610 = vpack.c.b16 %v5564, %v5562
        %v5611 = vpack.c.b16 %v5567, %v5565
        %v5612 = vpack.c.b16 %v5568, %v5566
        %v5613 = vpack.c.b16 %v5571, %v5569
        %v5614 = vpack.c.b16 %v5572, %v5570
        %v5615 = vpack.c.b16 %v5575, %v5573
        %v5616 = vpack.c.b16 %v5576, %v5574
        %v5658 = vsel %vm1597, %v5454, 0
        %5660 = vmatprep.subr.bf16.mxu0 %v5592
        %5661 = vmatpush1.bf16.msra.mxu0 %v5591
        %5662 = vmatprep.subr.bf16.mxu0 %v5590
        %5663 = vmatpush1.bf16.msra.mxu0 %v5589
        %5664 = vmatprep.subr.bf16.mxu0 %v5588
        %5665 = vmatpush1.bf16.msra.mxu0 %v5587
        %5666 = vmatprep.subr.bf16.mxu0 %v5586
        %5667 = vmatpush1.bf16.msra.mxu0 %v5585
        %5668 = vmatprep.subr.bf16.mxu0 %v5584
        %5669 = vmatpush1.bf16.msra.mxu0 %v5583
        %5670 = vmatprep.subr.bf16.mxu0 %v5582
        %5671 = vmatpush1.bf16.msra.mxu0 %v5581
        %5672 = vmatprep.subr.bf16.mxu0 %v5580
        %5673 = vmatpush1.bf16.msra.mxu0 %v5579
        %5674 = vmatprep.subr.bf16.mxu0 %v5578
        %5675 = vmatpush1.bf16.msra.mxu0 %v5577
        %5676 = vmatprep.subr.bf16.mxu0 %v5608
        %5677 = vmatpush2.bf16.msra.mxu0 %v5607
        %5678 = vmatprep.subr.bf16.mxu0 %v5606
        %5679 = vmatpush2.bf16.msra.mxu0 %v5605
        %5680 = vmatprep.subr.bf16.mxu0 %v5604
        %5681 = vmatpush2.bf16.msra.mxu0 %v5603
        %5682 = vmatprep.subr.bf16.mxu0 %v5602
        %5683 = vmatpush2.bf16.msra.mxu0 %v5601
        %5684 = vmatprep.subr.bf16.mxu0 %v5600
        %5685 = vmatpush2.bf16.msra.mxu0 %v5599
        %5686 = vmatprep.subr.bf16.mxu0 %v5598
        %5687 = vmatpush2.bf16.msra.mxu0 %v5597
        %5688 = vmatprep.subr.bf16.mxu0 %v5596
        %5689 = vmatpush2.bf16.msra.mxu0 %v5595
        %5690 = vmatprep.subr.bf16.mxu0 %v5594
        %5691 = vmatpush2.bf16.msra.mxu0 %v5593
        %5692 = vmatprep.mubr.bf16.mxu0 %v5453
        %5693 = vmatmul.mubr.bf16.gmra.mxu0 %v5452
        %v5694 = vpop.f32.mrf.mxu0
        %v5695 = vadd.f32 0.0, %v5694
        %v5696 = vpop.f32.mrf.mxu0
        %v5697 = vadd.f32 0.0, %v5696
        %v5698 = vpop.f32.mrf.mxu0
        %v5699 = vpop.f32.mrf.mxu0
        %5700 = vdwg.mxu0
        %5701 = vmatprep.subr.bf16.mxu0 0
        %5702 = vmatpush1.bf16.msra.mxu0 0
        %5703 = vmatprep.subr.bf16.mxu0 0
        %5704 = vmatpush1.bf16.msra.mxu0 0
        %5705 = vmatprep.subr.bf16.mxu0 0
        %5706 = vmatpush1.bf16.msra.mxu0 0
        %5707 = vmatprep.subr.bf16.mxu0 0
        %5708 = vmatpush1.bf16.msra.mxu0 0
        %5709 = vmatprep.subr.bf16.mxu0 %v5616
        %5710 = vmatpush1.bf16.msra.mxu0 %v5615
        %5711 = vmatprep.subr.bf16.mxu0 %v5614
        %5712 = vmatpush1.bf16.msra.mxu0 %v5613
        %5713 = vmatprep.subr.bf16.mxu0 %v5612
        %5714 = vmatpush1.bf16.msra.mxu0 %v5611
        %5715 = vmatprep.subr.bf16.mxu0 %v5610
        %5716 = vmatpush1.bf16.msra.mxu0 %v5609
        %5717 = vmatprep.subr.bf16.mxu0 0
        %5718 = vmatpush2.bf16.msra.mxu0 0
        %5719 = vmatprep.subr.bf16.mxu0 0
        %5720 = vmatpush2.bf16.msra.mxu0 0
        %5721 = vmatprep.subr.bf16.mxu0 0
        %5722 = vmatpush2.bf16.msra.mxu0 0
        %5723 = vmatprep.subr.bf16.mxu0 0
        %5724 = vmatpush2.bf16.msra.mxu0 0
        %5725 = vmatprep.subr.bf16.mxu0 0
        %5726 = vmatpush2.bf16.msra.mxu0 0
        %5727 = vmatprep.subr.bf16.mxu0 0
        %5728 = vmatpush2.bf16.msra.mxu0 0
        %5729 = vmatprep.subr.bf16.mxu0 0
        %5730 = vmatpush2.bf16.msra.mxu0 0
        %5731 = vmatprep.subr.bf16.mxu0 0
        %5732 = vmatpush2.bf16.msra.mxu0 0
        %5733 = vmatprep.mubr.bf16.mxu0 0
        %5734 = vmatmul.mubr.bf16.gmra.mxu0 %v5658
        %v5735 = vpop.f32.mrf.mxu0
        %v5736 = vadd.f32 %v5695, %v5735
        %v5737 = vpop.f32.mrf.mxu0
        %v5738 = vadd.f32 %v5697, %v5737
        %v5739 = vpop.f32.mrf.mxu0
        %v5740 = vpop.f32.mrf.mxu0
        %5741 = vdwg.mxu0
        %v5742 = vadd.f32 %v5393, %v5736
        %v5743 = vadd.f32 %v5395, %v5738
        %v5744 = vld [vmem:[%s21] sm:$0x3]
        %v5746 = vlaneseq
        %v5747 = vshrl.u32 %v5746, 7
        %v5748 = vsub.s32 0, %v5747
        %v5749 = vrot.slane %v5744, %v5748
        %v5750 = vlaneseq
        %v5751 = vshrl.u32 %v5750, 7
        %v5752 = vsub.s32 1, %v5751
        %v5753 = vrot.slane %v5744, %v5752
        %v5756 = vadd.f32 %v5742, %v5749
        %v5757 = vadd.f32 %v5743, %v5753
        %v5758 = vmax.f32 %v5756, 0.0
        %v5759 = vmax.f32 %v5757, 0.0
        %v5760 = vld [vmem:[%s19] sm:$0xff]
        %v5761 = vld [vmem:[%s19 + $0x8] sm:$0xff]
        %v5762 = vld [vmem:[%s19 + $0x10] sm:$0xff]
        %v5763 = vld [vmem:[%s19 + $0x18] sm:$0xff]
        %v5764 = vld [vmem:[%s19 + $0x20] sm:$0xff]
        %v5765 = vld [vmem:[%s19 + $0x28] sm:$0xff]
        %v5766 = vld [vmem:[%s19 + $0x30] sm:$0xff]
        %v5767 = vld [vmem:[%s19 + $0x38] sm:$0xff]
        %v5768 = vld [vmem:[%s19 + $0x40] sm:$0xff]
        %v5769 = vld [vmem:[%s19 + $0x48] sm:$0xff]
        %v5770 = vld [vmem:[%s19 + $0x50] sm:$0xff]
        %v5771 = vld [vmem:[%s19 + $0x58] sm:$0xff]
        %v5772 = vld [vmem:[%s19 + $0x60] sm:$0xff]
        %v5773 = vld [vmem:[%s19 + $0x68] sm:$0xff]
        %v5774 = vld [vmem:[%s19 + $0x70] sm:$0xff]
        %v5775 = vld [vmem:[%s19 + $0x78] sm:$0xff]
        %v5776 = vld [vmem:[%s19 + $0x80] sm:$0xff]
        %v5777 = vld [vmem:[%s19 + $0x88] sm:$0xff]
        %v5778 = vld [vmem:[%s19 + $0x90] sm:$0xff]
        %v5779 = vld [vmem:[%s19 + $0x98] sm:$0xff]
        %v5780 = vld [vmem:[%s19 + $0xa0] sm:$0xff]
        %v5781 = vld [vmem:[%s19 + $0xa8] sm:$0xff]
        %v5782 = vld [vmem:[%s19 + $0xb0] sm:$0xff]
        %v5783 = vld [vmem:[%s19 + $0xb8] sm:$0xff]
        %v5784 = vld [vmem:[%s19 + $0xc0] sm:$0xff]
        %v5785 = vld [vmem:[%s19 + $0xc8] sm:$0xff]
        %v5786 = vld [vmem:[%s19 + $0xd0] sm:$0xff]
        %v5787 = vld [vmem:[%s19 + $0xd8] sm:$0xff]
        %v5788 = vld [vmem:[%s19 + $0xe0] sm:$0xff]
        %v5789 = vld [vmem:[%s19 + $0xe8] sm:$0xff]
        %v5790 = vld [vmem:[%s19 + $0xf0] sm:$0xff]
        %v5791 = vld [vmem:[%s19 + $0xf8] sm:$0xff]
        %v5792 = vld [vmem:[%s19 + $0x100] sm:$0xff]
        %v5793 = vld [vmem:[%s19 + $0x108] sm:$0xff]
        %v5794 = vld [vmem:[%s19 + $0x110] sm:$0xff]
        %v5795 = vld [vmem:[%s19 + $0x118] sm:$0xff]
        %v5796 = vld [vmem:[%s19 + $0x120] sm:$0xff]
        %v5797 = vld [vmem:[%s19 + $0x128] sm:$0xff]
        %v5798 = vld [vmem:[%s19 + $0x130] sm:$0xff]
        %v5799 = vld [vmem:[%s19 + $0x138] sm:$0xff]
        %s5800 = scalar_lea.vmem %s19, 320
        %v5801 = vld [vmem:[%s5800] sm:$0xff]
        %v5802 = vld [vmem:[%s5800 + $0x8] sm:$0xff]
        %v5803 = vld [vmem:[%s5800 + $0x10] sm:$0xff]
        %v5804 = vld [vmem:[%s5800 + $0x18] sm:$0xff]
        %v5805 = vld [vmem:[%s5800 + $0x20] sm:$0xff]
        %v5806 = vld [vmem:[%s5800 + $0x28] sm:$0xff]
        %v5807 = vld [vmem:[%s5800 + $0x30] sm:$0xff]
        %v5808 = vld [vmem:[%s5800 + $0x38] sm:$0xff]
        %v5809 = vld [vmem:[%s5800 + $0x40] sm:$0xff]
        %v5810 = vld [vmem:[%s5800 + $0x48] sm:$0xff]
        %v5811 = vld [vmem:[%s5800 + $0x50] sm:$0xff]
        %v5812 = vld [vmem:[%s5800 + $0x58] sm:$0xff]
        %v5813 = vld [vmem:[%s5800 + $0x60] sm:$0xff]
        %v5814 = vld [vmem:[%s5800 + $0x68] sm:$0xff]
        %v5815 = vld [vmem:[%s5800 + $0x70] sm:$0xff]
        %v5816 = vld [vmem:[%s5800 + $0x78] sm:$0xff]
        %v5817 = vld [vmem:[%s5800 + $0x80] sm:$0xff]
        %v5818 = vld [vmem:[%s5800 + $0x88] sm:$0xff]
        %v5819 = vld [vmem:[%s5800 + $0x90] sm:$0xff]
        %v5820 = vld [vmem:[%s5800 + $0x98] sm:$0xff]
        %v5821 = vld [vmem:[%s5800 + $0xa0] sm:$0xff]
        %v5822 = vld [vmem:[%s5800 + $0xa8] sm:$0xff]
        %v5823 = vld [vmem:[%s5800 + $0xb0] sm:$0xff]
        %v5824 = vld [vmem:[%s5800 + $0xb8] sm:$0xff]
        %v5825 = vld [vmem:[%s5800 + $0xc0] sm:$0xff]
        %v5826 = vld [vmem:[%s5800 + $0xc8] sm:$0xff]
        %v5827 = vld [vmem:[%s5800 + $0xd0] sm:$0xff]
        %v5828 = vld [vmem:[%s5800 + $0xd8] sm:$0xff]
        %v5829 = vld [vmem:[%s5800 + $0xe0] sm:$0xff]
        %v5830 = vld [vmem:[%s5800 + $0xe8] sm:$0xff]
        %v5831 = vld [vmem:[%s5800 + $0xf0] sm:$0xff]
        %v5832 = vld [vmem:[%s5800 + $0xf8] sm:$0xff]
        %v5833 = vld [vmem:[%s5800 + $0x100] sm:$0xff]
        %v5834 = vld [vmem:[%s5800 + $0x108] sm:$0xff]
        %v5835 = vld [vmem:[%s5800 + $0x110] sm:$0xff]
        %v5836 = vld [vmem:[%s5800 + $0x118] sm:$0xff]
        %v5837 = vld [vmem:[%s5800 + $0x120] sm:$0xff]
        %v5838 = vld [vmem:[%s5800 + $0x128] sm:$0xff]
        %v5839 = vld [vmem:[%s5800 + $0x130] sm:$0xff]
        %v5840 = vld [vmem:[%s5800 + $0x138] sm:$0xff]
        %v5881 = vunpack.c.l.b16 %v5801
        %v5882 = vunpack.c.h.b16 %v5801
        %v5883 = vunpack.c.l.b16 %v5802
        %v5884 = vunpack.c.h.b16 %v5802
        %v5885 = vunpack.c.l.b16 %v5803
        %v5886 = vunpack.c.h.b16 %v5803
        %v5887 = vunpack.c.l.b16 %v5804
        %v5888 = vunpack.c.h.b16 %v5804
        %v5889 = vunpack.c.l.b16 %v5805
        %v5890 = vunpack.c.h.b16 %v5805
        %v5891 = vunpack.c.l.b16 %v5806
        %v5892 = vunpack.c.h.b16 %v5806
        %v5893 = vunpack.c.l.b16 %v5807
        %v5894 = vunpack.c.h.b16 %v5807
        %v5895 = vunpack.c.l.b16 %v5808
        %v5896 = vunpack.c.h.b16 %v5808
        %v5897 = vunpack.c.l.b16 %v5809
        %v5898 = vunpack.c.h.b16 %v5809
        %v5899 = vunpack.c.l.b16 %v5810
        %v5900 = vunpack.c.h.b16 %v5810
        %v5901 = vunpack.c.l.b16 %v5811
        %v5902 = vunpack.c.h.b16 %v5811
        %v5903 = vunpack.c.l.b16 %v5812
        %v5904 = vunpack.c.h.b16 %v5812
        %v5905 = vunpack.c.l.b16 %v5813
        %v5906 = vunpack.c.h.b16 %v5813
        %v5907 = vunpack.c.l.b16 %v5814
        %v5908 = vunpack.c.h.b16 %v5814
        %v5909 = vunpack.c.l.b16 %v5815
        %v5910 = vunpack.c.h.b16 %v5815
        %v5911 = vunpack.c.l.b16 %v5816
        %v5912 = vunpack.c.h.b16 %v5816
        %v5913 = vunpack.c.l.b16 %v5817
        %v5914 = vunpack.c.h.b16 %v5817
        %v5915 = vunpack.c.l.b16 %v5818
        %v5916 = vunpack.c.h.b16 %v5818
        %v5917 = vunpack.c.l.b16 %v5819
        %v5918 = vunpack.c.h.b16 %v5819
        %v5919 = vunpack.c.l.b16 %v5820
        %v5920 = vunpack.c.h.b16 %v5820
        %v5921 = vunpack.c.l.b16 %v5821
        %v5922 = vunpack.c.h.b16 %v5821
        %v5923 = vunpack.c.l.b16 %v5822
        %v5924 = vunpack.c.h.b16 %v5822
        %v5925 = vunpack.c.l.b16 %v5823
        %v5926 = vunpack.c.h.b16 %v5823
        %v5927 = vunpack.c.l.b16 %v5824
        %v5928 = vunpack.c.h.b16 %v5824
        %v5929 = vunpack.c.l.b16 %v5825
        %v5930 = vunpack.c.h.b16 %v5825
        %v5931 = vunpack.c.l.b16 %v5826
        %v5932 = vunpack.c.h.b16 %v5826
        %v5933 = vunpack.c.l.b16 %v5827
        %v5934 = vunpack.c.h.b16 %v5827
        %v5935 = vunpack.c.l.b16 %v5828
        %v5936 = vunpack.c.h.b16 %v5828
        %v5937 = vunpack.c.l.b16 %v5829
        %v5938 = vunpack.c.h.b16 %v5829
        %v5939 = vunpack.c.l.b16 %v5830
        %v5940 = vunpack.c.h.b16 %v5830
        %v5941 = vunpack.c.l.b16 %v5831
        %v5942 = vunpack.c.h.b16 %v5831
        %v5943 = vunpack.c.l.b16 %v5832
        %v5944 = vunpack.c.h.b16 %v5832
        %v5945 = vunpack.c.l.b16 %v5833
        %v5946 = vunpack.c.h.b16 %v5833
        %v5947 = vunpack.c.l.b16 %v5834
        %v5948 = vunpack.c.h.b16 %v5834
        %v5949 = vunpack.c.l.b16 %v5835
        %v5950 = vunpack.c.h.b16 %v5835
        %v5951 = vunpack.c.l.b16 %v5836
        %v5952 = vunpack.c.h.b16 %v5836
        %v5953 = vunpack.c.l.b16 %v5837
        %v5954 = vunpack.c.h.b16 %v5837
        %v5955 = vunpack.c.l.b16 %v5838
        %v5956 = vunpack.c.h.b16 %v5838
        %v5957 = vunpack.c.l.b16 %v5839
        %v5958 = vunpack.c.h.b16 %v5839
        %v5959 = vunpack.c.l.b16 %v5840
        %v5960 = vunpack.c.h.b16 %v5840
        %v5961 = vpack.c.b16 %v5883, %v5881
        %v5962 = vpack.c.b16 %v5884, %v5882
        %v5963 = vpack.c.b16 %v5887, %v5885
        %v5964 = vpack.c.b16 %v5888, %v5886
        %v5965 = vpack.c.b16 %v5891, %v5889
        %v5966 = vpack.c.b16 %v5892, %v5890
        %v5967 = vpack.c.b16 %v5895, %v5893
        %v5968 = vpack.c.b16 %v5896, %v5894
        %v5969 = vpack.c.b16 %v5899, %v5897
        %v5970 = vpack.c.b16 %v5900, %v5898
        %v5971 = vpack.c.b16 %v5903, %v5901
        %v5972 = vpack.c.b16 %v5904, %v5902
        %v5973 = vpack.c.b16 %v5907, %v5905
        %v5974 = vpack.c.b16 %v5908, %v5906
        %v5975 = vpack.c.b16 %v5911, %v5909
        %v5976 = vpack.c.b16 %v5912, %v5910
        %v5977 = vpack.c.b16 %v5915, %v5913
        %v5978 = vpack.c.b16 %v5916, %v5914
        %v5979 = vpack.c.b16 %v5919, %v5917
        %v5980 = vpack.c.b16 %v5920, %v5918
        %v5981 = vpack.c.b16 %v5923, %v5921
        %v5982 = vpack.c.b16 %v5924, %v5922
        %v5983 = vpack.c.b16 %v5927, %v5925
        %v5984 = vpack.c.b16 %v5928, %v5926
        %v5985 = vpack.c.b16 %v5931, %v5929
        %v5986 = vpack.c.b16 %v5932, %v5930
        %v5987 = vpack.c.b16 %v5935, %v5933
        %v5988 = vpack.c.b16 %v5936, %v5934
        %v5989 = vpack.c.b16 %v5939, %v5937
        %v5990 = vpack.c.b16 %v5940, %v5938
        %v5991 = vpack.c.b16 %v5943, %v5941
        %v5992 = vpack.c.b16 %v5944, %v5942
        %v5993 = vpack.c.b16 %v5947, %v5945
        %v5994 = vpack.c.b16 %v5948, %v5946
        %v5995 = vpack.c.b16 %v5951, %v5949
        %v5996 = vpack.c.b16 %v5952, %v5950
        %v5997 = vpack.c.b16 %v5955, %v5953
        %v5998 = vpack.c.b16 %v5956, %v5954
        %v5999 = vpack.c.b16 %v5959, %v5957
        %v6000 = vpack.c.b16 %v5960, %v5958
        %6041 = vmatprep.subr.bf16.mxu0 %v5976
        %6042 = vmatpush1.bf16.msra.mxu0 %v5975
        %6043 = vmatprep.subr.bf16.mxu0 %v5974
        %6044 = vmatpush1.bf16.msra.mxu0 %v5973
        %6045 = vmatprep.subr.bf16.mxu0 %v5972
        %6046 = vmatpush1.bf16.msra.mxu0 %v5971
        %6047 = vmatprep.subr.bf16.mxu0 %v5970
        %6048 = vmatpush1.bf16.msra.mxu0 %v5969
        %6049 = vmatprep.subr.bf16.mxu0 %v5968
        %6050 = vmatpush1.bf16.msra.mxu0 %v5967
        %6051 = vmatprep.subr.bf16.mxu0 %v5966
        %6052 = vmatpush1.bf16.msra.mxu0 %v5965
        %6053 = vmatprep.subr.bf16.mxu0 %v5964
        %6054 = vmatpush1.bf16.msra.mxu0 %v5963
        %6055 = vmatprep.subr.bf16.mxu0 %v5962
        %6056 = vmatpush1.bf16.msra.mxu0 %v5961
        %6057 = vmatprep.subr.bf16.mxu0 %v5992
        %6058 = vmatpush2.bf16.msra.mxu0 %v5991
        %6059 = vmatprep.subr.bf16.mxu0 %v5990
        %6060 = vmatpush2.bf16.msra.mxu0 %v5989
        %6061 = vmatprep.subr.bf16.mxu0 %v5988
        %6062 = vmatpush2.bf16.msra.mxu0 %v5987
        %6063 = vmatprep.subr.bf16.mxu0 %v5986
        %6064 = vmatpush2.bf16.msra.mxu0 %v5985
        %6065 = vmatprep.subr.bf16.mxu0 %v5984
        %6066 = vmatpush2.bf16.msra.mxu0 %v5983
        %6067 = vmatprep.subr.bf16.mxu0 %v5982
        %6068 = vmatpush2.bf16.msra.mxu0 %v5981
        %6069 = vmatprep.subr.bf16.mxu0 %v5980
        %6070 = vmatpush2.bf16.msra.mxu0 %v5979
        %6071 = vmatprep.subr.bf16.mxu0 %v5978
        %6072 = vmatpush2.bf16.msra.mxu0 %v5977
        %6073 = vmatprep.mubr.bf16.mxu0 %v4819
        %6074 = vmatmul.mubr.bf16.gmra.mxu0 %v4812
        %v6075 = vpop.f32.mrf.mxu0
        %v6076 = vadd.f32 0.0, %v6075
        %v6077 = vpop.f32.mrf.mxu0
        %v6078 = vadd.f32 0.0, %v6077
        %v6079 = vpop.f32.mrf.mxu0
        %v6080 = vpop.f32.mrf.mxu0
        %6081 = vdwg.mxu0
        %6082 = vmatprep.subr.bf16.mxu0 0
        %6083 = vmatpush1.bf16.msra.mxu0 0
        %6084 = vmatprep.subr.bf16.mxu0 0
        %6085 = vmatpush1.bf16.msra.mxu0 0
        %6086 = vmatprep.subr.bf16.mxu0 0
        %6087 = vmatpush1.bf16.msra.mxu0 0
        %6088 = vmatprep.subr.bf16.mxu0 0
        %6089 = vmatpush1.bf16.msra.mxu0 0
        %6090 = vmatprep.subr.bf16.mxu0 %v6000
        %6091 = vmatpush1.bf16.msra.mxu0 %v5999
        %6092 = vmatprep.subr.bf16.mxu0 %v5998
        %6093 = vmatpush1.bf16.msra.mxu0 %v5997
        %6094 = vmatprep.subr.bf16.mxu0 %v5996
        %6095 = vmatpush1.bf16.msra.mxu0 %v5995
        %6096 = vmatprep.subr.bf16.mxu0 %v5994
        %6097 = vmatpush1.bf16.msra.mxu0 %v5993
        %6098 = vmatprep.subr.bf16.mxu0 0
        %6099 = vmatpush2.bf16.msra.mxu0 0
        %6100 = vmatprep.subr.bf16.mxu0 0
        %6101 = vmatpush2.bf16.msra.mxu0 0
        %6102 = vmatprep.subr.bf16.mxu0 0
        %6103 = vmatpush2.bf16.msra.mxu0 0
        %6104 = vmatprep.subr.bf16.mxu0 0
        %6105 = vmatpush2.bf16.msra.mxu0 0
        %6106 = vmatprep.subr.bf16.mxu0 0
        %6107 = vmatpush2.bf16.msra.mxu0 0
        %6108 = vmatprep.subr.bf16.mxu0 0
        %6109 = vmatpush2.bf16.msra.mxu0 0
        %6110 = vmatprep.subr.bf16.mxu0 0
        %6111 = vmatpush2.bf16.msra.mxu0 0
        %6112 = vmatprep.subr.bf16.mxu0 0
        %6113 = vmatpush2.bf16.msra.mxu0 0
        %6114 = vmatprep.mubr.bf16.mxu0 0
        %6115 = vmatmul.mubr.bf16.gmra.mxu0 %v5030
        %v6116 = vpop.f32.mrf.mxu0
        %v6117 = vadd.f32 %v6076, %v6116
        %v6118 = vpop.f32.mrf.mxu0
        %v6119 = vadd.f32 %v6078, %v6118
        %v6120 = vpop.f32.mrf.mxu0
        %v6121 = vpop.f32.mrf.mxu0
        %6122 = vdwg.mxu0
        %v6163 = vunpack.c.l.b16 %v5760
        %v6164 = vunpack.c.h.b16 %v5760
        %v6165 = vunpack.c.l.b16 %v5761
        %v6166 = vunpack.c.h.b16 %v5761
        %v6167 = vunpack.c.l.b16 %v5762
        %v6168 = vunpack.c.h.b16 %v5762
        %v6169 = vunpack.c.l.b16 %v5763
        %v6170 = vunpack.c.h.b16 %v5763
        %v6171 = vunpack.c.l.b16 %v5764
        %v6172 = vunpack.c.h.b16 %v5764
        %v6173 = vunpack.c.l.b16 %v5765
        %v6174 = vunpack.c.h.b16 %v5765
        %v6175 = vunpack.c.l.b16 %v5766
        %v6176 = vunpack.c.h.b16 %v5766
        %v6177 = vunpack.c.l.b16 %v5767
        %v6178 = vunpack.c.h.b16 %v5767
        %v6179 = vunpack.c.l.b16 %v5768
        %v6180 = vunpack.c.h.b16 %v5768
        %v6181 = vunpack.c.l.b16 %v5769
        %v6182 = vunpack.c.h.b16 %v5769
        %v6183 = vunpack.c.l.b16 %v5770
        %v6184 = vunpack.c.h.b16 %v5770
        %v6185 = vunpack.c.l.b16 %v5771
        %v6186 = vunpack.c.h.b16 %v5771
        %v6187 = vunpack.c.l.b16 %v5772
        %v6188 = vunpack.c.h.b16 %v5772
        %v6189 = vunpack.c.l.b16 %v5773
        %v6190 = vunpack.c.h.b16 %v5773
        %v6191 = vunpack.c.l.b16 %v5774
        %v6192 = vunpack.c.h.b16 %v5774
        %v6193 = vunpack.c.l.b16 %v5775
        %v6194 = vunpack.c.h.b16 %v5775
        %v6195 = vunpack.c.l.b16 %v5776
        %v6196 = vunpack.c.h.b16 %v5776
        %v6197 = vunpack.c.l.b16 %v5777
        %v6198 = vunpack.c.h.b16 %v5777
        %v6199 = vunpack.c.l.b16 %v5778
        %v6200 = vunpack.c.h.b16 %v5778
        %v6201 = vunpack.c.l.b16 %v5779
        %v6202 = vunpack.c.h.b16 %v5779
        %v6203 = vunpack.c.l.b16 %v5780
        %v6204 = vunpack.c.h.b16 %v5780
        %v6205 = vunpack.c.l.b16 %v5781
        %v6206 = vunpack.c.h.b16 %v5781
        %v6207 = vunpack.c.l.b16 %v5782
        %v6208 = vunpack.c.h.b16 %v5782
        %v6209 = vunpack.c.l.b16 %v5783
        %v6210 = vunpack.c.h.b16 %v5783
        %v6211 = vunpack.c.l.b16 %v5784
        %v6212 = vunpack.c.h.b16 %v5784
        %v6213 = vunpack.c.l.b16 %v5785
        %v6214 = vunpack.c.h.b16 %v5785
        %v6215 = vunpack.c.l.b16 %v5786
        %v6216 = vunpack.c.h.b16 %v5786
        %v6217 = vunpack.c.l.b16 %v5787
        %v6218 = vunpack.c.h.b16 %v5787
        %v6219 = vunpack.c.l.b16 %v5788
        %v6220 = vunpack.c.h.b16 %v5788
        %v6221 = vunpack.c.l.b16 %v5789
        %v6222 = vunpack.c.h.b16 %v5789
        %v6223 = vunpack.c.l.b16 %v5790
        %v6224 = vunpack.c.h.b16 %v5790
        %v6225 = vunpack.c.l.b16 %v5791
        %v6226 = vunpack.c.h.b16 %v5791
        %v6227 = vunpack.c.l.b16 %v5792
        %v6228 = vunpack.c.h.b16 %v5792
        %v6229 = vunpack.c.l.b16 %v5793
        %v6230 = vunpack.c.h.b16 %v5793
        %v6231 = vunpack.c.l.b16 %v5794
        %v6232 = vunpack.c.h.b16 %v5794
        %v6233 = vunpack.c.l.b16 %v5795
        %v6234 = vunpack.c.h.b16 %v5795
        %v6235 = vunpack.c.l.b16 %v5796
        %v6236 = vunpack.c.h.b16 %v5796
        %v6237 = vunpack.c.l.b16 %v5797
        %v6238 = vunpack.c.h.b16 %v5797
        %v6239 = vunpack.c.l.b16 %v5798
        %v6240 = vunpack.c.h.b16 %v5798
        %v6241 = vunpack.c.l.b16 %v5799
        %v6242 = vunpack.c.h.b16 %v5799
        %v6243 = vpack.c.b16 %v6165, %v6163
        %v6244 = vpack.c.b16 %v6166, %v6164
        %v6245 = vpack.c.b16 %v6169, %v6167
        %v6246 = vpack.c.b16 %v6170, %v6168
        %v6247 = vpack.c.b16 %v6173, %v6171
        %v6248 = vpack.c.b16 %v6174, %v6172
        %v6249 = vpack.c.b16 %v6177, %v6175
        %v6250 = vpack.c.b16 %v6178, %v6176
        %v6251 = vpack.c.b16 %v6181, %v6179
        %v6252 = vpack.c.b16 %v6182, %v6180
        %v6253 = vpack.c.b16 %v6185, %v6183
        %v6254 = vpack.c.b16 %v6186, %v6184
        %v6255 = vpack.c.b16 %v6189, %v6187
        %v6256 = vpack.c.b16 %v6190, %v6188
        %v6257 = vpack.c.b16 %v6193, %v6191
        %v6258 = vpack.c.b16 %v6194, %v6192
        %v6259 = vpack.c.b16 %v6197, %v6195
        %v6260 = vpack.c.b16 %v6198, %v6196
        %v6261 = vpack.c.b16 %v6201, %v6199
        %v6262 = vpack.c.b16 %v6202, %v6200
        %v6263 = vpack.c.b16 %v6205, %v6203
        %v6264 = vpack.c.b16 %v6206, %v6204
        %v6265 = vpack.c.b16 %v6209, %v6207
        %v6266 = vpack.c.b16 %v6210, %v6208
        %v6267 = vpack.c.b16 %v6213, %v6211
        %v6268 = vpack.c.b16 %v6214, %v6212
        %v6269 = vpack.c.b16 %v6217, %v6215
        %v6270 = vpack.c.b16 %v6218, %v6216
        %v6271 = vpack.c.b16 %v6221, %v6219
        %v6272 = vpack.c.b16 %v6222, %v6220
        %v6273 = vpack.c.b16 %v6225, %v6223
        %v6274 = vpack.c.b16 %v6226, %v6224
        %v6275 = vpack.c.b16 %v6229, %v6227
        %v6276 = vpack.c.b16 %v6230, %v6228
        %v6277 = vpack.c.b16 %v6233, %v6231
        %v6278 = vpack.c.b16 %v6234, %v6232
        %v6279 = vpack.c.b16 %v6237, %v6235
        %v6280 = vpack.c.b16 %v6238, %v6236
        %v6281 = vpack.c.b16 %v6241, %v6239
        %v6282 = vpack.c.b16 %v6242, %v6240
        %6323 = vmatprep.subr.bf16.mxu0 %v6258
        %6324 = vmatpush1.bf16.msra.mxu0 %v6257
        %6325 = vmatprep.subr.bf16.mxu0 %v6256
        %6326 = vmatpush1.bf16.msra.mxu0 %v6255
        %6327 = vmatprep.subr.bf16.mxu0 %v6254
        %6328 = vmatpush1.bf16.msra.mxu0 %v6253
        %6329 = vmatprep.subr.bf16.mxu0 %v6252
        %6330 = vmatpush1.bf16.msra.mxu0 %v6251
        %6331 = vmatprep.subr.bf16.mxu0 %v6250
        %6332 = vmatpush1.bf16.msra.mxu0 %v6249
        %6333 = vmatprep.subr.bf16.mxu0 %v6248
        %6334 = vmatpush1.bf16.msra.mxu0 %v6247
        %6335 = vmatprep.subr.bf16.mxu0 %v6246
        %6336 = vmatpush1.bf16.msra.mxu0 %v6245
        %6337 = vmatprep.subr.bf16.mxu0 %v6244
        %6338 = vmatpush1.bf16.msra.mxu0 %v6243
        %6339 = vmatprep.subr.bf16.mxu0 %v6274
        %6340 = vmatpush2.bf16.msra.mxu0 %v6273
        %6341 = vmatprep.subr.bf16.mxu0 %v6272
        %6342 = vmatpush2.bf16.msra.mxu0 %v6271
        %6343 = vmatprep.subr.bf16.mxu0 %v6270
        %6344 = vmatpush2.bf16.msra.mxu0 %v6269
        %6345 = vmatprep.subr.bf16.mxu0 %v6268
        %6346 = vmatpush2.bf16.msra.mxu0 %v6267
        %6347 = vmatprep.subr.bf16.mxu0 %v6266
        %6348 = vmatpush2.bf16.msra.mxu0 %v6265
        %6349 = vmatprep.subr.bf16.mxu0 %v6264
        %6350 = vmatpush2.bf16.msra.mxu0 %v6263
        %6351 = vmatprep.subr.bf16.mxu0 %v6262
        %6352 = vmatpush2.bf16.msra.mxu0 %v6261
        %6353 = vmatprep.subr.bf16.mxu0 %v6260
        %6354 = vmatpush2.bf16.msra.mxu0 %v6259
        %6355 = vmatprep.mubr.bf16.mxu0 %v4714
        %6356 = vmatmul.mubr.bf16.gmra.mxu0 %v4713
        %v6357 = vpop.f32.mrf.mxu0
        %v6358 = vadd.f32 %v6117, %v6357
        %v6359 = vpop.f32.mrf.mxu0
        %v6360 = vadd.f32 %v6119, %v6359
        %v6361 = vpop.f32.mrf.mxu0
        %v6362 = vpop.f32.mrf.mxu0
        %6363 = vdwg.mxu0
        %6364 = vmatprep.subr.bf16.mxu0 0
        %6365 = vmatpush1.bf16.msra.mxu0 0
        %6366 = vmatprep.subr.bf16.mxu0 0
        %6367 = vmatpush1.bf16.msra.mxu0 0
        %6368 = vmatprep.subr.bf16.mxu0 0
        %6369 = vmatpush1.bf16.msra.mxu0 0
        %6370 = vmatprep.subr.bf16.mxu0 0
        %6371 = vmatpush1.bf16.msra.mxu0 0
        %6372 = vmatprep.subr.bf16.mxu0 %v6282
        %6373 = vmatpush1.bf16.msra.mxu0 %v6281
        %6374 = vmatprep.subr.bf16.mxu0 %v6280
        %6375 = vmatpush1.bf16.msra.mxu0 %v6279
        %6376 = vmatprep.subr.bf16.mxu0 %v6278
        %6377 = vmatpush1.bf16.msra.mxu0 %v6277
        %6378 = vmatprep.subr.bf16.mxu0 %v6276
        %6379 = vmatpush1.bf16.msra.mxu0 %v6275
        %6380 = vmatprep.subr.bf16.mxu0 0
        %6381 = vmatpush2.bf16.msra.mxu0 0
        %6382 = vmatprep.subr.bf16.mxu0 0
        %6383 = vmatpush2.bf16.msra.mxu0 0
        %6384 = vmatprep.subr.bf16.mxu0 0
        %6385 = vmatpush2.bf16.msra.mxu0 0
        %6386 = vmatprep.subr.bf16.mxu0 0
        %6387 = vmatpush2.bf16.msra.mxu0 0
        %6388 = vmatprep.subr.bf16.mxu0 0
        %6389 = vmatpush2.bf16.msra.mxu0 0
        %6390 = vmatprep.subr.bf16.mxu0 0
        %6391 = vmatpush2.bf16.msra.mxu0 0
        %6392 = vmatprep.subr.bf16.mxu0 0
        %6393 = vmatpush2.bf16.msra.mxu0 0
        %6394 = vmatprep.subr.bf16.mxu0 0
        %6395 = vmatpush2.bf16.msra.mxu0 0
        %6396 = vmatprep.mubr.bf16.mxu0 0
        %6397 = vmatmul.mubr.bf16.gmra.mxu0 %v5315
        %v6398 = vpop.f32.mrf.mxu0
        %v6399 = vadd.f32 %v6358, %v6398
        %v6400 = vpop.f32.mrf.mxu0
        %v6401 = vadd.f32 %v6360, %v6400
        %v6402 = vpop.f32.mrf.mxu0
        %v6403 = vpop.f32.mrf.mxu0
        %6404 = vdwg.mxu0
        %s6405 = scalar_lea.vmem %s19, 640
        %v6406 = vld [vmem:[%s6405] sm:$0xff]
        %v6407 = vld [vmem:[%s6405 + $0x8] sm:$0xff]
        %v6408 = vld [vmem:[%s6405 + $0x10] sm:$0xff]
        %v6409 = vld [vmem:[%s6405 + $0x18] sm:$0xff]
        %v6410 = vld [vmem:[%s6405 + $0x20] sm:$0xff]
        %v6411 = vld [vmem:[%s6405 + $0x28] sm:$0xff]
        %v6412 = vld [vmem:[%s6405 + $0x30] sm:$0xff]
        %v6413 = vld [vmem:[%s6405 + $0x38] sm:$0xff]
        %v6414 = vld [vmem:[%s6405 + $0x40] sm:$0xff]
        %v6415 = vld [vmem:[%s6405 + $0x48] sm:$0xff]
        %v6416 = vld [vmem:[%s6405 + $0x50] sm:$0xff]
        %v6417 = vld [vmem:[%s6405 + $0x58] sm:$0xff]
        %v6418 = vld [vmem:[%s6405 + $0x60] sm:$0xff]
        %v6419 = vld [vmem:[%s6405 + $0x68] sm:$0xff]
        %v6420 = vld [vmem:[%s6405 + $0x70] sm:$0xff]
        %v6421 = vld [vmem:[%s6405 + $0x78] sm:$0xff]
        %v6422 = vld [vmem:[%s6405 + $0x80] sm:$0xff]
        %v6423 = vld [vmem:[%s6405 + $0x88] sm:$0xff]
        %v6424 = vld [vmem:[%s6405 + $0x90] sm:$0xff]
        %v6425 = vld [vmem:[%s6405 + $0x98] sm:$0xff]
        %v6426 = vld [vmem:[%s6405 + $0xa0] sm:$0xff]
        %v6427 = vld [vmem:[%s6405 + $0xa8] sm:$0xff]
        %v6428 = vld [vmem:[%s6405 + $0xb0] sm:$0xff]
        %v6429 = vld [vmem:[%s6405 + $0xb8] sm:$0xff]
        %v6430 = vld [vmem:[%s6405 + $0xc0] sm:$0xff]
        %v6431 = vld [vmem:[%s6405 + $0xc8] sm:$0xff]
        %v6432 = vld [vmem:[%s6405 + $0xd0] sm:$0xff]
        %v6433 = vld [vmem:[%s6405 + $0xd8] sm:$0xff]
        %v6434 = vld [vmem:[%s6405 + $0xe0] sm:$0xff]
        %v6435 = vld [vmem:[%s6405 + $0xe8] sm:$0xff]
        %v6436 = vld [vmem:[%s6405 + $0xf0] sm:$0xff]
        %v6437 = vld [vmem:[%s6405 + $0xf8] sm:$0xff]
        %v6438 = vld [vmem:[%s6405 + $0x100] sm:$0xff]
        %v6439 = vld [vmem:[%s6405 + $0x108] sm:$0xff]
        %v6440 = vld [vmem:[%s6405 + $0x110] sm:$0xff]
        %v6441 = vld [vmem:[%s6405 + $0x118] sm:$0xff]
        %v6442 = vld [vmem:[%s6405 + $0x120] sm:$0xff]
        %v6443 = vld [vmem:[%s6405 + $0x128] sm:$0xff]
        %v6444 = vld [vmem:[%s6405 + $0x130] sm:$0xff]
        %v6445 = vld [vmem:[%s6405 + $0x138] sm:$0xff]
        %v6486 = vunpack.c.l.b16 %v6406
        %v6487 = vunpack.c.h.b16 %v6406
        %v6488 = vunpack.c.l.b16 %v6407
        %v6489 = vunpack.c.h.b16 %v6407
        %v6490 = vunpack.c.l.b16 %v6408
        %v6491 = vunpack.c.h.b16 %v6408
        %v6492 = vunpack.c.l.b16 %v6409
        %v6493 = vunpack.c.h.b16 %v6409
        %v6494 = vunpack.c.l.b16 %v6410
        %v6495 = vunpack.c.h.b16 %v6410
        %v6496 = vunpack.c.l.b16 %v6411
        %v6497 = vunpack.c.h.b16 %v6411
        %v6498 = vunpack.c.l.b16 %v6412
        %v6499 = vunpack.c.h.b16 %v6412
        %v6500 = vunpack.c.l.b16 %v6413
        %v6501 = vunpack.c.h.b16 %v6413
        %v6502 = vunpack.c.l.b16 %v6414
        %v6503 = vunpack.c.h.b16 %v6414
        %v6504 = vunpack.c.l.b16 %v6415
        %v6505 = vunpack.c.h.b16 %v6415
        %v6506 = vunpack.c.l.b16 %v6416
        %v6507 = vunpack.c.h.b16 %v6416
        %v6508 = vunpack.c.l.b16 %v6417
        %v6509 = vunpack.c.h.b16 %v6417
        %v6510 = vunpack.c.l.b16 %v6418
        %v6511 = vunpack.c.h.b16 %v6418
        %v6512 = vunpack.c.l.b16 %v6419
        %v6513 = vunpack.c.h.b16 %v6419
        %v6514 = vunpack.c.l.b16 %v6420
        %v6515 = vunpack.c.h.b16 %v6420
        %v6516 = vunpack.c.l.b16 %v6421
        %v6517 = vunpack.c.h.b16 %v6421
        %v6518 = vunpack.c.l.b16 %v6422
        %v6519 = vunpack.c.h.b16 %v6422
        %v6520 = vunpack.c.l.b16 %v6423
        %v6521 = vunpack.c.h.b16 %v6423
        %v6522 = vunpack.c.l.b16 %v6424
        %v6523 = vunpack.c.h.b16 %v6424
        %v6524 = vunpack.c.l.b16 %v6425
        %v6525 = vunpack.c.h.b16 %v6425
        %v6526 = vunpack.c.l.b16 %v6426
        %v6527 = vunpack.c.h.b16 %v6426
        %v6528 = vunpack.c.l.b16 %v6427
        %v6529 = vunpack.c.h.b16 %v6427
        %v6530 = vunpack.c.l.b16 %v6428
        %v6531 = vunpack.c.h.b16 %v6428
        %v6532 = vunpack.c.l.b16 %v6429
        %v6533 = vunpack.c.h.b16 %v6429
        %v6534 = vunpack.c.l.b16 %v6430
        %v6535 = vunpack.c.h.b16 %v6430
        %v6536 = vunpack.c.l.b16 %v6431
        %v6537 = vunpack.c.h.b16 %v6431
        %v6538 = vunpack.c.l.b16 %v6432
        %v6539 = vunpack.c.h.b16 %v6432
        %v6540 = vunpack.c.l.b16 %v6433
        %v6541 = vunpack.c.h.b16 %v6433
        %v6542 = vunpack.c.l.b16 %v6434
        %v6543 = vunpack.c.h.b16 %v6434
        %v6544 = vunpack.c.l.b16 %v6435
        %v6545 = vunpack.c.h.b16 %v6435
        %v6546 = vunpack.c.l.b16 %v6436
        %v6547 = vunpack.c.h.b16 %v6436
        %v6548 = vunpack.c.l.b16 %v6437
        %v6549 = vunpack.c.h.b16 %v6437
        %v6550 = vunpack.c.l.b16 %v6438
        %v6551 = vunpack.c.h.b16 %v6438
        %v6552 = vunpack.c.l.b16 %v6439
        %v6553 = vunpack.c.h.b16 %v6439
        %v6554 = vunpack.c.l.b16 %v6440
        %v6555 = vunpack.c.h.b16 %v6440
        %v6556 = vunpack.c.l.b16 %v6441
        %v6557 = vunpack.c.h.b16 %v6441
        %v6558 = vunpack.c.l.b16 %v6442
        %v6559 = vunpack.c.h.b16 %v6442
        %v6560 = vunpack.c.l.b16 %v6443
        %v6561 = vunpack.c.h.b16 %v6443
        %v6562 = vunpack.c.l.b16 %v6444
        %v6563 = vunpack.c.h.b16 %v6444
        %v6564 = vunpack.c.l.b16 %v6445
        %v6565 = vunpack.c.h.b16 %v6445
        %v6566 = vpack.c.b16 %v6488, %v6486
        %v6567 = vpack.c.b16 %v6489, %v6487
        %v6568 = vpack.c.b16 %v6492, %v6490
        %v6569 = vpack.c.b16 %v6493, %v6491
        %v6570 = vpack.c.b16 %v6496, %v6494
        %v6571 = vpack.c.b16 %v6497, %v6495
        %v6572 = vpack.c.b16 %v6500, %v6498
        %v6573 = vpack.c.b16 %v6501, %v6499
        %v6574 = vpack.c.b16 %v6504, %v6502
        %v6575 = vpack.c.b16 %v6505, %v6503
        %v6576 = vpack.c.b16 %v6508, %v6506
        %v6577 = vpack.c.b16 %v6509, %v6507
        %v6578 = vpack.c.b16 %v6512, %v6510
        %v6579 = vpack.c.b16 %v6513, %v6511
        %v6580 = vpack.c.b16 %v6516, %v6514
        %v6581 = vpack.c.b16 %v6517, %v6515
        %v6582 = vpack.c.b16 %v6520, %v6518
        %v6583 = vpack.c.b16 %v6521, %v6519
        %v6584 = vpack.c.b16 %v6524, %v6522
        %v6585 = vpack.c.b16 %v6525, %v6523
        %v6586 = vpack.c.b16 %v6528, %v6526
        %v6587 = vpack.c.b16 %v6529, %v6527
        %v6588 = vpack.c.b16 %v6532, %v6530
        %v6589 = vpack.c.b16 %v6533, %v6531
        %v6590 = vpack.c.b16 %v6536, %v6534
        %v6591 = vpack.c.b16 %v6537, %v6535
        %v6592 = vpack.c.b16 %v6540, %v6538
        %v6593 = vpack.c.b16 %v6541, %v6539
        %v6594 = vpack.c.b16 %v6544, %v6542
        %v6595 = vpack.c.b16 %v6545, %v6543
        %v6596 = vpack.c.b16 %v6548, %v6546
        %v6597 = vpack.c.b16 %v6549, %v6547
        %v6598 = vpack.c.b16 %v6552, %v6550
        %v6599 = vpack.c.b16 %v6553, %v6551
        %v6600 = vpack.c.b16 %v6556, %v6554
        %v6601 = vpack.c.b16 %v6557, %v6555
        %v6602 = vpack.c.b16 %v6560, %v6558
        %v6603 = vpack.c.b16 %v6561, %v6559
        %v6604 = vpack.c.b16 %v6564, %v6562
        %v6605 = vpack.c.b16 %v6565, %v6563
        %6646 = vmatprep.subr.bf16.mxu0 %v6581
        %6647 = vmatpush1.bf16.msra.mxu0 %v6580
        %6648 = vmatprep.subr.bf16.mxu0 %v6579
        %6649 = vmatpush1.bf16.msra.mxu0 %v6578
        %6650 = vmatprep.subr.bf16.mxu0 %v6577
        %6651 = vmatpush1.bf16.msra.mxu0 %v6576
        %6652 = vmatprep.subr.bf16.mxu0 %v6575
        %6653 = vmatpush1.bf16.msra.mxu0 %v6574
        %6654 = vmatprep.subr.bf16.mxu0 %v6573
        %6655 = vmatpush1.bf16.msra.mxu0 %v6572
        %6656 = vmatprep.subr.bf16.mxu0 %v6571
        %6657 = vmatpush1.bf16.msra.mxu0 %v6570
        %6658 = vmatprep.subr.bf16.mxu0 %v6569
        %6659 = vmatpush1.bf16.msra.mxu0 %v6568
        %6660 = vmatprep.subr.bf16.mxu0 %v6567
        %6661 = vmatpush1.bf16.msra.mxu0 %v6566
        %6662 = vmatprep.subr.bf16.mxu0 %v6597
        %6663 = vmatpush2.bf16.msra.mxu0 %v6596
        %6664 = vmatprep.subr.bf16.mxu0 %v6595
        %6665 = vmatpush2.bf16.msra.mxu0 %v6594
        %6666 = vmatprep.subr.bf16.mxu0 %v6593
        %6667 = vmatpush2.bf16.msra.mxu0 %v6592
        %6668 = vmatprep.subr.bf16.mxu0 %v6591
        %6669 = vmatpush2.bf16.msra.mxu0 %v6590
        %6670 = vmatprep.subr.bf16.mxu0 %v6589
        %6671 = vmatpush2.bf16.msra.mxu0 %v6588
        %6672 = vmatprep.subr.bf16.mxu0 %v6587
        %6673 = vmatpush2.bf16.msra.mxu0 %v6586
        %6674 = vmatprep.subr.bf16.mxu0 %v6585
        %6675 = vmatpush2.bf16.msra.mxu0 %v6584
        %6676 = vmatprep.subr.bf16.mxu0 %v6583
        %6677 = vmatpush2.bf16.msra.mxu0 %v6582
        %6678 = vmatprep.mubr.bf16.mxu0 %v5453
        %6679 = vmatmul.mubr.bf16.gmra.mxu0 %v5452
        %v6680 = vpop.f32.mrf.mxu0
        %v6681 = vadd.f32 0.0, %v6680
        %v6682 = vpop.f32.mrf.mxu0
        %v6683 = vadd.f32 0.0, %v6682
        %v6684 = vpop.f32.mrf.mxu0
        %v6685 = vpop.f32.mrf.mxu0
        %6686 = vdwg.mxu0
        %6687 = vmatprep.subr.bf16.mxu0 0
        %6688 = vmatpush1.bf16.msra.mxu0 0
        %6689 = vmatprep.subr.bf16.mxu0 0
        %6690 = vmatpush1.bf16.msra.mxu0 0
        %6691 = vmatprep.subr.bf16.mxu0 0
        %6692 = vmatpush1.bf16.msra.mxu0 0
        %6693 = vmatprep.subr.bf16.mxu0 0
        %6694 = vmatpush1.bf16.msra.mxu0 0
        %6695 = vmatprep.subr.bf16.mxu0 %v6605
        %6696 = vmatpush1.bf16.msra.mxu0 %v6604
        %6697 = vmatprep.subr.bf16.mxu0 %v6603
        %6698 = vmatpush1.bf16.msra.mxu0 %v6602
        %6699 = vmatprep.subr.bf16.mxu0 %v6601
        %6700 = vmatpush1.bf16.msra.mxu0 %v6600
        %6701 = vmatprep.subr.bf16.mxu0 %v6599
        %6702 = vmatpush1.bf16.msra.mxu0 %v6598
        %6703 = vmatprep.subr.bf16.mxu0 0
        %6704 = vmatpush2.bf16.msra.mxu0 0
        %6705 = vmatprep.subr.bf16.mxu0 0
        %6706 = vmatpush2.bf16.msra.mxu0 0
        %6707 = vmatprep.subr.bf16.mxu0 0
        %6708 = vmatpush2.bf16.msra.mxu0 0
        %6709 = vmatprep.subr.bf16.mxu0 0
        %6710 = vmatpush2.bf16.msra.mxu0 0
        %6711 = vmatprep.subr.bf16.mxu0 0
        %6712 = vmatpush2.bf16.msra.mxu0 0
        %6713 = vmatprep.subr.bf16.mxu0 0
        %6714 = vmatpush2.bf16.msra.mxu0 0
        %6715 = vmatprep.subr.bf16.mxu0 0
        %6716 = vmatpush2.bf16.msra.mxu0 0
        %6717 = vmatprep.subr.bf16.mxu0 0
        %6718 = vmatpush2.bf16.msra.mxu0 0
        %6719 = vmatprep.mubr.bf16.mxu0 0
        %6720 = vmatmul.mubr.bf16.gmra.mxu0 %v5658
        %v6721 = vpop.f32.mrf.mxu0
        %v6722 = vadd.f32 %v6681, %v6721
        %v6723 = vpop.f32.mrf.mxu0
        %v6724 = vadd.f32 %v6683, %v6723
        %v6725 = vpop.f32.mrf.mxu0
        %v6726 = vpop.f32.mrf.mxu0
        %6727 = vdwg.mxu0
        %v6728 = vadd.f32 %v6399, %v6722
        %v6729 = vadd.f32 %v6401, %v6724
        %v6730 = vadd.f32 %v6728, %v5749
        %v6731 = vadd.f32 %v6729, %v5753
        %v6732 = vmax.f32 %v6730, 0.0
        %v6733 = vmax.f32 %v6731, 0.0
        %v6734 = vmax.f32 %v5758, %v6732
        %v6735 = vmax.f32 %v5759, %v6733
        %6736 = vst [vmem:[#allocation3] sm:$0xff] %v6734
        %6737 = vst.msk [vmem:[#allocation3 + $0x8] sm:$0xff] %vm3701, %v6735
        %6738 = vst.msk [vmem:[#allocation2] ss:$8 sm:$0x3] %vm3706, 0.0
        %6739 = vst.msk [vmem:[#allocation2] ss:$8 sm:$0x0] %vm3706, 0.0
        %6740 = vst.msk [vmem:[%s3748] ss:$8 sm:$0x3] %vm3706, 0.0
        %6741 = vst.msk [vmem:[%s3748] ss:$8 sm:$0x0] %vm3706, 0.0
        %v6742 = vld [vmem:[#allocation3] ss:$8 sm:$0x3]
        %v6743 = vld [vmem:[%s3713] ss:$8 sm:$0x3]
        %v6744 = vmax.f32 %v6742, %v6743
        %6745 = vst.msk [vmem:[%s3716] ss:$8 sm:$0x3] %vm3706, %v6744
        %6746 = vst.msk [vmem:[%s3716] ss:$8 sm:$0x0] %vm3706, %v6744
        %v6747 = vld [vmem:[%s3719] ss:$8 sm:$0x3]
        %v6748 = vld [vmem:[%s3721] ss:$8 sm:$0x3]
        %v6749 = vmax.f32 %v6747, %v6748
        %6750 = vst.msk [vmem:[%s3724] ss:$8 sm:$0x3] %vm3706, %v6749
        %6751 = vst.msk [vmem:[%s3724] ss:$8 sm:$0x0] %vm3706, %v6749
        %v6752 = vld [vmem:[%s3727] ss:$8 sm:$0x3]
        %v6753 = vld [vmem:[%s3729] ss:$8 sm:$0x3]
        %v6754 = vmax.f32 %v6752, %v6753
        %6755 = vst.msk [vmem:[%s3732] ss:$8 sm:$0x3] %vm3706, %v6754
        %6756 = vst.msk [vmem:[%s3732] ss:$8 sm:$0x0] %vm3706, %v6754
        %v6757 = vld [vmem:[%s3735] ss:$8 sm:$0x3]
        %v6758 = vld [vmem:[%s3737] ss:$8 sm:$0x3]
        %v6759 = vmax.f32 %v6757, %v6758
        %6760 = vst.msk [vmem:[%s3740] ss:$8 sm:$0x3] %vm3706, %v6759
        %6761 = vst.msk [vmem:[%s3740] ss:$8 sm:$0x0] %vm3706, %v6759
        %v6762 = vld [vmem:[#allocation2] sm:$0xf]
        %v6763 = vld [vmem:[#allocation2 + $0x8] sm:$0xf]
        %v6764 = vpack.c.bf16 %v6762, %v6762
        %v6765 = vpack.c.bf16 %v6763, %v6763
        %v6766 = vld [vmem:[%s23] sm:$0xff]
        %v6767 = vld [vmem:[%s23 + $0x8] sm:$0xf]
        %v6768 = vld [vmem:[%s23 + $0xc] sm:$0xff]
        %v6769 = vld [vmem:[%s23 + $0x14] sm:$0xf]
        %v6770 = vld [vmem:[%s23 + $0x18] sm:$0xff]
        %v6771 = vld [vmem:[%s23 + $0x20] sm:$0xf]
        %v6772 = vld [vmem:[%s23 + $0x24] sm:$0xff]
        %v6773 = vld [vmem:[%s23 + $0x2c] sm:$0xf]
        %v6774 = vld [vmem:[%s23 + $0x30] sm:$0xff]
        %v6775 = vld [vmem:[%s23 + $0x38] sm:$0xf]
        %v6776 = vld [vmem:[%s23 + $0x3c] sm:$0xff]
        %v6777 = vld [vmem:[%s23 + $0x44] sm:$0xf]
        %v6778 = vld [vmem:[%s23 + $0x48] sm:$0xff]
        %v6779 = vld [vmem:[%s23 + $0x50] sm:$0xf]
        %v6780 = vld [vmem:[%s23 + $0x54] sm:$0xff]
        %v6781 = vld [vmem:[%s23 + $0x5c] sm:$0xf]
        %v6782 = vld [vmem:[%s23 + $0x60] sm:$0xff]
        %v6783 = vld [vmem:[%s23 + $0x68] sm:$0xf]
        %v6784 = vld [vmem:[%s23 + $0x6c] sm:$0xff]
        %v6785 = vld [vmem:[%s23 + $0x74] sm:$0xf]
        %v6786 = vld [vmem:[%s23 + $0x78] sm:$0xff]
        %v6787 = vld [vmem:[%s23 + $0x80] sm:$0xf]
        %v6788 = vld [vmem:[%s23 + $0x84] sm:$0xff]
        %v6789 = vld [vmem:[%s23 + $0x8c] sm:$0xf]
        %v6790 = vld [vmem:[%s23 + $0x90] sm:$0xff]
        %v6791 = vld [vmem:[%s23 + $0x98] sm:$0xf]
        %v6792 = vld [vmem:[%s23 + $0x9c] sm:$0xff]
        %v6793 = vld [vmem:[%s23 + $0xa4] sm:$0xf]
        %v6794 = vld [vmem:[%s23 + $0xa8] sm:$0xff]
        %v6795 = vld [vmem:[%s23 + $0xb0] sm:$0xf]
        %v6796 = vld [vmem:[%s23 + $0xb4] sm:$0xff]
        %v6797 = vld [vmem:[%s23 + $0xbc] sm:$0xf]
        %v6798 = vld [vmem:[%s23 + $0xc0] sm:$0xff]
        %v6799 = vld [vmem:[%s23 + $0xc8] sm:$0xf]
        %v6800 = vld [vmem:[%s23 + $0xcc] sm:$0xff]
        %v6801 = vld [vmem:[%s23 + $0xd4] sm:$0xf]
        %v6802 = vld [vmem:[%s23 + $0xd8] sm:$0xff]
        %v6803 = vld [vmem:[%s23 + $0xe0] sm:$0xf]
        %v6804 = vld [vmem:[%s23 + $0xe4] sm:$0xff]
        %v6805 = vld [vmem:[%s23 + $0xec] sm:$0xf]
        %v6806 = vld [vmem:[#allocation2] sm:$0x1e]
        %v6807 = vld [vmem:[#allocation2 + $0x8] sm:$0x1e]
        %v6808 = vpack.c.bf16 %v6806, %v6806
        %v6809 = vpack.c.bf16 %v6807, %v6807
        %s6810 = scalar_lea.vmem %s23, 240
        %v6811 = vld [vmem:[%s6810] sm:$0xff]
        %v6812 = vld [vmem:[%s6810 + $0x8] sm:$0xf]
        %v6813 = vld [vmem:[%s6810 + $0xc] sm:$0xff]
        %v6814 = vld [vmem:[%s6810 + $0x14] sm:$0xf]
        %v6815 = vld [vmem:[%s6810 + $0x18] sm:$0xff]
        %v6816 = vld [vmem:[%s6810 + $0x20] sm:$0xf]
        %v6817 = vld [vmem:[%s6810 + $0x24] sm:$0xff]
        %v6818 = vld [vmem:[%s6810 + $0x2c] sm:$0xf]
        %v6819 = vld [vmem:[%s6810 + $0x30] sm:$0xff]
        %v6820 = vld [vmem:[%s6810 + $0x38] sm:$0xf]
        %v6821 = vld [vmem:[%s6810 + $0x3c] sm:$0xff]
        %v6822 = vld [vmem:[%s6810 + $0x44] sm:$0xf]
        %v6823 = vld [vmem:[%s6810 + $0x48] sm:$0xff]
        %v6824 = vld [vmem:[%s6810 + $0x50] sm:$0xf]
        %v6825 = vld [vmem:[%s6810 + $0x54] sm:$0xff]
        %v6826 = vld [vmem:[%s6810 + $0x5c] sm:$0xf]
        %v6827 = vld [vmem:[%s6810 + $0x60] sm:$0xff]
        %v6828 = vld [vmem:[%s6810 + $0x68] sm:$0xf]
        %v6829 = vld [vmem:[%s6810 + $0x6c] sm:$0xff]
        %v6830 = vld [vmem:[%s6810 + $0x74] sm:$0xf]
        %v6831 = vld [vmem:[%s6810 + $0x78] sm:$0xff]
        %v6832 = vld [vmem:[%s6810 + $0x80] sm:$0xf]
        %v6833 = vld [vmem:[%s6810 + $0x84] sm:$0xff]
        %v6834 = vld [vmem:[%s6810 + $0x8c] sm:$0xf]
        %v6835 = vld [vmem:[%s6810 + $0x90] sm:$0xff]
        %v6836 = vld [vmem:[%s6810 + $0x98] sm:$0xf]
        %v6837 = vld [vmem:[%s6810 + $0x9c] sm:$0xff]
        %v6838 = vld [vmem:[%s6810 + $0xa4] sm:$0xf]
        %v6839 = vld [vmem:[%s6810 + $0xa8] sm:$0xff]
        %v6840 = vld [vmem:[%s6810 + $0xb0] sm:$0xf]
        %v6841 = vld [vmem:[%s6810 + $0xb4] sm:$0xff]
        %v6842 = vld [vmem:[%s6810 + $0xbc] sm:$0xf]
        %v6843 = vld [vmem:[%s6810 + $0xc0] sm:$0xff]
        %v6844 = vld [vmem:[%s6810 + $0xc8] sm:$0xf]
        %v6845 = vld [vmem:[%s6810 + $0xcc] sm:$0xff]
        %v6846 = vld [vmem:[%s6810 + $0xd4] sm:$0xf]
        %v6847 = vld [vmem:[%s6810 + $0xd8] sm:$0xff]
        %v6848 = vld [vmem:[%s6810 + $0xe0] sm:$0xf]
        %v6849 = vld [vmem:[%s6810 + $0xe4] sm:$0xff]
        %v6850 = vld [vmem:[%s6810 + $0xec] sm:$0xf]
        %v6852 = vshrl.u32 %v6808, 16
        %v6854 = vshll.u32 %v6808, 16
        %v6856 = vrot.slane %v6854, 1
        %v6857 = vor.u32 %v6852, %v6856
        %v6859 = vshrl.u32 %v6809, 16
        %v6861 = vshll.u32 %v6809, 16
        %v6863 = vrot.slane %v6861, 1
        %v6864 = vor.u32 %v6859, %v6863
        %v6906 = vunpack.c.l.b16 %v6811
        %v6907 = vunpack.c.h.b16 %v6811
        %v6908 = vunpack.c.l.b16 %v6812
        %v6909 = vunpack.c.l.b16 %v6813
        %v6910 = vunpack.c.h.b16 %v6813
        %v6911 = vunpack.c.l.b16 %v6814
        %v6912 = vunpack.c.l.b16 %v6815
        %v6913 = vunpack.c.h.b16 %v6815
        %v6914 = vunpack.c.l.b16 %v6816
        %v6915 = vunpack.c.l.b16 %v6817
        %v6916 = vunpack.c.h.b16 %v6817
        %v6917 = vunpack.c.l.b16 %v6818
        %v6918 = vunpack.c.l.b16 %v6819
        %v6919 = vunpack.c.h.b16 %v6819
        %v6920 = vunpack.c.l.b16 %v6820
        %v6921 = vunpack.c.l.b16 %v6821
        %v6922 = vunpack.c.h.b16 %v6821
        %v6923 = vunpack.c.l.b16 %v6822
        %v6924 = vunpack.c.l.b16 %v6823
        %v6925 = vunpack.c.h.b16 %v6823
        %v6926 = vunpack.c.l.b16 %v6824
        %v6927 = vunpack.c.l.b16 %v6825
        %v6928 = vunpack.c.h.b16 %v6825
        %v6929 = vunpack.c.l.b16 %v6826
        %v6930 = vunpack.c.l.b16 %v6827
        %v6931 = vunpack.c.h.b16 %v6827
        %v6932 = vunpack.c.l.b16 %v6828
        %v6933 = vunpack.c.l.b16 %v6829
        %v6934 = vunpack.c.h.b16 %v6829
        %v6935 = vunpack.c.l.b16 %v6830
        %v6936 = vunpack.c.l.b16 %v6831
        %v6937 = vunpack.c.h.b16 %v6831
        %v6938 = vunpack.c.l.b16 %v6832
        %v6939 = vunpack.c.l.b16 %v6833
        %v6940 = vunpack.c.h.b16 %v6833
        %v6941 = vunpack.c.l.b16 %v6834
        %v6942 = vunpack.c.l.b16 %v6835
        %v6943 = vunpack.c.h.b16 %v6835
        %v6944 = vunpack.c.l.b16 %v6836
        %v6945 = vunpack.c.l.b16 %v6837
        %v6946 = vunpack.c.h.b16 %v6837
        %v6947 = vunpack.c.l.b16 %v6838
        %v6948 = vunpack.c.l.b16 %v6839
        %v6949 = vunpack.c.h.b16 %v6839
        %v6950 = vunpack.c.l.b16 %v6840
        %v6951 = vunpack.c.l.b16 %v6841
        %v6952 = vunpack.c.h.b16 %v6841
        %v6953 = vunpack.c.l.b16 %v6842
        %v6954 = vunpack.c.l.b16 %v6843
        %v6955 = vunpack.c.h.b16 %v6843
        %v6956 = vunpack.c.l.b16 %v6844
        %v6957 = vunpack.c.l.b16 %v6845
        %v6958 = vunpack.c.h.b16 %v6845
        %v6959 = vunpack.c.l.b16 %v6846
        %v6960 = vunpack.c.l.b16 %v6847
        %v6961 = vunpack.c.h.b16 %v6847
        %v6962 = vunpack.c.l.b16 %v6848
        %v6963 = vunpack.c.l.b16 %v6849
        %v6964 = vunpack.c.h.b16 %v6849
        %v6965 = vunpack.c.l.b16 %v6850
        %v6966 = vpack.c.b16 %v6909, %v6906
        %v6967 = vpack.c.b16 %v6910, %v6907
        %v6968 = vpack.c.b16 %v6911, %v6908
        %v6969 = vpack.c.b16 %v6915, %v6912
        %v6970 = vpack.c.b16 %v6916, %v6913
        %v6971 = vpack.c.b16 %v6917, %v6914
        %v6972 = vpack.c.b16 %v6921, %v6918
        %v6973 = vpack.c.b16 %v6922, %v6919
        %v6974 = vpack.c.b16 %v6923, %v6920
        %v6975 = vpack.c.b16 %v6927, %v6924
        %v6976 = vpack.c.b16 %v6928, %v6925
        %v6977 = vpack.c.b16 %v6929, %v6926
        %v6978 = vpack.c.b16 %v6933, %v6930
        %v6979 = vpack.c.b16 %v6934, %v6931
        %v6980 = vpack.c.b16 %v6935, %v6932
        %v6981 = vpack.c.b16 %v6939, %v6936
        %v6982 = vpack.c.b16 %v6940, %v6937
        %v6983 = vpack.c.b16 %v6941, %v6938
        %v6984 = vpack.c.b16 %v6945, %v6942
        %v6985 = vpack.c.b16 %v6946, %v6943
        %v6986 = vpack.c.b16 %v6947, %v6944
        %v6987 = vpack.c.b16 %v6951, %v6948
        %v6988 = vpack.c.b16 %v6952, %v6949
        %v6989 = vpack.c.b16 %v6953, %v6950
        %v6990 = vpack.c.b16 %v6957, %v6954
        %v6991 = vpack.c.b16 %v6958, %v6955
        %v6992 = vpack.c.b16 %v6959, %v6956
        %v6993 = vpack.c.b16 %v6963, %v6960
        %v6994 = vpack.c.b16 %v6964, %v6961
        %v6995 = vpack.c.b16 %v6965, %v6962
        %v7027 = vsel %vm3701, %v6864, 0
        %7029 = vmatprep.subr.bf16.mxu0 %v6988
        %7030 = vmatpush1.bf16.msra.mxu0 %v6987
        %7031 = vmatprep.subr.bf16.mxu0 %v6985
        %7032 = vmatpush1.bf16.msra.mxu0 %v6984
        %7033 = vmatprep.subr.bf16.mxu0 %v6982
        %7034 = vmatpush1.bf16.msra.mxu0 %v6981
        %7035 = vmatprep.subr.bf16.mxu0 %v6979
        %7036 = vmatpush1.bf16.msra.mxu0 %v6978
        %7037 = vmatprep.subr.bf16.mxu0 %v6976
        %7038 = vmatpush1.bf16.msra.mxu0 %v6975
        %7039 = vmatprep.subr.bf16.mxu0 %v6973
        %7040 = vmatpush1.bf16.msra.mxu0 %v6972
        %7041 = vmatprep.subr.bf16.mxu0 %v6970
        %7042 = vmatpush1.bf16.msra.mxu0 %v6969
        %7043 = vmatprep.subr.bf16.mxu0 %v6967
        %7044 = vmatpush1.bf16.msra.mxu0 %v6966
        %7045 = vmatprep.subr.bf16.mxu0 0
        %7046 = vmatpush2.bf16.msra.mxu0 0
        %7047 = vmatprep.subr.bf16.mxu0 0
        %7048 = vmatpush2.bf16.msra.mxu0 0
        %7049 = vmatprep.subr.bf16.mxu0 0
        %7050 = vmatpush2.bf16.msra.mxu0 0
        %7051 = vmatprep.subr.bf16.mxu0 0
        %7052 = vmatpush2.bf16.msra.mxu0 0
        %7053 = vmatprep.subr.bf16.mxu0 0
        %7054 = vmatpush2.bf16.msra.mxu0 0
        %7055 = vmatprep.subr.bf16.mxu0 0
        %7056 = vmatpush2.bf16.msra.mxu0 0
        %7057 = vmatprep.subr.bf16.mxu0 %v6994
        %7058 = vmatpush2.bf16.msra.mxu0 %v6993
        %7059 = vmatprep.subr.bf16.mxu0 %v6991
        %7060 = vmatpush2.bf16.msra.mxu0 %v6990
        %7061 = vmatprep.mubr.bf16.mxu0 %v7027
        %7062 = vmatmul.mubr.bf16.gmra.mxu0 %v6857
        %v7063 = vpop.f32.mrf.mxu0
        %v7064 = vadd.f32 0.0, %v7063
        %v7065 = vpop.f32.mrf.mxu0
        %v7066 = vadd.f32 0.0, %v7065
        %v7067 = vpop.f32.mrf.mxu0
        %v7068 = vpop.f32.mrf.mxu0
        %7069 = vdwg.mxu0
        %7070 = vmatprep.subr.bf16.mxu0 0
        %7071 = vmatpush1.bf16.msra.mxu0 %v6989
        %7072 = vmatprep.subr.bf16.mxu0 0
        %7073 = vmatpush1.bf16.msra.mxu0 %v6986
        %7074 = vmatprep.subr.bf16.mxu0 0
        %7075 = vmatpush1.bf16.msra.mxu0 %v6983
        %7076 = vmatprep.subr.bf16.mxu0 0
        %7077 = vmatpush1.bf16.msra.mxu0 %v6980
        %7078 = vmatprep.subr.bf16.mxu0 0
        %7079 = vmatpush1.bf16.msra.mxu0 %v6977
        %7080 = vmatprep.subr.bf16.mxu0 0
        %7081 = vmatpush1.bf16.msra.mxu0 %v6974
        %7082 = vmatprep.subr.bf16.mxu0 0
        %7083 = vmatpush1.bf16.msra.mxu0 %v6971
        %7084 = vmatprep.subr.bf16.mxu0 0
        %7085 = vmatpush1.bf16.msra.mxu0 %v6968
        %7086 = vmatprep.subr.bf16.mxu0 0
        %7087 = vmatpush2.bf16.msra.mxu0 0
        %7088 = vmatprep.subr.bf16.mxu0 0
        %7089 = vmatpush2.bf16.msra.mxu0 0
        %7090 = vmatprep.subr.bf16.mxu0 0
        %7091 = vmatpush2.bf16.msra.mxu0 0
        %7092 = vmatprep.subr.bf16.mxu0 0
        %7093 = vmatpush2.bf16.msra.mxu0 0
        %7094 = vmatprep.subr.bf16.mxu0 0
        %7095 = vmatpush2.bf16.msra.mxu0 0
        %7096 = vmatprep.subr.bf16.mxu0 0
        %7097 = vmatpush2.bf16.msra.mxu0 0
        %7098 = vmatprep.subr.bf16.mxu0 0
        %7099 = vmatpush2.bf16.msra.mxu0 %v6995
        %7100 = vmatprep.subr.bf16.mxu0 0
        %7101 = vmatpush2.bf16.msra.mxu0 %v6992
        %7102 = vmatprep.mubr.bf16.mxu0 %v7027
        %7103 = vmatmul.mubr.bf16.gmra.mxu0 %v6857
        %v7104 = vpop.f32.mrf.mxu0
        %v7105 = vadd.f32 0.0, %v7104
        %v7106 = vpop.f32.mrf.mxu0
        %v7107 = vpop.f32.mrf.mxu0
        %v7108 = vpop.f32.mrf.mxu0
        %7109 = vdwg.mxu0
        %v7150 = vunpack.c.l.b16 %v6766
        %v7151 = vunpack.c.h.b16 %v6766
        %v7152 = vunpack.c.l.b16 %v6767
        %v7153 = vunpack.c.l.b16 %v6768
        %v7154 = vunpack.c.h.b16 %v6768
        %v7155 = vunpack.c.l.b16 %v6769
        %v7156 = vunpack.c.l.b16 %v6770
        %v7157 = vunpack.c.h.b16 %v6770
        %v7158 = vunpack.c.l.b16 %v6771
        %v7159 = vunpack.c.l.b16 %v6772
        %v7160 = vunpack.c.h.b16 %v6772
        %v7161 = vunpack.c.l.b16 %v6773
        %v7162 = vunpack.c.l.b16 %v6774
        %v7163 = vunpack.c.h.b16 %v6774
        %v7164 = vunpack.c.l.b16 %v6775
        %v7165 = vunpack.c.l.b16 %v6776
        %v7166 = vunpack.c.h.b16 %v6776
        %v7167 = vunpack.c.l.b16 %v6777
        %v7168 = vunpack.c.l.b16 %v6778
        %v7169 = vunpack.c.h.b16 %v6778
        %v7170 = vunpack.c.l.b16 %v6779
        %v7171 = vunpack.c.l.b16 %v6780
        %v7172 = vunpack.c.h.b16 %v6780
        %v7173 = vunpack.c.l.b16 %v6781
        %v7174 = vunpack.c.l.b16 %v6782
        %v7175 = vunpack.c.h.b16 %v6782
        %v7176 = vunpack.c.l.b16 %v6783
        %v7177 = vunpack.c.l.b16 %v6784
        %v7178 = vunpack.c.h.b16 %v6784
        %v7179 = vunpack.c.l.b16 %v6785
        %v7180 = vunpack.c.l.b16 %v6786
        %v7181 = vunpack.c.h.b16 %v6786
        %v7182 = vunpack.c.l.b16 %v6787
        %v7183 = vunpack.c.l.b16 %v6788
        %v7184 = vunpack.c.h.b16 %v6788
        %v7185 = vunpack.c.l.b16 %v6789
        %v7186 = vunpack.c.l.b16 %v6790
        %v7187 = vunpack.c.h.b16 %v6790
        %v7188 = vunpack.c.l.b16 %v6791
        %v7189 = vunpack.c.l.b16 %v6792
        %v7190 = vunpack.c.h.b16 %v6792
        %v7191 = vunpack.c.l.b16 %v6793
        %v7192 = vunpack.c.l.b16 %v6794
        %v7193 = vunpack.c.h.b16 %v6794
        %v7194 = vunpack.c.l.b16 %v6795
        %v7195 = vunpack.c.l.b16 %v6796
        %v7196 = vunpack.c.h.b16 %v6796
        %v7197 = vunpack.c.l.b16 %v6797
        %v7198 = vunpack.c.l.b16 %v6798
        %v7199 = vunpack.c.h.b16 %v6798
        %v7200 = vunpack.c.l.b16 %v6799
        %v7201 = vunpack.c.l.b16 %v6800
        %v7202 = vunpack.c.h.b16 %v6800
        %v7203 = vunpack.c.l.b16 %v6801
        %v7204 = vunpack.c.l.b16 %v6802
        %v7205 = vunpack.c.h.b16 %v6802
        %v7206 = vunpack.c.l.b16 %v6803
        %v7207 = vunpack.c.l.b16 %v6804
        %v7208 = vunpack.c.h.b16 %v6804
        %v7209 = vunpack.c.l.b16 %v6805
        %v7210 = vpack.c.b16 %v7153, %v7150
        %v7211 = vpack.c.b16 %v7154, %v7151
        %v7212 = vpack.c.b16 %v7155, %v7152
        %v7213 = vpack.c.b16 %v7159, %v7156
        %v7214 = vpack.c.b16 %v7160, %v7157
        %v7215 = vpack.c.b16 %v7161, %v7158
        %v7216 = vpack.c.b16 %v7165, %v7162
        %v7217 = vpack.c.b16 %v7166, %v7163
        %v7218 = vpack.c.b16 %v7167, %v7164
        %v7219 = vpack.c.b16 %v7171, %v7168
        %v7220 = vpack.c.b16 %v7172, %v7169
        %v7221 = vpack.c.b16 %v7173, %v7170
        %v7222 = vpack.c.b16 %v7177, %v7174
        %v7223 = vpack.c.b16 %v7178, %v7175
        %v7224 = vpack.c.b16 %v7179, %v7176
        %v7225 = vpack.c.b16 %v7183, %v7180
        %v7226 = vpack.c.b16 %v7184, %v7181
        %v7227 = vpack.c.b16 %v7185, %v7182
        %v7228 = vpack.c.b16 %v7189, %v7186
        %v7229 = vpack.c.b16 %v7190, %v7187
        %v7230 = vpack.c.b16 %v7191, %v7188
        %v7231 = vpack.c.b16 %v7195, %v7192
        %v7232 = vpack.c.b16 %v7196, %v7193
        %v7233 = vpack.c.b16 %v7197, %v7194
        %v7234 = vpack.c.b16 %v7201, %v7198
        %v7235 = vpack.c.b16 %v7202, %v7199
        %v7236 = vpack.c.b16 %v7203, %v7200
        %v7237 = vpack.c.b16 %v7207, %v7204
        %v7238 = vpack.c.b16 %v7208, %v7205
        %v7239 = vpack.c.b16 %v7209, %v7206
        %v7271 = vsel %vm3701, %v6765, 0
        %7273 = vmatprep.subr.bf16.mxu0 %v7232
        %7274 = vmatpush1.bf16.msra.mxu0 %v7231
        %7275 = vmatprep.subr.bf16.mxu0 %v7229
        %7276 = vmatpush1.bf16.msra.mxu0 %v7228
        %7277 = vmatprep.subr.bf16.mxu0 %v7226
        %7278 = vmatpush1.bf16.msra.mxu0 %v7225
        %7279 = vmatprep.subr.bf16.mxu0 %v7223
        %7280 = vmatpush1.bf16.msra.mxu0 %v7222
        %7281 = vmatprep.subr.bf16.mxu0 %v7220
        %7282 = vmatpush1.bf16.msra.mxu0 %v7219
        %7283 = vmatprep.subr.bf16.mxu0 %v7217
        %7284 = vmatpush1.bf16.msra.mxu0 %v7216
        %7285 = vmatprep.subr.bf16.mxu0 %v7214
        %7286 = vmatpush1.bf16.msra.mxu0 %v7213
        %7287 = vmatprep.subr.bf16.mxu0 %v7211
        %7288 = vmatpush1.bf16.msra.mxu0 %v7210
        %7289 = vmatprep.subr.bf16.mxu0 0
        %7290 = vmatpush2.bf16.msra.mxu0 0
        %7291 = vmatprep.subr.bf16.mxu0 0
        %7292 = vmatpush2.bf16.msra.mxu0 0
        %7293 = vmatprep.subr.bf16.mxu0 0
        %7294 = vmatpush2.bf16.msra.mxu0 0
        %7295 = vmatprep.subr.bf16.mxu0 0
        %7296 = vmatpush2.bf16.msra.mxu0 0
        %7297 = vmatprep.subr.bf16.mxu0 0
        %7298 = vmatpush2.bf16.msra.mxu0 0
        %7299 = vmatprep.subr.bf16.mxu0 0
        %7300 = vmatpush2.bf16.msra.mxu0 0
        %7301 = vmatprep.subr.bf16.mxu0 %v7238
        %7302 = vmatpush2.bf16.msra.mxu0 %v7237
        %7303 = vmatprep.subr.bf16.mxu0 %v7235
        %7304 = vmatpush2.bf16.msra.mxu0 %v7234
        %7305 = vmatprep.mubr.bf16.mxu0 %v7271
        %7306 = vmatmul.mubr.bf16.gmra.mxu0 %v6764
        %v7307 = vpop.f32.mrf.mxu0
        %v7308 = vadd.f32 %v7064, %v7307
        %v7309 = vpop.f32.mrf.mxu0
        %v7310 = vadd.f32 %v7066, %v7309
        %v7311 = vpop.f32.mrf.mxu0
        %v7312 = vpop.f32.mrf.mxu0
        %7313 = vdwg.mxu0
        %7314 = vmatprep.subr.bf16.mxu0 0
        %7315 = vmatpush1.bf16.msra.mxu0 %v7233
        %7316 = vmatprep.subr.bf16.mxu0 0
        %7317 = vmatpush1.bf16.msra.mxu0 %v7230
        %7318 = vmatprep.subr.bf16.mxu0 0
        %7319 = vmatpush1.bf16.msra.mxu0 %v7227
        %7320 = vmatprep.subr.bf16.mxu0 0
        %7321 = vmatpush1.bf16.msra.mxu0 %v7224
        %7322 = vmatprep.subr.bf16.mxu0 0
        %7323 = vmatpush1.bf16.msra.mxu0 %v7221
        %7324 = vmatprep.subr.bf16.mxu0 0
        %7325 = vmatpush1.bf16.msra.mxu0 %v7218
        %7326 = vmatprep.subr.bf16.mxu0 0
        %7327 = vmatpush1.bf16.msra.mxu0 %v7215
        %7328 = vmatprep.subr.bf16.mxu0 0
        %7329 = vmatpush1.bf16.msra.mxu0 %v7212
        %7330 = vmatprep.subr.bf16.mxu0 0
        %7331 = vmatpush2.bf16.msra.mxu0 0
        %7332 = vmatprep.subr.bf16.mxu0 0
        %7333 = vmatpush2.bf16.msra.mxu0 0
        %7334 = vmatprep.subr.bf16.mxu0 0
        %7335 = vmatpush2.bf16.msra.mxu0 0
        %7336 = vmatprep.subr.bf16.mxu0 0
        %7337 = vmatpush2.bf16.msra.mxu0 0
        %7338 = vmatprep.subr.bf16.mxu0 0
        %7339 = vmatpush2.bf16.msra.mxu0 0
        %7340 = vmatprep.subr.bf16.mxu0 0
        %7341 = vmatpush2.bf16.msra.mxu0 0
        %7342 = vmatprep.subr.bf16.mxu0 0
        %7343 = vmatpush2.bf16.msra.mxu0 %v7239
        %7344 = vmatprep.subr.bf16.mxu0 0
        %7345 = vmatpush2.bf16.msra.mxu0 %v7236
        %7346 = vmatprep.mubr.bf16.mxu0 %v7271
        %7347 = vmatmul.mubr.bf16.gmra.mxu0 %v6764
        %v7348 = vpop.f32.mrf.mxu0
        %v7349 = vadd.f32 %v7105, %v7348
        %v7350 = vpop.f32.mrf.mxu0
        %v7351 = vpop.f32.mrf.mxu0
        %v7352 = vpop.f32.mrf.mxu0
        %7353 = vdwg.mxu0
        %v7354 = vld [vmem:[#allocation2] sm:$0x3c]
        %v7355 = vld [vmem:[#allocation2 + $0x8] sm:$0x3c]
        %v7356 = vpack.c.bf16 %v7354, %v7354
        %v7357 = vpack.c.bf16 %v7355, %v7355
        %s7358 = scalar_lea.vmem %s23, 480
        %v7359 = vld [vmem:[%s7358] sm:$0xff]
        %v7360 = vld [vmem:[%s7358 + $0x8] sm:$0xf]
        %v7361 = vld [vmem:[%s7358 + $0xc] sm:$0xff]
        %v7362 = vld [vmem:[%s7358 + $0x14] sm:$0xf]
        %v7363 = vld [vmem:[%s7358 + $0x18] sm:$0xff]
        %v7364 = vld [vmem:[%s7358 + $0x20] sm:$0xf]
        %v7365 = vld [vmem:[%s7358 + $0x24] sm:$0xff]
        %v7366 = vld [vmem:[%s7358 + $0x2c] sm:$0xf]
        %v7367 = vld [vmem:[%s7358 + $0x30] sm:$0xff]
        %v7368 = vld [vmem:[%s7358 + $0x38] sm:$0xf]
        %v7369 = vld [vmem:[%s7358 + $0x3c] sm:$0xff]
        %v7370 = vld [vmem:[%s7358 + $0x44] sm:$0xf]
        %v7371 = vld [vmem:[%s7358 + $0x48] sm:$0xff]
        %v7372 = vld [vmem:[%s7358 + $0x50] sm:$0xf]
        %v7373 = vld [vmem:[%s7358 + $0x54] sm:$0xff]
        %v7374 = vld [vmem:[%s7358 + $0x5c] sm:$0xf]
        %v7375 = vld [vmem:[%s7358 + $0x60] sm:$0xff]
        %v7376 = vld [vmem:[%s7358 + $0x68] sm:$0xf]
        %v7377 = vld [vmem:[%s7358 + $0x6c] sm:$0xff]
        %v7378 = vld [vmem:[%s7358 + $0x74] sm:$0xf]
        %v7379 = vld [vmem:[%s7358 + $0x78] sm:$0xff]
        %v7380 = vld [vmem:[%s7358 + $0x80] sm:$0xf]
        %v7381 = vld [vmem:[%s7358 + $0x84] sm:$0xff]
        %v7382 = vld [vmem:[%s7358 + $0x8c] sm:$0xf]
        %v7383 = vld [vmem:[%s7358 + $0x90] sm:$0xff]
        %v7384 = vld [vmem:[%s7358 + $0x98] sm:$0xf]
        %v7385 = vld [vmem:[%s7358 + $0x9c] sm:$0xff]
        %v7386 = vld [vmem:[%s7358 + $0xa4] sm:$0xf]
        %v7387 = vld [vmem:[%s7358 + $0xa8] sm:$0xff]
        %v7388 = vld [vmem:[%s7358 + $0xb0] sm:$0xf]
        %v7389 = vld [vmem:[%s7358 + $0xb4] sm:$0xff]
        %v7390 = vld [vmem:[%s7358 + $0xbc] sm:$0xf]
        %v7391 = vld [vmem:[%s7358 + $0xc0] sm:$0xff]
        %v7392 = vld [vmem:[%s7358 + $0xc8] sm:$0xf]
        %v7393 = vld [vmem:[%s7358 + $0xcc] sm:$0xff]
        %v7394 = vld [vmem:[%s7358 + $0xd4] sm:$0xf]
        %v7395 = vld [vmem:[%s7358 + $0xd8] sm:$0xff]
        %v7396 = vld [vmem:[%s7358 + $0xe0] sm:$0xf]
        %v7397 = vld [vmem:[%s7358 + $0xe4] sm:$0xff]
        %v7398 = vld [vmem:[%s7358 + $0xec] sm:$0xf]
        %v7401 = vrot.slane %v7356, 1
        %v7402 = vrot.slane %v7357, 1
        %v7444 = vunpack.c.l.b16 %v7359
        %v7445 = vunpack.c.h.b16 %v7359
        %v7446 = vunpack.c.l.b16 %v7360
        %v7447 = vunpack.c.l.b16 %v7361
        %v7448 = vunpack.c.h.b16 %v7361
        %v7449 = vunpack.c.l.b16 %v7362
        %v7450 = vunpack.c.l.b16 %v7363
        %v7451 = vunpack.c.h.b16 %v7363
        %v7452 = vunpack.c.l.b16 %v7364
        %v7453 = vunpack.c.l.b16 %v7365
        %v7454 = vunpack.c.h.b16 %v7365
        %v7455 = vunpack.c.l.b16 %v7366
        %v7456 = vunpack.c.l.b16 %v7367
        %v7457 = vunpack.c.h.b16 %v7367
        %v7458 = vunpack.c.l.b16 %v7368
        %v7459 = vunpack.c.l.b16 %v7369
        %v7460 = vunpack.c.h.b16 %v7369
        %v7461 = vunpack.c.l.b16 %v7370
        %v7462 = vunpack.c.l.b16 %v7371
        %v7463 = vunpack.c.h.b16 %v7371
        %v7464 = vunpack.c.l.b16 %v7372
        %v7465 = vunpack.c.l.b16 %v7373
        %v7466 = vunpack.c.h.b16 %v7373
        %v7467 = vunpack.c.l.b16 %v7374
        %v7468 = vunpack.c.l.b16 %v7375
        %v7469 = vunpack.c.h.b16 %v7375
        %v7470 = vunpack.c.l.b16 %v7376
        %v7471 = vunpack.c.l.b16 %v7377
        %v7472 = vunpack.c.h.b16 %v7377
        %v7473 = vunpack.c.l.b16 %v7378
        %v7474 = vunpack.c.l.b16 %v7379
        %v7475 = vunpack.c.h.b16 %v7379
        %v7476 = vunpack.c.l.b16 %v7380
        %v7477 = vunpack.c.l.b16 %v7381
        %v7478 = vunpack.c.h.b16 %v7381
        %v7479 = vunpack.c.l.b16 %v7382
        %v7480 = vunpack.c.l.b16 %v7383
        %v7481 = vunpack.c.h.b16 %v7383
        %v7482 = vunpack.c.l.b16 %v7384
        %v7483 = vunpack.c.l.b16 %v7385
        %v7484 = vunpack.c.h.b16 %v7385
        %v7485 = vunpack.c.l.b16 %v7386
        %v7486 = vunpack.c.l.b16 %v7387
        %v7487 = vunpack.c.h.b16 %v7387
        %v7488 = vunpack.c.l.b16 %v7388
        %v7489 = vunpack.c.l.b16 %v7389
        %v7490 = vunpack.c.h.b16 %v7389
        %v7491 = vunpack.c.l.b16 %v7390
        %v7492 = vunpack.c.l.b16 %v7391
        %v7493 = vunpack.c.h.b16 %v7391
        %v7494 = vunpack.c.l.b16 %v7392
        %v7495 = vunpack.c.l.b16 %v7393
        %v7496 = vunpack.c.h.b16 %v7393
        %v7497 = vunpack.c.l.b16 %v7394
        %v7498 = vunpack.c.l.b16 %v7395
        %v7499 = vunpack.c.h.b16 %v7395
        %v7500 = vunpack.c.l.b16 %v7396
        %v7501 = vunpack.c.l.b16 %v7397
        %v7502 = vunpack.c.h.b16 %v7397
        %v7503 = vunpack.c.l.b16 %v7398
        %v7504 = vpack.c.b16 %v7447, %v7444
        %v7505 = vpack.c.b16 %v7448, %v7445
        %v7506 = vpack.c.b16 %v7449, %v7446
        %v7507 = vpack.c.b16 %v7453, %v7450
        %v7508 = vpack.c.b16 %v7454, %v7451
        %v7509 = vpack.c.b16 %v7455, %v7452
        %v7510 = vpack.c.b16 %v7459, %v7456
        %v7511 = vpack.c.b16 %v7460, %v7457
        %v7512 = vpack.c.b16 %v7461, %v7458
        %v7513 = vpack.c.b16 %v7465, %v7462
        %v7514 = vpack.c.b16 %v7466, %v7463
        %v7515 = vpack.c.b16 %v7467, %v7464
        %v7516 = vpack.c.b16 %v7471, %v7468
        %v7517 = vpack.c.b16 %v7472, %v7469
        %v7518 = vpack.c.b16 %v7473, %v7470
        %v7519 = vpack.c.b16 %v7477, %v7474
        %v7520 = vpack.c.b16 %v7478, %v7475
        %v7521 = vpack.c.b16 %v7479, %v7476
        %v7522 = vpack.c.b16 %v7483, %v7480
        %v7523 = vpack.c.b16 %v7484, %v7481
        %v7524 = vpack.c.b16 %v7485, %v7482
        %v7525 = vpack.c.b16 %v7489, %v7486
        %v7526 = vpack.c.b16 %v7490, %v7487
        %v7527 = vpack.c.b16 %v7491, %v7488
        %v7528 = vpack.c.b16 %v7495, %v7492
        %v7529 = vpack.c.b16 %v7496, %v7493
        %v7530 = vpack.c.b16 %v7497, %v7494
        %v7531 = vpack.c.b16 %v7501, %v7498
        %v7532 = vpack.c.b16 %v7502, %v7499
        %v7533 = vpack.c.b16 %v7503, %v7500
        %v7565 = vsel %vm3701, %v7402, 0
        %7567 = vmatprep.subr.bf16.mxu0 %v7526
        %7568 = vmatpush1.bf16.msra.mxu0 %v7525
        %7569 = vmatprep.subr.bf16.mxu0 %v7523
        %7570 = vmatpush1.bf16.msra.mxu0 %v7522
        %7571 = vmatprep.subr.bf16.mxu0 %v7520
        %7572 = vmatpush1.bf16.msra.mxu0 %v7519
        %7573 = vmatprep.subr.bf16.mxu0 %v7517
        %7574 = vmatpush1.bf16.msra.mxu0 %v7516
        %7575 = vmatprep.subr.bf16.mxu0 %v7514
        %7576 = vmatpush1.bf16.msra.mxu0 %v7513
        %7577 = vmatprep.subr.bf16.mxu0 %v7511
        %7578 = vmatpush1.bf16.msra.mxu0 %v7510
        %7579 = vmatprep.subr.bf16.mxu0 %v7508
        %7580 = vmatpush1.bf16.msra.mxu0 %v7507
        %7581 = vmatprep.subr.bf16.mxu0 %v7505
        %7582 = vmatpush1.bf16.msra.mxu0 %v7504
        %7583 = vmatprep.subr.bf16.mxu0 0
        %7584 = vmatpush2.bf16.msra.mxu0 0
        %7585 = vmatprep.subr.bf16.mxu0 0
        %7586 = vmatpush2.bf16.msra.mxu0 0
        %7587 = vmatprep.subr.bf16.mxu0 0
        %7588 = vmatpush2.bf16.msra.mxu0 0
        %7589 = vmatprep.subr.bf16.mxu0 0
        %7590 = vmatpush2.bf16.msra.mxu0 0
        %7591 = vmatprep.subr.bf16.mxu0 0
        %7592 = vmatpush2.bf16.msra.mxu0 0
        %7593 = vmatprep.subr.bf16.mxu0 0
        %7594 = vmatpush2.bf16.msra.mxu0 0
        %7595 = vmatprep.subr.bf16.mxu0 %v7532
        %7596 = vmatpush2.bf16.msra.mxu0 %v7531
        %7597 = vmatprep.subr.bf16.mxu0 %v7529
        %7598 = vmatpush2.bf16.msra.mxu0 %v7528
        %7599 = vmatprep.mubr.bf16.mxu0 %v7565
        %7600 = vmatmul.mubr.bf16.gmra.mxu0 %v7401
        %v7601 = vpop.f32.mrf.mxu0
        %v7602 = vadd.f32 0.0, %v7601
        %v7603 = vpop.f32.mrf.mxu0
        %v7604 = vadd.f32 0.0, %v7603
        %v7605 = vpop.f32.mrf.mxu0
        %v7606 = vpop.f32.mrf.mxu0
        %7607 = vdwg.mxu0
        %7608 = vmatprep.subr.bf16.mxu0 0
        %7609 = vmatpush1.bf16.msra.mxu0 %v7527
        %7610 = vmatprep.subr.bf16.mxu0 0
        %7611 = vmatpush1.bf16.msra.mxu0 %v7524
        %7612 = vmatprep.subr.bf16.mxu0 0
        %7613 = vmatpush1.bf16.msra.mxu0 %v7521
        %7614 = vmatprep.subr.bf16.mxu0 0
        %7615 = vmatpush1.bf16.msra.mxu0 %v7518
        %7616 = vmatprep.subr.bf16.mxu0 0
        %7617 = vmatpush1.bf16.msra.mxu0 %v7515
        %7618 = vmatprep.subr.bf16.mxu0 0
        %7619 = vmatpush1.bf16.msra.mxu0 %v7512
        %7620 = vmatprep.subr.bf16.mxu0 0
        %7621 = vmatpush1.bf16.msra.mxu0 %v7509
        %7622 = vmatprep.subr.bf16.mxu0 0
        %7623 = vmatpush1.bf16.msra.mxu0 %v7506
        %7624 = vmatprep.subr.bf16.mxu0 0
        %7625 = vmatpush2.bf16.msra.mxu0 0
        %7626 = vmatprep.subr.bf16.mxu0 0
        %7627 = vmatpush2.bf16.msra.mxu0 0
        %7628 = vmatprep.subr.bf16.mxu0 0
        %7629 = vmatpush2.bf16.msra.mxu0 0
        %7630 = vmatprep.subr.bf16.mxu0 0
        %7631 = vmatpush2.bf16.msra.mxu0 0
        %7632 = vmatprep.subr.bf16.mxu0 0
        %7633 = vmatpush2.bf16.msra.mxu0 0
        %7634 = vmatprep.subr.bf16.mxu0 0
        %7635 = vmatpush2.bf16.msra.mxu0 0
        %7636 = vmatprep.subr.bf16.mxu0 0
        %7637 = vmatpush2.bf16.msra.mxu0 %v7533
        %7638 = vmatprep.subr.bf16.mxu0 0
        %7639 = vmatpush2.bf16.msra.mxu0 %v7530
        %7640 = vmatprep.mubr.bf16.mxu0 %v7565
        %7641 = vmatmul.mubr.bf16.gmra.mxu0 %v7401
        %v7642 = vpop.f32.mrf.mxu0
        %v7643 = vadd.f32 0.0, %v7642
        %v7644 = vpop.f32.mrf.mxu0
        %v7645 = vpop.f32.mrf.mxu0
        %v7646 = vpop.f32.mrf.mxu0
        %7647 = vdwg.mxu0
        %v7648 = vadd.f32 %v7308, %v7602
        %v7649 = vadd.f32 %v7310, %v7604
        %v7650 = vadd.f32 %v7349, %v7643
        %v7651 = vld [vmem:[%s25] sm:$0x7]
        %v7653 = vlaneseq
        %v7654 = vshrl.u32 %v7653, 7
        %v7655 = vsub.s32 0, %v7654
        %v7656 = vrot.slane %v7651, %v7655
        %v7657 = vlaneseq
        %v7658 = vshrl.u32 %v7657, 7
        %v7659 = vsub.s32 1, %v7658
        %v7660 = vrot.slane %v7651, %v7659
        %v7661 = vlaneseq
        %v7662 = vshrl.u32 %v7661, 7
        %v7663 = vsub.s32 2, %v7662
        %v7664 = vrot.slane %v7651, %v7663
        %v7668 = vadd.f32 %v7648, %v7656
        %v7669 = vadd.f32 %v7649, %v7660
        %v7670 = vadd.f32 %v7650, %v7664
        %v7671 = vmax.f32 %v7668, 0.0
        %v7672 = vmax.f32 %v7669, 0.0
        %v7673 = vmax.f32 %v7670, 0.0
        %7674 = vst.msk [vmem:[#allocation2] ss:$8 sm:$0x7] %vm1561, 0.0
        %7675 = vst.msk [vmem:[#allocation2] ss:$8 sm:$0x0] %vm1561, 0.0
        %7676 = vst.msk [vmem:[%s3748] ss:$8 sm:$0x7] %vm1561, 0.0
        %7677 = vst.msk [vmem:[%s3748] ss:$8 sm:$0x0] %vm1561, 0.0
        %v7681 = vrot.slane %v7671, 7
        %v7682 = vrot.slane %v7672, 7
        %v7683 = vrot.slane %v7673, 7
        %7687 = vst [vmem:[#allocation2] sm:$0x1e] %v7681
        %7688 = vst [vmem:[#allocation2 + $0x8] sm:$0x1e] %v7682
        %vm7689 = vcmask 520193
        %7690 = vst.msk [vmem:[#allocation2 + $0x10] sm:$0x1e] %vm7689, %v7683
        %v7691 = vld [vmem:[#allocation2] sm:$0xf]
        %v7692 = vld [vmem:[#allocation2 + $0x8] sm:$0xf]
        %v7693 = vld [vmem:[#allocation2 + $0x10] sm:$0xf]
        %v7694 = vpack.c.bf16 %v7691, %v7691
        %v7695 = vpack.c.bf16 %v7692, %v7692
        %v7696 = vpack.c.bf16 %v7693, %v7693
        %v7697 = vld [vmem:[%s27] sm:$0xff]
        %v7698 = vld [vmem:[%s27 + $0x8] sm:$0xff]
        %v7699 = vld [vmem:[%s27 + $0x10] sm:$0xff]
        %v7700 = vld [vmem:[%s27 + $0x18] sm:$0xff]
        %v7701 = vld [vmem:[%s27 + $0x20] sm:$0xff]
        %v7702 = vld [vmem:[%s27 + $0x28] sm:$0xff]
        %v7703 = vld [vmem:[%s27 + $0x30] sm:$0xff]
        %v7704 = vld [vmem:[%s27 + $0x38] sm:$0xff]
        %v7705 = vld [vmem:[%s27 + $0x40] sm:$0xff]
        %v7706 = vld [vmem:[%s27 + $0x48] sm:$0xff]
        %v7707 = vld [vmem:[%s27 + $0x50] sm:$0xff]
        %v7708 = vld [vmem:[%s27 + $0x58] sm:$0xff]
        %v7709 = vld [vmem:[%s27 + $0x60] sm:$0xff]
        %v7710 = vld [vmem:[%s27 + $0x68] sm:$0xff]
        %v7711 = vld [vmem:[%s27 + $0x70] sm:$0xff]
        %v7712 = vld [vmem:[%s27 + $0x78] sm:$0xff]
        %v7713 = vld [vmem:[%s27 + $0x80] sm:$0xff]
        %v7714 = vld [vmem:[%s27 + $0x88] sm:$0xff]
        %v7715 = vld [vmem:[%s27 + $0x90] sm:$0xff]
        %v7716 = vld [vmem:[%s27 + $0x98] sm:$0xff]
        %v7717 = vld [vmem:[%s27 + $0xa0] sm:$0xff]
        %v7718 = vld [vmem:[%s27 + $0xa8] sm:$0xff]
        %v7719 = vld [vmem:[%s27 + $0xb0] sm:$0xff]
        %v7720 = vld [vmem:[%s27 + $0xb8] sm:$0xff]
        %v7721 = vld [vmem:[%s27 + $0xc0] sm:$0xff]
        %v7722 = vld [vmem:[%s27 + $0xc8] sm:$0xff]
        %v7723 = vld [vmem:[%s27 + $0xd0] sm:$0xff]
        %v7724 = vld [vmem:[%s27 + $0xd8] sm:$0xff]
        %v7725 = vld [vmem:[%s27 + $0xe0] sm:$0xff]
        %v7726 = vld [vmem:[%s27 + $0xe8] sm:$0xff]
        %v7727 = vld [vmem:[%s27 + $0xf0] sm:$0xff]
        %v7728 = vld [vmem:[%s27 + $0xf8] sm:$0xff]
        %v7729 = vld [vmem:[%s27 + $0x100] sm:$0xff]
        %v7730 = vld [vmem:[%s27 + $0x108] sm:$0xff]
        %v7731 = vld [vmem:[%s27 + $0x110] sm:$0xff]
        %v7732 = vld [vmem:[%s27 + $0x118] sm:$0xff]
        %v7733 = vld [vmem:[%s27 + $0x120] sm:$0xff]
        %v7734 = vld [vmem:[%s27 + $0x128] sm:$0xff]
        %v7735 = vld [vmem:[%s27 + $0x130] sm:$0xff]
        %v7736 = vld [vmem:[%s27 + $0x138] sm:$0xff]
        %v7737 = vld [vmem:[#allocation2] sm:$0x1e]
        %v7738 = vld [vmem:[#allocation2 + $0x8] sm:$0x1e]
        %v7739 = vld [vmem:[#allocation2 + $0x10] sm:$0x1e]
        %v7740 = vpack.c.bf16 %v7737, %v7737
        %v7741 = vpack.c.bf16 %v7738, %v7738
        %v7742 = vpack.c.bf16 %v7739, %v7739
        %s7743 = scalar_lea.vmem %s27, 320
        %v7744 = vld [vmem:[%s7743] sm:$0xff]
        %v7745 = vld [vmem:[%s7743 + $0x8] sm:$0xff]
        %v7746 = vld [vmem:[%s7743 + $0x10] sm:$0xff]
        %v7747 = vld [vmem:[%s7743 + $0x18] sm:$0xff]
        %v7748 = vld [vmem:[%s7743 + $0x20] sm:$0xff]
        %v7749 = vld [vmem:[%s7743 + $0x28] sm:$0xff]
        %v7750 = vld [vmem:[%s7743 + $0x30] sm:$0xff]
        %v7751 = vld [vmem:[%s7743 + $0x38] sm:$0xff]
        %v7752 = vld [vmem:[%s7743 + $0x40] sm:$0xff]
        %v7753 = vld [vmem:[%s7743 + $0x48] sm:$0xff]
        %v7754 = vld [vmem:[%s7743 + $0x50] sm:$0xff]
        %v7755 = vld [vmem:[%s7743 + $0x58] sm:$0xff]
        %v7756 = vld [vmem:[%s7743 + $0x60] sm:$0xff]
        %v7757 = vld [vmem:[%s7743 + $0x68] sm:$0xff]
        %v7758 = vld [vmem:[%s7743 + $0x70] sm:$0xff]
        %v7759 = vld [vmem:[%s7743 + $0x78] sm:$0xff]
        %v7760 = vld [vmem:[%s7743 + $0x80] sm:$0xff]
        %v7761 = vld [vmem:[%s7743 + $0x88] sm:$0xff]
        %v7762 = vld [vmem:[%s7743 + $0x90] sm:$0xff]
        %v7763 = vld [vmem:[%s7743 + $0x98] sm:$0xff]
        %v7764 = vld [vmem:[%s7743 + $0xa0] sm:$0xff]
        %v7765 = vld [vmem:[%s7743 + $0xa8] sm:$0xff]
        %v7766 = vld [vmem:[%s7743 + $0xb0] sm:$0xff]
        %v7767 = vld [vmem:[%s7743 + $0xb8] sm:$0xff]
        %v7768 = vld [vmem:[%s7743 + $0xc0] sm:$0xff]
        %v7769 = vld [vmem:[%s7743 + $0xc8] sm:$0xff]
        %v7770 = vld [vmem:[%s7743 + $0xd0] sm:$0xff]
        %v7771 = vld [vmem:[%s7743 + $0xd8] sm:$0xff]
        %v7772 = vld [vmem:[%s7743 + $0xe0] sm:$0xff]
        %v7773 = vld [vmem:[%s7743 + $0xe8] sm:$0xff]
        %v7774 = vld [vmem:[%s7743 + $0xf0] sm:$0xff]
        %v7775 = vld [vmem:[%s7743 + $0xf8] sm:$0xff]
        %v7776 = vld [vmem:[%s7743 + $0x100] sm:$0xff]
        %v7777 = vld [vmem:[%s7743 + $0x108] sm:$0xff]
        %v7778 = vld [vmem:[%s7743 + $0x110] sm:$0xff]
        %v7779 = vld [vmem:[%s7743 + $0x118] sm:$0xff]
        %v7780 = vld [vmem:[%s7743 + $0x120] sm:$0xff]
        %v7781 = vld [vmem:[%s7743 + $0x128] sm:$0xff]
        %v7782 = vld [vmem:[%s7743 + $0x130] sm:$0xff]
        %v7783 = vld [vmem:[%s7743 + $0x138] sm:$0xff]
        %v7785 = vshrl.u32 %v7740, 16
        %v7787 = vshll.u32 %v7740, 16
        %v7789 = vrot.slane %v7787, 1
        %v7790 = vor.u32 %v7785, %v7789
        %v7792 = vshrl.u32 %v7741, 16
        %v7794 = vshll.u32 %v7741, 16
        %v7796 = vrot.slane %v7794, 1
        %v7797 = vor.u32 %v7792, %v7796
        %v7799 = vshrl.u32 %v7742, 16
        %v7801 = vshll.u32 %v7742, 16
        %v7803 = vrot.slane %v7801, 1
        %v7804 = vor.u32 %v7799, %v7803
        %v7847 = vunpack.c.l.b16 %v7744
        %v7848 = vunpack.c.h.b16 %v7744
        %v7849 = vunpack.c.l.b16 %v7745
        %v7850 = vunpack.c.h.b16 %v7745
        %v7851 = vunpack.c.l.b16 %v7746
        %v7852 = vunpack.c.h.b16 %v7746
        %v7853 = vunpack.c.l.b16 %v7747
        %v7854 = vunpack.c.h.b16 %v7747
        %v7855 = vunpack.c.l.b16 %v7748
        %v7856 = vunpack.c.h.b16 %v7748
        %v7857 = vunpack.c.l.b16 %v7749
        %v7858 = vunpack.c.h.b16 %v7749
        %v7859 = vunpack.c.l.b16 %v7750
        %v7860 = vunpack.c.h.b16 %v7750
        %v7861 = vunpack.c.l.b16 %v7751
        %v7862 = vunpack.c.h.b16 %v7751
        %v7863 = vunpack.c.l.b16 %v7752
        %v7864 = vunpack.c.h.b16 %v7752
        %v7865 = vunpack.c.l.b16 %v7753
        %v7866 = vunpack.c.h.b16 %v7753
        %v7867 = vunpack.c.l.b16 %v7754
        %v7868 = vunpack.c.h.b16 %v7754
        %v7869 = vunpack.c.l.b16 %v7755
        %v7870 = vunpack.c.h.b16 %v7755
        %v7871 = vunpack.c.l.b16 %v7756
        %v7872 = vunpack.c.h.b16 %v7756
        %v7873 = vunpack.c.l.b16 %v7757
        %v7874 = vunpack.c.h.b16 %v7757
        %v7875 = vunpack.c.l.b16 %v7758
        %v7876 = vunpack.c.h.b16 %v7758
        %v7877 = vunpack.c.l.b16 %v7759
        %v7878 = vunpack.c.h.b16 %v7759
        %v7879 = vunpack.c.l.b16 %v7760
        %v7880 = vunpack.c.h.b16 %v7760
        %v7881 = vunpack.c.l.b16 %v7761
        %v7882 = vunpack.c.h.b16 %v7761
        %v7883 = vunpack.c.l.b16 %v7762
        %v7884 = vunpack.c.h.b16 %v7762
        %v7885 = vunpack.c.l.b16 %v7763
        %v7886 = vunpack.c.h.b16 %v7763
        %v7887 = vunpack.c.l.b16 %v7764
        %v7888 = vunpack.c.h.b16 %v7764
        %v7889 = vunpack.c.l.b16 %v7765
        %v7890 = vunpack.c.h.b16 %v7765
        %v7891 = vunpack.c.l.b16 %v7766
        %v7892 = vunpack.c.h.b16 %v7766
        %v7893 = vunpack.c.l.b16 %v7767
        %v7894 = vunpack.c.h.b16 %v7767
        %v7895 = vunpack.c.l.b16 %v7768
        %v7896 = vunpack.c.h.b16 %v7768
        %v7897 = vunpack.c.l.b16 %v7769
        %v7898 = vunpack.c.h.b16 %v7769
        %v7899 = vunpack.c.l.b16 %v7770
        %v7900 = vunpack.c.h.b16 %v7770
        %v7901 = vunpack.c.l.b16 %v7771
        %v7902 = vunpack.c.h.b16 %v7771
        %v7903 = vunpack.c.l.b16 %v7772
        %v7904 = vunpack.c.h.b16 %v7772
        %v7905 = vunpack.c.l.b16 %v7773
        %v7906 = vunpack.c.h.b16 %v7773
        %v7907 = vunpack.c.l.b16 %v7774
        %v7908 = vunpack.c.h.b16 %v7774
        %v7909 = vunpack.c.l.b16 %v7775
        %v7910 = vunpack.c.h.b16 %v7775
        %v7911 = vunpack.c.l.b16 %v7776
        %v7912 = vunpack.c.h.b16 %v7776
        %v7913 = vunpack.c.l.b16 %v7777
        %v7914 = vunpack.c.h.b16 %v7777
        %v7915 = vunpack.c.l.b16 %v7778
        %v7916 = vunpack.c.h.b16 %v7778
        %v7917 = vunpack.c.l.b16 %v7779
        %v7918 = vunpack.c.h.b16 %v7779
        %v7919 = vunpack.c.l.b16 %v7780
        %v7920 = vunpack.c.h.b16 %v7780
        %v7921 = vunpack.c.l.b16 %v7781
        %v7922 = vunpack.c.h.b16 %v7781
        %v7923 = vunpack.c.l.b16 %v7782
        %v7924 = vunpack.c.h.b16 %v7782
        %v7925 = vunpack.c.l.b16 %v7783
        %v7926 = vunpack.c.h.b16 %v7783
        %v7927 = vpack.c.b16 %v7849, %v7847
        %v7928 = vpack.c.b16 %v7850, %v7848
        %v7929 = vpack.c.b16 %v7853, %v7851
        %v7930 = vpack.c.b16 %v7854, %v7852
        %v7931 = vpack.c.b16 %v7857, %v7855
        %v7932 = vpack.c.b16 %v7858, %v7856
        %v7933 = vpack.c.b16 %v7861, %v7859
        %v7934 = vpack.c.b16 %v7862, %v7860
        %v7935 = vpack.c.b16 %v7865, %v7863
        %v7936 = vpack.c.b16 %v7866, %v7864
        %v7937 = vpack.c.b16 %v7869, %v7867
        %v7938 = vpack.c.b16 %v7870, %v7868
        %v7939 = vpack.c.b16 %v7873, %v7871
        %v7940 = vpack.c.b16 %v7874, %v7872
        %v7941 = vpack.c.b16 %v7877, %v7875
        %v7942 = vpack.c.b16 %v7878, %v7876
        %v7943 = vpack.c.b16 %v7881, %v7879
        %v7944 = vpack.c.b16 %v7882, %v7880
        %v7945 = vpack.c.b16 %v7885, %v7883
        %v7946 = vpack.c.b16 %v7886, %v7884
        %v7947 = vpack.c.b16 %v7889, %v7887
        %v7948 = vpack.c.b16 %v7890, %v7888
        %v7949 = vpack.c.b16 %v7893, %v7891
        %v7950 = vpack.c.b16 %v7894, %v7892
        %v7951 = vpack.c.b16 %v7897, %v7895
        %v7952 = vpack.c.b16 %v7898, %v7896
        %v7953 = vpack.c.b16 %v7901, %v7899
        %v7954 = vpack.c.b16 %v7902, %v7900
        %v7955 = vpack.c.b16 %v7905, %v7903
        %v7956 = vpack.c.b16 %v7906, %v7904
        %v7957 = vpack.c.b16 %v7909, %v7907
        %v7958 = vpack.c.b16 %v7910, %v7908
        %v7959 = vpack.c.b16 %v7913, %v7911
        %v7960 = vpack.c.b16 %v7914, %v7912
        %v7961 = vpack.c.b16 %v7917, %v7915
        %v7962 = vpack.c.b16 %v7918, %v7916
        %v7963 = vpack.c.b16 %v7921, %v7919
        %v7964 = vpack.c.b16 %v7922, %v7920
        %v7965 = vpack.c.b16 %v7925, %v7923
        %v7966 = vpack.c.b16 %v7926, %v7924
        %v8008 = vsel %vm1597, %v7804, 0
        %8010 = vmatprep.subr.bf16.mxu0 %v7942
        %8011 = vmatpush1.bf16.msra.mxu0 %v7941
        %8012 = vmatprep.subr.bf16.mxu0 %v7940
        %8013 = vmatpush1.bf16.msra.mxu0 %v7939
        %8014 = vmatprep.subr.bf16.mxu0 %v7938
        %8015 = vmatpush1.bf16.msra.mxu0 %v7937
        %8016 = vmatprep.subr.bf16.mxu0 %v7936
        %8017 = vmatpush1.bf16.msra.mxu0 %v7935
        %8018 = vmatprep.subr.bf16.mxu0 %v7934
        %8019 = vmatpush1.bf16.msra.mxu0 %v7933
        %8020 = vmatprep.subr.bf16.mxu0 %v7932
        %8021 = vmatpush1.bf16.msra.mxu0 %v7931
        %8022 = vmatprep.subr.bf16.mxu0 %v7930
        %8023 = vmatpush1.bf16.msra.mxu0 %v7929
        %8024 = vmatprep.subr.bf16.mxu0 %v7928
        %8025 = vmatpush1.bf16.msra.mxu0 %v7927
        %8026 = vmatprep.subr.bf16.mxu0 %v7958
        %8027 = vmatpush2.bf16.msra.mxu0 %v7957
        %8028 = vmatprep.subr.bf16.mxu0 %v7956
        %8029 = vmatpush2.bf16.msra.mxu0 %v7955
        %8030 = vmatprep.subr.bf16.mxu0 %v7954
        %8031 = vmatpush2.bf16.msra.mxu0 %v7953
        %8032 = vmatprep.subr.bf16.mxu0 %v7952
        %8033 = vmatpush2.bf16.msra.mxu0 %v7951
        %8034 = vmatprep.subr.bf16.mxu0 %v7950
        %8035 = vmatpush2.bf16.msra.mxu0 %v7949
        %8036 = vmatprep.subr.bf16.mxu0 %v7948
        %8037 = vmatpush2.bf16.msra.mxu0 %v7947
        %8038 = vmatprep.subr.bf16.mxu0 %v7946
        %8039 = vmatpush2.bf16.msra.mxu0 %v7945
        %8040 = vmatprep.subr.bf16.mxu0 %v7944
        %8041 = vmatpush2.bf16.msra.mxu0 %v7943
        %8042 = vmatprep.mubr.bf16.mxu0 %v7797
        %8043 = vmatmul.mubr.bf16.gmra.mxu0 %v7790
        %v8044 = vpop.f32.mrf.mxu0
        %v8045 = vadd.f32 0.0, %v8044
        %v8046 = vpop.f32.mrf.mxu0
        %v8047 = vadd.f32 0.0, %v8046
        %v8048 = vpop.f32.mrf.mxu0
        %v8049 = vpop.f32.mrf.mxu0
        %8050 = vdwg.mxu0
        %8051 = vmatprep.subr.bf16.mxu0 0
        %8052 = vmatpush1.bf16.msra.mxu0 0
        %8053 = vmatprep.subr.bf16.mxu0 0
        %8054 = vmatpush1.bf16.msra.mxu0 0
        %8055 = vmatprep.subr.bf16.mxu0 0
        %8056 = vmatpush1.bf16.msra.mxu0 0
        %8057 = vmatprep.subr.bf16.mxu0 0
        %8058 = vmatpush1.bf16.msra.mxu0 0
        %8059 = vmatprep.subr.bf16.mxu0 %v7966
        %8060 = vmatpush1.bf16.msra.mxu0 %v7965
        %8061 = vmatprep.subr.bf16.mxu0 %v7964
        %8062 = vmatpush1.bf16.msra.mxu0 %v7963
        %8063 = vmatprep.subr.bf16.mxu0 %v7962
        %8064 = vmatpush1.bf16.msra.mxu0 %v7961
        %8065 = vmatprep.subr.bf16.mxu0 %v7960
        %8066 = vmatpush1.bf16.msra.mxu0 %v7959
        %8067 = vmatprep.subr.bf16.mxu0 0
        %8068 = vmatpush2.bf16.msra.mxu0 0
        %8069 = vmatprep.subr.bf16.mxu0 0
        %8070 = vmatpush2.bf16.msra.mxu0 0
        %8071 = vmatprep.subr.bf16.mxu0 0
        %8072 = vmatpush2.bf16.msra.mxu0 0
        %8073 = vmatprep.subr.bf16.mxu0 0
        %8074 = vmatpush2.bf16.msra.mxu0 0
        %8075 = vmatprep.subr.bf16.mxu0 0
        %8076 = vmatpush2.bf16.msra.mxu0 0
        %8077 = vmatprep.subr.bf16.mxu0 0
        %8078 = vmatpush2.bf16.msra.mxu0 0
        %8079 = vmatprep.subr.bf16.mxu0 0
        %8080 = vmatpush2.bf16.msra.mxu0 0
        %8081 = vmatprep.subr.bf16.mxu0 0
        %8082 = vmatpush2.bf16.msra.mxu0 0
        %8083 = vmatprep.mubr.bf16.mxu0 0
        %8084 = vmatmul.mubr.bf16.gmra.mxu0 %v8008
        %v8085 = vpop.f32.mrf.mxu0
        %v8086 = vadd.f32 %v8045, %v8085
        %v8087 = vpop.f32.mrf.mxu0
        %v8088 = vadd.f32 %v8047, %v8087
        %v8089 = vpop.f32.mrf.mxu0
        %v8090 = vpop.f32.mrf.mxu0
        %8091 = vdwg.mxu0
        %v8132 = vunpack.c.l.b16 %v7697
        %v8133 = vunpack.c.h.b16 %v7697
        %v8134 = vunpack.c.l.b16 %v7698
        %v8135 = vunpack.c.h.b16 %v7698
        %v8136 = vunpack.c.l.b16 %v7699
        %v8137 = vunpack.c.h.b16 %v7699
        %v8138 = vunpack.c.l.b16 %v7700
        %v8139 = vunpack.c.h.b16 %v7700
        %v8140 = vunpack.c.l.b16 %v7701
        %v8141 = vunpack.c.h.b16 %v7701
        %v8142 = vunpack.c.l.b16 %v7702
        %v8143 = vunpack.c.h.b16 %v7702
        %v8144 = vunpack.c.l.b16 %v7703
        %v8145 = vunpack.c.h.b16 %v7703
        %v8146 = vunpack.c.l.b16 %v7704
        %v8147 = vunpack.c.h.b16 %v7704
        %v8148 = vunpack.c.l.b16 %v7705
        %v8149 = vunpack.c.h.b16 %v7705
        %v8150 = vunpack.c.l.b16 %v7706
        %v8151 = vunpack.c.h.b16 %v7706
        %v8152 = vunpack.c.l.b16 %v7707
        %v8153 = vunpack.c.h.b16 %v7707
        %v8154 = vunpack.c.l.b16 %v7708
        %v8155 = vunpack.c.h.b16 %v7708
        %v8156 = vunpack.c.l.b16 %v7709
        %v8157 = vunpack.c.h.b16 %v7709
        %v8158 = vunpack.c.l.b16 %v7710
        %v8159 = vunpack.c.h.b16 %v7710
        %v8160 = vunpack.c.l.b16 %v7711
        %v8161 = vunpack.c.h.b16 %v7711
        %v8162 = vunpack.c.l.b16 %v7712
        %v8163 = vunpack.c.h.b16 %v7712
        %v8164 = vunpack.c.l.b16 %v7713
        %v8165 = vunpack.c.h.b16 %v7713
        %v8166 = vunpack.c.l.b16 %v7714
        %v8167 = vunpack.c.h.b16 %v7714
        %v8168 = vunpack.c.l.b16 %v7715
        %v8169 = vunpack.c.h.b16 %v7715
        %v8170 = vunpack.c.l.b16 %v7716
        %v8171 = vunpack.c.h.b16 %v7716
        %v8172 = vunpack.c.l.b16 %v7717
        %v8173 = vunpack.c.h.b16 %v7717
        %v8174 = vunpack.c.l.b16 %v7718
        %v8175 = vunpack.c.h.b16 %v7718
        %v8176 = vunpack.c.l.b16 %v7719
        %v8177 = vunpack.c.h.b16 %v7719
        %v8178 = vunpack.c.l.b16 %v7720
        %v8179 = vunpack.c.h.b16 %v7720
        %v8180 = vunpack.c.l.b16 %v7721
        %v8181 = vunpack.c.h.b16 %v7721
        %v8182 = vunpack.c.l.b16 %v7722
        %v8183 = vunpack.c.h.b16 %v7722
        %v8184 = vunpack.c.l.b16 %v7723
        %v8185 = vunpack.c.h.b16 %v7723
        %v8186 = vunpack.c.l.b16 %v7724
        %v8187 = vunpack.c.h.b16 %v7724
        %v8188 = vunpack.c.l.b16 %v7725
        %v8189 = vunpack.c.h.b16 %v7725
        %v8190 = vunpack.c.l.b16 %v7726
        %v8191 = vunpack.c.h.b16 %v7726
        %v8192 = vunpack.c.l.b16 %v7727
        %v8193 = vunpack.c.h.b16 %v7727
        %v8194 = vunpack.c.l.b16 %v7728
        %v8195 = vunpack.c.h.b16 %v7728
        %v8196 = vunpack.c.l.b16 %v7729
        %v8197 = vunpack.c.h.b16 %v7729
        %v8198 = vunpack.c.l.b16 %v7730
        %v8199 = vunpack.c.h.b16 %v7730
        %v8200 = vunpack.c.l.b16 %v7731
        %v8201 = vunpack.c.h.b16 %v7731
        %v8202 = vunpack.c.l.b16 %v7732
        %v8203 = vunpack.c.h.b16 %v7732
        %v8204 = vunpack.c.l.b16 %v7733
        %v8205 = vunpack.c.h.b16 %v7733
        %v8206 = vunpack.c.l.b16 %v7734
        %v8207 = vunpack.c.h.b16 %v7734
        %v8208 = vunpack.c.l.b16 %v7735
        %v8209 = vunpack.c.h.b16 %v7735
        %v8210 = vunpack.c.l.b16 %v7736
        %v8211 = vunpack.c.h.b16 %v7736
        %v8212 = vpack.c.b16 %v8134, %v8132
        %v8213 = vpack.c.b16 %v8135, %v8133
        %v8214 = vpack.c.b16 %v8138, %v8136
        %v8215 = vpack.c.b16 %v8139, %v8137
        %v8216 = vpack.c.b16 %v8142, %v8140
        %v8217 = vpack.c.b16 %v8143, %v8141
        %v8218 = vpack.c.b16 %v8146, %v8144
        %v8219 = vpack.c.b16 %v8147, %v8145
        %v8220 = vpack.c.b16 %v8150, %v8148
        %v8221 = vpack.c.b16 %v8151, %v8149
        %v8222 = vpack.c.b16 %v8154, %v8152
        %v8223 = vpack.c.b16 %v8155, %v8153
        %v8224 = vpack.c.b16 %v8158, %v8156
        %v8225 = vpack.c.b16 %v8159, %v8157
        %v8226 = vpack.c.b16 %v8162, %v8160
        %v8227 = vpack.c.b16 %v8163, %v8161
        %v8228 = vpack.c.b16 %v8166, %v8164
        %v8229 = vpack.c.b16 %v8167, %v8165
        %v8230 = vpack.c.b16 %v8170, %v8168
        %v8231 = vpack.c.b16 %v8171, %v8169
        %v8232 = vpack.c.b16 %v8174, %v8172
        %v8233 = vpack.c.b16 %v8175, %v8173
        %v8234 = vpack.c.b16 %v8178, %v8176
        %v8235 = vpack.c.b16 %v8179, %v8177
        %v8236 = vpack.c.b16 %v8182, %v8180
        %v8237 = vpack.c.b16 %v8183, %v8181
        %v8238 = vpack.c.b16 %v8186, %v8184
        %v8239 = vpack.c.b16 %v8187, %v8185
        %v8240 = vpack.c.b16 %v8190, %v8188
        %v8241 = vpack.c.b16 %v8191, %v8189
        %v8242 = vpack.c.b16 %v8194, %v8192
        %v8243 = vpack.c.b16 %v8195, %v8193
        %v8244 = vpack.c.b16 %v8198, %v8196
        %v8245 = vpack.c.b16 %v8199, %v8197
        %v8246 = vpack.c.b16 %v8202, %v8200
        %v8247 = vpack.c.b16 %v8203, %v8201
        %v8248 = vpack.c.b16 %v8206, %v8204
        %v8249 = vpack.c.b16 %v8207, %v8205
        %v8250 = vpack.c.b16 %v8210, %v8208
        %v8251 = vpack.c.b16 %v8211, %v8209
        %v8293 = vsel %vm1597, %v7696, 0
        %8295 = vmatprep.subr.bf16.mxu0 %v8227
        %8296 = vmatpush1.bf16.msra.mxu0 %v8226
        %8297 = vmatprep.subr.bf16.mxu0 %v8225
        %8298 = vmatpush1.bf16.msra.mxu0 %v8224
        %8299 = vmatprep.subr.bf16.mxu0 %v8223
        %8300 = vmatpush1.bf16.msra.mxu0 %v8222
        %8301 = vmatprep.subr.bf16.mxu0 %v8221
        %8302 = vmatpush1.bf16.msra.mxu0 %v8220
        %8303 = vmatprep.subr.bf16.mxu0 %v8219
        %8304 = vmatpush1.bf16.msra.mxu0 %v8218
        %8305 = vmatprep.subr.bf16.mxu0 %v8217
        %8306 = vmatpush1.bf16.msra.mxu0 %v8216
        %8307 = vmatprep.subr.bf16.mxu0 %v8215
        %8308 = vmatpush1.bf16.msra.mxu0 %v8214
        %8309 = vmatprep.subr.bf16.mxu0 %v8213
        %8310 = vmatpush1.bf16.msra.mxu0 %v8212
        %8311 = vmatprep.subr.bf16.mxu0 %v8243
        %8312 = vmatpush2.bf16.msra.mxu0 %v8242
        %8313 = vmatprep.subr.bf16.mxu0 %v8241
        %8314 = vmatpush2.bf16.msra.mxu0 %v8240
        %8315 = vmatprep.subr.bf16.mxu0 %v8239
        %8316 = vmatpush2.bf16.msra.mxu0 %v8238
        %8317 = vmatprep.subr.bf16.mxu0 %v8237
        %8318 = vmatpush2.bf16.msra.mxu0 %v8236
        %8319 = vmatprep.subr.bf16.mxu0 %v8235
        %8320 = vmatpush2.bf16.msra.mxu0 %v8234
        %8321 = vmatprep.subr.bf16.mxu0 %v8233
        %8322 = vmatpush2.bf16.msra.mxu0 %v8232
        %8323 = vmatprep.subr.bf16.mxu0 %v8231
        %8324 = vmatpush2.bf16.msra.mxu0 %v8230
        %8325 = vmatprep.subr.bf16.mxu0 %v8229
        %8326 = vmatpush2.bf16.msra.mxu0 %v8228
        %8327 = vmatprep.mubr.bf16.mxu0 %v7695
        %8328 = vmatmul.mubr.bf16.gmra.mxu0 %v7694
        %v8329 = vpop.f32.mrf.mxu0
        %v8330 = vadd.f32 %v8086, %v8329
        %v8331 = vpop.f32.mrf.mxu0
        %v8332 = vadd.f32 %v8088, %v8331
        %v8333 = vpop.f32.mrf.mxu0
        %v8334 = vpop.f32.mrf.mxu0
        %8335 = vdwg.mxu0
        %8336 = vmatprep.subr.bf16.mxu0 0
        %8337 = vmatpush1.bf16.msra.mxu0 0
        %8338 = vmatprep.subr.bf16.mxu0 0
        %8339 = vmatpush1.bf16.msra.mxu0 0
        %8340 = vmatprep.subr.bf16.mxu0 0
        %8341 = vmatpush1.bf16.msra.mxu0 0
        %8342 = vmatprep.subr.bf16.mxu0 0
        %8343 = vmatpush1.bf16.msra.mxu0 0
        %8344 = vmatprep.subr.bf16.mxu0 %v8251
        %8345 = vmatpush1.bf16.msra.mxu0 %v8250
        %8346 = vmatprep.subr.bf16.mxu0 %v8249
        %8347 = vmatpush1.bf16.msra.mxu0 %v8248
        %8348 = vmatprep.subr.bf16.mxu0 %v8247
        %8349 = vmatpush1.bf16.msra.mxu0 %v8246
        %8350 = vmatprep.subr.bf16.mxu0 %v8245
        %8351 = vmatpush1.bf16.msra.mxu0 %v8244
        %8352 = vmatprep.subr.bf16.mxu0 0
        %8353 = vmatpush2.bf16.msra.mxu0 0
        %8354 = vmatprep.subr.bf16.mxu0 0
        %8355 = vmatpush2.bf16.msra.mxu0 0
        %8356 = vmatprep.subr.bf16.mxu0 0
        %8357 = vmatpush2.bf16.msra.mxu0 0
        %8358 = vmatprep.subr.bf16.mxu0 0
        %8359 = vmatpush2.bf16.msra.mxu0 0
        %8360 = vmatprep.subr.bf16.mxu0 0
        %8361 = vmatpush2.bf16.msra.mxu0 0
        %8362 = vmatprep.subr.bf16.mxu0 0
        %8363 = vmatpush2.bf16.msra.mxu0 0
        %8364 = vmatprep.subr.bf16.mxu0 0
        %8365 = vmatpush2.bf16.msra.mxu0 0
        %8366 = vmatprep.subr.bf16.mxu0 0
        %8367 = vmatpush2.bf16.msra.mxu0 0
        %8368 = vmatprep.mubr.bf16.mxu0 0
        %8369 = vmatmul.mubr.bf16.gmra.mxu0 %v8293
        %v8370 = vpop.f32.mrf.mxu0
        %v8371 = vadd.f32 %v8330, %v8370
        %v8372 = vpop.f32.mrf.mxu0
        %v8373 = vadd.f32 %v8332, %v8372
        %v8374 = vpop.f32.mrf.mxu0
        %v8375 = vpop.f32.mrf.mxu0
        %8376 = vdwg.mxu0
        %v8377 = vld [vmem:[#allocation2] sm:$0x3c]
        %v8378 = vld [vmem:[#allocation2 + $0x8] sm:$0x3c]
        %v8379 = vld [vmem:[#allocation2 + $0x10] sm:$0x3c]
        %v8380 = vpack.c.bf16 %v8377, %v8377
        %v8381 = vpack.c.bf16 %v8378, %v8378
        %v8382 = vpack.c.bf16 %v8379, %v8379
        %s8383 = scalar_lea.vmem %s27, 640
        %v8384 = vld [vmem:[%s8383] sm:$0xff]
        %v8385 = vld [vmem:[%s8383 + $0x8] sm:$0xff]
        %v8386 = vld [vmem:[%s8383 + $0x10] sm:$0xff]
        %v8387 = vld [vmem:[%s8383 + $0x18] sm:$0xff]
        %v8388 = vld [vmem:[%s8383 + $0x20] sm:$0xff]
        %v8389 = vld [vmem:[%s8383 + $0x28] sm:$0xff]
        %v8390 = vld [vmem:[%s8383 + $0x30] sm:$0xff]
        %v8391 = vld [vmem:[%s8383 + $0x38] sm:$0xff]
        %v8392 = vld [vmem:[%s8383 + $0x40] sm:$0xff]
        %v8393 = vld [vmem:[%s8383 + $0x48] sm:$0xff]
        %v8394 = vld [vmem:[%s8383 + $0x50] sm:$0xff]
        %v8395 = vld [vmem:[%s8383 + $0x58] sm:$0xff]
        %v8396 = vld [vmem:[%s8383 + $0x60] sm:$0xff]
        %v8397 = vld [vmem:[%s8383 + $0x68] sm:$0xff]
        %v8398 = vld [vmem:[%s8383 + $0x70] sm:$0xff]
        %v8399 = vld [vmem:[%s8383 + $0x78] sm:$0xff]
        %v8400 = vld [vmem:[%s8383 + $0x80] sm:$0xff]
        %v8401 = vld [vmem:[%s8383 + $0x88] sm:$0xff]
        %v8402 = vld [vmem:[%s8383 + $0x90] sm:$0xff]
        %v8403 = vld [vmem:[%s8383 + $0x98] sm:$0xff]
        %v8404 = vld [vmem:[%s8383 + $0xa0] sm:$0xff]
        %v8405 = vld [vmem:[%s8383 + $0xa8] sm:$0xff]
        %v8406 = vld [vmem:[%s8383 + $0xb0] sm:$0xff]
        %v8407 = vld [vmem:[%s8383 + $0xb8] sm:$0xff]
        %v8408 = vld [vmem:[%s8383 + $0xc0] sm:$0xff]
        %v8409 = vld [vmem:[%s8383 + $0xc8] sm:$0xff]
        %v8410 = vld [vmem:[%s8383 + $0xd0] sm:$0xff]
        %v8411 = vld [vmem:[%s8383 + $0xd8] sm:$0xff]
        %v8412 = vld [vmem:[%s8383 + $0xe0] sm:$0xff]
        %v8413 = vld [vmem:[%s8383 + $0xe8] sm:$0xff]
        %v8414 = vld [vmem:[%s8383 + $0xf0] sm:$0xff]
        %v8415 = vld [vmem:[%s8383 + $0xf8] sm:$0xff]
        %v8416 = vld [vmem:[%s8383 + $0x100] sm:$0xff]
        %v8417 = vld [vmem:[%s8383 + $0x108] sm:$0xff]
        %v8418 = vld [vmem:[%s8383 + $0x110] sm:$0xff]
        %v8419 = vld [vmem:[%s8383 + $0x118] sm:$0xff]
        %v8420 = vld [vmem:[%s8383 + $0x120] sm:$0xff]
        %v8421 = vld [vmem:[%s8383 + $0x128] sm:$0xff]
        %v8422 = vld [vmem:[%s8383 + $0x130] sm:$0xff]
        %v8423 = vld [vmem:[%s8383 + $0x138] sm:$0xff]
        %v8427 = vrot.slane %v8380, 1
        %v8428 = vrot.slane %v8381, 1
        %v8429 = vrot.slane %v8382, 1
        %v8472 = vunpack.c.l.b16 %v8384
        %v8473 = vunpack.c.h.b16 %v8384
        %v8474 = vunpack.c.l.b16 %v8385
        %v8475 = vunpack.c.h.b16 %v8385
        %v8476 = vunpack.c.l.b16 %v8386
        %v8477 = vunpack.c.h.b16 %v8386
        %v8478 = vunpack.c.l.b16 %v8387
        %v8479 = vunpack.c.h.b16 %v8387
        %v8480 = vunpack.c.l.b16 %v8388
        %v8481 = vunpack.c.h.b16 %v8388
        %v8482 = vunpack.c.l.b16 %v8389
        %v8483 = vunpack.c.h.b16 %v8389
        %v8484 = vunpack.c.l.b16 %v8390
        %v8485 = vunpack.c.h.b16 %v8390
        %v8486 = vunpack.c.l.b16 %v8391
        %v8487 = vunpack.c.h.b16 %v8391
        %v8488 = vunpack.c.l.b16 %v8392
        %v8489 = vunpack.c.h.b16 %v8392
        %v8490 = vunpack.c.l.b16 %v8393
        %v8491 = vunpack.c.h.b16 %v8393
        %v8492 = vunpack.c.l.b16 %v8394
        %v8493 = vunpack.c.h.b16 %v8394
        %v8494 = vunpack.c.l.b16 %v8395
        %v8495 = vunpack.c.h.b16 %v8395
        %v8496 = vunpack.c.l.b16 %v8396
        %v8497 = vunpack.c.h.b16 %v8396
        %v8498 = vunpack.c.l.b16 %v8397
        %v8499 = vunpack.c.h.b16 %v8397
        %v8500 = vunpack.c.l.b16 %v8398
        %v8501 = vunpack.c.h.b16 %v8398
        %v8502 = vunpack.c.l.b16 %v8399
        %v8503 = vunpack.c.h.b16 %v8399
        %v8504 = vunpack.c.l.b16 %v8400
        %v8505 = vunpack.c.h.b16 %v8400
        %v8506 = vunpack.c.l.b16 %v8401
        %v8507 = vunpack.c.h.b16 %v8401
        %v8508 = vunpack.c.l.b16 %v8402
        %v8509 = vunpack.c.h.b16 %v8402
        %v8510 = vunpack.c.l.b16 %v8403
        %v8511 = vunpack.c.h.b16 %v8403
        %v8512 = vunpack.c.l.b16 %v8404
        %v8513 = vunpack.c.h.b16 %v8404
        %v8514 = vunpack.c.l.b16 %v8405
        %v8515 = vunpack.c.h.b16 %v8405
        %v8516 = vunpack.c.l.b16 %v8406
        %v8517 = vunpack.c.h.b16 %v8406
        %v8518 = vunpack.c.l.b16 %v8407
        %v8519 = vunpack.c.h.b16 %v8407
        %v8520 = vunpack.c.l.b16 %v8408
        %v8521 = vunpack.c.h.b16 %v8408
        %v8522 = vunpack.c.l.b16 %v8409
        %v8523 = vunpack.c.h.b16 %v8409
        %v8524 = vunpack.c.l.b16 %v8410
        %v8525 = vunpack.c.h.b16 %v8410
        %v8526 = vunpack.c.l.b16 %v8411
        %v8527 = vunpack.c.h.b16 %v8411
        %v8528 = vunpack.c.l.b16 %v8412
        %v8529 = vunpack.c.h.b16 %v8412
        %v8530 = vunpack.c.l.b16 %v8413
        %v8531 = vunpack.c.h.b16 %v8413
        %v8532 = vunpack.c.l.b16 %v8414
        %v8533 = vunpack.c.h.b16 %v8414
        %v8534 = vunpack.c.l.b16 %v8415
        %v8535 = vunpack.c.h.b16 %v8415
        %v8536 = vunpack.c.l.b16 %v8416
        %v8537 = vunpack.c.h.b16 %v8416
        %v8538 = vunpack.c.l.b16 %v8417
        %v8539 = vunpack.c.h.b16 %v8417
        %v8540 = vunpack.c.l.b16 %v8418
        %v8541 = vunpack.c.h.b16 %v8418
        %v8542 = vunpack.c.l.b16 %v8419
        %v8543 = vunpack.c.h.b16 %v8419
        %v8544 = vunpack.c.l.b16 %v8420
        %v8545 = vunpack.c.h.b16 %v8420
        %v8546 = vunpack.c.l.b16 %v8421
        %v8547 = vunpack.c.h.b16 %v8421
        %v8548 = vunpack.c.l.b16 %v8422
        %v8549 = vunpack.c.h.b16 %v8422
        %v8550 = vunpack.c.l.b16 %v8423
        %v8551 = vunpack.c.h.b16 %v8423
        %v8552 = vpack.c.b16 %v8474, %v8472
        %v8553 = vpack.c.b16 %v8475, %v8473
        %v8554 = vpack.c.b16 %v8478, %v8476
        %v8555 = vpack.c.b16 %v8479, %v8477
        %v8556 = vpack.c.b16 %v8482, %v8480
        %v8557 = vpack.c.b16 %v8483, %v8481
        %v8558 = vpack.c.b16 %v8486, %v8484
        %v8559 = vpack.c.b16 %v8487, %v8485
        %v8560 = vpack.c.b16 %v8490, %v8488
        %v8561 = vpack.c.b16 %v8491, %v8489
        %v8562 = vpack.c.b16 %v8494, %v8492
        %v8563 = vpack.c.b16 %v8495, %v8493
        %v8564 = vpack.c.b16 %v8498, %v8496
        %v8565 = vpack.c.b16 %v8499, %v8497
        %v8566 = vpack.c.b16 %v8502, %v8500
        %v8567 = vpack.c.b16 %v8503, %v8501
        %v8568 = vpack.c.b16 %v8506, %v8504
        %v8569 = vpack.c.b16 %v8507, %v8505
        %v8570 = vpack.c.b16 %v8510, %v8508
        %v8571 = vpack.c.b16 %v8511, %v8509
        %v8572 = vpack.c.b16 %v8514, %v8512
        %v8573 = vpack.c.b16 %v8515, %v8513
        %v8574 = vpack.c.b16 %v8518, %v8516
        %v8575 = vpack.c.b16 %v8519, %v8517
        %v8576 = vpack.c.b16 %v8522, %v8520
        %v8577 = vpack.c.b16 %v8523, %v8521
        %v8578 = vpack.c.b16 %v8526, %v8524
        %v8579 = vpack.c.b16 %v8527, %v8525
        %v8580 = vpack.c.b16 %v8530, %v8528
        %v8581 = vpack.c.b16 %v8531, %v8529
        %v8582 = vpack.c.b16 %v8534, %v8532
        %v8583 = vpack.c.b16 %v8535, %v8533
        %v8584 = vpack.c.b16 %v8538, %v8536
        %v8585 = vpack.c.b16 %v8539, %v8537
        %v8586 = vpack.c.b16 %v8542, %v8540
        %v8587 = vpack.c.b16 %v8543, %v8541
        %v8588 = vpack.c.b16 %v8546, %v8544
        %v8589 = vpack.c.b16 %v8547, %v8545
        %v8590 = vpack.c.b16 %v8550, %v8548
        %v8591 = vpack.c.b16 %v8551, %v8549
        %v8633 = vsel %vm1597, %v8429, 0
        %8635 = vmatprep.subr.bf16.mxu0 %v8567
        %8636 = vmatpush1.bf16.msra.mxu0 %v8566
        %8637 = vmatprep.subr.bf16.mxu0 %v8565
        %8638 = vmatpush1.bf16.msra.mxu0 %v8564
        %8639 = vmatprep.subr.bf16.mxu0 %v8563
        %8640 = vmatpush1.bf16.msra.mxu0 %v8562
        %8641 = vmatprep.subr.bf16.mxu0 %v8561
        %8642 = vmatpush1.bf16.msra.mxu0 %v8560
        %8643 = vmatprep.subr.bf16.mxu0 %v8559
        %8644 = vmatpush1.bf16.msra.mxu0 %v8558
        %8645 = vmatprep.subr.bf16.mxu0 %v8557
        %8646 = vmatpush1.bf16.msra.mxu0 %v8556
        %8647 = vmatprep.subr.bf16.mxu0 %v8555
        %8648 = vmatpush1.bf16.msra.mxu0 %v8554
        %8649 = vmatprep.subr.bf16.mxu0 %v8553
        %8650 = vmatpush1.bf16.msra.mxu0 %v8552
        %8651 = vmatprep.subr.bf16.mxu0 %v8583
        %8652 = vmatpush2.bf16.msra.mxu0 %v8582
        %8653 = vmatprep.subr.bf16.mxu0 %v8581
        %8654 = vmatpush2.bf16.msra.mxu0 %v8580
        %8655 = vmatprep.subr.bf16.mxu0 %v8579
        %8656 = vmatpush2.bf16.msra.mxu0 %v8578
        %8657 = vmatprep.subr.bf16.mxu0 %v8577
        %8658 = vmatpush2.bf16.msra.mxu0 %v8576
        %8659 = vmatprep.subr.bf16.mxu0 %v8575
        %8660 = vmatpush2.bf16.msra.mxu0 %v8574
        %8661 = vmatprep.subr.bf16.mxu0 %v8573
        %8662 = vmatpush2.bf16.msra.mxu0 %v8572
        %8663 = vmatprep.subr.bf16.mxu0 %v8571
        %8664 = vmatpush2.bf16.msra.mxu0 %v8570
        %8665 = vmatprep.subr.bf16.mxu0 %v8569
        %8666 = vmatpush2.bf16.msra.mxu0 %v8568
        %8667 = vmatprep.mubr.bf16.mxu0 %v8428
        %8668 = vmatmul.mubr.bf16.gmra.mxu0 %v8427
        %v8669 = vpop.f32.mrf.mxu0
        %v8670 = vadd.f32 0.0, %v8669
        %v8671 = vpop.f32.mrf.mxu0
        %v8672 = vadd.f32 0.0, %v8671
        %v8673 = vpop.f32.mrf.mxu0
        %v8674 = vpop.f32.mrf.mxu0
        %8675 = vdwg.mxu0
        %8676 = vmatprep.subr.bf16.mxu0 0
        %8677 = vmatpush1.bf16.msra.mxu0 0
        %8678 = vmatprep.subr.bf16.mxu0 0
        %8679 = vmatpush1.bf16.msra.mxu0 0
        %8680 = vmatprep.subr.bf16.mxu0 0
        %8681 = vmatpush1.bf16.msra.mxu0 0
        %8682 = vmatprep.subr.bf16.mxu0 0
        %8683 = vmatpush1.bf16.msra.mxu0 0
        %8684 = vmatprep.subr.bf16.mxu0 %v8591
        %8685 = vmatpush1.bf16.msra.mxu0 %v8590
        %8686 = vmatprep.subr.bf16.mxu0 %v8589
        %8687 = vmatpush1.bf16.msra.mxu0 %v8588
        %8688 = vmatprep.subr.bf16.mxu0 %v8587
        %8689 = vmatpush1.bf16.msra.mxu0 %v8586
        %8690 = vmatprep.subr.bf16.mxu0 %v8585
        %8691 = vmatpush1.bf16.msra.mxu0 %v8584
        %8692 = vmatprep.subr.bf16.mxu0 0
        %8693 = vmatpush2.bf16.msra.mxu0 0
        %8694 = vmatprep.subr.bf16.mxu0 0
        %8695 = vmatpush2.bf16.msra.mxu0 0
        %8696 = vmatprep.subr.bf16.mxu0 0
        %8697 = vmatpush2.bf16.msra.mxu0 0
        %8698 = vmatprep.subr.bf16.mxu0 0
        %8699 = vmatpush2.bf16.msra.mxu0 0
        %8700 = vmatprep.subr.bf16.mxu0 0
        %8701 = vmatpush2.bf16.msra.mxu0 0
        %8702 = vmatprep.subr.bf16.mxu0 0
        %8703 = vmatpush2.bf16.msra.mxu0 0
        %8704 = vmatprep.subr.bf16.mxu0 0
        %8705 = vmatpush2.bf16.msra.mxu0 0
        %8706 = vmatprep.subr.bf16.mxu0 0
        %8707 = vmatpush2.bf16.msra.mxu0 0
        %8708 = vmatprep.mubr.bf16.mxu0 0
        %8709 = vmatmul.mubr.bf16.gmra.mxu0 %v8633
        %v8710 = vpop.f32.mrf.mxu0
        %v8711 = vadd.f32 %v8670, %v8710
        %v8712 = vpop.f32.mrf.mxu0
        %v8713 = vadd.f32 %v8672, %v8712
        %v8714 = vpop.f32.mrf.mxu0
        %v8715 = vpop.f32.mrf.mxu0
        %8716 = vdwg.mxu0
        %v8717 = vadd.f32 %v8371, %v8711
        %v8718 = vadd.f32 %v8373, %v8713
        %v8719 = vld [vmem:[%s31] sm:$0x3]
        %v8721 = vlaneseq
        %v8722 = vshrl.u32 %v8721, 7
        %v8723 = vsub.s32 0, %v8722
        %v8724 = vrot.slane %v8719, %v8723
        %v8725 = vlaneseq
        %v8726 = vshrl.u32 %v8725, 7
        %v8727 = vsub.s32 1, %v8726
        %v8728 = vrot.slane %v8719, %v8727
        %v8731 = vadd.f32 %v8717, %v8724
        %v8732 = vadd.f32 %v8718, %v8728
        %v8733 = vmax.f32 %v8731, 0.0
        %v8734 = vmax.f32 %v8732, 0.0
        %v8735 = vld [vmem:[%s29] sm:$0xff]
        %v8736 = vld [vmem:[%s29 + $0x8] sm:$0xff]
        %v8737 = vld [vmem:[%s29 + $0x10] sm:$0xff]
        %v8738 = vld [vmem:[%s29 + $0x18] sm:$0xff]
        %v8739 = vld [vmem:[%s29 + $0x20] sm:$0xff]
        %v8740 = vld [vmem:[%s29 + $0x28] sm:$0xff]
        %v8741 = vld [vmem:[%s29 + $0x30] sm:$0xff]
        %v8742 = vld [vmem:[%s29 + $0x38] sm:$0xff]
        %v8743 = vld [vmem:[%s29 + $0x40] sm:$0xff]
        %v8744 = vld [vmem:[%s29 + $0x48] sm:$0xff]
        %v8745 = vld [vmem:[%s29 + $0x50] sm:$0xff]
        %v8746 = vld [vmem:[%s29 + $0x58] sm:$0xff]
        %v8747 = vld [vmem:[%s29 + $0x60] sm:$0xff]
        %v8748 = vld [vmem:[%s29 + $0x68] sm:$0xff]
        %v8749 = vld [vmem:[%s29 + $0x70] sm:$0xff]
        %v8750 = vld [vmem:[%s29 + $0x78] sm:$0xff]
        %v8751 = vld [vmem:[%s29 + $0x80] sm:$0xff]
        %v8752 = vld [vmem:[%s29 + $0x88] sm:$0xff]
        %v8753 = vld [vmem:[%s29 + $0x90] sm:$0xff]
        %v8754 = vld [vmem:[%s29 + $0x98] sm:$0xff]
        %v8755 = vld [vmem:[%s29 + $0xa0] sm:$0xff]
        %v8756 = vld [vmem:[%s29 + $0xa8] sm:$0xff]
        %v8757 = vld [vmem:[%s29 + $0xb0] sm:$0xff]
        %v8758 = vld [vmem:[%s29 + $0xb8] sm:$0xff]
        %v8759 = vld [vmem:[%s29 + $0xc0] sm:$0xff]
        %v8760 = vld [vmem:[%s29 + $0xc8] sm:$0xff]
        %v8761 = vld [vmem:[%s29 + $0xd0] sm:$0xff]
        %v8762 = vld [vmem:[%s29 + $0xd8] sm:$0xff]
        %v8763 = vld [vmem:[%s29 + $0xe0] sm:$0xff]
        %v8764 = vld [vmem:[%s29 + $0xe8] sm:$0xff]
        %v8765 = vld [vmem:[%s29 + $0xf0] sm:$0xff]
        %v8766 = vld [vmem:[%s29 + $0xf8] sm:$0xff]
        %v8767 = vld [vmem:[%s29 + $0x100] sm:$0xff]
        %v8768 = vld [vmem:[%s29 + $0x108] sm:$0xff]
        %v8769 = vld [vmem:[%s29 + $0x110] sm:$0xff]
        %v8770 = vld [vmem:[%s29 + $0x118] sm:$0xff]
        %v8771 = vld [vmem:[%s29 + $0x120] sm:$0xff]
        %v8772 = vld [vmem:[%s29 + $0x128] sm:$0xff]
        %v8773 = vld [vmem:[%s29 + $0x130] sm:$0xff]
        %v8774 = vld [vmem:[%s29 + $0x138] sm:$0xff]
        %s8775 = scalar_lea.vmem %s29, 320
        %v8776 = vld [vmem:[%s8775] sm:$0xff]
        %v8777 = vld [vmem:[%s8775 + $0x8] sm:$0xff]
        %v8778 = vld [vmem:[%s8775 + $0x10] sm:$0xff]
        %v8779 = vld [vmem:[%s8775 + $0x18] sm:$0xff]
        %v8780 = vld [vmem:[%s8775 + $0x20] sm:$0xff]
        %v8781 = vld [vmem:[%s8775 + $0x28] sm:$0xff]
        %v8782 = vld [vmem:[%s8775 + $0x30] sm:$0xff]
        %v8783 = vld [vmem:[%s8775 + $0x38] sm:$0xff]
        %v8784 = vld [vmem:[%s8775 + $0x40] sm:$0xff]
        %v8785 = vld [vmem:[%s8775 + $0x48] sm:$0xff]
        %v8786 = vld [vmem:[%s8775 + $0x50] sm:$0xff]
        %v8787 = vld [vmem:[%s8775 + $0x58] sm:$0xff]
        %v8788 = vld [vmem:[%s8775 + $0x60] sm:$0xff]
        %v8789 = vld [vmem:[%s8775 + $0x68] sm:$0xff]
        %v8790 = vld [vmem:[%s8775 + $0x70] sm:$0xff]
        %v8791 = vld [vmem:[%s8775 + $0x78] sm:$0xff]
        %v8792 = vld [vmem:[%s8775 + $0x80] sm:$0xff]
        %v8793 = vld [vmem:[%s8775 + $0x88] sm:$0xff]
        %v8794 = vld [vmem:[%s8775 + $0x90] sm:$0xff]
        %v8795 = vld [vmem:[%s8775 + $0x98] sm:$0xff]
        %v8796 = vld [vmem:[%s8775 + $0xa0] sm:$0xff]
        %v8797 = vld [vmem:[%s8775 + $0xa8] sm:$0xff]
        %v8798 = vld [vmem:[%s8775 + $0xb0] sm:$0xff]
        %v8799 = vld [vmem:[%s8775 + $0xb8] sm:$0xff]
        %v8800 = vld [vmem:[%s8775 + $0xc0] sm:$0xff]
        %v8801 = vld [vmem:[%s8775 + $0xc8] sm:$0xff]
        %v8802 = vld [vmem:[%s8775 + $0xd0] sm:$0xff]
        %v8803 = vld [vmem:[%s8775 + $0xd8] sm:$0xff]
        %v8804 = vld [vmem:[%s8775 + $0xe0] sm:$0xff]
        %v8805 = vld [vmem:[%s8775 + $0xe8] sm:$0xff]
        %v8806 = vld [vmem:[%s8775 + $0xf0] sm:$0xff]
        %v8807 = vld [vmem:[%s8775 + $0xf8] sm:$0xff]
        %v8808 = vld [vmem:[%s8775 + $0x100] sm:$0xff]
        %v8809 = vld [vmem:[%s8775 + $0x108] sm:$0xff]
        %v8810 = vld [vmem:[%s8775 + $0x110] sm:$0xff]
        %v8811 = vld [vmem:[%s8775 + $0x118] sm:$0xff]
        %v8812 = vld [vmem:[%s8775 + $0x120] sm:$0xff]
        %v8813 = vld [vmem:[%s8775 + $0x128] sm:$0xff]
        %v8814 = vld [vmem:[%s8775 + $0x130] sm:$0xff]
        %v8815 = vld [vmem:[%s8775 + $0x138] sm:$0xff]
        %v8856 = vunpack.c.l.b16 %v8776
        %v8857 = vunpack.c.h.b16 %v8776
        %v8858 = vunpack.c.l.b16 %v8777
        %v8859 = vunpack.c.h.b16 %v8777
        %v8860 = vunpack.c.l.b16 %v8778
        %v8861 = vunpack.c.h.b16 %v8778
        %v8862 = vunpack.c.l.b16 %v8779
        %v8863 = vunpack.c.h.b16 %v8779
        %v8864 = vunpack.c.l.b16 %v8780
        %v8865 = vunpack.c.h.b16 %v8780
        %v8866 = vunpack.c.l.b16 %v8781
        %v8867 = vunpack.c.h.b16 %v8781
        %v8868 = vunpack.c.l.b16 %v8782
        %v8869 = vunpack.c.h.b16 %v8782
        %v8870 = vunpack.c.l.b16 %v8783
        %v8871 = vunpack.c.h.b16 %v8783
        %v8872 = vunpack.c.l.b16 %v8784
        %v8873 = vunpack.c.h.b16 %v8784
        %v8874 = vunpack.c.l.b16 %v8785
        %v8875 = vunpack.c.h.b16 %v8785
        %v8876 = vunpack.c.l.b16 %v8786
        %v8877 = vunpack.c.h.b16 %v8786
        %v8878 = vunpack.c.l.b16 %v8787
        %v8879 = vunpack.c.h.b16 %v8787
        %v8880 = vunpack.c.l.b16 %v8788
        %v8881 = vunpack.c.h.b16 %v8788
        %v8882 = vunpack.c.l.b16 %v8789
        %v8883 = vunpack.c.h.b16 %v8789
        %v8884 = vunpack.c.l.b16 %v8790
        %v8885 = vunpack.c.h.b16 %v8790
        %v8886 = vunpack.c.l.b16 %v8791
        %v8887 = vunpack.c.h.b16 %v8791
        %v8888 = vunpack.c.l.b16 %v8792
        %v8889 = vunpack.c.h.b16 %v8792
        %v8890 = vunpack.c.l.b16 %v8793
        %v8891 = vunpack.c.h.b16 %v8793
        %v8892 = vunpack.c.l.b16 %v8794
        %v8893 = vunpack.c.h.b16 %v8794
        %v8894 = vunpack.c.l.b16 %v8795
        %v8895 = vunpack.c.h.b16 %v8795
        %v8896 = vunpack.c.l.b16 %v8796
        %v8897 = vunpack.c.h.b16 %v8796
        %v8898 = vunpack.c.l.b16 %v8797
        %v8899 = vunpack.c.h.b16 %v8797
        %v8900 = vunpack.c.l.b16 %v8798
        %v8901 = vunpack.c.h.b16 %v8798
        %v8902 = vunpack.c.l.b16 %v8799
        %v8903 = vunpack.c.h.b16 %v8799
        %v8904 = vunpack.c.l.b16 %v8800
        %v8905 = vunpack.c.h.b16 %v8800
        %v8906 = vunpack.c.l.b16 %v8801
        %v8907 = vunpack.c.h.b16 %v8801
        %v8908 = vunpack.c.l.b16 %v8802
        %v8909 = vunpack.c.h.b16 %v8802
        %v8910 = vunpack.c.l.b16 %v8803
        %v8911 = vunpack.c.h.b16 %v8803
        %v8912 = vunpack.c.l.b16 %v8804
        %v8913 = vunpack.c.h.b16 %v8804
        %v8914 = vunpack.c.l.b16 %v8805
        %v8915 = vunpack.c.h.b16 %v8805
        %v8916 = vunpack.c.l.b16 %v8806
        %v8917 = vunpack.c.h.b16 %v8806
        %v8918 = vunpack.c.l.b16 %v8807
        %v8919 = vunpack.c.h.b16 %v8807
        %v8920 = vunpack.c.l.b16 %v8808
        %v8921 = vunpack.c.h.b16 %v8808
        %v8922 = vunpack.c.l.b16 %v8809
        %v8923 = vunpack.c.h.b16 %v8809
        %v8924 = vunpack.c.l.b16 %v8810
        %v8925 = vunpack.c.h.b16 %v8810
        %v8926 = vunpack.c.l.b16 %v8811
        %v8927 = vunpack.c.h.b16 %v8811
        %v8928 = vunpack.c.l.b16 %v8812
        %v8929 = vunpack.c.h.b16 %v8812
        %v8930 = vunpack.c.l.b16 %v8813
        %v8931 = vunpack.c.h.b16 %v8813
        %v8932 = vunpack.c.l.b16 %v8814
        %v8933 = vunpack.c.h.b16 %v8814
        %v8934 = vunpack.c.l.b16 %v8815
        %v8935 = vunpack.c.h.b16 %v8815
        %v8936 = vpack.c.b16 %v8858, %v8856
        %v8937 = vpack.c.b16 %v8859, %v8857
        %v8938 = vpack.c.b16 %v8862, %v8860
        %v8939 = vpack.c.b16 %v8863, %v8861
        %v8940 = vpack.c.b16 %v8866, %v8864
        %v8941 = vpack.c.b16 %v8867, %v8865
        %v8942 = vpack.c.b16 %v8870, %v8868
        %v8943 = vpack.c.b16 %v8871, %v8869
        %v8944 = vpack.c.b16 %v8874, %v8872
        %v8945 = vpack.c.b16 %v8875, %v8873
        %v8946 = vpack.c.b16 %v8878, %v8876
        %v8947 = vpack.c.b16 %v8879, %v8877
        %v8948 = vpack.c.b16 %v8882, %v8880
        %v8949 = vpack.c.b16 %v8883, %v8881
        %v8950 = vpack.c.b16 %v8886, %v8884
        %v8951 = vpack.c.b16 %v8887, %v8885
        %v8952 = vpack.c.b16 %v8890, %v8888
        %v8953 = vpack.c.b16 %v8891, %v8889
        %v8954 = vpack.c.b16 %v8894, %v8892
        %v8955 = vpack.c.b16 %v8895, %v8893
        %v8956 = vpack.c.b16 %v8898, %v8896
        %v8957 = vpack.c.b16 %v8899, %v8897
        %v8958 = vpack.c.b16 %v8902, %v8900
        %v8959 = vpack.c.b16 %v8903, %v8901
        %v8960 = vpack.c.b16 %v8906, %v8904
        %v8961 = vpack.c.b16 %v8907, %v8905
        %v8962 = vpack.c.b16 %v8910, %v8908
        %v8963 = vpack.c.b16 %v8911, %v8909
        %v8964 = vpack.c.b16 %v8914, %v8912
        %v8965 = vpack.c.b16 %v8915, %v8913
        %v8966 = vpack.c.b16 %v8918, %v8916
        %v8967 = vpack.c.b16 %v8919, %v8917
        %v8968 = vpack.c.b16 %v8922, %v8920
        %v8969 = vpack.c.b16 %v8923, %v8921
        %v8970 = vpack.c.b16 %v8926, %v8924
        %v8971 = vpack.c.b16 %v8927, %v8925
        %v8972 = vpack.c.b16 %v8930, %v8928
        %v8973 = vpack.c.b16 %v8931, %v8929
        %v8974 = vpack.c.b16 %v8934, %v8932
        %v8975 = vpack.c.b16 %v8935, %v8933
        %9016 = vmatprep.subr.bf16.mxu0 %v8951
        %9017 = vmatpush1.bf16.msra.mxu0 %v8950
        %9018 = vmatprep.subr.bf16.mxu0 %v8949
        %9019 = vmatpush1.bf16.msra.mxu0 %v8948
        %9020 = vmatprep.subr.bf16.mxu0 %v8947
        %9021 = vmatpush1.bf16.msra.mxu0 %v8946
        %9022 = vmatprep.subr.bf16.mxu0 %v8945
        %9023 = vmatpush1.bf16.msra.mxu0 %v8944
        %9024 = vmatprep.subr.bf16.mxu0 %v8943
        %9025 = vmatpush1.bf16.msra.mxu0 %v8942
        %9026 = vmatprep.subr.bf16.mxu0 %v8941
        %9027 = vmatpush1.bf16.msra.mxu0 %v8940
        %9028 = vmatprep.subr.bf16.mxu0 %v8939
        %9029 = vmatpush1.bf16.msra.mxu0 %v8938
        %9030 = vmatprep.subr.bf16.mxu0 %v8937
        %9031 = vmatpush1.bf16.msra.mxu0 %v8936
        %9032 = vmatprep.subr.bf16.mxu0 %v8967
        %9033 = vmatpush2.bf16.msra.mxu0 %v8966
        %9034 = vmatprep.subr.bf16.mxu0 %v8965
        %9035 = vmatpush2.bf16.msra.mxu0 %v8964
        %9036 = vmatprep.subr.bf16.mxu0 %v8963
        %9037 = vmatpush2.bf16.msra.mxu0 %v8962
        %9038 = vmatprep.subr.bf16.mxu0 %v8961
        %9039 = vmatpush2.bf16.msra.mxu0 %v8960
        %9040 = vmatprep.subr.bf16.mxu0 %v8959
        %9041 = vmatpush2.bf16.msra.mxu0 %v8958
        %9042 = vmatprep.subr.bf16.mxu0 %v8957
        %9043 = vmatpush2.bf16.msra.mxu0 %v8956
        %9044 = vmatprep.subr.bf16.mxu0 %v8955
        %9045 = vmatpush2.bf16.msra.mxu0 %v8954
        %9046 = vmatprep.subr.bf16.mxu0 %v8953
        %9047 = vmatpush2.bf16.msra.mxu0 %v8952
        %9048 = vmatprep.mubr.bf16.mxu0 %v7797
        %9049 = vmatmul.mubr.bf16.gmra.mxu0 %v7790
        %v9050 = vpop.f32.mrf.mxu0
        %v9051 = vadd.f32 0.0, %v9050
        %v9052 = vpop.f32.mrf.mxu0
        %v9053 = vadd.f32 0.0, %v9052
        %v9054 = vpop.f32.mrf.mxu0
        %v9055 = vpop.f32.mrf.mxu0
        %9056 = vdwg.mxu0
        %9057 = vmatprep.subr.bf16.mxu0 0
        %9058 = vmatpush1.bf16.msra.mxu0 0
        %9059 = vmatprep.subr.bf16.mxu0 0
        %9060 = vmatpush1.bf16.msra.mxu0 0
        %9061 = vmatprep.subr.bf16.mxu0 0
        %9062 = vmatpush1.bf16.msra.mxu0 0
        %9063 = vmatprep.subr.bf16.mxu0 0
        %9064 = vmatpush1.bf16.msra.mxu0 0
        %9065 = vmatprep.subr.bf16.mxu0 %v8975
        %9066 = vmatpush1.bf16.msra.mxu0 %v8974
        %9067 = vmatprep.subr.bf16.mxu0 %v8973
        %9068 = vmatpush1.bf16.msra.mxu0 %v8972
        %9069 = vmatprep.subr.bf16.mxu0 %v8971
        %9070 = vmatpush1.bf16.msra.mxu0 %v8970
        %9071 = vmatprep.subr.bf16.mxu0 %v8969
        %9072 = vmatpush1.bf16.msra.mxu0 %v8968
        %9073 = vmatprep.subr.bf16.mxu0 0
        %9074 = vmatpush2.bf16.msra.mxu0 0
        %9075 = vmatprep.subr.bf16.mxu0 0
        %9076 = vmatpush2.bf16.msra.mxu0 0
        %9077 = vmatprep.subr.bf16.mxu0 0
        %9078 = vmatpush2.bf16.msra.mxu0 0
        %9079 = vmatprep.subr.bf16.mxu0 0
        %9080 = vmatpush2.bf16.msra.mxu0 0
        %9081 = vmatprep.subr.bf16.mxu0 0
        %9082 = vmatpush2.bf16.msra.mxu0 0
        %9083 = vmatprep.subr.bf16.mxu0 0
        %9084 = vmatpush2.bf16.msra.mxu0 0
        %9085 = vmatprep.subr.bf16.mxu0 0
        %9086 = vmatpush2.bf16.msra.mxu0 0
        %9087 = vmatprep.subr.bf16.mxu0 0
        %9088 = vmatpush2.bf16.msra.mxu0 0
        %9089 = vmatprep.mubr.bf16.mxu0 0
        %9090 = vmatmul.mubr.bf16.gmra.mxu0 %v8008
        %v9091 = vpop.f32.mrf.mxu0
        %v9092 = vadd.f32 %v9051, %v9091
        %v9093 = vpop.f32.mrf.mxu0
        %v9094 = vadd.f32 %v9053, %v9093
        %v9095 = vpop.f32.mrf.mxu0
        %v9096 = vpop.f32.mrf.mxu0
        %9097 = vdwg.mxu0
        %v9138 = vunpack.c.l.b16 %v8735
        %v9139 = vunpack.c.h.b16 %v8735
        %v9140 = vunpack.c.l.b16 %v8736
        %v9141 = vunpack.c.h.b16 %v8736
        %v9142 = vunpack.c.l.b16 %v8737
        %v9143 = vunpack.c.h.b16 %v8737
        %v9144 = vunpack.c.l.b16 %v8738
        %v9145 = vunpack.c.h.b16 %v8738
        %v9146 = vunpack.c.l.b16 %v8739
        %v9147 = vunpack.c.h.b16 %v8739
        %v9148 = vunpack.c.l.b16 %v8740
        %v9149 = vunpack.c.h.b16 %v8740
        %v9150 = vunpack.c.l.b16 %v8741
        %v9151 = vunpack.c.h.b16 %v8741
        %v9152 = vunpack.c.l.b16 %v8742
        %v9153 = vunpack.c.h.b16 %v8742
        %v9154 = vunpack.c.l.b16 %v8743
        %v9155 = vunpack.c.h.b16 %v8743
        %v9156 = vunpack.c.l.b16 %v8744
        %v9157 = vunpack.c.h.b16 %v8744
        %v9158 = vunpack.c.l.b16 %v8745
        %v9159 = vunpack.c.h.b16 %v8745
        %v9160 = vunpack.c.l.b16 %v8746
        %v9161 = vunpack.c.h.b16 %v8746
        %v9162 = vunpack.c.l.b16 %v8747
        %v9163 = vunpack.c.h.b16 %v8747
        %v9164 = vunpack.c.l.b16 %v8748
        %v9165 = vunpack.c.h.b16 %v8748
        %v9166 = vunpack.c.l.b16 %v8749
        %v9167 = vunpack.c.h.b16 %v8749
        %v9168 = vunpack.c.l.b16 %v8750
        %v9169 = vunpack.c.h.b16 %v8750
        %v9170 = vunpack.c.l.b16 %v8751
        %v9171 = vunpack.c.h.b16 %v8751
        %v9172 = vunpack.c.l.b16 %v8752
        %v9173 = vunpack.c.h.b16 %v8752
        %v9174 = vunpack.c.l.b16 %v8753
        %v9175 = vunpack.c.h.b16 %v8753
        %v9176 = vunpack.c.l.b16 %v8754
        %v9177 = vunpack.c.h.b16 %v8754
        %v9178 = vunpack.c.l.b16 %v8755
        %v9179 = vunpack.c.h.b16 %v8755
        %v9180 = vunpack.c.l.b16 %v8756
        %v9181 = vunpack.c.h.b16 %v8756
        %v9182 = vunpack.c.l.b16 %v8757
        %v9183 = vunpack.c.h.b16 %v8757
        %v9184 = vunpack.c.l.b16 %v8758
        %v9185 = vunpack.c.h.b16 %v8758
        %v9186 = vunpack.c.l.b16 %v8759
        %v9187 = vunpack.c.h.b16 %v8759
        %v9188 = vunpack.c.l.b16 %v8760
        %v9189 = vunpack.c.h.b16 %v8760
        %v9190 = vunpack.c.l.b16 %v8761
        %v9191 = vunpack.c.h.b16 %v8761
        %v9192 = vunpack.c.l.b16 %v8762
        %v9193 = vunpack.c.h.b16 %v8762
        %v9194 = vunpack.c.l.b16 %v8763
        %v9195 = vunpack.c.h.b16 %v8763
        %v9196 = vunpack.c.l.b16 %v8764
        %v9197 = vunpack.c.h.b16 %v8764
        %v9198 = vunpack.c.l.b16 %v8765
        %v9199 = vunpack.c.h.b16 %v8765
        %v9200 = vunpack.c.l.b16 %v8766
        %v9201 = vunpack.c.h.b16 %v8766
        %v9202 = vunpack.c.l.b16 %v8767
        %v9203 = vunpack.c.h.b16 %v8767
        %v9204 = vunpack.c.l.b16 %v8768
        %v9205 = vunpack.c.h.b16 %v8768
        %v9206 = vunpack.c.l.b16 %v8769
        %v9207 = vunpack.c.h.b16 %v8769
        %v9208 = vunpack.c.l.b16 %v8770
        %v9209 = vunpack.c.h.b16 %v8770
        %v9210 = vunpack.c.l.b16 %v8771
        %v9211 = vunpack.c.h.b16 %v8771
        %v9212 = vunpack.c.l.b16 %v8772
        %v9213 = vunpack.c.h.b16 %v8772
        %v9214 = vunpack.c.l.b16 %v8773
        %v9215 = vunpack.c.h.b16 %v8773
        %v9216 = vunpack.c.l.b16 %v8774
        %v9217 = vunpack.c.h.b16 %v8774
        %v9218 = vpack.c.b16 %v9140, %v9138
        %v9219 = vpack.c.b16 %v9141, %v9139
        %v9220 = vpack.c.b16 %v9144, %v9142
        %v9221 = vpack.c.b16 %v9145, %v9143
        %v9222 = vpack.c.b16 %v9148, %v9146
        %v9223 = vpack.c.b16 %v9149, %v9147
        %v9224 = vpack.c.b16 %v9152, %v9150
        %v9225 = vpack.c.b16 %v9153, %v9151
        %v9226 = vpack.c.b16 %v9156, %v9154
        %v9227 = vpack.c.b16 %v9157, %v9155
        %v9228 = vpack.c.b16 %v9160, %v9158
        %v9229 = vpack.c.b16 %v9161, %v9159
        %v9230 = vpack.c.b16 %v9164, %v9162
        %v9231 = vpack.c.b16 %v9165, %v9163
        %v9232 = vpack.c.b16 %v9168, %v9166
        %v9233 = vpack.c.b16 %v9169, %v9167
        %v9234 = vpack.c.b16 %v9172, %v9170
        %v9235 = vpack.c.b16 %v9173, %v9171
        %v9236 = vpack.c.b16 %v9176, %v9174
        %v9237 = vpack.c.b16 %v9177, %v9175
        %v9238 = vpack.c.b16 %v9180, %v9178
        %v9239 = vpack.c.b16 %v9181, %v9179
        %v9240 = vpack.c.b16 %v9184, %v9182
        %v9241 = vpack.c.b16 %v9185, %v9183
        %v9242 = vpack.c.b16 %v9188, %v9186
        %v9243 = vpack.c.b16 %v9189, %v9187
        %v9244 = vpack.c.b16 %v9192, %v9190
        %v9245 = vpack.c.b16 %v9193, %v9191
        %v9246 = vpack.c.b16 %v9196, %v9194
        %v9247 = vpack.c.b16 %v9197, %v9195
        %v9248 = vpack.c.b16 %v9200, %v9198
        %v9249 = vpack.c.b16 %v9201, %v9199
        %v9250 = vpack.c.b16 %v9204, %v9202
        %v9251 = vpack.c.b16 %v9205, %v9203
        %v9252 = vpack.c.b16 %v9208, %v9206
        %v9253 = vpack.c.b16 %v9209, %v9207
        %v9254 = vpack.c.b16 %v9212, %v9210
        %v9255 = vpack.c.b16 %v9213, %v9211
        %v9256 = vpack.c.b16 %v9216, %v9214
        %v9257 = vpack.c.b16 %v9217, %v9215
        %9298 = vmatprep.subr.bf16.mxu0 %v9233
        %9299 = vmatpush1.bf16.msra.mxu0 %v9232
        %9300 = vmatprep.subr.bf16.mxu0 %v9231
        %9301 = vmatpush1.bf16.msra.mxu0 %v9230
        %9302 = vmatprep.subr.bf16.mxu0 %v9229
        %9303 = vmatpush1.bf16.msra.mxu0 %v9228
        %9304 = vmatprep.subr.bf16.mxu0 %v9227
        %9305 = vmatpush1.bf16.msra.mxu0 %v9226
        %9306 = vmatprep.subr.bf16.mxu0 %v9225
        %9307 = vmatpush1.bf16.msra.mxu0 %v9224
        %9308 = vmatprep.subr.bf16.mxu0 %v9223
        %9309 = vmatpush1.bf16.msra.mxu0 %v9222
        %9310 = vmatprep.subr.bf16.mxu0 %v9221
        %9311 = vmatpush1.bf16.msra.mxu0 %v9220
        %9312 = vmatprep.subr.bf16.mxu0 %v9219
        %9313 = vmatpush1.bf16.msra.mxu0 %v9218
        %9314 = vmatprep.subr.bf16.mxu0 %v9249
        %9315 = vmatpush2.bf16.msra.mxu0 %v9248
        %9316 = vmatprep.subr.bf16.mxu0 %v9247
        %9317 = vmatpush2.bf16.msra.mxu0 %v9246
        %9318 = vmatprep.subr.bf16.mxu0 %v9245
        %9319 = vmatpush2.bf16.msra.mxu0 %v9244
        %9320 = vmatprep.subr.bf16.mxu0 %v9243
        %9321 = vmatpush2.bf16.msra.mxu0 %v9242
        %9322 = vmatprep.subr.bf16.mxu0 %v9241
        %9323 = vmatpush2.bf16.msra.mxu0 %v9240
        %9324 = vmatprep.subr.bf16.mxu0 %v9239
        %9325 = vmatpush2.bf16.msra.mxu0 %v9238
        %9326 = vmatprep.subr.bf16.mxu0 %v9237
        %9327 = vmatpush2.bf16.msra.mxu0 %v9236
        %9328 = vmatprep.subr.bf16.mxu0 %v9235
        %9329 = vmatpush2.bf16.msra.mxu0 %v9234
        %9330 = vmatprep.mubr.bf16.mxu0 %v7695
        %9331 = vmatmul.mubr.bf16.gmra.mxu0 %v7694
        %v9332 = vpop.f32.mrf.mxu0
        %v9333 = vadd.f32 %v9092, %v9332
        %v9334 = vpop.f32.mrf.mxu0
        %v9335 = vadd.f32 %v9094, %v9334
        %v9336 = vpop.f32.mrf.mxu0
        %v9337 = vpop.f32.mrf.mxu0
        %9338 = vdwg.mxu0
        %9339 = vmatprep.subr.bf16.mxu0 0
        %9340 = vmatpush1.bf16.msra.mxu0 0
        %9341 = vmatprep.subr.bf16.mxu0 0
        %9342 = vmatpush1.bf16.msra.mxu0 0
        %9343 = vmatprep.subr.bf16.mxu0 0
        %9344 = vmatpush1.bf16.msra.mxu0 0
        %9345 = vmatprep.subr.bf16.mxu0 0
        %9346 = vmatpush1.bf16.msra.mxu0 0
        %9347 = vmatprep.subr.bf16.mxu0 %v9257
        %9348 = vmatpush1.bf16.msra.mxu0 %v9256
        %9349 = vmatprep.subr.bf16.mxu0 %v9255
        %9350 = vmatpush1.bf16.msra.mxu0 %v9254
        %9351 = vmatprep.subr.bf16.mxu0 %v9253
        %9352 = vmatpush1.bf16.msra.mxu0 %v9252
        %9353 = vmatprep.subr.bf16.mxu0 %v9251
        %9354 = vmatpush1.bf16.msra.mxu0 %v9250
        %9355 = vmatprep.subr.bf16.mxu0 0
        %9356 = vmatpush2.bf16.msra.mxu0 0
        %9357 = vmatprep.subr.bf16.mxu0 0
        %9358 = vmatpush2.bf16.msra.mxu0 0
        %9359 = vmatprep.subr.bf16.mxu0 0
        %9360 = vmatpush2.bf16.msra.mxu0 0
        %9361 = vmatprep.subr.bf16.mxu0 0
        %9362 = vmatpush2.bf16.msra.mxu0 0
        %9363 = vmatprep.subr.bf16.mxu0 0
        %9364 = vmatpush2.bf16.msra.mxu0 0
        %9365 = vmatprep.subr.bf16.mxu0 0
        %9366 = vmatpush2.bf16.msra.mxu0 0
        %9367 = vmatprep.subr.bf16.mxu0 0
        %9368 = vmatpush2.bf16.msra.mxu0 0
        %9369 = vmatprep.subr.bf16.mxu0 0
        %9370 = vmatpush2.bf16.msra.mxu0 0
        %9371 = vmatprep.mubr.bf16.mxu0 0
        %9372 = vmatmul.mubr.bf16.gmra.mxu0 %v8293
        %v9373 = vpop.f32.mrf.mxu0
        %v9374 = vadd.f32 %v9333, %v9373
        %v9375 = vpop.f32.mrf.mxu0
        %v9376 = vadd.f32 %v9335, %v9375
        %v9377 = vpop.f32.mrf.mxu0
        %v9378 = vpop.f32.mrf.mxu0
        %9379 = vdwg.mxu0
        %s9380 = scalar_lea.vmem %s29, 640
        %v9381 = vld [vmem:[%s9380] sm:$0xff]
        %v9382 = vld [vmem:[%s9380 + $0x8] sm:$0xff]
        %v9383 = vld [vmem:[%s9380 + $0x10] sm:$0xff]
        %v9384 = vld [vmem:[%s9380 + $0x18] sm:$0xff]
        %v9385 = vld [vmem:[%s9380 + $0x20] sm:$0xff]
        %v9386 = vld [vmem:[%s9380 + $0x28] sm:$0xff]
        %v9387 = vld [vmem:[%s9380 + $0x30] sm:$0xff]
        %v9388 = vld [vmem:[%s9380 + $0x38] sm:$0xff]
        %v9389 = vld [vmem:[%s9380 + $0x40] sm:$0xff]
        %v9390 = vld [vmem:[%s9380 + $0x48] sm:$0xff]
        %v9391 = vld [vmem:[%s9380 + $0x50] sm:$0xff]
        %v9392 = vld [vmem:[%s9380 + $0x58] sm:$0xff]
        %v9393 = vld [vmem:[%s9380 + $0x60] sm:$0xff]
        %v9394 = vld [vmem:[%s9380 + $0x68] sm:$0xff]
        %v9395 = vld [vmem:[%s9380 + $0x70] sm:$0xff]
        %v9396 = vld [vmem:[%s9380 + $0x78] sm:$0xff]
        %v9397 = vld [vmem:[%s9380 + $0x80] sm:$0xff]
        %v9398 = vld [vmem:[%s9380 + $0x88] sm:$0xff]
        %v9399 = vld [vmem:[%s9380 + $0x90] sm:$0xff]
        %v9400 = vld [vmem:[%s9380 + $0x98] sm:$0xff]
        %v9401 = vld [vmem:[%s9380 + $0xa0] sm:$0xff]
        %v9402 = vld [vmem:[%s9380 + $0xa8] sm:$0xff]
        %v9403 = vld [vmem:[%s9380 + $0xb0] sm:$0xff]
        %v9404 = vld [vmem:[%s9380 + $0xb8] sm:$0xff]
        %v9405 = vld [vmem:[%s9380 + $0xc0] sm:$0xff]
        %v9406 = vld [vmem:[%s9380 + $0xc8] sm:$0xff]
        %v9407 = vld [vmem:[%s9380 + $0xd0] sm:$0xff]
        %v9408 = vld [vmem:[%s9380 + $0xd8] sm:$0xff]
        %v9409 = vld [vmem:[%s9380 + $0xe0] sm:$0xff]
        %v9410 = vld [vmem:[%s9380 + $0xe8] sm:$0xff]
        %v9411 = vld [vmem:[%s9380 + $0xf0] sm:$0xff]
        %v9412 = vld [vmem:[%s9380 + $0xf8] sm:$0xff]
        %v9413 = vld [vmem:[%s9380 + $0x100] sm:$0xff]
        %v9414 = vld [vmem:[%s9380 + $0x108] sm:$0xff]
        %v9415 = vld [vmem:[%s9380 + $0x110] sm:$0xff]
        %v9416 = vld [vmem:[%s9380 + $0x118] sm:$0xff]
        %v9417 = vld [vmem:[%s9380 + $0x120] sm:$0xff]
        %v9418 = vld [vmem:[%s9380 + $0x128] sm:$0xff]
        %v9419 = vld [vmem:[%s9380 + $0x130] sm:$0xff]
        %v9420 = vld [vmem:[%s9380 + $0x138] sm:$0xff]
        %v9461 = vunpack.c.l.b16 %v9381
        %v9462 = vunpack.c.h.b16 %v9381
        %v9463 = vunpack.c.l.b16 %v9382
        %v9464 = vunpack.c.h.b16 %v9382
        %v9465 = vunpack.c.l.b16 %v9383
        %v9466 = vunpack.c.h.b16 %v9383
        %v9467 = vunpack.c.l.b16 %v9384
        %v9468 = vunpack.c.h.b16 %v9384
        %v9469 = vunpack.c.l.b16 %v9385
        %v9470 = vunpack.c.h.b16 %v9385
        %v9471 = vunpack.c.l.b16 %v9386
        %v9472 = vunpack.c.h.b16 %v9386
        %v9473 = vunpack.c.l.b16 %v9387
        %v9474 = vunpack.c.h.b16 %v9387
        %v9475 = vunpack.c.l.b16 %v9388
        %v9476 = vunpack.c.h.b16 %v9388
        %v9477 = vunpack.c.l.b16 %v9389
        %v9478 = vunpack.c.h.b16 %v9389
        %v9479 = vunpack.c.l.b16 %v9390
        %v9480 = vunpack.c.h.b16 %v9390
        %v9481 = vunpack.c.l.b16 %v9391
        %v9482 = vunpack.c.h.b16 %v9391
        %v9483 = vunpack.c.l.b16 %v9392
        %v9484 = vunpack.c.h.b16 %v9392
        %v9485 = vunpack.c.l.b16 %v9393
        %v9486 = vunpack.c.h.b16 %v9393
        %v9487 = vunpack.c.l.b16 %v9394
        %v9488 = vunpack.c.h.b16 %v9394
        %v9489 = vunpack.c.l.b16 %v9395
        %v9490 = vunpack.c.h.b16 %v9395
        %v9491 = vunpack.c.l.b16 %v9396
        %v9492 = vunpack.c.h.b16 %v9396
        %v9493 = vunpack.c.l.b16 %v9397
        %v9494 = vunpack.c.h.b16 %v9397
        %v9495 = vunpack.c.l.b16 %v9398
        %v9496 = vunpack.c.h.b16 %v9398
        %v9497 = vunpack.c.l.b16 %v9399
        %v9498 = vunpack.c.h.b16 %v9399
        %v9499 = vunpack.c.l.b16 %v9400
        %v9500 = vunpack.c.h.b16 %v9400
        %v9501 = vunpack.c.l.b16 %v9401
        %v9502 = vunpack.c.h.b16 %v9401
        %v9503 = vunpack.c.l.b16 %v9402
        %v9504 = vunpack.c.h.b16 %v9402
        %v9505 = vunpack.c.l.b16 %v9403
        %v9506 = vunpack.c.h.b16 %v9403
        %v9507 = vunpack.c.l.b16 %v9404
        %v9508 = vunpack.c.h.b16 %v9404
        %v9509 = vunpack.c.l.b16 %v9405
        %v9510 = vunpack.c.h.b16 %v9405
        %v9511 = vunpack.c.l.b16 %v9406
        %v9512 = vunpack.c.h.b16 %v9406
        %v9513 = vunpack.c.l.b16 %v9407
        %v9514 = vunpack.c.h.b16 %v9407
        %v9515 = vunpack.c.l.b16 %v9408
        %v9516 = vunpack.c.h.b16 %v9408
        %v9517 = vunpack.c.l.b16 %v9409
        %v9518 = vunpack.c.h.b16 %v9409
        %v9519 = vunpack.c.l.b16 %v9410
        %v9520 = vunpack.c.h.b16 %v9410
        %v9521 = vunpack.c.l.b16 %v9411
        %v9522 = vunpack.c.h.b16 %v9411
        %v9523 = vunpack.c.l.b16 %v9412
        %v9524 = vunpack.c.h.b16 %v9412
        %v9525 = vunpack.c.l.b16 %v9413
        %v9526 = vunpack.c.h.b16 %v9413
        %v9527 = vunpack.c.l.b16 %v9414
        %v9528 = vunpack.c.h.b16 %v9414
        %v9529 = vunpack.c.l.b16 %v9415
        %v9530 = vunpack.c.h.b16 %v9415
        %v9531 = vunpack.c.l.b16 %v9416
        %v9532 = vunpack.c.h.b16 %v9416
        %v9533 = vunpack.c.l.b16 %v9417
        %v9534 = vunpack.c.h.b16 %v9417
        %v9535 = vunpack.c.l.b16 %v9418
        %v9536 = vunpack.c.h.b16 %v9418
        %v9537 = vunpack.c.l.b16 %v9419
        %v9538 = vunpack.c.h.b16 %v9419
        %v9539 = vunpack.c.l.b16 %v9420
        %v9540 = vunpack.c.h.b16 %v9420
        %v9541 = vpack.c.b16 %v9463, %v9461
        %v9542 = vpack.c.b16 %v9464, %v9462
        %v9543 = vpack.c.b16 %v9467, %v9465
        %v9544 = vpack.c.b16 %v9468, %v9466
        %v9545 = vpack.c.b16 %v9471, %v9469
        %v9546 = vpack.c.b16 %v9472, %v9470
        %v9547 = vpack.c.b16 %v9475, %v9473
        %v9548 = vpack.c.b16 %v9476, %v9474
        %v9549 = vpack.c.b16 %v9479, %v9477
        %v9550 = vpack.c.b16 %v9480, %v9478
        %v9551 = vpack.c.b16 %v9483, %v9481
        %v9552 = vpack.c.b16 %v9484, %v9482
        %v9553 = vpack.c.b16 %v9487, %v9485
        %v9554 = vpack.c.b16 %v9488, %v9486
        %v9555 = vpack.c.b16 %v9491, %v9489
        %v9556 = vpack.c.b16 %v9492, %v9490
        %v9557 = vpack.c.b16 %v9495, %v9493
        %v9558 = vpack.c.b16 %v9496, %v9494
        %v9559 = vpack.c.b16 %v9499, %v9497
        %v9560 = vpack.c.b16 %v9500, %v9498
        %v9561 = vpack.c.b16 %v9503, %v9501
        %v9562 = vpack.c.b16 %v9504, %v9502
        %v9563 = vpack.c.b16 %v9507, %v9505
        %v9564 = vpack.c.b16 %v9508, %v9506
        %v9565 = vpack.c.b16 %v9511, %v9509
        %v9566 = vpack.c.b16 %v9512, %v9510
        %v9567 = vpack.c.b16 %v9515, %v9513
        %v9568 = vpack.c.b16 %v9516, %v9514
        %v9569 = vpack.c.b16 %v9519, %v9517
        %v9570 = vpack.c.b16 %v9520, %v9518
        %v9571 = vpack.c.b16 %v9523, %v9521
        %v9572 = vpack.c.b16 %v9524, %v9522
        %v9573 = vpack.c.b16 %v9527, %v9525
        %v9574 = vpack.c.b16 %v9528, %v9526
        %v9575 = vpack.c.b16 %v9531, %v9529
        %v9576 = vpack.c.b16 %v9532, %v9530
        %v9577 = vpack.c.b16 %v9535, %v9533
        %v9578 = vpack.c.b16 %v9536, %v9534
        %v9579 = vpack.c.b16 %v9539, %v9537
        %v9580 = vpack.c.b16 %v9540, %v9538
        %9621 = vmatprep.subr.bf16.mxu0 %v9556
        %9622 = vmatpush1.bf16.msra.mxu0 %v9555
        %9623 = vmatprep.subr.bf16.mxu0 %v9554
        %9624 = vmatpush1.bf16.msra.mxu0 %v9553
        %9625 = vmatprep.subr.bf16.mxu0 %v9552
        %9626 = vmatpush1.bf16.msra.mxu0 %v9551
        %9627 = vmatprep.subr.bf16.mxu0 %v9550
        %9628 = vmatpush1.bf16.msra.mxu0 %v9549
        %9629 = vmatprep.subr.bf16.mxu0 %v9548
        %9630 = vmatpush1.bf16.msra.mxu0 %v9547
        %9631 = vmatprep.subr.bf16.mxu0 %v9546
        %9632 = vmatpush1.bf16.msra.mxu0 %v9545
        %9633 = vmatprep.subr.bf16.mxu0 %v9544
        %9634 = vmatpush1.bf16.msra.mxu0 %v9543
        %9635 = vmatprep.subr.bf16.mxu0 %v9542
        %9636 = vmatpush1.bf16.msra.mxu0 %v9541
        %9637 = vmatprep.subr.bf16.mxu0 %v9572
        %9638 = vmatpush2.bf16.msra.mxu0 %v9571
        %9639 = vmatprep.subr.bf16.mxu0 %v9570
        %9640 = vmatpush2.bf16.msra.mxu0 %v9569
        %9641 = vmatprep.subr.bf16.mxu0 %v9568
        %9642 = vmatpush2.bf16.msra.mxu0 %v9567
        %9643 = vmatprep.subr.bf16.mxu0 %v9566
        %9644 = vmatpush2.bf16.msra.mxu0 %v9565
        %9645 = vmatprep.subr.bf16.mxu0 %v9564
        %9646 = vmatpush2.bf16.msra.mxu0 %v9563
        %9647 = vmatprep.subr.bf16.mxu0 %v9562
        %9648 = vmatpush2.bf16.msra.mxu0 %v9561
        %9649 = vmatprep.subr.bf16.mxu0 %v9560
        %9650 = vmatpush2.bf16.msra.mxu0 %v9559
        %9651 = vmatprep.subr.bf16.mxu0 %v9558
        %9652 = vmatpush2.bf16.msra.mxu0 %v9557
        %9653 = vmatprep.mubr.bf16.mxu0 %v8428
        %9654 = vmatmul.mubr.bf16.gmra.mxu0 %v8427
        %v9655 = vpop.f32.mrf.mxu0
        %v9656 = vadd.f32 0.0, %v9655
        %v9657 = vpop.f32.mrf.mxu0
        %v9658 = vadd.f32 0.0, %v9657
        %v9659 = vpop.f32.mrf.mxu0
        %v9660 = vpop.f32.mrf.mxu0
        %9661 = vdwg.mxu0
        %9662 = vmatprep.subr.bf16.mxu0 0
        %9663 = vmatpush1.bf16.msra.mxu0 0
        %9664 = vmatprep.subr.bf16.mxu0 0
        %9665 = vmatpush1.bf16.msra.mxu0 0
        %9666 = vmatprep.subr.bf16.mxu0 0
        %9667 = vmatpush1.bf16.msra.mxu0 0
        %9668 = vmatprep.subr.bf16.mxu0 0
        %9669 = vmatpush1.bf16.msra.mxu0 0
        %9670 = vmatprep.subr.bf16.mxu0 %v9580
        %9671 = vmatpush1.bf16.msra.mxu0 %v9579
        %9672 = vmatprep.subr.bf16.mxu0 %v9578
        %9673 = vmatpush1.bf16.msra.mxu0 %v9577
        %9674 = vmatprep.subr.bf16.mxu0 %v9576
        %9675 = vmatpush1.bf16.msra.mxu0 %v9575
        %9676 = vmatprep.subr.bf16.mxu0 %v9574
        %9677 = vmatpush1.bf16.msra.mxu0 %v9573
        %9678 = vmatprep.subr.bf16.mxu0 0
        %9679 = vmatpush2.bf16.msra.mxu0 0
        %9680 = vmatprep.subr.bf16.mxu0 0
        %9681 = vmatpush2.bf16.msra.mxu0 0
        %9682 = vmatprep.subr.bf16.mxu0 0
        %9683 = vmatpush2.bf16.msra.mxu0 0
        %9684 = vmatprep.subr.bf16.mxu0 0
        %9685 = vmatpush2.bf16.msra.mxu0 0
        %9686 = vmatprep.subr.bf16.mxu0 0
        %9687 = vmatpush2.bf16.msra.mxu0 0
        %9688 = vmatprep.subr.bf16.mxu0 0
        %9689 = vmatpush2.bf16.msra.mxu0 0
        %9690 = vmatprep.subr.bf16.mxu0 0
        %9691 = vmatpush2.bf16.msra.mxu0 0
        %9692 = vmatprep.subr.bf16.mxu0 0
        %9693 = vmatpush2.bf16.msra.mxu0 0
        %9694 = vmatprep.mubr.bf16.mxu0 0
        %9695 = vmatmul.mubr.bf16.gmra.mxu0 %v8633
        %v9696 = vpop.f32.mrf.mxu0
        %v9697 = vadd.f32 %v9656, %v9696
        %v9698 = vpop.f32.mrf.mxu0
        %v9699 = vadd.f32 %v9658, %v9698
        %v9700 = vpop.f32.mrf.mxu0
        %v9701 = vpop.f32.mrf.mxu0
        %9702 = vdwg.mxu0
        %v9703 = vadd.f32 %v9374, %v9697
        %v9704 = vadd.f32 %v9376, %v9699
        %v9705 = vadd.f32 %v9703, %v8724
        %v9706 = vadd.f32 %v9704, %v8728
        %v9707 = vmax.f32 %v9705, 0.0
        %v9708 = vmax.f32 %v9706, 0.0
        %v9709 = vmax.f32 %v8733, %v9707
        %v9710 = vmax.f32 %v8734, %v9708
        %9711 = vst [vmem:[#allocation3] sm:$0xf] %v9709
        %vm9712 = vcmask 257024
        %9713 = vst.msk [vmem:[#allocation3 + $0x8] sm:$0xf] %vm9712, %v9710
        %9714 = vst.msk [vmem:[#allocation2] ss:$8 sm:$0x3] %vm3706, 0.0
        %9715 = vst.msk [vmem:[#allocation2] ss:$8 sm:$0x0] %vm3706, 0.0
        %9716 = vst.msk [vmem:[%s3732] ss:$8 sm:$0x3] %vm3706, 0.0
        %9717 = vst.msk [vmem:[%s3732] ss:$8 sm:$0x0] %vm3706, 0.0
        %v9718 = vld [vmem:[#allocation3] ss:$8 sm:$0x3]
        %v9719 = vld [vmem:[%s3713] ss:$8 sm:$0x3]
        %v9720 = vmax.f32 %v9718, %v9719
        %9721 = vst.msk [vmem:[%s3716] ss:$8 sm:$0x3] %vm3706, %v9720
        %9722 = vst.msk [vmem:[%s3716] ss:$8 sm:$0x0] %vm3706, %v9720
        %v9723 = vld [vmem:[%s3719] ss:$8 sm:$0x3]
        %v9724 = vld [vmem:[%s3721] ss:$8 sm:$0x3]
        %v9725 = vmax.f32 %v9723, %v9724
        %9726 = vst.msk [vmem:[%s3724] ss:$8 sm:$0x3] %vm3706, %v9725
        %9727 = vst.msk [vmem:[%s3724] ss:$8 sm:$0x0] %vm3706, %v9725
        %v9728 = vld [vmem:[#allocation2] sm:$0x6]
        %v9729 = vld [vmem:[#allocation2 + $0x8] sm:$0x6]
        %v9730 = vld [vmem:[%s33] sm:$0xff]
        %v9731 = vld [vmem:[%s33 + $0x8] sm:$0xff]
        %v9732 = vld [vmem:[%s33 + $0x10] sm:$0xff]
        %v9733 = vld [vmem:[%s33 + $0x18] sm:$0xff]
        %v9734 = vld [vmem:[%s33 + $0x20] sm:$0xff]
        %v9735 = vld [vmem:[%s33 + $0x28] sm:$0xff]
        %v9736 = vld [vmem:[%s33 + $0x30] sm:$0xff]
        %v9737 = vld [vmem:[%s33 + $0x38] sm:$0xff]
        %v9738 = vld [vmem:[%s33 + $0x40] sm:$0xff]
        %v9739 = vld [vmem:[%s33 + $0x48] sm:$0xff]
        %v9740 = vld [vmem:[%s33 + $0x50] sm:$0xff]
        %v9741 = vld [vmem:[%s33 + $0x58] sm:$0xff]
        %v9742 = vld [vmem:[%s33 + $0x60] sm:$0xff]
        %v9743 = vld [vmem:[%s33 + $0x68] sm:$0xff]
        %v9744 = vld [vmem:[%s33 + $0x70] sm:$0xff]
        %v9745 = vld [vmem:[%s33 + $0x78] sm:$0xff]
        %v9746 = vld [vmem:[%s33 + $0x80] sm:$0xff]
        %v9747 = vld [vmem:[%s33 + $0x88] sm:$0xff]
        %v9748 = vld [vmem:[%s33 + $0x90] sm:$0xff]
        %v9749 = vld [vmem:[%s33 + $0x98] sm:$0xff]
        %v9752 = vrot.slane %v9728, 1
        %v9753 = vrot.slane %v9729, 1
        %v9755 = vsel %vm3701, %v9753, 0
        %9757 = vmatprep.subr.mxu0 0.0
        %9758 = vmatpush1.msra.mxu0 %v9745
        %9759 = vmatprep.subr.mxu0 0.0
        %9760 = vmatpush1.msra.mxu0 %v9744
        %9761 = vmatprep.subr.mxu0 0.0
        %9762 = vmatpush1.msra.mxu0 %v9743
        %9763 = vmatprep.subr.mxu0 0.0
        %9764 = vmatpush1.msra.mxu0 %v9742
        %9765 = vmatprep.subr.mxu0 0.0
        %9766 = vmatpush1.msra.mxu0 %v9741
        %9767 = vmatprep.subr.mxu0 0.0
        %9768 = vmatpush1.msra.mxu0 %v9740
        %9769 = vmatprep.subr.mxu0 0.0
        %9770 = vmatpush1.msra.mxu0 %v9739
        %9771 = vmatprep.subr.mxu0 0.0
        %9772 = vmatpush1.msra.mxu0 %v9738
        %9773 = vmatprep.subr.mxu0 0.0
        %9774 = vmatpush1.msra.mxu0 %v9737
        %9775 = vmatprep.subr.mxu0 0.0
        %9776 = vmatpush1.msra.mxu0 %v9736
        %9777 = vmatprep.subr.mxu0 0.0
        %9778 = vmatpush1.msra.mxu0 %v9735
        %9779 = vmatprep.subr.mxu0 0.0
        %9780 = vmatpush1.msra.mxu0 %v9734
        %9781 = vmatprep.subr.mxu0 0.0
        %9782 = vmatpush1.msra.mxu0 %v9733
        %9783 = vmatprep.subr.mxu0 0.0
        %9784 = vmatpush1.msra.mxu0 %v9732
        %9785 = vmatprep.subr.mxu0 0.0
        %9786 = vmatpush1.msra.mxu0 %v9731
        %9787 = vmatprep.subr.mxu0 0.0
        %9788 = vmatpush1.msra.mxu0 %v9730
        %9789 = vmatprep.subr.mxu0 0.0
        %9790 = vmatpush2.msra.mxu0 0.0
        %9791 = vmatprep.subr.mxu0 0.0
        %9792 = vmatpush2.msra.mxu0 0.0
        %9793 = vmatprep.subr.mxu0 0.0
        %9794 = vmatpush2.msra.mxu0 0.0
        %9795 = vmatprep.subr.mxu0 0.0
        %9796 = vmatpush2.msra.mxu0 0.0
        %9797 = vmatprep.subr.mxu0 0.0
        %9798 = vmatpush2.msra.mxu0 0.0
        %9799 = vmatprep.subr.mxu0 0.0
        %9800 = vmatpush2.msra.mxu0 0.0
        %9801 = vmatprep.subr.mxu0 0.0
        %9802 = vmatpush2.msra.mxu0 0.0
        %9803 = vmatprep.subr.mxu0 0.0
        %9804 = vmatpush2.msra.mxu0 0.0
        %9805 = vmatprep.subr.mxu0 0.0
        %9806 = vmatpush2.msra.mxu0 0.0
        %9807 = vmatprep.subr.mxu0 0.0
        %9808 = vmatpush2.msra.mxu0 0.0
        %9809 = vmatprep.subr.mxu0 0.0
        %9810 = vmatpush2.msra.mxu0 0.0
        %9811 = vmatprep.subr.mxu0 0.0
        %9812 = vmatpush2.msra.mxu0 0.0
        %9813 = vmatprep.subr.mxu0 0.0
        %9814 = vmatpush2.msra.mxu0 %v9749
        %9815 = vmatprep.subr.mxu0 0.0
        %9816 = vmatpush2.msra.mxu0 %v9748
        %9817 = vmatprep.subr.mxu0 0.0
        %9818 = vmatpush2.msra.mxu0 %v9747
        %9819 = vmatprep.subr.mxu0 0.0
        %9820 = vmatpush2.msra.mxu0 %v9746
        %9821 = vmatprep.mubr.f32.mxu0 %v9755
        %9822 = vmatmul.mubr.f32.gmra.mxu0 %v9752
        %v9823 = vpop.f32.mrf.mxu0
        %v9824 = vadd.f32 0.0, %v9823
        %v9825 = vpop.f32.mrf.mxu0
        %9826 = vdwg.mxu0
        %vm9827 = vcmask 1024
        %v9828 = vsel %vm9827, %v9824, -inf
        %v9829 = vrot.slane %v9828, 4
        %v9830 = vmax.f32 %v9828, %v9829
        %v9831 = vrot.slane %v9830, 2
        %v9832 = vmax.f32 %v9830, %v9831
        %v9833 = vrot.slane %v9832, 1
        %v9834 = vmax.f32 %v9832, %v9833
        %v9835 = vsub.f32 %v9824, %v9834
        %v9836 = vmul.f32 %v9835, 1.442695
        %v9837 = vpow.pop %v9836
        %v9838 = vsel %vm9827, %v9837, 0.0
        %v9839 = vrot.slane %v9838, 4
        %v9840 = vadd.f32 %v9838, %v9839
        %v9841 = vrot.slane %v9840, 2
        %v9842 = vadd.f32 %v9840, %v9841
        %v9843 = vrot.slane %v9842, 1
        %v9844 = vadd.f32 %v9842, %v9843
        %v9845 = vrcp.pop %v9844
        %v9846 = vmul.f32 %v9837, %v9845
        %9848 = vset.pattern.permute.xlu0 0
        %9849 = vperm.xlu0 %9848, %v9846
        %v9850 = vpop.permute.xlu0 %9849
        %v9851 = vrot.slane %v9850, 7
        %v9853 = vmul.f32 %v9728, %v9851
        %v9854 = vmul.f32 %v9729, %v9851
        %v9857 = vrot.slane %v9853, 1
        %v9858 = vrot.slane %v9854, 1
        %vm9861 = vcmask 1041408
        %v9862 = vsel %vm9861, %v9857, 0.0
        %v9863 = vrot.slane %v9862, 4
        %v9864 = vadd.f32 %v9862, %v9863
        %v9865 = vrot.slane %v9864, 2
        %v9866 = vadd.f32 %v9864, %v9865
        %v9867 = vrot.slane %v9866, 1
        %v9868 = vadd.f32 %v9866, %v9867
        %vm9869 = vcmask 254976
        %v9870 = vsel %vm9869, %v9858, 0.0
        %v9871 = vrot.slane %v9870, 4
        %v9872 = vadd.f32 %v9870, %v9871
        %v9873 = vrot.slane %v9872, 2
        %v9874 = vadd.f32 %v9872, %v9873
        %v9875 = vrot.slane %v9874, 1
        %v9876 = vadd.f32 %v9874, %v9875
        %v9877 = vld [vmem:[%s35] sm:$0xff]
        %v9878 = vld [vmem:[%s35 + $0x8] sm:$0xff]
        %v9879 = vld [vmem:[%s35 + $0x10] sm:$0xff]
        %v9880 = vld [vmem:[%s35 + $0x18] sm:$0xff]
        %v9881 = vld [vmem:[%s35 + $0x20] sm:$0xff]
        %v9882 = vld [vmem:[%s35 + $0x28] sm:$0xff]
        %v9883 = vld [vmem:[%s35 + $0x30] sm:$0xff]
        %v9884 = vld [vmem:[%s35 + $0x38] sm:$0xff]
        %v9885 = vld [vmem:[%s35 + $0x40] sm:$0xff]
        %v9886 = vld [vmem:[%s35 + $0x48] sm:$0xff]
        %v9887 = vld [vmem:[%s35 + $0x50] sm:$0xff]
        %v9888 = vld [vmem:[%s35 + $0x58] sm:$0xff]
        %v9889 = vld [vmem:[%s35 + $0x60] sm:$0xff]
        %v9890 = vld [vmem:[%s35 + $0x68] sm:$0xff]
        %v9891 = vld [vmem:[%s35 + $0x70] sm:$0xff]
        %v9892 = vld [vmem:[%s35 + $0x78] sm:$0xff]
        %v9893 = vld [vmem:[%s35 + $0x80] sm:$0xff]
        %v9894 = vld [vmem:[%s35 + $0x88] sm:$0xff]
        %v9895 = vld [vmem:[%s35 + $0x90] sm:$0xff]
        %v9896 = vld [vmem:[%s35 + $0x98] sm:$0xff]
        %v9897 = vld [vmem:[%s37] sm:$0x1]
        %v9899 = vsel %vm3701, %v9876, 0
        %9901 = vmatprep.subr.mxu0 0.0
        %9902 = vmatpush1.msra.mxu0 %v9892
        %9903 = vmatprep.subr.mxu0 0.0
        %9904 = vmatpush1.msra.mxu0 %v9891
        %9905 = vmatprep.subr.mxu0 0.0
        %9906 = vmatpush1.msra.mxu0 %v9890
        %9907 = vmatprep.subr.mxu0 0.0
        %9908 = vmatpush1.msra.mxu0 %v9889
        %9909 = vmatprep.subr.mxu0 0.0
        %9910 = vmatpush1.msra.mxu0 %v9888
        %9911 = vmatprep.subr.mxu0 0.0
        %9912 = vmatpush1.msra.mxu0 %v9887
        %9913 = vmatprep.subr.mxu0 0.0
        %9914 = vmatpush1.msra.mxu0 %v9886
        %9915 = vmatprep.subr.mxu0 0.0
        %9916 = vmatpush1.msra.mxu0 %v9885
        %9917 = vmatprep.subr.mxu0 0.0
        %9918 = vmatpush1.msra.mxu0 %v9884
        %9919 = vmatprep.subr.mxu0 0.0
        %9920 = vmatpush1.msra.mxu0 %v9883
        %9921 = vmatprep.subr.mxu0 0.0
        %9922 = vmatpush1.msra.mxu0 %v9882
        %9923 = vmatprep.subr.mxu0 0.0
        %9924 = vmatpush1.msra.mxu0 %v9881
        %9925 = vmatprep.subr.mxu0 0.0
        %9926 = vmatpush1.msra.mxu0 %v9880
        %9927 = vmatprep.subr.mxu0 0.0
        %9928 = vmatpush1.msra.mxu0 %v9879
        %9929 = vmatprep.subr.mxu0 0.0
        %9930 = vmatpush1.msra.mxu0 %v9878
        %9931 = vmatprep.subr.mxu0 0.0
        %9932 = vmatpush1.msra.mxu0 %v9877
        %9933 = vmatprep.subr.mxu0 0.0
        %9934 = vmatpush2.msra.mxu0 0.0
        %9935 = vmatprep.subr.mxu0 0.0
        %9936 = vmatpush2.msra.mxu0 0.0
        %9937 = vmatprep.subr.mxu0 0.0
        %9938 = vmatpush2.msra.mxu0 0.0
        %9939 = vmatprep.subr.mxu0 0.0
        %9940 = vmatpush2.msra.mxu0 0.0
        %9941 = vmatprep.subr.mxu0 0.0
        %9942 = vmatpush2.msra.mxu0 0.0
        %9943 = vmatprep.subr.mxu0 0.0
        %9944 = vmatpush2.msra.mxu0 0.0
        %9945 = vmatprep.subr.mxu0 0.0
        %9946 = vmatpush2.msra.mxu0 0.0
        %9947 = vmatprep.subr.mxu0 0.0
        %9948 = vmatpush2.msra.mxu0 0.0
        %9949 = vmatprep.subr.mxu0 0.0
        %9950 = vmatpush2.msra.mxu0 0.0
        %9951 = vmatprep.subr.mxu0 0.0
        %9952 = vmatpush2.msra.mxu0 0.0
        %9953 = vmatprep.subr.mxu0 0.0
        %9954 = vmatpush2.msra.mxu0 0.0
        %9955 = vmatprep.subr.mxu0 0.0
        %9956 = vmatpush2.msra.mxu0 0.0
        %9957 = vmatprep.subr.mxu0 0.0
        %9958 = vmatpush2.msra.mxu0 %v9896
        %9959 = vmatprep.subr.mxu0 0.0
        %9960 = vmatpush2.msra.mxu0 %v9895
        %9961 = vmatprep.subr.mxu0 0.0
        %9962 = vmatpush2.msra.mxu0 %v9894
        %9963 = vmatprep.subr.mxu0 0.0
        %9964 = vmatpush2.msra.mxu0 %v9893
        %9965 = vmatprep.mubr.f32.mxu0 %v9899
        %9966 = vmatmul.mubr.f32.gmra.mxu0 %v9868
        %v9967 = vpop.f32.mrf.mxu0
        %v9968 = vadd.f32 %v9897, %v9967
        %v9969 = vpop.f32.mrf.mxu0
        %9970 = vdwg.mxu0
        %v9971 = vmax.f32 %v9968, 0.0
        %v9972 = vld [vmem:[%s39] sm:$0xff]
        %v9973 = vld [vmem:[%s39 + $0x8] sm:$0xff]
        %v9974 = vld [vmem:[%s39 + $0x10] sm:$0xff]
        %v9975 = vld [vmem:[%s39 + $0x18] sm:$0xff]
        %v9976 = vld [vmem:[%s41] sm:$0x1]
        %v9978 = vsel %vm3701, %v9971, 0
        %9980 = vmatprep.subr.mxu0 0.0
        %9981 = vmatpush1.msra.mxu0 0.0
        %9982 = vmatprep.subr.mxu0 0.0
        %9983 = vmatpush1.msra.mxu0 0.0
        %9984 = vmatprep.subr.mxu0 0.0
        %9985 = vmatpush1.msra.mxu0 0.0
        %9986 = vmatprep.subr.mxu0 0.0
        %9987 = vmatpush1.msra.mxu0 0.0
        %9988 = vmatprep.subr.mxu0 0.0
        %9989 = vmatpush1.msra.mxu0 0.0
        %9990 = vmatprep.subr.mxu0 0.0
        %9991 = vmatpush1.msra.mxu0 0.0
        %9992 = vmatprep.subr.mxu0 0.0
        %9993 = vmatpush1.msra.mxu0 0.0
        %9994 = vmatprep.subr.mxu0 0.0
        %9995 = vmatpush1.msra.mxu0 0.0
        %9996 = vmatprep.subr.mxu0 0.0
        %9997 = vmatpush1.msra.mxu0 0.0
        %9998 = vmatprep.subr.mxu0 0.0
        %9999 = vmatpush1.msra.mxu0 0.0
        %10000 = vmatprep.subr.mxu0 0.0
        %10001 = vmatpush1.msra.mxu0 0.0
        %10002 = vmatprep.subr.mxu0 0.0
        %10003 = vmatpush1.msra.mxu0 0.0
        %10004 = vmatprep.subr.mxu0 0.0
        %10005 = vmatpush1.msra.mxu0 %v9975
        %10006 = vmatprep.subr.mxu0 0.0
        %10007 = vmatpush1.msra.mxu0 %v9974
        %10008 = vmatprep.subr.mxu0 0.0
        %10009 = vmatpush1.msra.mxu0 %v9973
        %10010 = vmatprep.subr.mxu0 0.0
        %10011 = vmatpush1.msra.mxu0 %v9972
        %10012 = vmatprep.subr.mxu0 0.0
        %10013 = vmatpush2.msra.mxu0 0.0
        %10014 = vmatprep.subr.mxu0 0.0
        %10015 = vmatpush2.msra.mxu0 0.0
        %10016 = vmatprep.subr.mxu0 0.0
        %10017 = vmatpush2.msra.mxu0 0.0
        %10018 = vmatprep.subr.mxu0 0.0
        %10019 = vmatpush2.msra.mxu0 0.0
        %10020 = vmatprep.subr.mxu0 0.0
        %10021 = vmatpush2.msra.mxu0 0.0
        %10022 = vmatprep.subr.mxu0 0.0
        %10023 = vmatpush2.msra.mxu0 0.0
        %10024 = vmatprep.subr.mxu0 0.0
        %10025 = vmatpush2.msra.mxu0 0.0
        %10026 = vmatprep.subr.mxu0 0.0
        %10027 = vmatpush2.msra.mxu0 0.0
        %10028 = vmatprep.subr.mxu0 0.0
        %10029 = vmatpush2.msra.mxu0 0.0
        %10030 = vmatprep.subr.mxu0 0.0
        %10031 = vmatpush2.msra.mxu0 0.0
        %10032 = vmatprep.subr.mxu0 0.0
        %10033 = vmatpush2.msra.mxu0 0.0
        %10034 = vmatprep.subr.mxu0 0.0
        %10035 = vmatpush2.msra.mxu0 0.0
        %10036 = vmatprep.subr.mxu0 0.0
        %10037 = vmatpush2.msra.mxu0 0.0
        %10038 = vmatprep.subr.mxu0 0.0
        %10039 = vmatpush2.msra.mxu0 0.0
        %10040 = vmatprep.subr.mxu0 0.0
        %10041 = vmatpush2.msra.mxu0 0.0
        %10042 = vmatprep.subr.mxu0 0.0
        %10043 = vmatpush2.msra.mxu0 0.0
        %10044 = vmatprep.mubr.f32.mxu0 0.0
        %10045 = vmatmul.mubr.f32.gmra.mxu0 %v9978
        %v10046 = vpop.f32.mrf.mxu0
        %v10047 = vadd.f32 %v9976, %v10046
        %v10048 = vpop.f32.mrf.mxu0
        %10049 = vdwg.mxu0
        %v10050 = vmax.f32 %v10047, 0.0
        %v10051 = vld [vmem:[%s47] sm:$0x1]
        %v10052 = vsub.f32 %v10050, %v10051
        %v10053 = vld [vmem:[%s49] sm:$0x1]
        %v10054 = vadd.f32 %v10053, 1e-05
        %v10055 = vrsqrt.pop %v10054
        %v10056 = vmul.f32 %v10052, %v10055
        %v10057 = vld [vmem:[%s43] sm:$0x1]
        %v10058 = vmul.f32 %v10056, %v10057
        %v10059 = vld [vmem:[%s45] sm:$0x1]
        %v10060 = vadd.f32 %v10058, %v10059
        %v10061 = vld [vmem:[%s51] sm:$0xff]
        %v10062 = vld [vmem:[%s51 + $0x8] sm:$0xff]
        %v10063 = vld [vmem:[%s51 + $0x10] sm:$0xff]
        %v10064 = vld [vmem:[%s51 + $0x18] sm:$0xff]
        %v10065 = vld [vmem:[%s53] sm:$0x1]
        %v10067 = vsel %vm3701, %v10060, 0
        %10069 = vmatprep.subr.mxu0 0.0
        %10070 = vmatpush1.msra.mxu0 0.0
        %10071 = vmatprep.subr.mxu0 0.0
        %10072 = vmatpush1.msra.mxu0 0.0
        %10073 = vmatprep.subr.mxu0 0.0
        %10074 = vmatpush1.msra.mxu0 0.0
        %10075 = vmatprep.subr.mxu0 0.0
        %10076 = vmatpush1.msra.mxu0 0.0
        %10077 = vmatprep.subr.mxu0 0.0
        %10078 = vmatpush1.msra.mxu0 0.0
        %10079 = vmatprep.subr.mxu0 0.0
        %10080 = vmatpush1.msra.mxu0 0.0
        %10081 = vmatprep.subr.mxu0 0.0
        %10082 = vmatpush1.msra.mxu0 0.0
        %10083 = vmatprep.subr.mxu0 0.0
        %10084 = vmatpush1.msra.mxu0 0.0
        %10085 = vmatprep.subr.mxu0 0.0
        %10086 = vmatpush1.msra.mxu0 0.0
        %10087 = vmatprep.subr.mxu0 0.0
        %10088 = vmatpush1.msra.mxu0 0.0
        %10089 = vmatprep.subr.mxu0 0.0
        %10090 = vmatpush1.msra.mxu0 0.0
        %10091 = vmatprep.subr.mxu0 0.0
        %10092 = vmatpush1.msra.mxu0 0.0
        %10093 = vmatprep.subr.mxu0 0.0
        %10094 = vmatpush1.msra.mxu0 %v10064
        %10095 = vmatprep.subr.mxu0 0.0
        %10096 = vmatpush1.msra.mxu0 %v10063
        %10097 = vmatprep.subr.mxu0 0.0
        %10098 = vmatpush1.msra.mxu0 %v10062
        %10099 = vmatprep.subr.mxu0 0.0
        %10100 = vmatpush1.msra.mxu0 %v10061
        %10101 = vmatprep.subr.mxu0 0.0
        %10102 = vmatpush2.msra.mxu0 0.0
        %10103 = vmatprep.subr.mxu0 0.0
        %10104 = vmatpush2.msra.mxu0 0.0
        %10105 = vmatprep.subr.mxu0 0.0
        %10106 = vmatpush2.msra.mxu0 0.0
        %10107 = vmatprep.subr.mxu0 0.0
        %10108 = vmatpush2.msra.mxu0 0.0
        %10109 = vmatprep.subr.mxu0 0.0
        %10110 = vmatpush2.msra.mxu0 0.0
        %10111 = vmatprep.subr.mxu0 0.0
        %10112 = vmatpush2.msra.mxu0 0.0
        %10113 = vmatprep.subr.mxu0 0.0
        %10114 = vmatpush2.msra.mxu0 0.0
        %10115 = vmatprep.subr.mxu0 0.0
        %10116 = vmatpush2.msra.mxu0 0.0
        %10117 = vmatprep.subr.mxu0 0.0
        %10118 = vmatpush2.msra.mxu0 0.0
        %10119 = vmatprep.subr.mxu0 0.0
        %10120 = vmatpush2.msra.mxu0 0.0
        %10121 = vmatprep.subr.mxu0 0.0
        %10122 = vmatpush2.msra.mxu0 0.0
        %10123 = vmatprep.subr.mxu0 0.0
        %10124 = vmatpush2.msra.mxu0 0.0
        %10125 = vmatprep.subr.mxu0 0.0
        %10126 = vmatpush2.msra.mxu0 0.0
        %10127 = vmatprep.subr.mxu0 0.0
        %10128 = vmatpush2.msra.mxu0 0.0
        %10129 = vmatprep.subr.mxu0 0.0
        %10130 = vmatpush2.msra.mxu0 0.0
        %10131 = vmatprep.subr.mxu0 0.0
        %10132 = vmatpush2.msra.mxu0 0.0
        %10133 = vmatprep.mubr.f32.mxu0 0.0
        %10134 = vmatmul.mubr.f32.gmra.mxu0 %v10067
        %v10135 = vpop.f32.mrf.mxu0
        %v10136 = vadd.f32 %v10065, %v10135
        %v10137 = vpop.f32.mrf.mxu0
        %10138 = vdwg.mxu0
        %v10139 = vmul.f32 %v10136, %v10136
        %vm10140 = vcmask 253952
        %v10141 = vsel %vm10140, %v10139, 0.0
        %10142 = vadd.xlane.f32.xlu0 %v10141
        %v10143 = vpop.xlane.xlu0 %10142
        %v10144 = vmax.f32 %v10143, 1e-24
        %v10145 = vrsqrt.pop %v10144
        %v10146 = vmul.f32 %v10136, %v10145
        %v10147 = vld [vmem:[%s55] sm:$0xff]
        %v10148 = vld [vmem:[%s55 + $0x8] sm:$0xff]
        %v10149 = vld [vmem:[%s55 + $0x10] sm:$0xff]
        %v10150 = vld [vmem:[%s55 + $0x18] sm:$0xff]
        %v10151 = vmul.f32 %v10147, %v10147
        %v10152 = vmul.f32 %v10148, %v10148
        %v10153 = vmul.f32 %v10149, %v10149
        %v10154 = vmul.f32 %v10150, %v10150
        %vm10155 = vcmask 64512
        %v10156 = vsel %vm10155, %v10151, 0.0
        %v10157 = vsel %vm10155, %v10152, 0.0
        %v10158 = vadd.f32 %v10156, %v10157
        %v10159 = vsel %vm10155, %v10153, 0.0
        %v10160 = vadd.f32 %v10158, %v10159
        %v10161 = vsel %vm10155, %v10154, 0.0
        %v10162 = vadd.f32 %v10160, %v10161
        %v10163 = vrot.slane %v10162, 4
        %v10164 = vadd.f32 %v10162, %v10163
        %v10165 = vrot.slane %v10164, 2
        %v10166 = vadd.f32 %v10164, %v10165
        %v10167 = vrot.slane %v10166, 1
        %v10168 = vadd.f32 %v10166, %v10167
        %v10169 = vmax.f32 %v10168, 1e-24
        %v10170 = vrsqrt.pop %v10169
        %v10171 = vmul.f32 %v10147, %v10170
        %v10172 = vmul.f32 %v10148, %v10170
        %v10173 = vmul.f32 %v10149, %v10170
        %v10174 = vmul.f32 %v10150, %v10170
        %v10176 = vsel %vm3701, %v10146, 0
        %10178 = vmatprep.subr.mxu0 0.0
        %10179 = vmatpush1.msra.mxu0 0.0
        %10180 = vmatprep.subr.mxu0 0.0
        %10181 = vmatpush1.msra.mxu0 0.0
        %10182 = vmatprep.subr.mxu0 0.0
        %10183 = vmatpush1.msra.mxu0 0.0
        %10184 = vmatprep.subr.mxu0 0.0
        %10185 = vmatpush1.msra.mxu0 0.0
        %10186 = vmatprep.subr.mxu0 0.0
        %10187 = vmatpush1.msra.mxu0 0.0
        %10188 = vmatprep.subr.mxu0 0.0
        %10189 = vmatpush1.msra.mxu0 0.0
        %10190 = vmatprep.subr.mxu0 0.0
        %10191 = vmatpush1.msra.mxu0 0.0
        %10192 = vmatprep.subr.mxu0 0.0
        %10193 = vmatpush1.msra.mxu0 0.0
        %10194 = vmatprep.subr.mxu0 0.0
        %10195 = vmatpush1.msra.mxu0 0.0
        %10196 = vmatprep.subr.mxu0 0.0
        %10197 = vmatpush1.msra.mxu0 0.0
        %10198 = vmatprep.subr.mxu0 0.0
        %10199 = vmatpush1.msra.mxu0 0.0
        %10200 = vmatprep.subr.mxu0 0.0
        %10201 = vmatpush1.msra.mxu0 0.0
        %10202 = vmatprep.subr.mxu0 0.0
        %10203 = vmatpush1.msra.mxu0 %v10174
        %10204 = vmatprep.subr.mxu0 0.0
        %10205 = vmatpush1.msra.mxu0 %v10173
        %10206 = vmatprep.subr.mxu0 0.0
        %10207 = vmatpush1.msra.mxu0 %v10172
        %10208 = vmatprep.subr.mxu0 0.0
        %10209 = vmatpush1.msra.mxu0 %v10171
        %10210 = vmatprep.subr.mxu0 0.0
        %10211 = vmatpush2.msra.mxu0 0.0
        %10212 = vmatprep.subr.mxu0 0.0
        %10213 = vmatpush2.msra.mxu0 0.0
        %10214 = vmatprep.subr.mxu0 0.0
        %10215 = vmatpush2.msra.mxu0 0.0
        %10216 = vmatprep.subr.mxu0 0.0
        %10217 = vmatpush2.msra.mxu0 0.0
        %10218 = vmatprep.subr.mxu0 0.0
        %10219 = vmatpush2.msra.mxu0 0.0
        %10220 = vmatprep.subr.mxu0 0.0
        %10221 = vmatpush2.msra.mxu0 0.0
        %10222 = vmatprep.subr.mxu0 0.0
        %10223 = vmatpush2.msra.mxu0 0.0
        %10224 = vmatprep.subr.mxu0 0.0
        %10225 = vmatpush2.msra.mxu0 0.0
        %10226 = vmatprep.subr.mxu0 0.0
        %10227 = vmatpush2.msra.mxu0 0.0
        %10228 = vmatprep.subr.mxu0 0.0
        %10229 = vmatpush2.msra.mxu0 0.0
        %10230 = vmatprep.subr.mxu0 0.0
        %10231 = vmatpush2.msra.mxu0 0.0
        %10232 = vmatprep.subr.mxu0 0.0
        %10233 = vmatpush2.msra.mxu0 0.0
        %10234 = vmatprep.subr.mxu0 0.0
        %10235 = vmatpush2.msra.mxu0 0.0
        %10236 = vmatprep.subr.mxu0 0.0
        %10237 = vmatpush2.msra.mxu0 0.0
        %10238 = vmatprep.subr.mxu0 0.0
        %10239 = vmatpush2.msra.mxu0 0.0
        %10240 = vmatprep.subr.mxu0 0.0
        %10241 = vmatpush2.msra.mxu0 0.0
        %10242 = vmatprep.mubr.f32.mxu0 0.0
        %10243 = vmatmul.mubr.f32.gmra.mxu0 %v10176
        %v10244 = vpop.f32.mrf.mxu0
        %v10245 = vadd.f32 0.0, %v10244
        %v10246 = vpop.f32.mrf.mxu0
        %10247 = vdwg.mxu0
        %vm10248 = vcmask 57344
        %10249 = vst.msk [vmem:[%s904] sm:$0x1] %vm10248, %v10245
        %v10250 = vmul.f32 %v10245, 30.0
        %10251 = vst.msk [vmem:[%s898] sm:$0x1] %vm10248, %v10250
        %s10252 = sand.u32 %s678, 1
        %s10253 = scalar_lea.sflag [#allocation5], %s10252
        %s10254 = sand.u32 %s678, 1
        %s10255 = scalar_lea.vmem [#allocation4], %s10254
        %s10256 = sand.u32 %s704, 1
        %s10257 = scalar_lea.sflag [#allocation7], %s10256
        %s10258 = sand.u32 %s704, 1
        %s10259 = scalar_lea.vmem [#allocation6], %s10258
        // Predicated region
        $region133: #{speaker_classifier_forward.1} parent=131 // pred_check
          %p10260 = pneg %p688
        $region134: #{speaker_classifier_forward.1} parent=131 // pred_check_branch
          %10262 = sbr.rel (%p10260) target = $region136
        $region135: #{speaker_classifier_forward.1} parent=131 // pred_region
          %s10264 = ssub.s32 16, 16
          %10265 = vsyncadd %s10253, %s10264
          %s10266 = smul.addr %s77, 16
          %s10267 = scalar_lea.hbm %s57, %s10266
          %s10269 = sshll.u32 %s10255, 4
          %s10270 = int_to_ptr.vmem [resolvable:$true] %s10269
          %10272 = dma.vmem_to_hbm [thread:$0]  %s10270, 16, %s10267, %s10253
        $region136: #{speaker_classifier_forward.1} parent=131 // pred_fallthru
          _
        // Predicated region
        $region137: #{speaker_classifier_forward.1} parent=131 // pred_check
          %p10273 = pneg %p714
        $region138: #{speaker_classifier_forward.1} parent=131 // pred_check_branch
          %10275 = sbr.rel (%p10273) target = $region140
        $region139: #{speaker_classifier_forward.1} parent=131 // pred_region
          %s10277 = ssub.s32 16, 16
          %10278 = vsyncadd %s10257, %s10277
          %s10279 = smul.addr %s77, 16
          %s10280 = scalar_lea.hbm %s59, %s10279
          %s10282 = sshll.u32 %s10259, 4
          %s10283 = int_to_ptr.vmem [resolvable:$true] %s10282
          %10285 = dma.vmem_to_hbm [thread:$0]  %s10283, 16, %s10280, %s10257
        $region140: #{speaker_classifier_forward.1} parent=131 // pred_fallthru
          _
      $region132: #{speaker_classifier_forward.1} parent=5 // pred_fallthru
        _
      %p10286 = scmp.le.s32.totalorder 2, %s72
      // Predicated region
      $region141: #{speaker_classifier_forward.1} parent=5 // pred_check
        %p10287 = pneg %p10286
      $region142: #{speaker_classifier_forward.1} parent=5 // pred_check_branch
        %10289 = sbr.rel (%p10287) target = $region144
      $region143: #{speaker_classifier_forward.1} parent=5 // pred_region
        %s10290 = ssub.s32 %s72, 2
        // Predicated region
        $region145: #{speaker_classifier_forward.1} parent=143 // pred_check
          %p10291 = pneg %p694
        $region146: #{speaker_classifier_forward.1} parent=143 // pred_check_branch
          %10293 = sbr.rel (%p10291) target = $region148
        $region147: #{speaker_classifier_forward.1} parent=143 // pred_region
          %s10294 = sand.u32 %s679, 1
          %s10295 = scalar_lea.sflag [#allocation5], %s10294
          %s10296 = sand.u32 %s679, 1
          %s10297 = scalar_lea.vmem [#allocation4], %s10296
          %10298 = dma.done %s10295, 16
        $region148: #{speaker_classifier_forward.1} parent=143 // pred_fallthru
          _
        // Predicated region
        $region149: #{speaker_classifier_forward.1} parent=143 // pred_check
          %p10299 = pneg %p720
        $region150: #{speaker_classifier_forward.1} parent=143 // pred_check_branch
          %10301 = sbr.rel (%p10299) target = $region152
        $region151: #{speaker_classifier_forward.1} parent=143 // pred_region
          %s10302 = sand.u32 %s705, 1
          %s10303 = scalar_lea.sflag [#allocation7], %s10302
          %s10304 = sand.u32 %s705, 1
          %s10305 = scalar_lea.vmem [#allocation6], %s10304
          %10306 = dma.done %s10303, 16
        $region152: #{speaker_classifier_forward.1} parent=143 // pred_fallthru
          _
      $region144: #{speaker_classifier_forward.1} parent=5 // pred_fallthru
        _
    $region6: #{speaker_classifier_forward.1} parent=1 // loop_footer
      %s76 = sadd.s32 1, %s72
    $region7: #{speaker_classifier_forward.1} parent=1 // loop_footer_branch
      %71 = sbr.rel target = $region3
    $region8: #{speaker_classifier_forward.1} parent=1 // loop_exit
      _
    %10307 = vsyncpa [#allocation5], 1
    %s10308 = scalar_lea.sflag [#allocation5], 1
    %10309 = vsyncpa %s10308, 1
    %10310 = vsyncpa [#allocation7], 1
    %s10311 = scalar_lea.sflag [#allocation7], 1
    %10312 = vsyncpa %s10311, 1

</llo_original>
